<compile_context>
chip_gen: v7x
topology: tpu7x:2x2x1
jax: 0.10.0
libtpu: 0.0.40
codegen_flags: <defaults>
</compile_context>

<pallas_src>
import functools

import jax
import jax.numpy as jnp
from jax.experimental import pallas as pl
from jax.experimental.pallas import tpu as pltpu

EPS = 1e-5

_COMPILER_PARAMS = pltpu.CompilerParams(
    dimension_semantics=("arbitrary",),
    vmem_limit_bytes=32 * 1024 * 1024,
)


def _round_up(n, m):
    return ((n + m - 1) // m) * m


def _full_spec(shape):
    # Whole-array block, grid=(1,).
    return pl.BlockSpec(shape, lambda i: (0,) * len(shape))


# ----------------------------------------------------------------------------
# In-kernel helpers (traced inside the Pallas kernels)
# ----------------------------------------------------------------------------
def _bn_scale_shift(ys, gamma, beta, inv_rows):
    """Training-mode BN scale/shift from the 4 corner-group GEMM results (f32)."""
    s1 = ys[0].sum(0, keepdims=True)
    s2 = (ys[0] * ys[0]).sum(0, keepdims=True)
    for y in ys[1:]:
        s1 = s1 + y.sum(0, keepdims=True)
        s2 = s2 + (y * y).sum(0, keepdims=True)
    mean = s1 * inv_rows
    var = jnp.maximum(s2 * inv_rows - mean * mean, 0.0)  # biased, one-pass
    scale = gamma * jax.lax.rsqrt(var + EPS)
    shift = beta - mean * scale
    return scale, shift


def _bn_relu_pool(ys, scale, shift):
    """max-pool over the 4 corner groups of relu(scale*y+shift), via one select+FMA.

    Exact because relu(a*y+b) is monotone in y for a>=0 and antitone for a<0.
    """
    ymax = jnp.maximum(jnp.maximum(ys[0], ys[1]), jnp.maximum(ys[2], ys[3]))
    ymin = jnp.minimum(jnp.minimum(ys[0], ys[1]), jnp.minimum(ys[2], ys[3]))
    ysel = jnp.where(scale >= 0.0, ymax, ymin)
    return jnp.maximum(scale * ysel + shift, 0.0)


# ----------------------------------------------------------------------------
# Pallas kernels
# ----------------------------------------------------------------------------
def _conv_block_kernel(a00_ref, a01_ref, a10_ref, a11_ref,
                       w_ref, gamma_ref, beta_ref, o_ref, *, inv_rows):
    """Fused im2col-GEMM + training BN + ReLU + 2x2 max-pool (bf16 in, bf16 out)."""
    w = w_ref[...]
    ys = [jnp.dot(a_ref[...], w, preferred_element_type=jnp.float32)
          for a_ref in (a00_ref, a01_ref, a10_ref, a11_ref)]
    scale, shift = _bn_scale_shift(ys, gamma_ref[...], beta_ref[...], inv_rows)
    o_ref[...] = _bn_relu_pool(ys, scale, shift).astype(o_ref.dtype)


def _conv3_fc_kernel(a00_ref, a01_ref, a10_ref, a11_ref,
                     wc_ref, g3_ref, bt3_ref,
                     w1_ref, g4_ref, bt4_ref,
                     w2_ref, b2_ref, w3_ref, b3_ref, w4_ref, b4_ref,
                     o_ref, *, batch, c3_pad, inv_rows):
    """conv3(+bn3+relu+pool) fused with fc1(+bn4)+relu -> fc2+relu -> fc3+relu -> fc4.

    The conv3 corner-group rows are ordered (pool_position, batch), so the
    pooled result is consumed by fc1 as 4 contiguous batch blocks, one per
    pool position, accumulated against the matching 384-row slab of the
    (position, channel)-ordered fc1 weight — no in-kernel reshape needed.
    """
    wc = wc_ref[...]
    ys = [jnp.dot(a_ref[...], wc, preferred_element_type=jnp.float32)
          for a_ref in (a00_ref, a01_ref, a10_ref, a11_ref)]
    scale, shift = _bn_scale_shift(ys, g3_ref[...], bt3_ref[...], inv_rows)
    pooled = _bn_relu_pool(ys, scale, shift)          # (4*batch, c3_pad) f32

    # fc1 (bias cancelled by bn4) as 4 accumulated pool-position GEMMs.
    h = None
    for p in range(4):
        xp = pooled[p * batch:(p + 1) * batch, :].astype(jnp.bfloat16)
        wp = w1_ref[p * c3_pad:(p + 1) * c3_pad, :]
        yp = jnp.dot(xp, wp, preferred_element_type=jnp.float32)
        h = yp if h is None else h + yp               # (batch, 400)

    # bn4: training-mode BatchNorm1d over the batch rows, then ReLU.
    m4 = jnp.mean(h, axis=0, keepdims=True)
    v4 = jnp.maximum(jnp.mean(h * h, axis=0, keepdims=True) - m4 * m4, 0.0)
    h = jnp.maximum(g4_ref[...] * (h - m4) * jax.lax.rsqrt(v4 + EPS)
                    + bt4_ref[...], 0.0)

    h = jnp.maximum(jnp.dot(h.astype(jnp.bfloat16), w2_ref[...],
                            preferred_element_type=jnp.float32) + b2_ref[...], 0.0)
    h = jnp.maximum(jnp.dot(h.astype(jnp.bfloat16), w3_ref[...],
                            preferred_element_type=jnp.float32) + b3_ref[...], 0.0)
    o_ref[...] = (jnp.dot(h.astype(jnp.bfloat16), w4_ref[...],
                          preferred_element_type=jnp.float32)
                  + b4_ref[...]).astype(o_ref.dtype)


# ----------------------------------------------------------------------------
# Pallas wrappers
# ----------------------------------------------------------------------------
def conv_block(x, w2d, gamma, beta, *, kh, kw, k_pad=None):
    """x: (B,H,W,Cin_pad) bf16 -> (B, Ho//2, Wo//2, Cout_pad) bf16. Valid conv."""
    B, H, W, C = x.shape
    Ho, Wo = H - kh + 1, W - kw + 1
    Hp, Wp = Ho // 2, Wo // 2
    M = B * Hp * Wp

    # im2col with (ki, kj, c) column order, split into the 4 pool-window
    # corner groups so the 2x2/stride-2 pool fuses into the GEMM epilogue.
    cols = [x[:, i:i + Ho, j:j + Wo, :] for i in range(kh) for j in range(kw)]
    patches = jnp.concatenate(cols, axis=-1)                  # (B, Ho, Wo, K)
    K = kh * kw * C
    if k_pad is not None and k_pad > K:
        patches = jnp.pad(patches, ((0, 0), (0, 0), (0, 0), (0, k_pad - K)))
        K = k_pad
    assert w2d.shape[0] == K
    groups = [patches[:, dh::2, dw::2, :].reshape(M, K)
              for dh in (0, 1) for dw in (0, 1)]
    n_out = w2d.shape[1]

    kernel = functools.partial(_conv_block_kernel, inv_rows=1.0 / (4.0 * M))
    y = pl.pallas_call(
        kernel,
        out_shape=jax.ShapeDtypeStruct((M, n_out), jnp.bfloat16),
        grid=(1,),
        in_specs=[_full_spec((M, K)) for _ in range(4)]
                 + [_full_spec((K, n_out)),
                    _full_spec((1, n_out)), _full_spec((1, n_out))],
        out_specs=_full_spec((M, n_out)),
        compiler_params=_COMPILER_PARAMS,
    )(*groups, w2d, gamma, beta)
    return y.reshape(B, Hp, Wp, n_out)


def conv3_fc_block(x2, params):
    """Fused conv3 block + full FC chain. x2: (B,6,6,80) bf16 -> (B,128) f32."""
    (wc, g3, bt3, w1p, g4, bt4, w2p, b2, w3p, b3, w4p, b4) = params
    B, H, W, C = x2.shape
    kh = kw = 3
    Ho, Wo = H - kh + 1, W - kw + 1               # 4, 4
    Hp, Wp = Ho // 2, Wo // 2                     # 2, 2
    K = kh * kw * C                               # 720
    c3_pad = wc.shape[1]                          # 384
    M3 = Hp * Wp * B                              # rows per corner group

    cols = [x2[:, i:i + Ho, j:j + Wo, :] for i in range(kh) for j in range(kw)]
    patches = jnp.concatenate(cols, axis=-1)      # (B, 4, 4, K)
    # Corner groups with rows ordered (pool_position, batch): lets fc1 consume
    # contiguous batch blocks per position inside the fused kernel.
    groups = [jnp.transpose(patches[:, dh::2, dw::2, :], (1, 2, 0, 3)).reshape(M3, K)
              for dh in (0, 1) for dw in (0, 1)]

    n_out = w4p.shape[1]
    kernel = functools.partial(_conv3_fc_kernel, batch=B, c3_pad=c3_pad,
                               inv_rows=1.0 / (4.0 * M3))
    args = tuple(groups) + (wc, g3, bt3, w1p, g4, bt4, w2p, b2, w3p, b3, w4p, b4)
    return pl.pallas_call(
        kernel,
        out_shape=jax.ShapeDtypeStruct((B, n_out), jnp.float32),
        grid=(1,),
        in_specs=[_full_spec(a.shape) for a in args],
        out_specs=_full_spec((B, n_out)),
        compiler_params=_COMPILER_PARAMS,
    )(*args)


# ----------------------------------------------------------------------------
# Parameter preparation (padding / reordering / bf16 cast, done once)
# ----------------------------------------------------------------------------
def prepare_params(raw):
    """Pad / reorder PyTorch-shaped params into kernel-ready form.

    Conv output channels are padded only to the next multiple of 8
    (15->16, 75->80, 375->384); the padding is absorbed by zero rows in the
    next layer's im2col weights, and gamma=beta=0 keeps padded activations
    exactly zero.  Biases of layers followed by BatchNorm (conv1-3, fc1) are
    dropped (BN mean subtraction cancels them).  All matmul weights are bf16;
    BN/bias params stay f32.
    """
    prep = {}

    def conv_prep(name, cin_pad, cout_pad, k_pad=None):
        w, _bias, gamma, beta = raw[name]
        cout, cin, kh, kw = w.shape
        w_hwio = jnp.transpose(w, (2, 3, 1, 0))           # (kh, kw, cin, cout)
        w_hwio = jnp.pad(w_hwio, ((0, 0), (0, 0),
                                  (0, cin_pad - cin), (0, cout_pad - cout)))
        w2d = w_hwio.reshape(kh * kw * cin_pad, cout_pad)
        if k_pad is not None and k_pad > w2d.shape[0]:
            w2d = jnp.pad(w2d, ((0, k_pad - w2d.shape[0]), (0, 0)))
        g = jnp.pad(gamma, (0, cout_pad - cout)).reshape(1, cout_pad).astype(jnp.float32)
        b = jnp.pad(beta, (0, cout_pad - cout)).reshape(1, cout_pad).astype(jnp.float32)
        return w2d.astype(jnp.bfloat16), g, b

    prep["conv1"] = conv_prep("conv1", cin_pad=3, cout_pad=16, k_pad=32)   # (32, 16)
    prep["conv2"] = conv_prep("conv2", cin_pad=16, cout_pad=80)            # (256, 80)
    wc3, g3, bt3 = conv_prep("conv3", cin_pad=80, cout_pad=384)            # (720, 384)

    # fc1 (+bn4): reorder W1 rows from PyTorch's (c, h, w) flatten order to
    # (pool_position, c_pad) so the fused kernel's pooled conv3 blocks map
    # directly onto 384-row slabs; output width stays 400 (multiple of 8).
    w1, _b1 = raw["fc1"]                                   # (400, 1500)
    g4, be4 = raw["bn4"]
    c3, c3_pad, hp, wp = 375, 384, 2, 2
    n1 = w1.shape[0]                                       # 400
    w1_chwn = w1.T.reshape(c3, hp, wp, n1)                 # rows c*4 + h*2 + w
    w1_hwcn = jnp.transpose(w1_chwn, (1, 2, 0, 3))         # (h, w, c, n)
    w1p = jnp.pad(w1_hwcn, ((0, 0), (0, 0), (0, c3_pad - c3), (0, 0)))
    w1p = w1p.reshape(hp * wp * c3_pad, n1).astype(jnp.bfloat16)  # (1536, 400)
    bng = g4.reshape(1, n1).astype(jnp.float32)
    bnb = be4.reshape(1, n1).astype(jnp.float32)

    def fc_prep(name, k_pad, n_pad):
        w, b = raw[name]                                   # (nout, nin)
        nout, nin = w.shape
        wpd = jnp.pad(w.T, ((0, k_pad - nin), (0, n_pad - nout))).astype(jnp.bfloat16)
        bpd = jnp.pad(b, (0, n_pad - nout)).reshape(1, n_pad).astype(jnp.float32)
        return wpd, bpd

    w2p, b2 = fc_prep("fc2", 400, 128)                     # (400, 128)
    w3p, b3 = fc_prep("fc3", 128, 128)                     # (128, 128)
    w4p, b4 = fc_prep("fc4", 128, 128)                     # (128, 128)

    prep["cfc"] = (wc3, g3, bt3, w1p, bng, bnb, w2p, b2, w3p, b3, w4p, b4)
    return prep


# ----------------------------------------------------------------------------
# Forward pass
# ----------------------------------------------------------------------------
def forward(prep, x_nchw):
    # NCHW -> NHWC, bf16 operands for the MXU / halved HBM traffic.
    x = jnp.transpose(x_nchw, (0, 2, 3, 1)).astype(jnp.bfloat16)

    w, g, b = prep["conv1"]
    x = conv_block(x, w, g, b, kh=3, kw=3, k_pad=32)   # (B, 15, 15, 16)
    w, g, b = prep["conv2"]
    x = conv_block(x, w, g, b, kh=4, kw=4)             # (B, 6, 6, 80)

    y = conv3_fc_block(x, prep["cfc"])                 # (B, 128) f32
    return y[:, :10]


# ----------------------------------------------------------------------------
# Deterministic synthetic parameters (shapes from ClassificationNetwork.__init__)
# ----------------------------------------------------------------------------
def init_params(key):
    keys = iter(jax.random.split(key, 32))

    def conv_p(cout, cin, k):
        w = 0.05 * jax.random.normal(next(keys), (cout, cin, k, k), jnp.float32)
        b = 0.05 * jax.random.normal(next(keys), (cout,), jnp.float32)
        gamma = 1.0 + 0.1 * jax.random.normal(next(keys), (cout,), jnp.float32)
        beta = 0.1 * jax.random.normal(next(keys), (cout,), jnp.float32)
        return (w, b, gamma, beta)

    def fc_p(nout, nin):
        w = 0.05 * jax.random.normal(next(keys), (nout, nin), jnp.float32)
        b = 0.05 * jax.random.normal(next(keys), (nout,), jnp.float32)
        return (w, b)

    return {
        "conv1": conv_p(15, 3, 3),
        "conv2": conv_p(75, 15, 4),
        "conv3": conv_p(375, 75, 3),
        "fc1": fc_p(400, 1500),
        "bn4": (1.0 + 0.1 * jax.random.normal(next(keys), (400,), jnp.float32),
                0.1 * jax.random.normal(next(keys), (400,), jnp.float32)),
        "fc2": fc_p(120, 400),
        "fc3": fc_p(84, 120),
        "fc4": fc_p(10, 84),
    }


if __name__ == "__main__":
    key = jax.random.PRNGKey(0)
    k_param, k_x = jax.random.split(key)
    params = init_params(k_param)
    prep = prepare_params(params)

    # fc1 fixes the input spatial size to 32x32 (CIFAR-10); batch = 2.
    x = jax.random.normal(k_x, (2, 3, 32, 32), jnp.float32)

    fwd = jax.jit(forward)
    out = jax.block_until_ready(fwd(prep, x))
    assert out.shape == (2, 10) and out.dtype == jnp.float32
    assert bool(jnp.all(jnp.isfinite(out)))
    print("KERNEL_OK")
</pallas_src>

<mosaic_0001>
module attributes {stable_mosaic.version = 11 : i64} {
  func.func @_conv_block_kernel(%arg0: i32, %arg1: memref<450x32xbf16, #tpu.memory_space<vmem>>, %arg2: memref<450x32xbf16, #tpu.memory_space<vmem>>, %arg3: memref<450x32xbf16, #tpu.memory_space<vmem>>, %arg4: memref<450x32xbf16, #tpu.memory_space<vmem>>, %arg5: memref<32x16xbf16, #tpu.memory_space<vmem>>, %arg6: memref<1x16xf32, #tpu.memory_space<vmem>>, %arg7: memref<1x16xf32, #tpu.memory_space<vmem>>, %arg8: memref<450x16xbf16, #tpu.memory_space<vmem>>) attributes {dimension_semantics = [#tpu.dimension_semantics<arbitrary>], iteration_bounds = array<i64: 1>, scalar_prefetch = 0 : i64, scratch_operands = 0 : i64, tpu.core_type = #tpu.core_type<tc>, window_params = [{pipeline_mode = #tpu.pipeline_mode<synchronous>, transform_indices = @transform_0, window_bounds = array<i64: 450, 32>}, {pipeline_mode = #tpu.pipeline_mode<synchronous>, transform_indices = @transform_1, window_bounds = array<i64: 450, 32>}, {pipeline_mode = #tpu.pipeline_mode<synchronous>, transform_indices = @transform_2, window_bounds = array<i64: 450, 32>}, {pipeline_mode = #tpu.pipeline_mode<synchronous>, transform_indices = @transform_3, window_bounds = array<i64: 450, 32>}, {pipeline_mode = #tpu.pipeline_mode<synchronous>, transform_indices = @transform_4, window_bounds = array<i64: 32, 16>}, {pipeline_mode = #tpu.pipeline_mode<synchronous>, transform_indices = @transform_5, window_bounds = array<i64: 1, 16>}, {pipeline_mode = #tpu.pipeline_mode<synchronous>, transform_indices = @transform_6, window_bounds = array<i64: 1, 16>}, {pipeline_mode = #tpu.pipeline_mode<synchronous>, transform_indices = @transform_7, window_bounds = array<i64: 450, 16>}]} {
    %c0 = arith.constant 0 : index
    %c0_0 = arith.constant 0 : index
    %0 = vector.load %arg5[%c0, %c0_0] : memref<32x16xbf16, #tpu.memory_space<vmem>>, vector<32x16xbf16>
    %c0_1 = arith.constant 0 : index
    %c0_2 = arith.constant 0 : index
    %1 = vector.load %arg1[%c0_1, %c0_2] : memref<450x32xbf16, #tpu.memory_space<vmem>>, vector<450x32xbf16>
    %cst = arith.constant dense<0.000000e+00> : vector<450x16xf32>
    %2 = tpu.matmul %1, %0, %cst {dimension_numbers = #tpu.dot_dimension_numbers<[1], [0], [0], [1], [0, 0, 1, 1], [], []>} : vector<450x32xbf16>, vector<32x16xbf16>, vector<450x16xf32> -> vector<450x16xf32>
    %c0_3 = arith.constant 0 : index
    %c0_4 = arith.constant 0 : index
    %3 = vector.load %arg2[%c0_3, %c0_4] : memref<450x32xbf16, #tpu.memory_space<vmem>>, vector<450x32xbf16>
    %cst_5 = arith.constant dense<0.000000e+00> : vector<450x16xf32>
    %4 = tpu.matmul %3, %0, %cst_5 {dimension_numbers = #tpu.dot_dimension_numbers<[1], [0], [0], [1], [0, 0, 1, 1], [], []>} : vector<450x32xbf16>, vector<32x16xbf16>, vector<450x16xf32> -> vector<450x16xf32>
    %c0_6 = arith.constant 0 : index
    %c0_7 = arith.constant 0 : index
    %5 = vector.load %arg3[%c0_6, %c0_7] : memref<450x32xbf16, #tpu.memory_space<vmem>>, vector<450x32xbf16>
    %cst_8 = arith.constant dense<0.000000e+00> : vector<450x16xf32>
    %6 = tpu.matmul %5, %0, %cst_8 {dimension_numbers = #tpu.dot_dimension_numbers<[1], [0], [0], [1], [0, 0, 1, 1], [], []>} : vector<450x32xbf16>, vector<32x16xbf16>, vector<450x16xf32> -> vector<450x16xf32>
    %c0_9 = arith.constant 0 : index
    %c0_10 = arith.constant 0 : index
    %7 = vector.load %arg4[%c0_9, %c0_10] : memref<450x32xbf16, #tpu.memory_space<vmem>>, vector<450x32xbf16>
    %cst_11 = arith.constant dense<0.000000e+00> : vector<450x16xf32>
    %8 = tpu.matmul %7, %0, %cst_11 {dimension_numbers = #tpu.dot_dimension_numbers<[1], [0], [0], [1], [0, 0, 1, 1], [], []>} : vector<450x32xbf16>, vector<32x16xbf16>, vector<450x16xf32> -> vector<450x16xf32>
    %c0_12 = arith.constant 0 : index
    %c0_13 = arith.constant 0 : index
    %9 = vector.load %arg6[%c0_12, %c0_13] : memref<1x16xf32, #tpu.memory_space<vmem>>, vector<1x16xf32>
    %c0_14 = arith.constant 0 : index
    %c0_15 = arith.constant 0 : index
    %10 = vector.load %arg7[%c0_14, %c0_15] : memref<1x16xf32, #tpu.memory_space<vmem>>, vector<1x16xf32>
    %cst_16 = arith.constant dense<0.000000e+00> : vector<16xf32>
    %11 = vector.multi_reduction <add>, %2, %cst_16 [0] : vector<450x16xf32> to vector<16xf32>
    %12 = vector.shape_cast %11 : vector<16xf32> to vector<1x16xf32>
    %13 = arith.mulf %2, %2 : vector<450x16xf32>
    %cst_17 = arith.constant dense<0.000000e+00> : vector<16xf32>
    %14 = vector.multi_reduction <add>, %13, %cst_17 [0] : vector<450x16xf32> to vector<16xf32>
    %15 = vector.shape_cast %14 : vector<16xf32> to vector<1x16xf32>
    %cst_18 = arith.constant dense<0.000000e+00> : vector<16xf32>
    %16 = vector.multi_reduction <add>, %4, %cst_18 [0] : vector<450x16xf32> to vector<16xf32>
    %17 = vector.shape_cast %16 : vector<16xf32> to vector<1x16xf32>
    %18 = arith.addf %12, %17 : vector<1x16xf32>
    %19 = arith.mulf %4, %4 : vector<450x16xf32>
    %cst_19 = arith.constant dense<0.000000e+00> : vector<16xf32>
    %20 = vector.multi_reduction <add>, %19, %cst_19 [0] : vector<450x16xf32> to vector<16xf32>
    %21 = vector.shape_cast %20 : vector<16xf32> to vector<1x16xf32>
    %22 = arith.addf %15, %21 : vector<1x16xf32>
    %cst_20 = arith.constant dense<0.000000e+00> : vector<16xf32>
    %23 = vector.multi_reduction <add>, %6, %cst_20 [0] : vector<450x16xf32> to vector<16xf32>
    %24 = vector.shape_cast %23 : vector<16xf32> to vector<1x16xf32>
    %25 = arith.addf %18, %24 : vector<1x16xf32>
    %26 = arith.mulf %6, %6 : vector<450x16xf32>
    %cst_21 = arith.constant dense<0.000000e+00> : vector<16xf32>
    %27 = vector.multi_reduction <add>, %26, %cst_21 [0] : vector<450x16xf32> to vector<16xf32>
    %28 = vector.shape_cast %27 : vector<16xf32> to vector<1x16xf32>
    %29 = arith.addf %22, %28 : vector<1x16xf32>
    %cst_22 = arith.constant dense<0.000000e+00> : vector<16xf32>
    %30 = vector.multi_reduction <add>, %8, %cst_22 [0] : vector<450x16xf32> to vector<16xf32>
    %31 = vector.shape_cast %30 : vector<16xf32> to vector<1x16xf32>
    %32 = arith.addf %25, %31 : vector<1x16xf32>
    %33 = arith.mulf %8, %8 : vector<450x16xf32>
    %cst_23 = arith.constant dense<0.000000e+00> : vector<16xf32>
    %34 = vector.multi_reduction <add>, %33, %cst_23 [0] : vector<450x16xf32> to vector<16xf32>
    %35 = vector.shape_cast %34 : vector<16xf32> to vector<1x16xf32>
    %36 = arith.addf %29, %35 : vector<1x16xf32>
    %cst_24 = arith.constant 5.55555569E-4 : f32
    %37 = vector.broadcast %cst_24 : f32 to vector<1x16xf32>
    %38 = arith.mulf %32, %37 : vector<1x16xf32>
    %cst_25 = arith.constant 5.55555569E-4 : f32
    %39 = vector.broadcast %cst_25 : f32 to vector<1x16xf32>
    %40 = arith.mulf %36, %39 : vector<1x16xf32>
    %41 = arith.mulf %38, %38 : vector<1x16xf32>
    %42 = arith.subf %40, %41 : vector<1x16xf32>
    %cst_26 = arith.constant 0.000000e+00 : f32
    %43 = vector.broadcast %cst_26 : f32 to vector<1x16xf32>
    %44 = arith.maximumf %42, %43 : vector<1x16xf32>
    %cst_27 = arith.constant 9.99999974E-6 : f32
    %45 = vector.broadcast %cst_27 : f32 to vector<1x16xf32>
    %46 = arith.addf %44, %45 : vector<1x16xf32>
    %47 = math.rsqrt %46 : vector<1x16xf32>
    %48 = arith.mulf %9, %47 : vector<1x16xf32>
    %49 = arith.mulf %38, %48 : vector<1x16xf32>
    %50 = arith.subf %10, %49 : vector<1x16xf32>
    %51 = arith.maximumf %2, %4 : vector<450x16xf32>
    %52 = arith.maximumf %6, %8 : vector<450x16xf32>
    %53 = arith.maximumf %51, %52 : vector<450x16xf32>
    %54 = arith.minimumf %2, %4 : vector<450x16xf32>
    %55 = arith.minimumf %6, %8 : vector<450x16xf32>
    %56 = arith.minimumf %54, %55 : vector<450x16xf32>
    %cst_28 = arith.constant 0.000000e+00 : f32
    %57 = vector.broadcast %cst_28 : f32 to vector<1x16xf32>
    %58 = arith.cmpf oge, %48, %57 : vector<1x16xf32>
    %59 = vector.shape_cast %58 : vector<1x16xi1> to vector<1x16xi1>
    %60 = vector.broadcast %59 : vector<1x16xi1> to vector<450x16xi1>
    %61 = arith.select %60, %53, %56 : vector<450x16xi1>, vector<450x16xf32>
    %62 = vector.broadcast %48 : vector<1x16xf32> to vector<450x16xf32>
    %63 = arith.mulf %62, %61 : vector<450x16xf32>
    %64 = vector.broadcast %50 : vector<1x16xf32> to vector<450x16xf32>
    %65 = arith.addf %63, %64 : vector<450x16xf32>
    %cst_29 = arith.constant 0.000000e+00 : f32
    %66 = vector.broadcast %cst_29 : f32 to vector<450x16xf32>
    %67 = arith.maximumf %65, %66 : vector<450x16xf32>
    %68 = arith.truncf %67 : vector<450x16xf32> to vector<450x16xbf16>
    %c0_30 = arith.constant 0 : index
    %c0_31 = arith.constant 0 : index
    %69 = vector.load %arg8[%c0_30, %c0_31] : memref<450x16xbf16, #tpu.memory_space<vmem>>, vector<450x16xbf16>
    tpu.vector_store %arg8[%c0_30, %c0_31], %68 {strides = array<i32>} : memref<450x16xbf16, #tpu.memory_space<vmem>>, vector<450x16xbf16>,
    return
  }
  func.func @transform_0(%arg0: i32) -> (i32, i32) {
    %c0_i32 = arith.constant 0 : i32
    %c0_i32_0 = arith.constant 0 : i32
    %c0_i32_1 = arith.constant 0 : i32
    return %c0_i32, %c0_i32_0 : i32, i32
  }
  func.func @transform_1(%arg0: i32) -> (i32, i32) {
    %c0_i32 = arith.constant 0 : i32
    %c0_i32_0 = arith.constant 0 : i32
    %c0_i32_1 = arith.constant 0 : i32
    return %c0_i32, %c0_i32_0 : i32, i32
  }
  func.func @transform_2(%arg0: i32) -> (i32, i32) {
    %c0_i32 = arith.constant 0 : i32
    %c0_i32_0 = arith.constant 0 : i32
    %c0_i32_1 = arith.constant 0 : i32
    return %c0_i32, %c0_i32_0 : i32, i32
  }
  func.func @transform_3(%arg0: i32) -> (i32, i32) {
    %c0_i32 = arith.constant 0 : i32
    %c0_i32_0 = arith.constant 0 : i32
    %c0_i32_1 = arith.constant 0 : i32
    return %c0_i32, %c0_i32_0 : i32, i32
  }
  func.func @transform_4(%arg0: i32) -> (i32, i32) {
    %c0_i32 = arith.constant 0 : i32
    %c0_i32_0 = arith.constant 0 : i32
    %c0_i32_1 = arith.constant 0 : i32
    return %c0_i32, %c0_i32_0 : i32, i32
  }
  func.func @transform_5(%arg0: i32) -> (i32, i32) {
    %c0_i32 = arith.constant 0 : i32
    %c0_i32_0 = arith.constant 0 : i32
    %c0_i32_1 = arith.constant 0 : i32
    return %c0_i32, %c0_i32_0 : i32, i32
  }
  func.func @transform_6(%arg0: i32) -> (i32, i32) {
    %c0_i32 = arith.constant 0 : i32
    %c0_i32_0 = arith.constant 0 : i32
    %c0_i32_1 = arith.constant 0 : i32
    return %c0_i32, %c0_i32_0 : i32, i32
  }
  func.func @transform_7(%arg0: i32) -> (i32, i32) {
    %c0_i32 = arith.constant 0 : i32
    %c0_i32_0 = arith.constant 0 : i32
    %c0_i32_1 = arith.constant 0 : i32
    return %c0_i32, %c0_i32_0 : i32, i32
  }
}

module attributes {stable_mosaic.version = 11 : i64} {
  func.func @_conv_block_kernel(%arg0: i32, %arg1: memref<72x256xbf16, #tpu.memory_space<vmem>>, %arg2: memref<72x256xbf16, #tpu.memory_space<vmem>>, %arg3: memref<72x256xbf16, #tpu.memory_space<vmem>>, %arg4: memref<72x256xbf16, #tpu.memory_space<vmem>>, %arg5: memref<256x80xbf16, #tpu.memory_space<vmem>>, %arg6: memref<1x80xf32, #tpu.memory_space<vmem>>, %arg7: memref<1x80xf32, #tpu.memory_space<vmem>>, %arg8: memref<72x80xbf16, #tpu.memory_space<vmem>>) attributes {dimension_semantics = [#tpu.dimension_semantics<arbitrary>], iteration_bounds = array<i64: 1>, scalar_prefetch = 0 : i64, scratch_operands = 0 : i64, tpu.core_type = #tpu.core_type<tc>, window_params = [{pipeline_mode = #tpu.pipeline_mode<synchronous>, transform_indices = @transform_0, window_bounds = array<i64: 72, 256>}, {pipeline_mode = #tpu.pipeline_mode<synchronous>, transform_indices = @transform_1, window_bounds = array<i64: 72, 256>}, {pipeline_mode = #tpu.pipeline_mode<synchronous>, transform_indices = @transform_2, window_bounds = array<i64: 72, 256>}, {pipeline_mode = #tpu.pipeline_mode<synchronous>, transform_indices = @transform_3, window_bounds = array<i64: 72, 256>}, {pipeline_mode = #tpu.pipeline_mode<synchronous>, transform_indices = @transform_4, window_bounds = array<i64: 256, 80>}, {pipeline_mode = #tpu.pipeline_mode<synchronous>, transform_indices = @transform_5, window_bounds = array<i64: 1, 80>}, {pipeline_mode = #tpu.pipeline_mode<synchronous>, transform_indices = @transform_6, window_bounds = array<i64: 1, 80>}, {pipeline_mode = #tpu.pipeline_mode<synchronous>, transform_indices = @transform_7, window_bounds = array<i64: 72, 80>}]} {
    %c0 = arith.constant 0 : index
    %c0_0 = arith.constant 0 : index
    %0 = vector.load %arg5[%c0, %c0_0] : memref<256x80xbf16, #tpu.memory_space<vmem>>, vector<256x80xbf16>
    %c0_1 = arith.constant 0 : index
    %c0_2 = arith.constant 0 : index
    %1 = vector.load %arg1[%c0_1, %c0_2] : memref<72x256xbf16, #tpu.memory_space<vmem>>, vector<72x256xbf16>
    %cst = arith.constant dense<0.000000e+00> : vector<72x80xf32>
    %2 = tpu.matmul %1, %0, %cst {dimension_numbers = #tpu.dot_dimension_numbers<[1], [0], [0], [1], [0, 0, 1, 1], [], []>} : vector<72x256xbf16>, vector<256x80xbf16>, vector<72x80xf32> -> vector<72x80xf32>
    %c0_3 = arith.constant 0 : index
    %c0_4 = arith.constant 0 : index
    %3 = vector.load %arg2[%c0_3, %c0_4] : memref<72x256xbf16, #tpu.memory_space<vmem>>, vector<72x256xbf16>
    %cst_5 = arith.constant dense<0.000000e+00> : vector<72x80xf32>
    %4 = tpu.matmul %3, %0, %cst_5 {dimension_numbers = #tpu.dot_dimension_numbers<[1], [0], [0], [1], [0, 0, 1, 1], [], []>} : vector<72x256xbf16>, vector<256x80xbf16>, vector<72x80xf32> -> vector<72x80xf32>
    %c0_6 = arith.constant 0 : index
    %c0_7 = arith.constant 0 : index
    %5 = vector.load %arg3[%c0_6, %c0_7] : memref<72x256xbf16, #tpu.memory_space<vmem>>, vector<72x256xbf16>
    %cst_8 = arith.constant dense<0.000000e+00> : vector<72x80xf32>
    %6 = tpu.matmul %5, %0, %cst_8 {dimension_numbers = #tpu.dot_dimension_numbers<[1], [0], [0], [1], [0, 0, 1, 1], [], []>} : vector<72x256xbf16>, vector<256x80xbf16>, vector<72x80xf32> -> vector<72x80xf32>
    %c0_9 = arith.constant 0 : index
    %c0_10 = arith.constant 0 : index
    %7 = vector.load %arg4[%c0_9, %c0_10] : memref<72x256xbf16, #tpu.memory_space<vmem>>, vector<72x256xbf16>
    %cst_11 = arith.constant dense<0.000000e+00> : vector<72x80xf32>
    %8 = tpu.matmul %7, %0, %cst_11 {dimension_numbers = #tpu.dot_dimension_numbers<[1], [0], [0], [1], [0, 0, 1, 1], [], []>} : vector<72x256xbf16>, vector<256x80xbf16>, vector<72x80xf32> -> vector<72x80xf32>
    %c0_12 = arith.constant 0 : index
    %c0_13 = arith.constant 0 : index
    %9 = vector.load %arg6[%c0_12, %c0_13] : memref<1x80xf32, #tpu.memory_space<vmem>>, vector<1x80xf32>
    %c0_14 = arith.constant 0 : index
    %c0_15 = arith.constant 0 : index
    %10 = vector.load %arg7[%c0_14, %c0_15] : memref<1x80xf32, #tpu.memory_space<vmem>>, vector<1x80xf32>
    %cst_16 = arith.constant dense<0.000000e+00> : vector<80xf32>
    %11 = vector.multi_reduction <add>, %2, %cst_16 [0] : vector<72x80xf32> to vector<80xf32>
    %12 = vector.shape_cast %11 : vector<80xf32> to vector<1x80xf32>
    %13 = arith.mulf %2, %2 : vector<72x80xf32>
    %cst_17 = arith.constant dense<0.000000e+00> : vector<80xf32>
    %14 = vector.multi_reduction <add>, %13, %cst_17 [0] : vector<72x80xf32> to vector<80xf32>
    %15 = vector.shape_cast %14 : vector<80xf32> to vector<1x80xf32>
    %cst_18 = arith.constant dense<0.000000e+00> : vector<80xf32>
    %16 = vector.multi_reduction <add>, %4, %cst_18 [0] : vector<72x80xf32> to vector<80xf32>
    %17 = vector.shape_cast %16 : vector<80xf32> to vector<1x80xf32>
    %18 = arith.addf %12, %17 : vector<1x80xf32>
    %19 = arith.mulf %4, %4 : vector<72x80xf32>
    %cst_19 = arith.constant dense<0.000000e+00> : vector<80xf32>
    %20 = vector.multi_reduction <add>, %19, %cst_19 [0] : vector<72x80xf32> to vector<80xf32>
    %21 = vector.shape_cast %20 : vector<80xf32> to vector<1x80xf32>
    %22 = arith.addf %15, %21 : vector<1x80xf32>
    %cst_20 = arith.constant dense<0.000000e+00> : vector<80xf32>
    %23 = vector.multi_reduction <add>, %6, %cst_20 [0] : vector<72x80xf32> to vector<80xf32>
    %24 = vector.shape_cast %23 : vector<80xf32> to vector<1x80xf32>
    %25 = arith.addf %18, %24 : vector<1x80xf32>
    %26 = arith.mulf %6, %6 : vector<72x80xf32>
    %cst_21 = arith.constant dense<0.000000e+00> : vector<80xf32>
    %27 = vector.multi_reduction <add>, %26, %cst_21 [0] : vector<72x80xf32> to vector<80xf32>
    %28 = vector.shape_cast %27 : vector<80xf32> to vector<1x80xf32>
    %29 = arith.addf %22, %28 : vector<1x80xf32>
    %cst_22 = arith.constant dense<0.000000e+00> : vector<80xf32>
    %30 = vector.multi_reduction <add>, %8, %cst_22 [0] : vector<72x80xf32> to vector<80xf32>
    %31 = vector.shape_cast %30 : vector<80xf32> to vector<1x80xf32>
    %32 = arith.addf %25, %31 : vector<1x80xf32>
    %33 = arith.mulf %8, %8 : vector<72x80xf32>
    %cst_23 = arith.constant dense<0.000000e+00> : vector<80xf32>
    %34 = vector.multi_reduction <add>, %33, %cst_23 [0] : vector<72x80xf32> to vector<80xf32>
    %35 = vector.shape_cast %34 : vector<80xf32> to vector<1x80xf32>
    %36 = arith.addf %29, %35 : vector<1x80xf32>
    %cst_24 = arith.constant 0.00347222225 : f32
    %37 = vector.broadcast %cst_24 : f32 to vector<1x80xf32>
    %38 = arith.mulf %32, %37 : vector<1x80xf32>
    %cst_25 = arith.constant 0.00347222225 : f32
    %39 = vector.broadcast %cst_25 : f32 to vector<1x80xf32>
    %40 = arith.mulf %36, %39 : vector<1x80xf32>
    %41 = arith.mulf %38, %38 : vector<1x80xf32>
    %42 = arith.subf %40, %41 : vector<1x80xf32>
    %cst_26 = arith.constant 0.000000e+00 : f32
    %43 = vector.broadcast %cst_26 : f32 to vector<1x80xf32>
    %44 = arith.maximumf %42, %43 : vector<1x80xf32>
    %cst_27 = arith.constant 9.99999974E-6 : f32
    %45 = vector.broadcast %cst_27 : f32 to vector<1x80xf32>
    %46 = arith.addf %44, %45 : vector<1x80xf32>
    %47 = math.rsqrt %46 : vector<1x80xf32>
    %48 = arith.mulf %9, %47 : vector<1x80xf32>
    %49 = arith.mulf %38, %48 : vector<1x80xf32>
    %50 = arith.subf %10, %49 : vector<1x80xf32>
    %51 = arith.maximumf %2, %4 : vector<72x80xf32>
    %52 = arith.maximumf %6, %8 : vector<72x80xf32>
    %53 = arith.maximumf %51, %52 : vector<72x80xf32>
    %54 = arith.minimumf %2, %4 : vector<72x80xf32>
    %55 = arith.minimumf %6, %8 : vector<72x80xf32>
    %56 = arith.minimumf %54, %55 : vector<72x80xf32>
    %cst_28 = arith.constant 0.000000e+00 : f32
    %57 = vector.broadcast %cst_28 : f32 to vector<1x80xf32>
    %58 = arith.cmpf oge, %48, %57 : vector<1x80xf32>
    %59 = vector.shape_cast %58 : vector<1x80xi1> to vector<1x80xi1>
    %60 = vector.broadcast %59 : vector<1x80xi1> to vector<72x80xi1>
    %61 = arith.select %60, %53, %56 : vector<72x80xi1>, vector<72x80xf32>
    %62 = vector.broadcast %48 : vector<1x80xf32> to vector<72x80xf32>
    %63 = arith.mulf %62, %61 : vector<72x80xf32>
    %64 = vector.broadcast %50 : vector<1x80xf32> to vector<72x80xf32>
    %65 = arith.addf %63, %64 : vector<72x80xf32>
    %cst_29 = arith.constant 0.000000e+00 : f32
    %66 = vector.broadcast %cst_29 : f32 to vector<72x80xf32>
    %67 = arith.maximumf %65, %66 : vector<72x80xf32>
    %68 = arith.truncf %67 : vector<72x80xf32> to vector<72x80xbf16>
    %c0_30 = arith.constant 0 : index
    %c0_31 = arith.constant 0 : index
    %69 = vector.load %arg8[%c0_30, %c0_31] : memref<72x80xbf16, #tpu.memory_space<vmem>>, vector<72x80xbf16>
    tpu.vector_store %arg8[%c0_30, %c0_31], %68 {strides = array<i32>} : memref<72x80xbf16, #tpu.memory_space<vmem>>, vector<72x80xbf16>,
    return
  }
  func.func @transform_0(%arg0: i32) -> (i32, i32) {
    %c0_i32 = arith.constant 0 : i32
    %c0_i32_0 = arith.constant 0 : i32
    %c0_i32_1 = arith.constant 0 : i32
    return %c0_i32, %c0_i32_0 : i32, i32
  }
  func.func @transform_1(%arg0: i32) -> (i32, i32) {
    %c0_i32 = arith.constant 0 : i32
    %c0_i32_0 = arith.constant 0 : i32
    %c0_i32_1 = arith.constant 0 : i32
    return %c0_i32, %c0_i32_0 : i32, i32
  }
  func.func @transform_2(%arg0: i32) -> (i32, i32) {
    %c0_i32 = arith.constant 0 : i32
    %c0_i32_0 = arith.constant 0 : i32
    %c0_i32_1 = arith.constant 0 : i32
    return %c0_i32, %c0_i32_0 : i32, i32
  }
  func.func @transform_3(%arg0: i32) -> (i32, i32) {
    %c0_i32 = arith.constant 0 : i32
    %c0_i32_0 = arith.constant 0 : i32
    %c0_i32_1 = arith.constant 0 : i32
    return %c0_i32, %c0_i32_0 : i32, i32
  }
  func.func @transform_4(%arg0: i32) -> (i32, i32) {
    %c0_i32 = arith.constant 0 : i32
    %c0_i32_0 = arith.constant 0 : i32
    %c0_i32_1 = arith.constant 0 : i32
    return %c0_i32, %c0_i32_0 : i32, i32
  }
  func.func @transform_5(%arg0: i32) -> (i32, i32) {
    %c0_i32 = arith.constant 0 : i32
    %c0_i32_0 = arith.constant 0 : i32
    %c0_i32_1 = arith.constant 0 : i32
    return %c0_i32, %c0_i32_0 : i32, i32
  }
  func.func @transform_6(%arg0: i32) -> (i32, i32) {
    %c0_i32 = arith.constant 0 : i32
    %c0_i32_0 = arith.constant 0 : i32
    %c0_i32_1 = arith.constant 0 : i32
    return %c0_i32, %c0_i32_0 : i32, i32
  }
  func.func @transform_7(%arg0: i32) -> (i32, i32) {
    %c0_i32 = arith.constant 0 : i32
    %c0_i32_0 = arith.constant 0 : i32
    %c0_i32_1 = arith.constant 0 : i32
    return %c0_i32, %c0_i32_0 : i32, i32
  }
}

module attributes {stable_mosaic.version = 11 : i64} {
  func.func @_conv3_fc_kernel(%arg0: i32, %arg1: memref<8x720xbf16, #tpu.memory_space<vmem>>, %arg2: memref<8x720xbf16, #tpu.memory_space<vmem>>, %arg3: memref<8x720xbf16, #tpu.memory_space<vmem>>, %arg4: memref<8x720xbf16, #tpu.memory_space<vmem>>, %arg5: memref<720x384xbf16, #tpu.memory_space<vmem>>, %arg6: memref<1x384xf32, #tpu.memory_space<vmem>>, %arg7: memref<1x384xf32, #tpu.memory_space<vmem>>, %arg8: memref<1536x400xbf16, #tpu.memory_space<vmem>>, %arg9: memref<1x400xf32, #tpu.memory_space<vmem>>, %arg10: memref<1x400xf32, #tpu.memory_space<vmem>>, %arg11: memref<400x128xbf16, #tpu.memory_space<vmem>>, %arg12: memref<1x128xf32, #tpu.memory_space<vmem>>, %arg13: memref<128x128xbf16, #tpu.memory_space<vmem>>, %arg14: memref<1x128xf32, #tpu.memory_space<vmem>>, %arg15: memref<128x128xbf16, #tpu.memory_space<vmem>>, %arg16: memref<1x128xf32, #tpu.memory_space<vmem>>, %arg17: memref<2x128xf32, #tpu.memory_space<vmem>>) attributes {dimension_semantics = [#tpu.dimension_semantics<arbitrary>], iteration_bounds = array<i64: 1>, scalar_prefetch = 0 : i64, scratch_operands = 0 : i64, tpu.core_type = #tpu.core_type<tc>, window_params = [{pipeline_mode = #tpu.pipeline_mode<synchronous>, transform_indices = @transform_0, window_bounds = array<i64: 8, 720>}, {pipeline_mode = #tpu.pipeline_mode<synchronous>, transform_indices = @transform_1, window_bounds = array<i64: 8, 720>}, {pipeline_mode = #tpu.pipeline_mode<synchronous>, transform_indices = @transform_2, window_bounds = array<i64: 8, 720>}, {pipeline_mode = #tpu.pipeline_mode<synchronous>, transform_indices = @transform_3, window_bounds = array<i64: 8, 720>}, {pipeline_mode = #tpu.pipeline_mode<synchronous>, transform_indices = @transform_4, window_bounds = array<i64: 720, 384>}, {pipeline_mode = #tpu.pipeline_mode<synchronous>, transform_indices = @transform_5, window_bounds = array<i64: 1, 384>}, {pipeline_mode = #tpu.pipeline_mode<synchronous>, transform_indices = @transform_6, window_bounds = array<i64: 1, 384>}, {pipeline_mode = #tpu.pipeline_mode<synchronous>, transform_indices = @transform_7, window_bounds = array<i64: 1536, 400>}, {pipeline_mode = #tpu.pipeline_mode<synchronous>, transform_indices = @transform_8, window_bounds = array<i64: 1, 400>}, {pipeline_mode = #tpu.pipeline_mode<synchronous>, transform_indices = @transform_9, window_bounds = array<i64: 1, 400>}, {pipeline_mode = #tpu.pipeline_mode<synchronous>, transform_indices = @transform_10, window_bounds = array<i64: 400, 128>}, {pipeline_mode = #tpu.pipeline_mode<synchronous>, transform_indices = @transform_11, window_bounds = array<i64: 1, 128>}, {pipeline_mode = #tpu.pipeline_mode<synchronous>, transform_indices = @transform_12, window_bounds = array<i64: 128, 128>}, {pipeline_mode = #tpu.pipeline_mode<synchronous>, transform_indices = @transform_13, window_bounds = array<i64: 1, 128>}, {pipeline_mode = #tpu.pipeline_mode<synchronous>, transform_indices = @transform_14, window_bounds = array<i64: 128, 128>}, {pipeline_mode = #tpu.pipeline_mode<synchronous>, transform_indices = @transform_15, window_bounds = array<i64: 1, 128>}, {pipeline_mode = #tpu.pipeline_mode<synchronous>, transform_indices = @transform_16, window_bounds = array<i64: 2, 128>}]} {
    %c0 = arith.constant 0 : index
    %c0_0 = arith.constant 0 : index
    %0 = vector.load %arg5[%c0, %c0_0] : memref<720x384xbf16, #tpu.memory_space<vmem>>, vector<720x384xbf16>
    %c0_1 = arith.constant 0 : index
    %c0_2 = arith.constant 0 : index
    %1 = vector.load %arg1[%c0_1, %c0_2] : memref<8x720xbf16, #tpu.memory_space<vmem>>, vector<8x720xbf16>
    %cst = arith.constant dense<0.000000e+00> : vector<8x384xf32>
    %2 = tpu.matmul %1, %0, %cst {dimension_numbers = #tpu.dot_dimension_numbers<[1], [0], [0], [1], [0, 0, 1, 1], [], []>} : vector<8x720xbf16>, vector<720x384xbf16>, vector<8x384xf32> -> vector<8x384xf32>
    %c0_3 = arith.constant 0 : index
    %c0_4 = arith.constant 0 : index
    %3 = vector.load %arg2[%c0_3, %c0_4] : memref<8x720xbf16, #tpu.memory_space<vmem>>, vector<8x720xbf16>
    %cst_5 = arith.constant dense<0.000000e+00> : vector<8x384xf32>
    %4 = tpu.matmul %3, %0, %cst_5 {dimension_numbers = #tpu.dot_dimension_numbers<[1], [0], [0], [1], [0, 0, 1, 1], [], []>} : vector<8x720xbf16>, vector<720x384xbf16>, vector<8x384xf32> -> vector<8x384xf32>
    %c0_6 = arith.constant 0 : index
    %c0_7 = arith.constant 0 : index
    %5 = vector.load %arg3[%c0_6, %c0_7] : memref<8x720xbf16, #tpu.memory_space<vmem>>, vector<8x720xbf16>
    %cst_8 = arith.constant dense<0.000000e+00> : vector<8x384xf32>
    %6 = tpu.matmul %5, %0, %cst_8 {dimension_numbers = #tpu.dot_dimension_numbers<[1], [0], [0], [1], [0, 0, 1, 1], [], []>} : vector<8x720xbf16>, vector<720x384xbf16>, vector<8x384xf32> -> vector<8x384xf32>
    %c0_9 = arith.constant 0 : index
    %c0_10 = arith.constant 0 : index
    %7 = vector.load %arg4[%c0_9, %c0_10] : memref<8x720xbf16, #tpu.memory_space<vmem>>, vector<8x720xbf16>
    %cst_11 = arith.constant dense<0.000000e+00> : vector<8x384xf32>
    %8 = tpu.matmul %7, %0, %cst_11 {dimension_numbers = #tpu.dot_dimension_numbers<[1], [0], [0], [1], [0, 0, 1, 1], [], []>} : vector<8x720xbf16>, vector<720x384xbf16>, vector<8x384xf32> -> vector<8x384xf32>
    %c0_12 = arith.constant 0 : index
    %c0_13 = arith.constant 0 : index
    %9 = vector.load %arg6[%c0_12, %c0_13] : memref<1x384xf32, #tpu.memory_space<vmem>>, vector<1x384xf32>
    %c0_14 = arith.constant 0 : index
    %c0_15 = arith.constant 0 : index
    %10 = vector.load %arg7[%c0_14, %c0_15] : memref<1x384xf32, #tpu.memory_space<vmem>>, vector<1x384xf32>
    %cst_16 = arith.constant dense<0.000000e+00> : vector<384xf32>
    %11 = vector.multi_reduction <add>, %2, %cst_16 [0] : vector<8x384xf32> to vector<384xf32>
    %12 = vector.shape_cast %11 : vector<384xf32> to vector<1x384xf32>
    %13 = arith.mulf %2, %2 : vector<8x384xf32>
    %cst_17 = arith.constant dense<0.000000e+00> : vector<384xf32>
    %14 = vector.multi_reduction <add>, %13, %cst_17 [0] : vector<8x384xf32> to vector<384xf32>
    %15 = vector.shape_cast %14 : vector<384xf32> to vector<1x384xf32>
    %cst_18 = arith.constant dense<0.000000e+00> : vector<384xf32>
    %16 = vector.multi_reduction <add>, %4, %cst_18 [0] : vector<8x384xf32> to vector<384xf32>
    %17 = vector.shape_cast %16 : vector<384xf32> to vector<1x384xf32>
    %18 = arith.addf %12, %17 : vector<1x384xf32>
    %19 = arith.mulf %4, %4 : vector<8x384xf32>
    %cst_19 = arith.constant dense<0.000000e+00> : vector<384xf32>
    %20 = vector.multi_reduction <add>, %19, %cst_19 [0] : vector<8x384xf32> to vector<384xf32>
    %21 = vector.shape_cast %20 : vector<384xf32> to vector<1x384xf32>
    %22 = arith.addf %15, %21 : vector<1x384xf32>
    %cst_20 = arith.constant dense<0.000000e+00> : vector<384xf32>
    %23 = vector.multi_reduction <add>, %6, %cst_20 [0] : vector<8x384xf32> to vector<384xf32>
    %24 = vector.shape_cast %23 : vector<384xf32> to vector<1x384xf32>
    %25 = arith.addf %18, %24 : vector<1x384xf32>
    %26 = arith.mulf %6, %6 : vector<8x384xf32>
    %cst_21 = arith.constant dense<0.000000e+00> : vector<384xf32>
    %27 = vector.multi_reduction <add>, %26, %cst_21 [0] : vector<8x384xf32> to vector<384xf32>
    %28 = vector.shape_cast %27 : vector<384xf32> to vector<1x384xf32>
    %29 = arith.addf %22, %28 : vector<1x384xf32>
    %cst_22 = arith.constant dense<0.000000e+00> : vector<384xf32>
    %30 = vector.multi_reduction <add>, %8, %cst_22 [0] : vector<8x384xf32> to vector<384xf32>
    %31 = vector.shape_cast %30 : vector<384xf32> to vector<1x384xf32>
    %32 = arith.addf %25, %31 : vector<1x384xf32>
    %33 = arith.mulf %8, %8 : vector<8x384xf32>
    %cst_23 = arith.constant dense<0.000000e+00> : vector<384xf32>
    %34 = vector.multi_reduction <add>, %33, %cst_23 [0] : vector<8x384xf32> to vector<384xf32>
    %35 = vector.shape_cast %34 : vector<384xf32> to vector<1x384xf32>
    %36 = arith.addf %29, %35 : vector<1x384xf32>
    %cst_24 = arith.constant 3.125000e-02 : f32
    %37 = vector.broadcast %cst_24 : f32 to vector<1x384xf32>
    %38 = arith.mulf %32, %37 : vector<1x384xf32>
    %cst_25 = arith.constant 3.125000e-02 : f32
    %39 = vector.broadcast %cst_25 : f32 to vector<1x384xf32>
    %40 = arith.mulf %36, %39 : vector<1x384xf32>
    %41 = arith.mulf %38, %38 : vector<1x384xf32>
    %42 = arith.subf %40, %41 : vector<1x384xf32>
    %cst_26 = arith.constant 0.000000e+00 : f32
    %43 = vector.broadcast %cst_26 : f32 to vector<1x384xf32>
    %44 = arith.maximumf %42, %43 : vector<1x384xf32>
    %cst_27 = arith.constant 9.99999974E-6 : f32
    %45 = vector.broadcast %cst_27 : f32 to vector<1x384xf32>
    %46 = arith.addf %44, %45 : vector<1x384xf32>
    %47 = math.rsqrt %46 : vector<1x384xf32>
    %48 = arith.mulf %9, %47 : vector<1x384xf32>
    %49 = arith.mulf %38, %48 : vector<1x384xf32>
    %50 = arith.subf %10, %49 : vector<1x384xf32>
    %51 = arith.maximumf %2, %4 : vector<8x384xf32>
    %52 = arith.maximumf %6, %8 : vector<8x384xf32>
    %53 = arith.maximumf %51, %52 : vector<8x384xf32>
    %54 = arith.minimumf %2, %4 : vector<8x384xf32>
    %55 = arith.minimumf %6, %8 : vector<8x384xf32>
    %56 = arith.minimumf %54, %55 : vector<8x384xf32>
    %cst_28 = arith.constant 0.000000e+00 : f32
    %57 = vector.broadcast %cst_28 : f32 to vector<1x384xf32>
    %58 = arith.cmpf oge, %48, %57 : vector<1x384xf32>
    %59 = vector.shape_cast %58 : vector<1x384xi1> to vector<1x384xi1>
    %60 = vector.broadcast %59 : vector<1x384xi1> to vector<8x384xi1>
    %61 = arith.select %60, %53, %56 : vector<8x384xi1>, vector<8x384xf32>
    %62 = vector.broadcast %48 : vector<1x384xf32> to vector<8x384xf32>
    %63 = arith.mulf %62, %61 : vector<8x384xf32>
    %64 = vector.broadcast %50 : vector<1x384xf32> to vector<8x384xf32>
    %65 = arith.addf %63, %64 : vector<8x384xf32>
    %cst_29 = arith.constant 0.000000e+00 : f32
    %66 = vector.broadcast %cst_29 : f32 to vector<8x384xf32>
    %67 = arith.maximumf %65, %66 : vector<8x384xf32>
    %68 = vector.extract_strided_slice %67 {offsets = [0, 0], sizes = [2, 384], strides = [1, 1]} : vector<8x384xf32> to vector<2x384xf32>
    %69 = arith.truncf %68 : vector<2x384xf32> to vector<2x384xbf16>
    %c0_30 = arith.constant 0 : index
    %c0_31 = arith.constant 0 : index
    %70 = vector.load %arg8[%c0_30, %c0_31] : memref<1536x400xbf16, #tpu.memory_space<vmem>>, vector<384x400xbf16>
    %cst_32 = arith.constant dense<0.000000e+00> : vector<2x400xf32>
    %71 = tpu.matmul %69, %70, %cst_32 {dimension_numbers = #tpu.dot_dimension_numbers<[1], [0], [0], [1], [0, 0, 1, 1], [], []>} : vector<2x384xbf16>, vector<384x400xbf16>, vector<2x400xf32> -> vector<2x400xf32>
    %72 = vector.extract_strided_slice %67 {offsets = [2, 0], sizes = [2, 384], strides = [1, 1]} : vector<8x384xf32> to vector<2x384xf32>
    %73 = arith.truncf %72 : vector<2x384xf32> to vector<2x384xbf16>
    %c384 = arith.constant 384 : index
    %c0_33 = arith.constant 0 : index
    %74 = vector.load %arg8[%c384, %c0_33] : memref<1536x400xbf16, #tpu.memory_space<vmem>>, vector<384x400xbf16>
    %cst_34 = arith.constant dense<0.000000e+00> : vector<2x400xf32>
    %75 = tpu.matmul %73, %74, %cst_34 {dimension_numbers = #tpu.dot_dimension_numbers<[1], [0], [0], [1], [0, 0, 1, 1], [], []>} : vector<2x384xbf16>, vector<384x400xbf16>, vector<2x400xf32> -> vector<2x400xf32>
    %76 = arith.addf %71, %75 : vector<2x400xf32>
    %77 = vector.extract_strided_slice %67 {offsets = [4, 0], sizes = [2, 384], strides = [1, 1]} : vector<8x384xf32> to vector<2x384xf32>
    %78 = arith.truncf %77 : vector<2x384xf32> to vector<2x384xbf16>
    %c768 = arith.constant 768 : index
    %c0_35 = arith.constant 0 : index
    %79 = vector.load %arg8[%c768, %c0_35] : memref<1536x400xbf16, #tpu.memory_space<vmem>>, vector<384x400xbf16>
    %cst_36 = arith.constant dense<0.000000e+00> : vector<2x400xf32>
    %80 = tpu.matmul %78, %79, %cst_36 {dimension_numbers = #tpu.dot_dimension_numbers<[1], [0], [0], [1], [0, 0, 1, 1], [], []>} : vector<2x384xbf16>, vector<384x400xbf16>, vector<2x400xf32> -> vector<2x400xf32>
    %81 = arith.addf %76, %80 : vector<2x400xf32>
    %82 = vector.extract_strided_slice %67 {offsets = [6, 0], sizes = [2, 384], strides = [1, 1]} : vector<8x384xf32> to vector<2x384xf32>
    %83 = arith.truncf %82 : vector<2x384xf32> to vector<2x384xbf16>
    %c1152 = arith.constant 1152 : index
    %c0_37 = arith.constant 0 : index
    %84 = vector.load %arg8[%c1152, %c0_37] : memref<1536x400xbf16, #tpu.memory_space<vmem>>, vector<384x400xbf16>
    %cst_38 = arith.constant dense<0.000000e+00> : vector<2x400xf32>
    %85 = tpu.matmul %83, %84, %cst_38 {dimension_numbers = #tpu.dot_dimension_numbers<[1], [0], [0], [1], [0, 0, 1, 1], [], []>} : vector<2x384xbf16>, vector<384x400xbf16>, vector<2x400xf32> -> vector<2x400xf32>
    %86 = arith.addf %81, %85 : vector<2x400xf32>
    %cst_39 = arith.constant dense<0.000000e+00> : vector<400xf32>
    %87 = vector.multi_reduction <add>, %86, %cst_39 [0] : vector<2x400xf32> to vector<400xf32>
    %88 = vector.shape_cast %87 : vector<400xf32> to vector<1x400xf32>
    %cst_40 = arith.constant 2.000000e+00 : f32
    %89 = vector.broadcast %cst_40 : f32 to vector<1x400xf32>
    %90 = arith.divf %88, %89 : vector<1x400xf32>
    %91 = arith.mulf %86, %86 : vector<2x400xf32>
    %cst_41 = arith.constant dense<0.000000e+00> : vector<400xf32>
    %92 = vector.multi_reduction <add>, %91, %cst_41 [0] : vector<2x400xf32> to vector<400xf32>
    %93 = vector.shape_cast %92 : vector<400xf32> to vector<1x400xf32>
    %cst_42 = arith.constant 2.000000e+00 : f32
    %94 = vector.broadcast %cst_42 : f32 to vector<1x400xf32>
    %95 = arith.divf %93, %94 : vector<1x400xf32>
    %96 = arith.mulf %90, %90 : vector<1x400xf32>
    %97 = arith.subf %95, %96 : vector<1x400xf32>
    %cst_43 = arith.constant 0.000000e+00 : f32
    %98 = vector.broadcast %cst_43 : f32 to vector<1x400xf32>
    %99 = arith.maximumf %97, %98 : vector<1x400xf32>
    %c0_44 = arith.constant 0 : index
    %c0_45 = arith.constant 0 : index
    %100 = vector.load %arg9[%c0_44, %c0_45] : memref<1x400xf32, #tpu.memory_space<vmem>>, vector<1x400xf32>
    %101 = vector.broadcast %90 : vector<1x400xf32> to vector<2x400xf32>
    %102 = arith.subf %86, %101 : vector<2x400xf32>
    %103 = vector.broadcast %100 : vector<1x400xf32> to vector<2x400xf32>
    %104 = arith.mulf %103, %102 : vector<2x400xf32>
    %cst_46 = arith.constant 9.99999974E-6 : f32
    %105 = vector.broadcast %cst_46 : f32 to vector<1x400xf32>
    %106 = arith.addf %99, %105 : vector<1x400xf32>
    %107 = math.rsqrt %106 : vector<1x400xf32>
    %108 = vector.broadcast %107 : vector<1x400xf32> to vector<2x400xf32>
    %109 = arith.mulf %104, %108 : vector<2x400xf32>
    %c0_47 = arith.constant 0 : index
    %c0_48 = arith.constant 0 : index
    %110 = vector.load %arg10[%c0_47, %c0_48] : memref<1x400xf32, #tpu.memory_space<vmem>>, vector<1x400xf32>
    %111 = vector.broadcast %110 : vector<1x400xf32> to vector<2x400xf32>
    %112 = arith.addf %109, %111 : vector<2x400xf32>
    %cst_49 = arith.constant 0.000000e+00 : f32
    %113 = vector.broadcast %cst_49 : f32 to vector<2x400xf32>
    %114 = arith.maximumf %112, %113 : vector<2x400xf32>
    %115 = arith.truncf %114 : vector<2x400xf32> to vector<2x400xbf16>
    %c0_50 = arith.constant 0 : index
    %c0_51 = arith.constant 0 : index
    %116 = vector.load %arg11[%c0_50, %c0_51] : memref<400x128xbf16, #tpu.memory_space<vmem>>, vector<400x128xbf16>
    %cst_52 = arith.constant dense<0.000000e+00> : vector<2x128xf32>
    %117 = tpu.matmul %115, %116, %cst_52 {dimension_numbers = #tpu.dot_dimension_numbers<[1], [0], [0], [1], [0, 0, 1, 1], [], []>} : vector<2x400xbf16>, vector<400x128xbf16>, vector<2x128xf32> -> vector<2x128xf32>
    %c0_53 = arith.constant 0 : index
    %c0_54 = arith.constant 0 : index
    %118 = vector.load %arg12[%c0_53, %c0_54] : memref<1x128xf32, #tpu.memory_space<vmem>>, vector<1x128xf32>
    %119 = vector.broadcast %118 : vector<1x128xf32> to vector<2x128xf32>
    %120 = arith.addf %117, %119 : vector<2x128xf32>
    %cst_55 = arith.constant 0.000000e+00 : f32
    %121 = vector.broadcast %cst_55 : f32 to vector<2x128xf32>
    %122 = arith.maximumf %120, %121 : vector<2x128xf32>
    %123 = arith.truncf %122 : vector<2x128xf32> to vector<2x128xbf16>
    %c0_56 = arith.constant 0 : index
    %c0_57 = arith.constant 0 : index
    %124 = vector.load %arg13[%c0_56, %c0_57] : memref<128x128xbf16, #tpu.memory_space<vmem>>, vector<128x128xbf16>
    %cst_58 = arith.constant dense<0.000000e+00> : vector<2x128xf32>
    %125 = tpu.matmul %123, %124, %cst_58 {dimension_numbers = #tpu.dot_dimension_numbers<[1], [0], [0], [1], [0, 0, 1, 1], [], []>} : vector<2x128xbf16>, vector<128x128xbf16>, vector<2x128xf32> -> vector<2x128xf32>
    %c0_59 = arith.constant 0 : index
    %c0_60 = arith.constant 0 : index
    %126 = vector.load %arg14[%c0_59, %c0_60] : memref<1x128xf32, #tpu.memory_space<vmem>>, vector<1x128xf32>
    %127 = vector.broadcast %126 : vector<1x128xf32> to vector<2x128xf32>
    %128 = arith.addf %125, %127 : vector<2x128xf32>
    %cst_61 = arith.constant 0.000000e+00 : f32
    %129 = vector.broadcast %cst_61 : f32 to vector<2x128xf32>
    %130 = arith.maximumf %128, %129 : vector<2x128xf32>
    %131 = arith.truncf %130 : vector<2x128xf32> to vector<2x128xbf16>
    %c0_62 = arith.constant 0 : index
    %c0_63 = arith.constant 0 : index
    %132 = vector.load %arg15[%c0_62, %c0_63] : memref<128x128xbf16, #tpu.memory_space<vmem>>, vector<128x128xbf16>
    %cst_64 = arith.constant dense<0.000000e+00> : vector<2x128xf32>
    %133 = tpu.matmul %131, %132, %cst_64 {dimension_numbers = #tpu.dot_dimension_numbers<[1], [0], [0], [1], [0, 0, 1, 1], [], []>} : vector<2x128xbf16>, vector<128x128xbf16>, vector<2x128xf32> -> vector<2x128xf32>
    %c0_65 = arith.constant 0 : index
    %c0_66 = arith.constant 0 : index
    %134 = vector.load %arg16[%c0_65, %c0_66] : memref<1x128xf32, #tpu.memory_space<vmem>>, vector<1x128xf32>
    %135 = vector.broadcast %134 : vector<1x128xf32> to vector<2x128xf32>
    %136 = arith.addf %133, %135 : vector<2x128xf32>
    %c0_67 = arith.constant 0 : index
    %c0_68 = arith.constant 0 : index
    %137 = vector.load %arg17[%c0_67, %c0_68] : memref<2x128xf32, #tpu.memory_space<vmem>>, vector<2x128xf32>
    tpu.vector_store %arg17[%c0_67, %c0_68], %136 {strides = array<i32>} : memref<2x128xf32, #tpu.memory_space<vmem>>, vector<2x128xf32>,
    return
  }
  func.func @transform_0(%arg0: i32) -> (i32, i32) {
    %c0_i32 = arith.constant 0 : i32
    %c0_i32_0 = arith.constant 0 : i32
    %c0_i32_1 = arith.constant 0 : i32
    return %c0_i32, %c0_i32_0 : i32, i32
  }
  func.func @transform_1(%arg0: i32) -> (i32, i32) {
    %c0_i32 = arith.constant 0 : i32
    %c0_i32_0 = arith.constant 0 : i32
    %c0_i32_1 = arith.constant 0 : i32
    return %c0_i32, %c0_i32_0 : i32, i32
  }
  func.func @transform_2(%arg0: i32) -> (i32, i32) {
    %c0_i32 = arith.constant 0 : i32
    %c0_i32_0 = arith.constant 0 : i32
    %c0_i32_1 = arith.constant 0 : i32
    return %c0_i32, %c0_i32_0 : i32, i32
  }
  func.func @transform_3(%arg0: i32) -> (i32, i32) {
    %c0_i32 = arith.constant 0 : i32
    %c0_i32_0 = arith.constant 0 : i32
    %c0_i32_1 = arith.constant 0 : i32
    return %c0_i32, %c0_i32_0 : i32, i32
  }
  func.func @transform_4(%arg0: i32) -> (i32, i32) {
    %c0_i32 = arith.constant 0 : i32
    %c0_i32_0 = arith.constant 0 : i32
    %c0_i32_1 = arith.constant 0 : i32
    return %c0_i32, %c0_i32_0 : i32, i32
  }
  func.func @transform_5(%arg0: i32) -> (i32, i32) {
    %c0_i32 = arith.constant 0 : i32
    %c0_i32_0 = arith.constant 0 : i32
    %c0_i32_1 = arith.constant 0 : i32
    return %c0_i32, %c0_i32_0 : i32, i32
  }
  func.func @transform_6(%arg0: i32) -> (i32, i32) {
    %c0_i32 = arith.constant 0 : i32
    %c0_i32_0 = arith.constant 0 : i32
    %c0_i32_1 = arith.constant 0 : i32
    return %c0_i32, %c0_i32_0 : i32, i32
  }
  func.func @transform_7(%arg0: i32) -> (i32, i32) {
    %c0_i32 = arith.constant 0 : i32
    %c0_i32_0 = arith.constant 0 : i32
    %c0_i32_1 = arith.constant 0 : i32
    return %c0_i32, %c0_i32_0 : i32, i32
  }
  func.func @transform_8(%arg0: i32) -> (i32, i32) {
    %c0_i32 = arith.constant 0 : i32
    %c0_i32_0 = arith.constant 0 : i32
    %c0_i32_1 = arith.constant 0 : i32
    return %c0_i32, %c0_i32_0 : i32, i32
  }
  func.func @transform_9(%arg0: i32) -> (i32, i32) {
    %c0_i32 = arith.constant 0 : i32
    %c0_i32_0 = arith.constant 0 : i32
    %c0_i32_1 = arith.constant 0 : i32
    return %c0_i32, %c0_i32_0 : i32, i32
  }
  func.func @transform_10(%arg0: i32) -> (i32, i32) {
    %c0_i32 = arith.constant 0 : i32
    %c0_i32_0 = arith.constant 0 : i32
    %c0_i32_1 = arith.constant 0 : i32
    return %c0_i32, %c0_i32_0 : i32, i32
  }
  func.func @transform_11(%arg0: i32) -> (i32, i32) {
    %c0_i32 = arith.constant 0 : i32
    %c0_i32_0 = arith.constant 0 : i32
    %c0_i32_1 = arith.constant 0 : i32
    return %c0_i32, %c0_i32_0 : i32, i32
  }
  func.func @transform_12(%arg0: i32) -> (i32, i32) {
    %c0_i32 = arith.constant 0 : i32
    %c0_i32_0 = arith.constant 0 : i32
    %c0_i32_1 = arith.constant 0 : i32
    return %c0_i32, %c0_i32_0 : i32, i32
  }
  func.func @transform_13(%arg0: i32) -> (i32, i32) {
    %c0_i32 = arith.constant 0 : i32
    %c0_i32_0 = arith.constant 0 : i32
    %c0_i32_1 = arith.constant 0 : i32
    return %c0_i32, %c0_i32_0 : i32, i32
  }
  func.func @transform_14(%arg0: i32) -> (i32, i32) {
    %c0_i32 = arith.constant 0 : i32
    %c0_i32_0 = arith.constant 0 : i32
    %c0_i32_1 = arith.constant 0 : i32
    return %c0_i32, %c0_i32_0 : i32, i32
  }
  func.func @transform_15(%arg0: i32) -> (i32, i32) {
    %c0_i32 = arith.constant 0 : i32
    %c0_i32_0 = arith.constant 0 : i32
    %c0_i32_1 = arith.constant 0 : i32
    return %c0_i32, %c0_i32_0 : i32, i32
  }
  func.func @transform_16(%arg0: i32) -> (i32, i32) {
    %c0_i32 = arith.constant 0 : i32
    %c0_i32_0 = arith.constant 0 : i32
    %c0_i32_1 = arith.constant 0 : i32
    return %c0_i32, %c0_i32_0 : i32, i32
  }
}

</mosaic_0001>

<llo_original>
// kernel: forward.3
$region0: #{forward.3}
  #allocation0 [shape = 'u32[]', space=smem, size = 0x4, offset = 0x4, fixed_abs, tag = 'smem constant byte address 0x4 - core index']
  #allocation1 [shape = 'u32[144,128]{1,0:T(1,128)}', space=vmem, size = 0x12000, scoped, tag = 'internal scratch']
  %s0 = inlined_call_operand.vmem [shape: bf16[450,32], index: 0, kind: input, shape index: {}]
  %s1 = inlined_call_operand.vmem [shape: bf16[450,32], index: 1, kind: input, shape index: {}]
  %s2 = inlined_call_operand.vmem [shape: bf16[450,32], index: 2, kind: input, shape index: {}]
  %s3 = inlined_call_operand.vmem [shape: bf16[450,32], index: 3, kind: input, shape index: {}]
  %s4 = inlined_call_operand.vmem [shape: bf16[32,16], index: 4, kind: input, shape index: {}]
  %s5 = inlined_call_operand.vmem [shape: f32[1,16], index: 5, kind: input, shape index: {}]
  %s6 = inlined_call_operand.vmem [shape: f32[1,16], index: 6, kind: input, shape index: {}]
  %s7 = inlined_call_operand.vmem [shape: bf16[450,16], index: 7, kind: output, shape index: {}]
  %s8 = sld [smem:[#allocation0]]
  $region38: #{forward.3} parent=0
    _
  %s10 = ssub.s32 1, %s8
  %s11 = scalar_select 0, %s10, %s8
  // Predicated region
  $region2: #{forward.3} parent=0 // pred_check
    _
  $region3: #{forward.3} parent=0 // pred_check_branch
    %13 = sbr.rel (0) target = $region5
  $region4: #{forward.3} parent=0 // pred_region
    _
  $region5: #{forward.3} parent=0 // pred_fallthru
    _
  // Predicated region
  $region6: #{forward.3} parent=0 // pred_check
    _
  $region7: #{forward.3} parent=0 // pred_check_branch
    %15 = sbr.rel (0) target = $region9
  $region8: #{forward.3} parent=0 // pred_region
    _
  $region9: #{forward.3} parent=0 // pred_fallthru
    _
  // Predicated region
  $region10: #{forward.3} parent=0 // pred_check
    _
  $region11: #{forward.3} parent=0 // pred_check_branch
    %17 = sbr.rel (0) target = $region13
  $region12: #{forward.3} parent=0 // pred_region
    _
  $region13: #{forward.3} parent=0 // pred_fallthru
    _
  // Predicated region
  $region14: #{forward.3} parent=0 // pred_check
    _
  $region15: #{forward.3} parent=0 // pred_check_branch
    %19 = sbr.rel (0) target = $region17
  $region16: #{forward.3} parent=0 // pred_region
    _
  $region17: #{forward.3} parent=0 // pred_fallthru
    _
  // Predicated region
  $region18: #{forward.3} parent=0 // pred_check
    _
  $region19: #{forward.3} parent=0 // pred_check_branch
    %21 = sbr.rel (0) target = $region21
  $region20: #{forward.3} parent=0 // pred_region
    _
  $region21: #{forward.3} parent=0 // pred_fallthru
    _
  // Predicated region
  $region22: #{forward.3} parent=0 // pred_check
    _
  $region23: #{forward.3} parent=0 // pred_check_branch
    %23 = sbr.rel (0) target = $region25
  $region24: #{forward.3} parent=0 // pred_region
    _
  $region25: #{forward.3} parent=0 // pred_fallthru
    _
  // Predicated region
  $region26: #{forward.3} parent=0 // pred_check
    _
  $region27: #{forward.3} parent=0 // pred_check_branch
    %25 = sbr.rel (0) target = $region29
  $region28: #{forward.3} parent=0 // pred_region
    _
  $region29: #{forward.3} parent=0 // pred_fallthru
    _
  %v27 = vld [vmem:[%s4] sm:$0xf]
  %v28 = vld [vmem:[%s4 + $0x4] sm:$0xf]
  %v29 = vld [vmem:[%s4 + $0x8] sm:$0xf]
  %v30 = vld [vmem:[%s4 + $0xc] sm:$0xf]
  %v31 = vld [vmem:[%s0] sm:$0xf]
  %v32 = vld [vmem:[%s0 + $0x4] sm:$0xf]
  %v33 = vld [vmem:[%s0 + $0x8] sm:$0xf]
  %v34 = vld [vmem:[%s0 + $0xc] sm:$0xf]
  %v35 = vld [vmem:[%s0 + $0x10] sm:$0xf]
  %v36 = vld [vmem:[%s0 + $0x14] sm:$0xf]
  %v37 = vld [vmem:[%s0 + $0x18] sm:$0xf]
  %v38 = vld [vmem:[%s0 + $0x1c] sm:$0xf]
  %v39 = vld [vmem:[%s0 + $0x20] sm:$0xf]
  %v40 = vld [vmem:[%s0 + $0x24] sm:$0xf]
  %v41 = vld [vmem:[%s0 + $0x28] sm:$0xf]
  %v42 = vld [vmem:[%s0 + $0x2c] sm:$0xf]
  %v43 = vld [vmem:[%s0 + $0x30] sm:$0xf]
  %v44 = vld [vmem:[%s0 + $0x34] sm:$0xf]
  %v45 = vld [vmem:[%s0 + $0x38] sm:$0xf]
  %v46 = vld [vmem:[%s0 + $0x3c] sm:$0xf]
  %v47 = vld [vmem:[%s0 + $0x40] sm:$0xf]
  %v48 = vld [vmem:[%s0 + $0x44] sm:$0xf]
  %v49 = vld [vmem:[%s0 + $0x48] sm:$0xf]
  %v50 = vld [vmem:[%s0 + $0x4c] sm:$0xf]
  %v51 = vld [vmem:[%s0 + $0x50] sm:$0xf]
  %v52 = vld [vmem:[%s0 + $0x54] sm:$0xf]
  %v53 = vld [vmem:[%s0 + $0x58] sm:$0xf]
  %v54 = vld [vmem:[%s0 + $0x5c] sm:$0xf]
  %v55 = vld [vmem:[%s0 + $0x60] sm:$0xf]
  %v56 = vld [vmem:[%s0 + $0x64] sm:$0xf]
  %v57 = vld [vmem:[%s0 + $0x68] sm:$0xf]
  %v58 = vld [vmem:[%s0 + $0x6c] sm:$0xf]
  %v59 = vld [vmem:[%s0 + $0x70] sm:$0xf]
  %v60 = vld [vmem:[%s0 + $0x74] sm:$0xf]
  %v61 = vld [vmem:[%s0 + $0x78] sm:$0xf]
  %v62 = vld [vmem:[%s0 + $0x7c] sm:$0xf]
  %v63 = vld [vmem:[%s0 + $0x80] sm:$0xf]
  %v64 = vld [vmem:[%s0 + $0x84] sm:$0xf]
  %v65 = vld [vmem:[%s0 + $0x88] sm:$0xf]
  %v66 = vld [vmem:[%s0 + $0x8c] sm:$0xf]
  %v67 = vld [vmem:[%s0 + $0x90] sm:$0xf]
  %v68 = vld [vmem:[%s0 + $0x94] sm:$0xf]
  %v69 = vld [vmem:[%s0 + $0x98] sm:$0xf]
  %v70 = vld [vmem:[%s0 + $0x9c] sm:$0xf]
  %v71 = vld [vmem:[%s0 + $0xa0] sm:$0xf]
  %v72 = vld [vmem:[%s0 + $0xa4] sm:$0xf]
  %v73 = vld [vmem:[%s0 + $0xa8] sm:$0xf]
  %v74 = vld [vmem:[%s0 + $0xac] sm:$0xf]
  %v75 = vld [vmem:[%s0 + $0xb0] sm:$0xf]
  %v76 = vld [vmem:[%s0 + $0xb4] sm:$0xf]
  %v77 = vld [vmem:[%s0 + $0xb8] sm:$0xf]
  %v78 = vld [vmem:[%s0 + $0xbc] sm:$0xf]
  %v79 = vld [vmem:[%s0 + $0xc0] sm:$0xf]
  %v80 = vld [vmem:[%s0 + $0xc4] sm:$0xf]
  %v81 = vld [vmem:[%s0 + $0xc8] sm:$0xf]
  %v82 = vld [vmem:[%s0 + $0xcc] sm:$0xf]
  %v83 = vld [vmem:[%s0 + $0xd0] sm:$0xf]
  %v84 = vld [vmem:[%s0 + $0xd4] sm:$0xf]
  %v85 = vld [vmem:[%s0 + $0xd8] sm:$0xf]
  %v86 = vld [vmem:[%s0 + $0xdc] sm:$0xf]
  %v87 = vld [vmem:[%s0 + $0xe0] sm:$0x1]
  %v145 = vunpack.c.l.b16 %v31
  %v146 = vunpack.c.l.b16 %v32
  %v147 = vunpack.c.l.b16 %v33
  %v148 = vunpack.c.l.b16 %v34
  %v149 = vunpack.c.l.b16 %v35
  %v150 = vunpack.c.l.b16 %v36
  %v151 = vunpack.c.l.b16 %v37
  %v152 = vunpack.c.l.b16 %v38
  %v153 = vunpack.c.l.b16 %v39
  %v154 = vunpack.c.l.b16 %v40
  %v155 = vunpack.c.l.b16 %v41
  %v156 = vunpack.c.l.b16 %v42
  %v157 = vunpack.c.l.b16 %v43
  %v158 = vunpack.c.l.b16 %v44
  %v159 = vunpack.c.l.b16 %v45
  %v160 = vunpack.c.l.b16 %v46
  %v161 = vunpack.c.l.b16 %v47
  %v162 = vunpack.c.l.b16 %v48
  %v163 = vunpack.c.l.b16 %v49
  %v164 = vunpack.c.l.b16 %v50
  %v165 = vunpack.c.l.b16 %v51
  %v166 = vunpack.c.l.b16 %v52
  %v167 = vunpack.c.l.b16 %v53
  %v168 = vunpack.c.l.b16 %v54
  %v169 = vunpack.c.l.b16 %v55
  %v170 = vunpack.c.l.b16 %v56
  %v171 = vunpack.c.l.b16 %v57
  %v172 = vunpack.c.l.b16 %v58
  %v173 = vunpack.c.l.b16 %v59
  %v174 = vunpack.c.l.b16 %v60
  %v175 = vunpack.c.l.b16 %v61
  %v176 = vunpack.c.l.b16 %v62
  %v177 = vunpack.c.l.b16 %v63
  %v178 = vunpack.c.l.b16 %v64
  %v179 = vunpack.c.l.b16 %v65
  %v180 = vunpack.c.l.b16 %v66
  %v181 = vunpack.c.l.b16 %v67
  %v182 = vunpack.c.l.b16 %v68
  %v183 = vunpack.c.l.b16 %v69
  %v184 = vunpack.c.l.b16 %v70
  %v185 = vunpack.c.l.b16 %v71
  %v186 = vunpack.c.l.b16 %v72
  %v187 = vunpack.c.l.b16 %v73
  %v188 = vunpack.c.l.b16 %v74
  %v189 = vunpack.c.l.b16 %v75
  %v190 = vunpack.c.l.b16 %v76
  %v191 = vunpack.c.l.b16 %v77
  %v192 = vunpack.c.l.b16 %v78
  %v193 = vunpack.c.l.b16 %v79
  %v194 = vunpack.c.l.b16 %v80
  %v195 = vunpack.c.l.b16 %v81
  %v196 = vunpack.c.l.b16 %v82
  %v197 = vunpack.c.l.b16 %v83
  %v198 = vunpack.c.l.b16 %v84
  %v199 = vunpack.c.l.b16 %v85
  %v200 = vunpack.c.l.b16 %v86
  %v201 = vunpack.c.l.b16 %v87
  %v202 = vpack.c.b16 %v146, %v145
  %v203 = vpack.c.b16 %v148, %v147
  %v204 = vpack.c.b16 %v150, %v149
  %v205 = vpack.c.b16 %v152, %v151
  %v206 = vpack.c.b16 %v154, %v153
  %v207 = vpack.c.b16 %v156, %v155
  %v208 = vpack.c.b16 %v158, %v157
  %v209 = vpack.c.b16 %v160, %v159
  %v210 = vpack.c.b16 %v162, %v161
  %v211 = vpack.c.b16 %v164, %v163
  %v212 = vpack.c.b16 %v166, %v165
  %v213 = vpack.c.b16 %v168, %v167
  %v214 = vpack.c.b16 %v170, %v169
  %v215 = vpack.c.b16 %v172, %v171
  %v216 = vpack.c.b16 %v174, %v173
  %v217 = vpack.c.b16 %v176, %v175
  %v218 = vpack.c.b16 %v178, %v177
  %v219 = vpack.c.b16 %v180, %v179
  %v220 = vpack.c.b16 %v182, %v181
  %v221 = vpack.c.b16 %v184, %v183
  %v222 = vpack.c.b16 %v186, %v185
  %v223 = vpack.c.b16 %v188, %v187
  %v224 = vpack.c.b16 %v190, %v189
  %v225 = vpack.c.b16 %v192, %v191
  %v226 = vpack.c.b16 %v194, %v193
  %v227 = vpack.c.b16 %v196, %v195
  %v228 = vpack.c.b16 %v198, %v197
  %v229 = vpack.c.b16 %v200, %v199
  %v230 = vpack.c.b16 %v201, %v201
  %v235 = vunpack.c.l.b16 %v27
  %v236 = vunpack.c.l.b16 %v28
  %v237 = vunpack.c.l.b16 %v29
  %v238 = vunpack.c.l.b16 %v30
  %v239 = vpack.c.b16 %v236, %v235
  %v240 = vpack.c.b16 %v238, %v237
  %vm243 = vcmask 261120
  %v245 = vsel %vm243, %v202, 0
  %v248 = vsel %vm243, %v203, 0
  %v251 = vsel %vm243, %v204, 0
  %v254 = vsel %vm243, %v205, 0
  %v257 = vsel %vm243, %v206, 0
  %v260 = vsel %vm243, %v207, 0
  %v263 = vsel %vm243, %v208, 0
  %v266 = vsel %vm243, %v209, 0
  %v269 = vsel %vm243, %v210, 0
  %v272 = vsel %vm243, %v211, 0
  %v275 = vsel %vm243, %v212, 0
  %v278 = vsel %vm243, %v213, 0
  %v281 = vsel %vm243, %v214, 0
  %v284 = vsel %vm243, %v215, 0
  %v287 = vsel %vm243, %v216, 0
  %v290 = vsel %vm243, %v217, 0
  %v293 = vsel %vm243, %v218, 0
  %v296 = vsel %vm243, %v219, 0
  %v299 = vsel %vm243, %v220, 0
  %v302 = vsel %vm243, %v221, 0
  %v305 = vsel %vm243, %v222, 0
  %v308 = vsel %vm243, %v223, 0
  %v311 = vsel %vm243, %v224, 0
  %v314 = vsel %vm243, %v225, 0
  %v317 = vsel %vm243, %v226, 0
  %v320 = vsel %vm243, %v227, 0
  %v323 = vsel %vm243, %v228, 0
  %v326 = vsel %vm243, %v229, 0
  %v329 = vsel %vm243, %v230, 0
  %331 = vmatprep.subr.bf16.mxu0 0
  %332 = vmatpush1.bf16.msra.mxu0 %v239
  %333 = vmatprep.subr.bf16.mxu0 0
  %334 = vmatpush1.bf16.msra.mxu0 %v240
  %335 = vmatprep.subr.bf16.mxu0 0
  %336 = vmatpush1.bf16.msra.mxu0 0
  %337 = vmatprep.subr.bf16.mxu0 0
  %338 = vmatpush1.bf16.msra.mxu0 0
  %339 = vmatprep.subr.bf16.mxu0 0
  %340 = vmatpush1.bf16.msra.mxu0 0
  %341 = vmatprep.subr.bf16.mxu0 0
  %342 = vmatpush1.bf16.msra.mxu0 0
  %343 = vmatprep.subr.bf16.mxu0 0
  %344 = vmatpush1.bf16.msra.mxu0 0
  %345 = vmatprep.subr.bf16.mxu0 0
  %346 = vmatpush1.bf16.msra.mxu0 0
  %347 = vmatprep.subr.bf16.mxu0 0
  %348 = vmatpush1.bf16.msra.mxu0 0
  %349 = vmatprep.subr.bf16.mxu0 0
  %350 = vmatpush1.bf16.msra.mxu0 0
  %351 = vmatprep.subr.bf16.mxu0 0
  %352 = vmatpush1.bf16.msra.mxu0 0
  %353 = vmatprep.subr.bf16.mxu0 0
  %354 = vmatpush1.bf16.msra.mxu0 0
  %355 = vmatprep.subr.bf16.mxu0 0
  %356 = vmatpush1.bf16.msra.mxu0 0
  %357 = vmatprep.subr.bf16.mxu0 0
  %358 = vmatpush1.bf16.msra.mxu0 0
  %359 = vmatprep.subr.bf16.mxu0 0
  %360 = vmatpush1.bf16.msra.mxu0 0
  %361 = vmatprep.subr.bf16.mxu0 0
  %362 = vmatpush1.bf16.msra.mxu0 0
  %363 = vmatprep.mubr.bf16.mxu0 0
  %364 = vmatmul.mubr.bf16.gmra.mrb[0].mxu0 %v245
  %v365 = vpop.f32.mrb[0].mxu0
  %v366 = vadd.f32 0.0, %v365
  %v367 = vpop.f32.mrb[0].mxu0
  %v368 = vpop.f32.mrb[0].mxu0
  %v369 = vadd.f32 0.0, %v368
  %v370 = vpop.f32.mrb[0].mxu0
  %371 = vmatprep.mubr.bf16.mxu0 0
  %372 = vmatmul.mubr.bf16.gmra.mrb[0].mxu0 %v248
  %v373 = vpop.f32.mrb[0].mxu0
  %v374 = vadd.f32 0.0, %v373
  %v375 = vpop.f32.mrb[0].mxu0
  %v376 = vpop.f32.mrb[0].mxu0
  %v377 = vadd.f32 0.0, %v376
  %v378 = vpop.f32.mrb[0].mxu0
  %379 = vmatprep.mubr.bf16.mxu0 0
  %380 = vmatmul.mubr.bf16.gmra.mrb[0].mxu0 %v251
  %v381 = vpop.f32.mrb[0].mxu0
  %v382 = vadd.f32 0.0, %v381
  %v383 = vpop.f32.mrb[0].mxu0
  %v384 = vpop.f32.mrb[0].mxu0
  %v385 = vadd.f32 0.0, %v384
  %v386 = vpop.f32.mrb[0].mxu0
  %387 = vmatprep.mubr.bf16.mxu0 0
  %388 = vmatmul.mubr.bf16.gmra.mrb[0].mxu0 %v254
  %v389 = vpop.f32.mrb[0].mxu0
  %v390 = vadd.f32 0.0, %v389
  %v391 = vpop.f32.mrb[0].mxu0
  %v392 = vpop.f32.mrb[0].mxu0
  %v393 = vadd.f32 0.0, %v392
  %v394 = vpop.f32.mrb[0].mxu0
  %395 = vmatprep.mubr.bf16.mxu0 0
  %396 = vmatmul.mubr.bf16.gmra.mrb[0].mxu0 %v257
  %v397 = vpop.f32.mrb[0].mxu0
  %v398 = vadd.f32 0.0, %v397
  %v399 = vpop.f32.mrb[0].mxu0
  %v400 = vpop.f32.mrb[0].mxu0
  %v401 = vadd.f32 0.0, %v400
  %v402 = vpop.f32.mrb[0].mxu0
  %403 = vmatprep.mubr.bf16.mxu0 0
  %404 = vmatmul.mubr.bf16.gmra.mrb[0].mxu0 %v260
  %v405 = vpop.f32.mrb[0].mxu0
  %v406 = vadd.f32 0.0, %v405
  %v407 = vpop.f32.mrb[0].mxu0
  %v408 = vpop.f32.mrb[0].mxu0
  %v409 = vadd.f32 0.0, %v408
  %v410 = vpop.f32.mrb[0].mxu0
  %411 = vmatprep.mubr.bf16.mxu0 0
  %412 = vmatmul.mubr.bf16.gmra.mrb[0].mxu0 %v263
  %v413 = vpop.f32.mrb[0].mxu0
  %v414 = vadd.f32 0.0, %v413
  %v415 = vpop.f32.mrb[0].mxu0
  %v416 = vpop.f32.mrb[0].mxu0
  %v417 = vadd.f32 0.0, %v416
  %v418 = vpop.f32.mrb[0].mxu0
  %419 = vmatprep.mubr.bf16.mxu0 0
  %420 = vmatmul.mubr.bf16.gmra.mrb[0].mxu0 %v266
  %v421 = vpop.f32.mrb[0].mxu0
  %v422 = vadd.f32 0.0, %v421
  %v423 = vpop.f32.mrb[0].mxu0
  %v424 = vpop.f32.mrb[0].mxu0
  %v425 = vadd.f32 0.0, %v424
  %v426 = vpop.f32.mrb[0].mxu0
  %427 = vmatprep.mubr.bf16.mxu0 0
  %428 = vmatmul.mubr.bf16.gmra.mrb[0].mxu0 %v269
  %v429 = vpop.f32.mrb[0].mxu0
  %v430 = vadd.f32 0.0, %v429
  %v431 = vpop.f32.mrb[0].mxu0
  %v432 = vpop.f32.mrb[0].mxu0
  %v433 = vadd.f32 0.0, %v432
  %v434 = vpop.f32.mrb[0].mxu0
  %435 = vmatprep.mubr.bf16.mxu0 0
  %436 = vmatmul.mubr.bf16.gmra.mrb[0].mxu0 %v272
  %v437 = vpop.f32.mrb[0].mxu0
  %v438 = vadd.f32 0.0, %v437
  %v439 = vpop.f32.mrb[0].mxu0
  %v440 = vpop.f32.mrb[0].mxu0
  %v441 = vadd.f32 0.0, %v440
  %v442 = vpop.f32.mrb[0].mxu0
  %443 = vmatprep.mubr.bf16.mxu0 0
  %444 = vmatmul.mubr.bf16.gmra.mrb[0].mxu0 %v275
  %v445 = vpop.f32.mrb[0].mxu0
  %v446 = vadd.f32 0.0, %v445
  %v447 = vpop.f32.mrb[0].mxu0
  %v448 = vpop.f32.mrb[0].mxu0
  %v449 = vadd.f32 0.0, %v448
  %v450 = vpop.f32.mrb[0].mxu0
  %451 = vmatprep.mubr.bf16.mxu0 0
  %452 = vmatmul.mubr.bf16.gmra.mrb[0].mxu0 %v278
  %v453 = vpop.f32.mrb[0].mxu0
  %v454 = vadd.f32 0.0, %v453
  %v455 = vpop.f32.mrb[0].mxu0
  %v456 = vpop.f32.mrb[0].mxu0
  %v457 = vadd.f32 0.0, %v456
  %v458 = vpop.f32.mrb[0].mxu0
  %459 = vmatprep.mubr.bf16.mxu0 0
  %460 = vmatmul.mubr.bf16.gmra.mrb[0].mxu0 %v281
  %v461 = vpop.f32.mrb[0].mxu0
  %v462 = vadd.f32 0.0, %v461
  %v463 = vpop.f32.mrb[0].mxu0
  %v464 = vpop.f32.mrb[0].mxu0
  %v465 = vadd.f32 0.0, %v464
  %v466 = vpop.f32.mrb[0].mxu0
  %467 = vmatprep.mubr.bf16.mxu0 0
  %468 = vmatmul.mubr.bf16.gmra.mrb[0].mxu0 %v284
  %v469 = vpop.f32.mrb[0].mxu0
  %v470 = vadd.f32 0.0, %v469
  %v471 = vpop.f32.mrb[0].mxu0
  %v472 = vpop.f32.mrb[0].mxu0
  %v473 = vadd.f32 0.0, %v472
  %v474 = vpop.f32.mrb[0].mxu0
  %475 = vmatprep.mubr.bf16.mxu0 0
  %476 = vmatmul.mubr.bf16.gmra.mrb[0].mxu0 %v287
  %v477 = vpop.f32.mrb[0].mxu0
  %v478 = vadd.f32 0.0, %v477
  %v479 = vpop.f32.mrb[0].mxu0
  %v480 = vpop.f32.mrb[0].mxu0
  %v481 = vadd.f32 0.0, %v480
  %v482 = vpop.f32.mrb[0].mxu0
  %483 = vmatprep.mubr.bf16.mxu0 0
  %484 = vmatmul.mubr.bf16.gmra.mrb[0].mxu0 %v290
  %v485 = vpop.f32.mrb[0].mxu0
  %v486 = vadd.f32 0.0, %v485
  %v487 = vpop.f32.mrb[0].mxu0
  %v488 = vpop.f32.mrb[0].mxu0
  %v489 = vadd.f32 0.0, %v488
  %v490 = vpop.f32.mrb[0].mxu0
  %491 = vmatprep.mubr.bf16.mxu0 0
  %492 = vmatmul.mubr.bf16.gmra.mrb[0].mxu0 %v293
  %v493 = vpop.f32.mrb[0].mxu0
  %v494 = vadd.f32 0.0, %v493
  %v495 = vpop.f32.mrb[0].mxu0
  %v496 = vpop.f32.mrb[0].mxu0
  %v497 = vadd.f32 0.0, %v496
  %v498 = vpop.f32.mrb[0].mxu0
  %499 = vmatprep.mubr.bf16.mxu0 0
  %500 = vmatmul.mubr.bf16.gmra.mrb[0].mxu0 %v296
  %v501 = vpop.f32.mrb[0].mxu0
  %v502 = vadd.f32 0.0, %v501
  %v503 = vpop.f32.mrb[0].mxu0
  %v504 = vpop.f32.mrb[0].mxu0
  %v505 = vadd.f32 0.0, %v504
  %v506 = vpop.f32.mrb[0].mxu0
  %507 = vmatprep.mubr.bf16.mxu0 0
  %508 = vmatmul.mubr.bf16.gmra.mrb[0].mxu0 %v299
  %v509 = vpop.f32.mrb[0].mxu0
  %v510 = vadd.f32 0.0, %v509
  %v511 = vpop.f32.mrb[0].mxu0
  %v512 = vpop.f32.mrb[0].mxu0
  %v513 = vadd.f32 0.0, %v512
  %v514 = vpop.f32.mrb[0].mxu0
  %515 = vmatprep.mubr.bf16.mxu0 0
  %516 = vmatmul.mubr.bf16.gmra.mrb[0].mxu0 %v302
  %v517 = vpop.f32.mrb[0].mxu0
  %v518 = vadd.f32 0.0, %v517
  %v519 = vpop.f32.mrb[0].mxu0
  %v520 = vpop.f32.mrb[0].mxu0
  %v521 = vadd.f32 0.0, %v520
  %v522 = vpop.f32.mrb[0].mxu0
  %523 = vmatprep.mubr.bf16.mxu0 0
  %524 = vmatmul.mubr.bf16.gmra.mrb[0].mxu0 %v305
  %v525 = vpop.f32.mrb[0].mxu0
  %v526 = vadd.f32 0.0, %v525
  %v527 = vpop.f32.mrb[0].mxu0
  %v528 = vpop.f32.mrb[0].mxu0
  %v529 = vadd.f32 0.0, %v528
  %v530 = vpop.f32.mrb[0].mxu0
  %531 = vmatprep.mubr.bf16.mxu0 0
  %532 = vmatmul.mubr.bf16.gmra.mrb[0].mxu0 %v308
  %v533 = vpop.f32.mrb[0].mxu0
  %v534 = vadd.f32 0.0, %v533
  %v535 = vpop.f32.mrb[0].mxu0
  %v536 = vpop.f32.mrb[0].mxu0
  %v537 = vadd.f32 0.0, %v536
  %v538 = vpop.f32.mrb[0].mxu0
  %539 = vmatprep.mubr.bf16.mxu0 0
  %540 = vmatmul.mubr.bf16.gmra.mrb[0].mxu0 %v311
  %v541 = vpop.f32.mrb[0].mxu0
  %v542 = vadd.f32 0.0, %v541
  %v543 = vpop.f32.mrb[0].mxu0
  %v544 = vpop.f32.mrb[0].mxu0
  %v545 = vadd.f32 0.0, %v544
  %v546 = vpop.f32.mrb[0].mxu0
  %547 = vmatprep.mubr.bf16.mxu0 0
  %548 = vmatmul.mubr.bf16.gmra.mrb[0].mxu0 %v314
  %v549 = vpop.f32.mrb[0].mxu0
  %v550 = vadd.f32 0.0, %v549
  %v551 = vpop.f32.mrb[0].mxu0
  %v552 = vpop.f32.mrb[0].mxu0
  %v553 = vadd.f32 0.0, %v552
  %v554 = vpop.f32.mrb[0].mxu0
  %555 = vmatprep.mubr.bf16.mxu0 0
  %556 = vmatmul.mubr.bf16.gmra.mrb[0].mxu0 %v317
  %v557 = vpop.f32.mrb[0].mxu0
  %v558 = vadd.f32 0.0, %v557
  %v559 = vpop.f32.mrb[0].mxu0
  %v560 = vpop.f32.mrb[0].mxu0
  %v561 = vadd.f32 0.0, %v560
  %v562 = vpop.f32.mrb[0].mxu0
  %563 = vmatprep.mubr.bf16.mxu0 0
  %564 = vmatmul.mubr.bf16.gmra.mrb[0].mxu0 %v320
  %v565 = vpop.f32.mrb[0].mxu0
  %v566 = vadd.f32 0.0, %v565
  %v567 = vpop.f32.mrb[0].mxu0
  %v568 = vpop.f32.mrb[0].mxu0
  %v569 = vadd.f32 0.0, %v568
  %v570 = vpop.f32.mrb[0].mxu0
  %571 = vmatprep.mubr.bf16.mxu0 0
  %572 = vmatmul.mubr.bf16.gmra.mrb[0].mxu0 %v323
  %v573 = vpop.f32.mrb[0].mxu0
  %v574 = vadd.f32 0.0, %v573
  %v575 = vpop.f32.mrb[0].mxu0
  %v576 = vpop.f32.mrb[0].mxu0
  %v577 = vadd.f32 0.0, %v576
  %v578 = vpop.f32.mrb[0].mxu0
  %579 = vmatprep.mubr.bf16.mxu0 0
  %580 = vmatmul.mubr.bf16.gmra.mrb[0].mxu0 %v326
  %v581 = vpop.f32.mrb[0].mxu0
  %v582 = vadd.f32 0.0, %v581
  %v583 = vpop.f32.mrb[0].mxu0
  %v584 = vpop.f32.mrb[0].mxu0
  %v585 = vadd.f32 0.0, %v584
  %v586 = vpop.f32.mrb[0].mxu0
  %587 = vmatprep.mubr.bf16.mxu0 0
  %588 = vmatmul.mubr.bf16.gmra.mrb[0].mxu0 %v329
  %v589 = vpop.f32.mrb[0].mxu0
  %v590 = vadd.f32 0.0, %v589
  %v591 = vpop.f32.mrb[0].mxu0
  %v592 = vpop.f32.mrb[0].mxu0
  %v593 = vpop.f32.mrb[0].mxu0
  %594 = vdwg.mxu0
  %v595 = vld [vmem:[%s1] sm:$0xf]
  %v596 = vld [vmem:[%s1 + $0x4] sm:$0xf]
  %v597 = vld [vmem:[%s1 + $0x8] sm:$0xf]
  %v598 = vld [vmem:[%s1 + $0xc] sm:$0xf]
  %v599 = vld [vmem:[%s1 + $0x10] sm:$0xf]
  %v600 = vld [vmem:[%s1 + $0x14] sm:$0xf]
  %v601 = vld [vmem:[%s1 + $0x18] sm:$0xf]
  %v602 = vld [vmem:[%s1 + $0x1c] sm:$0xf]
  %v603 = vld [vmem:[%s1 + $0x20] sm:$0xf]
  %v604 = vld [vmem:[%s1 + $0x24] sm:$0xf]
  %v605 = vld [vmem:[%s1 + $0x28] sm:$0xf]
  %v606 = vld [vmem:[%s1 + $0x2c] sm:$0xf]
  %v607 = vld [vmem:[%s1 + $0x30] sm:$0xf]
  %v608 = vld [vmem:[%s1 + $0x34] sm:$0xf]
  %v609 = vld [vmem:[%s1 + $0x38] sm:$0xf]
  %v610 = vld [vmem:[%s1 + $0x3c] sm:$0xf]
  %v611 = vld [vmem:[%s1 + $0x40] sm:$0xf]
  %v612 = vld [vmem:[%s1 + $0x44] sm:$0xf]
  %v613 = vld [vmem:[%s1 + $0x48] sm:$0xf]
  %v614 = vld [vmem:[%s1 + $0x4c] sm:$0xf]
  %v615 = vld [vmem:[%s1 + $0x50] sm:$0xf]
  %v616 = vld [vmem:[%s1 + $0x54] sm:$0xf]
  %v617 = vld [vmem:[%s1 + $0x58] sm:$0xf]
  %v618 = vld [vmem:[%s1 + $0x5c] sm:$0xf]
  %v619 = vld [vmem:[%s1 + $0x60] sm:$0xf]
  %v620 = vld [vmem:[%s1 + $0x64] sm:$0xf]
  %v621 = vld [vmem:[%s1 + $0x68] sm:$0xf]
  %v622 = vld [vmem:[%s1 + $0x6c] sm:$0xf]
  %v623 = vld [vmem:[%s1 + $0x70] sm:$0xf]
  %v624 = vld [vmem:[%s1 + $0x74] sm:$0xf]
  %v625 = vld [vmem:[%s1 + $0x78] sm:$0xf]
  %v626 = vld [vmem:[%s1 + $0x7c] sm:$0xf]
  %v627 = vld [vmem:[%s1 + $0x80] sm:$0xf]
  %v628 = vld [vmem:[%s1 + $0x84] sm:$0xf]
  %v629 = vld [vmem:[%s1 + $0x88] sm:$0xf]
  %v630 = vld [vmem:[%s1 + $0x8c] sm:$0xf]
  %v631 = vld [vmem:[%s1 + $0x90] sm:$0xf]
  %v632 = vld [vmem:[%s1 + $0x94] sm:$0xf]
  %v633 = vld [vmem:[%s1 + $0x98] sm:$0xf]
  %v634 = vld [vmem:[%s1 + $0x9c] sm:$0xf]
  %v635 = vld [vmem:[%s1 + $0xa0] sm:$0xf]
  %v636 = vld [vmem:[%s1 + $0xa4] sm:$0xf]
  %v637 = vld [vmem:[%s1 + $0xa8] sm:$0xf]
  %v638 = vld [vmem:[%s1 + $0xac] sm:$0xf]
  %v639 = vld [vmem:[%s1 + $0xb0] sm:$0xf]
  %v640 = vld [vmem:[%s1 + $0xb4] sm:$0xf]
  %v641 = vld [vmem:[%s1 + $0xb8] sm:$0xf]
  %v642 = vld [vmem:[%s1 + $0xbc] sm:$0xf]
  %v643 = vld [vmem:[%s1 + $0xc0] sm:$0xf]
  %v644 = vld [vmem:[%s1 + $0xc4] sm:$0xf]
  %v645 = vld [vmem:[%s1 + $0xc8] sm:$0xf]
  %v646 = vld [vmem:[%s1 + $0xcc] sm:$0xf]
  %v647 = vld [vmem:[%s1 + $0xd0] sm:$0xf]
  %v648 = vld [vmem:[%s1 + $0xd4] sm:$0xf]
  %v649 = vld [vmem:[%s1 + $0xd8] sm:$0xf]
  %v650 = vld [vmem:[%s1 + $0xdc] sm:$0xf]
  %v651 = vld [vmem:[%s1 + $0xe0] sm:$0x1]
  %v709 = vunpack.c.l.b16 %v595
  %v710 = vunpack.c.l.b16 %v596
  %v711 = vunpack.c.l.b16 %v597
  %v712 = vunpack.c.l.b16 %v598
  %v713 = vunpack.c.l.b16 %v599
  %v714 = vunpack.c.l.b16 %v600
  %v715 = vunpack.c.l.b16 %v601
  %v716 = vunpack.c.l.b16 %v602
  %v717 = vunpack.c.l.b16 %v603
  %v718 = vunpack.c.l.b16 %v604
  %v719 = vunpack.c.l.b16 %v605
  %v720 = vunpack.c.l.b16 %v606
  %v721 = vunpack.c.l.b16 %v607
  %v722 = vunpack.c.l.b16 %v608
  %v723 = vunpack.c.l.b16 %v609
  %v724 = vunpack.c.l.b16 %v610
  %v725 = vunpack.c.l.b16 %v611
  %v726 = vunpack.c.l.b16 %v612
  %v727 = vunpack.c.l.b16 %v613
  %v728 = vunpack.c.l.b16 %v614
  %v729 = vunpack.c.l.b16 %v615
  %v730 = vunpack.c.l.b16 %v616
  %v731 = vunpack.c.l.b16 %v617
  %v732 = vunpack.c.l.b16 %v618
  %v733 = vunpack.c.l.b16 %v619
  %v734 = vunpack.c.l.b16 %v620
  %v735 = vunpack.c.l.b16 %v621
  %v736 = vunpack.c.l.b16 %v622
  %v737 = vunpack.c.l.b16 %v623
  %v738 = vunpack.c.l.b16 %v624
  %v739 = vunpack.c.l.b16 %v625
  %v740 = vunpack.c.l.b16 %v626
  %v741 = vunpack.c.l.b16 %v627
  %v742 = vunpack.c.l.b16 %v628
  %v743 = vunpack.c.l.b16 %v629
  %v744 = vunpack.c.l.b16 %v630
  %v745 = vunpack.c.l.b16 %v631
  %v746 = vunpack.c.l.b16 %v632
  %v747 = vunpack.c.l.b16 %v633
  %v748 = vunpack.c.l.b16 %v634
  %v749 = vunpack.c.l.b16 %v635
  %v750 = vunpack.c.l.b16 %v636
  %v751 = vunpack.c.l.b16 %v637
  %v752 = vunpack.c.l.b16 %v638
  %v753 = vunpack.c.l.b16 %v639
  %v754 = vunpack.c.l.b16 %v640
  %v755 = vunpack.c.l.b16 %v641
  %v756 = vunpack.c.l.b16 %v642
  %v757 = vunpack.c.l.b16 %v643
  %v758 = vunpack.c.l.b16 %v644
  %v759 = vunpack.c.l.b16 %v645
  %v760 = vunpack.c.l.b16 %v646
  %v761 = vunpack.c.l.b16 %v647
  %v762 = vunpack.c.l.b16 %v648
  %v763 = vunpack.c.l.b16 %v649
  %v764 = vunpack.c.l.b16 %v650
  %v765 = vunpack.c.l.b16 %v651
  %v766 = vpack.c.b16 %v710, %v709
  %v767 = vpack.c.b16 %v712, %v711
  %v768 = vpack.c.b16 %v714, %v713
  %v769 = vpack.c.b16 %v716, %v715
  %v770 = vpack.c.b16 %v718, %v717
  %v771 = vpack.c.b16 %v720, %v719
  %v772 = vpack.c.b16 %v722, %v721
  %v773 = vpack.c.b16 %v724, %v723
  %v774 = vpack.c.b16 %v726, %v725
  %v775 = vpack.c.b16 %v728, %v727
  %v776 = vpack.c.b16 %v730, %v729
  %v777 = vpack.c.b16 %v732, %v731
  %v778 = vpack.c.b16 %v734, %v733
  %v779 = vpack.c.b16 %v736, %v735
  %v780 = vpack.c.b16 %v738, %v737
  %v781 = vpack.c.b16 %v740, %v739
  %v782 = vpack.c.b16 %v742, %v741
  %v783 = vpack.c.b16 %v744, %v743
  %v784 = vpack.c.b16 %v746, %v745
  %v785 = vpack.c.b16 %v748, %v747
  %v786 = vpack.c.b16 %v750, %v749
  %v787 = vpack.c.b16 %v752, %v751
  %v788 = vpack.c.b16 %v754, %v753
  %v789 = vpack.c.b16 %v756, %v755
  %v790 = vpack.c.b16 %v758, %v757
  %v791 = vpack.c.b16 %v760, %v759
  %v792 = vpack.c.b16 %v762, %v761
  %v793 = vpack.c.b16 %v764, %v763
  %v794 = vpack.c.b16 %v765, %v765
  %v796 = vsel %vm243, %v766, 0
  %v799 = vsel %vm243, %v767, 0
  %v802 = vsel %vm243, %v768, 0
  %v805 = vsel %vm243, %v769, 0
  %v808 = vsel %vm243, %v770, 0
  %v811 = vsel %vm243, %v771, 0
  %v814 = vsel %vm243, %v772, 0
  %v817 = vsel %vm243, %v773, 0
  %v820 = vsel %vm243, %v774, 0
  %v823 = vsel %vm243, %v775, 0
  %v826 = vsel %vm243, %v776, 0
  %v829 = vsel %vm243, %v777, 0
  %v832 = vsel %vm243, %v778, 0
  %v835 = vsel %vm243, %v779, 0
  %v838 = vsel %vm243, %v780, 0
  %v841 = vsel %vm243, %v781, 0
  %v844 = vsel %vm243, %v782, 0
  %v847 = vsel %vm243, %v783, 0
  %v850 = vsel %vm243, %v784, 0
  %v853 = vsel %vm243, %v785, 0
  %v856 = vsel %vm243, %v786, 0
  %v859 = vsel %vm243, %v787, 0
  %v862 = vsel %vm243, %v788, 0
  %v865 = vsel %vm243, %v789, 0
  %v868 = vsel %vm243, %v790, 0
  %v871 = vsel %vm243, %v791, 0
  %v874 = vsel %vm243, %v792, 0
  %v877 = vsel %vm243, %v793, 0
  %v880 = vsel %vm243, %v794, 0
  %882 = vmatprep.subr.bf16.mxu0 0
  %883 = vmatpush1.bf16.msra.mxu0 %v239
  %884 = vmatprep.subr.bf16.mxu0 0
  %885 = vmatpush1.bf16.msra.mxu0 %v240
  %886 = vmatprep.subr.bf16.mxu0 0
  %887 = vmatpush1.bf16.msra.mxu0 0
  %888 = vmatprep.subr.bf16.mxu0 0
  %889 = vmatpush1.bf16.msra.mxu0 0
  %890 = vmatprep.subr.bf16.mxu0 0
  %891 = vmatpush1.bf16.msra.mxu0 0
  %892 = vmatprep.subr.bf16.mxu0 0
  %893 = vmatpush1.bf16.msra.mxu0 0
  %894 = vmatprep.subr.bf16.mxu0 0
  %895 = vmatpush1.bf16.msra.mxu0 0
  %896 = vmatprep.subr.bf16.mxu0 0
  %897 = vmatpush1.bf16.msra.mxu0 0
  %898 = vmatprep.subr.bf16.mxu0 0
  %899 = vmatpush1.bf16.msra.mxu0 0
  %900 = vmatprep.subr.bf16.mxu0 0
  %901 = vmatpush1.bf16.msra.mxu0 0
  %902 = vmatprep.subr.bf16.mxu0 0
  %903 = vmatpush1.bf16.msra.mxu0 0
  %904 = vmatprep.subr.bf16.mxu0 0
  %905 = vmatpush1.bf16.msra.mxu0 0
  %906 = vmatprep.subr.bf16.mxu0 0
  %907 = vmatpush1.bf16.msra.mxu0 0
  %908 = vmatprep.subr.bf16.mxu0 0
  %909 = vmatpush1.bf16.msra.mxu0 0
  %910 = vmatprep.subr.bf16.mxu0 0
  %911 = vmatpush1.bf16.msra.mxu0 0
  %912 = vmatprep.subr.bf16.mxu0 0
  %913 = vmatpush1.bf16.msra.mxu0 0
  %914 = vmatprep.mubr.bf16.mxu0 0
  %915 = vmatmul.mubr.bf16.gmra.mrb[0].mxu0 %v796
  %v916 = vpop.f32.mrb[0].mxu0
  %v917 = vadd.f32 0.0, %v916
  %v918 = vpop.f32.mrb[0].mxu0
  %v919 = vpop.f32.mrb[0].mxu0
  %v920 = vadd.f32 0.0, %v919
  %v921 = vpop.f32.mrb[0].mxu0
  %922 = vmatprep.mubr.bf16.mxu0 0
  %923 = vmatmul.mubr.bf16.gmra.mrb[0].mxu0 %v799
  %v924 = vpop.f32.mrb[0].mxu0
  %v925 = vadd.f32 0.0, %v924
  %v926 = vpop.f32.mrb[0].mxu0
  %v927 = vpop.f32.mrb[0].mxu0
  %v928 = vadd.f32 0.0, %v927
  %v929 = vpop.f32.mrb[0].mxu0
  %930 = vmatprep.mubr.bf16.mxu0 0
  %931 = vmatmul.mubr.bf16.gmra.mrb[0].mxu0 %v802
  %v932 = vpop.f32.mrb[0].mxu0
  %v933 = vadd.f32 0.0, %v932
  %v934 = vpop.f32.mrb[0].mxu0
  %v935 = vpop.f32.mrb[0].mxu0
  %v936 = vadd.f32 0.0, %v935
  %v937 = vpop.f32.mrb[0].mxu0
  %938 = vmatprep.mubr.bf16.mxu0 0
  %939 = vmatmul.mubr.bf16.gmra.mrb[0].mxu0 %v805
  %v940 = vpop.f32.mrb[0].mxu0
  %v941 = vadd.f32 0.0, %v940
  %v942 = vpop.f32.mrb[0].mxu0
  %v943 = vpop.f32.mrb[0].mxu0
  %v944 = vadd.f32 0.0, %v943
  %v945 = vpop.f32.mrb[0].mxu0
  %946 = vmatprep.mubr.bf16.mxu0 0
  %947 = vmatmul.mubr.bf16.gmra.mrb[0].mxu0 %v808
  %v948 = vpop.f32.mrb[0].mxu0
  %v949 = vadd.f32 0.0, %v948
  %v950 = vpop.f32.mrb[0].mxu0
  %v951 = vpop.f32.mrb[0].mxu0
  %v952 = vadd.f32 0.0, %v951
  %v953 = vpop.f32.mrb[0].mxu0
  %954 = vmatprep.mubr.bf16.mxu0 0
  %955 = vmatmul.mubr.bf16.gmra.mrb[0].mxu0 %v811
  %v956 = vpop.f32.mrb[0].mxu0
  %v957 = vadd.f32 0.0, %v956
  %v958 = vpop.f32.mrb[0].mxu0
  %v959 = vpop.f32.mrb[0].mxu0
  %v960 = vadd.f32 0.0, %v959
  %v961 = vpop.f32.mrb[0].mxu0
  %962 = vmatprep.mubr.bf16.mxu0 0
  %963 = vmatmul.mubr.bf16.gmra.mrb[0].mxu0 %v814
  %v964 = vpop.f32.mrb[0].mxu0
  %v965 = vadd.f32 0.0, %v964
  %v966 = vpop.f32.mrb[0].mxu0
  %v967 = vpop.f32.mrb[0].mxu0
  %v968 = vadd.f32 0.0, %v967
  %v969 = vpop.f32.mrb[0].mxu0
  %970 = vmatprep.mubr.bf16.mxu0 0
  %971 = vmatmul.mubr.bf16.gmra.mrb[0].mxu0 %v817
  %v972 = vpop.f32.mrb[0].mxu0
  %v973 = vadd.f32 0.0, %v972
  %v974 = vpop.f32.mrb[0].mxu0
  %v975 = vpop.f32.mrb[0].mxu0
  %v976 = vadd.f32 0.0, %v975
  %v977 = vpop.f32.mrb[0].mxu0
  %978 = vmatprep.mubr.bf16.mxu0 0
  %979 = vmatmul.mubr.bf16.gmra.mrb[0].mxu0 %v820
  %v980 = vpop.f32.mrb[0].mxu0
  %v981 = vadd.f32 0.0, %v980
  %v982 = vpop.f32.mrb[0].mxu0
  %v983 = vpop.f32.mrb[0].mxu0
  %v984 = vadd.f32 0.0, %v983
  %v985 = vpop.f32.mrb[0].mxu0
  %986 = vmatprep.mubr.bf16.mxu0 0
  %987 = vmatmul.mubr.bf16.gmra.mrb[0].mxu0 %v823
  %v988 = vpop.f32.mrb[0].mxu0
  %v989 = vadd.f32 0.0, %v988
  %v990 = vpop.f32.mrb[0].mxu0
  %v991 = vpop.f32.mrb[0].mxu0
  %v992 = vadd.f32 0.0, %v991
  %v993 = vpop.f32.mrb[0].mxu0
  %994 = vmatprep.mubr.bf16.mxu0 0
  %995 = vmatmul.mubr.bf16.gmra.mrb[0].mxu0 %v826
  %v996 = vpop.f32.mrb[0].mxu0
  %v997 = vadd.f32 0.0, %v996
  %v998 = vpop.f32.mrb[0].mxu0
  %v999 = vpop.f32.mrb[0].mxu0
  %v1000 = vadd.f32 0.0, %v999
  %v1001 = vpop.f32.mrb[0].mxu0
  %1002 = vmatprep.mubr.bf16.mxu0 0
  %1003 = vmatmul.mubr.bf16.gmra.mrb[0].mxu0 %v829
  %v1004 = vpop.f32.mrb[0].mxu0
  %v1005 = vadd.f32 0.0, %v1004
  %v1006 = vpop.f32.mrb[0].mxu0
  %v1007 = vpop.f32.mrb[0].mxu0
  %v1008 = vadd.f32 0.0, %v1007
  %v1009 = vpop.f32.mrb[0].mxu0
  %1010 = vmatprep.mubr.bf16.mxu0 0
  %1011 = vmatmul.mubr.bf16.gmra.mrb[0].mxu0 %v832
  %v1012 = vpop.f32.mrb[0].mxu0
  %v1013 = vadd.f32 0.0, %v1012
  %v1014 = vpop.f32.mrb[0].mxu0
  %v1015 = vpop.f32.mrb[0].mxu0
  %v1016 = vadd.f32 0.0, %v1015
  %v1017 = vpop.f32.mrb[0].mxu0
  %1018 = vmatprep.mubr.bf16.mxu0 0
  %1019 = vmatmul.mubr.bf16.gmra.mrb[0].mxu0 %v835
  %v1020 = vpop.f32.mrb[0].mxu0
  %v1021 = vadd.f32 0.0, %v1020
  %v1022 = vpop.f32.mrb[0].mxu0
  %v1023 = vpop.f32.mrb[0].mxu0
  %v1024 = vadd.f32 0.0, %v1023
  %v1025 = vpop.f32.mrb[0].mxu0
  %1026 = vmatprep.mubr.bf16.mxu0 0
  %1027 = vmatmul.mubr.bf16.gmra.mrb[0].mxu0 %v838
  %v1028 = vpop.f32.mrb[0].mxu0
  %v1029 = vadd.f32 0.0, %v1028
  %v1030 = vpop.f32.mrb[0].mxu0
  %v1031 = vpop.f32.mrb[0].mxu0
  %v1032 = vadd.f32 0.0, %v1031
  %v1033 = vpop.f32.mrb[0].mxu0
  %1034 = vmatprep.mubr.bf16.mxu0 0
  %1035 = vmatmul.mubr.bf16.gmra.mrb[0].mxu0 %v841
  %v1036 = vpop.f32.mrb[0].mxu0
  %v1037 = vadd.f32 0.0, %v1036
  %v1038 = vpop.f32.mrb[0].mxu0
  %v1039 = vpop.f32.mrb[0].mxu0
  %v1040 = vadd.f32 0.0, %v1039
  %v1041 = vpop.f32.mrb[0].mxu0
  %1042 = vmatprep.mubr.bf16.mxu0 0
  %1043 = vmatmul.mubr.bf16.gmra.mrb[0].mxu0 %v844
  %v1044 = vpop.f32.mrb[0].mxu0
  %v1045 = vadd.f32 0.0, %v1044
  %v1046 = vpop.f32.mrb[0].mxu0
  %v1047 = vpop.f32.mrb[0].mxu0
  %v1048 = vadd.f32 0.0, %v1047
  %v1049 = vpop.f32.mrb[0].mxu0
  %1050 = vmatprep.mubr.bf16.mxu0 0
  %1051 = vmatmul.mubr.bf16.gmra.mrb[0].mxu0 %v847
  %v1052 = vpop.f32.mrb[0].mxu0
  %v1053 = vadd.f32 0.0, %v1052
  %v1054 = vpop.f32.mrb[0].mxu0
  %v1055 = vpop.f32.mrb[0].mxu0
  %v1056 = vadd.f32 0.0, %v1055
  %v1057 = vpop.f32.mrb[0].mxu0
  %1058 = vmatprep.mubr.bf16.mxu0 0
  %1059 = vmatmul.mubr.bf16.gmra.mrb[0].mxu0 %v850
  %v1060 = vpop.f32.mrb[0].mxu0
  %v1061 = vadd.f32 0.0, %v1060
  %v1062 = vpop.f32.mrb[0].mxu0
  %v1063 = vpop.f32.mrb[0].mxu0
  %v1064 = vadd.f32 0.0, %v1063
  %v1065 = vpop.f32.mrb[0].mxu0
  %1066 = vmatprep.mubr.bf16.mxu0 0
  %1067 = vmatmul.mubr.bf16.gmra.mrb[0].mxu0 %v853
  %v1068 = vpop.f32.mrb[0].mxu0
  %v1069 = vadd.f32 0.0, %v1068
  %v1070 = vpop.f32.mrb[0].mxu0
  %v1071 = vpop.f32.mrb[0].mxu0
  %v1072 = vadd.f32 0.0, %v1071
  %v1073 = vpop.f32.mrb[0].mxu0
  %1074 = vmatprep.mubr.bf16.mxu0 0
  %1075 = vmatmul.mubr.bf16.gmra.mrb[0].mxu0 %v856
  %v1076 = vpop.f32.mrb[0].mxu0
  %v1077 = vadd.f32 0.0, %v1076
  %v1078 = vpop.f32.mrb[0].mxu0
  %v1079 = vpop.f32.mrb[0].mxu0
  %v1080 = vadd.f32 0.0, %v1079
  %v1081 = vpop.f32.mrb[0].mxu0
  %1082 = vmatprep.mubr.bf16.mxu0 0
  %1083 = vmatmul.mubr.bf16.gmra.mrb[0].mxu0 %v859
  %v1084 = vpop.f32.mrb[0].mxu0
  %v1085 = vadd.f32 0.0, %v1084
  %v1086 = vpop.f32.mrb[0].mxu0
  %v1087 = vpop.f32.mrb[0].mxu0
  %v1088 = vadd.f32 0.0, %v1087
  %v1089 = vpop.f32.mrb[0].mxu0
  %1090 = vmatprep.mubr.bf16.mxu0 0
  %1091 = vmatmul.mubr.bf16.gmra.mrb[0].mxu0 %v862
  %v1092 = vpop.f32.mrb[0].mxu0
  %v1093 = vadd.f32 0.0, %v1092
  %v1094 = vpop.f32.mrb[0].mxu0
  %v1095 = vpop.f32.mrb[0].mxu0
  %v1096 = vadd.f32 0.0, %v1095
  %v1097 = vpop.f32.mrb[0].mxu0
  %1098 = vmatprep.mubr.bf16.mxu0 0
  %1099 = vmatmul.mubr.bf16.gmra.mrb[0].mxu0 %v865
  %v1100 = vpop.f32.mrb[0].mxu0
  %v1101 = vadd.f32 0.0, %v1100
  %v1102 = vpop.f32.mrb[0].mxu0
  %v1103 = vpop.f32.mrb[0].mxu0
  %v1104 = vadd.f32 0.0, %v1103
  %v1105 = vpop.f32.mrb[0].mxu0
  %1106 = vmatprep.mubr.bf16.mxu0 0
  %1107 = vmatmul.mubr.bf16.gmra.mrb[0].mxu0 %v868
  %v1108 = vpop.f32.mrb[0].mxu0
  %v1109 = vadd.f32 0.0, %v1108
  %v1110 = vpop.f32.mrb[0].mxu0
  %v1111 = vpop.f32.mrb[0].mxu0
  %v1112 = vadd.f32 0.0, %v1111
  %v1113 = vpop.f32.mrb[0].mxu0
  %1114 = vmatprep.mubr.bf16.mxu0 0
  %1115 = vmatmul.mubr.bf16.gmra.mrb[0].mxu0 %v871
  %v1116 = vpop.f32.mrb[0].mxu0
  %v1117 = vadd.f32 0.0, %v1116
  %v1118 = vpop.f32.mrb[0].mxu0
  %v1119 = vpop.f32.mrb[0].mxu0
  %v1120 = vadd.f32 0.0, %v1119
  %v1121 = vpop.f32.mrb[0].mxu0
  %1122 = vmatprep.mubr.bf16.mxu0 0
  %1123 = vmatmul.mubr.bf16.gmra.mrb[0].mxu0 %v874
  %v1124 = vpop.f32.mrb[0].mxu0
  %v1125 = vadd.f32 0.0, %v1124
  %v1126 = vpop.f32.mrb[0].mxu0
  %v1127 = vpop.f32.mrb[0].mxu0
  %v1128 = vadd.f32 0.0, %v1127
  %v1129 = vpop.f32.mrb[0].mxu0
  %1130 = vmatprep.mubr.bf16.mxu0 0
  %1131 = vmatmul.mubr.bf16.gmra.mrb[0].mxu0 %v877
  %v1132 = vpop.f32.mrb[0].mxu0
  %v1133 = vadd.f32 0.0, %v1132
  %v1134 = vpop.f32.mrb[0].mxu0
  %v1135 = vpop.f32.mrb[0].mxu0
  %v1136 = vadd.f32 0.0, %v1135
  %v1137 = vpop.f32.mrb[0].mxu0
  %1138 = vmatprep.mubr.bf16.mxu0 0
  %1139 = vmatmul.mubr.bf16.gmra.mrb[0].mxu0 %v880
  %v1140 = vpop.f32.mrb[0].mxu0
  %v1141 = vadd.f32 0.0, %v1140
  %v1142 = vpop.f32.mrb[0].mxu0
  %v1143 = vpop.f32.mrb[0].mxu0
  %v1144 = vpop.f32.mrb[0].mxu0
  %1145 = vdwg.mxu0
  %v1146 = vld [vmem:[%s2] sm:$0xf]
  %v1147 = vld [vmem:[%s2 + $0x4] sm:$0xf]
  %v1148 = vld [vmem:[%s2 + $0x8] sm:$0xf]
  %v1149 = vld [vmem:[%s2 + $0xc] sm:$0xf]
  %v1150 = vld [vmem:[%s2 + $0x10] sm:$0xf]
  %v1151 = vld [vmem:[%s2 + $0x14] sm:$0xf]
  %v1152 = vld [vmem:[%s2 + $0x18] sm:$0xf]
  %v1153 = vld [vmem:[%s2 + $0x1c] sm:$0xf]
  %v1154 = vld [vmem:[%s2 + $0x20] sm:$0xf]
  %v1155 = vld [vmem:[%s2 + $0x24] sm:$0xf]
  %v1156 = vld [vmem:[%s2 + $0x28] sm:$0xf]
  %v1157 = vld [vmem:[%s2 + $0x2c] sm:$0xf]
  %v1158 = vld [vmem:[%s2 + $0x30] sm:$0xf]
  %v1159 = vld [vmem:[%s2 + $0x34] sm:$0xf]
  %v1160 = vld [vmem:[%s2 + $0x38] sm:$0xf]
  %v1161 = vld [vmem:[%s2 + $0x3c] sm:$0xf]
  %v1162 = vld [vmem:[%s2 + $0x40] sm:$0xf]
  %v1163 = vld [vmem:[%s2 + $0x44] sm:$0xf]
  %v1164 = vld [vmem:[%s2 + $0x48] sm:$0xf]
  %v1165 = vld [vmem:[%s2 + $0x4c] sm:$0xf]
  %v1166 = vld [vmem:[%s2 + $0x50] sm:$0xf]
  %v1167 = vld [vmem:[%s2 + $0x54] sm:$0xf]
  %v1168 = vld [vmem:[%s2 + $0x58] sm:$0xf]
  %v1169 = vld [vmem:[%s2 + $0x5c] sm:$0xf]
  %v1170 = vld [vmem:[%s2 + $0x60] sm:$0xf]
  %v1171 = vld [vmem:[%s2 + $0x64] sm:$0xf]
  %v1172 = vld [vmem:[%s2 + $0x68] sm:$0xf]
  %v1173 = vld [vmem:[%s2 + $0x6c] sm:$0xf]
  %v1174 = vld [vmem:[%s2 + $0x70] sm:$0xf]
  %v1175 = vld [vmem:[%s2 + $0x74] sm:$0xf]
  %v1176 = vld [vmem:[%s2 + $0x78] sm:$0xf]
  %v1177 = vld [vmem:[%s2 + $0x7c] sm:$0xf]
  %v1178 = vld [vmem:[%s2 + $0x80] sm:$0xf]
  %v1179 = vld [vmem:[%s2 + $0x84] sm:$0xf]
  %v1180 = vld [vmem:[%s2 + $0x88] sm:$0xf]
  %v1181 = vld [vmem:[%s2 + $0x8c] sm:$0xf]
  %v1182 = vld [vmem:[%s2 + $0x90] sm:$0xf]
  %v1183 = vld [vmem:[%s2 + $0x94] sm:$0xf]
  %v1184 = vld [vmem:[%s2 + $0x98] sm:$0xf]
  %v1185 = vld [vmem:[%s2 + $0x9c] sm:$0xf]
  %v1186 = vld [vmem:[%s2 + $0xa0] sm:$0xf]
  %v1187 = vld [vmem:[%s2 + $0xa4] sm:$0xf]
  %v1188 = vld [vmem:[%s2 + $0xa8] sm:$0xf]
  %v1189 = vld [vmem:[%s2 + $0xac] sm:$0xf]
  %v1190 = vld [vmem:[%s2 + $0xb0] sm:$0xf]
  %v1191 = vld [vmem:[%s2 + $0xb4] sm:$0xf]
  %v1192 = vld [vmem:[%s2 + $0xb8] sm:$0xf]
  %v1193 = vld [vmem:[%s2 + $0xbc] sm:$0xf]
  %v1194 = vld [vmem:[%s2 + $0xc0] sm:$0xf]
  %v1195 = vld [vmem:[%s2 + $0xc4] sm:$0xf]
  %v1196 = vld [vmem:[%s2 + $0xc8] sm:$0xf]
  %v1197 = vld [vmem:[%s2 + $0xcc] sm:$0xf]
  %v1198 = vld [vmem:[%s2 + $0xd0] sm:$0xf]
  %v1199 = vld [vmem:[%s2 + $0xd4] sm:$0xf]
  %v1200 = vld [vmem:[%s2 + $0xd8] sm:$0xf]
  %v1201 = vld [vmem:[%s2 + $0xdc] sm:$0xf]
  %v1202 = vld [vmem:[%s2 + $0xe0] sm:$0x1]
  %v1260 = vunpack.c.l.b16 %v1146
  %v1261 = vunpack.c.l.b16 %v1147
  %v1262 = vunpack.c.l.b16 %v1148
  %v1263 = vunpack.c.l.b16 %v1149
  %v1264 = vunpack.c.l.b16 %v1150
  %v1265 = vunpack.c.l.b16 %v1151
  %v1266 = vunpack.c.l.b16 %v1152
  %v1267 = vunpack.c.l.b16 %v1153
  %v1268 = vunpack.c.l.b16 %v1154
  %v1269 = vunpack.c.l.b16 %v1155
  %v1270 = vunpack.c.l.b16 %v1156
  %v1271 = vunpack.c.l.b16 %v1157
  %v1272 = vunpack.c.l.b16 %v1158
  %v1273 = vunpack.c.l.b16 %v1159
  %v1274 = vunpack.c.l.b16 %v1160
  %v1275 = vunpack.c.l.b16 %v1161
  %v1276 = vunpack.c.l.b16 %v1162
  %v1277 = vunpack.c.l.b16 %v1163
  %v1278 = vunpack.c.l.b16 %v1164
  %v1279 = vunpack.c.l.b16 %v1165
  %v1280 = vunpack.c.l.b16 %v1166
  %v1281 = vunpack.c.l.b16 %v1167
  %v1282 = vunpack.c.l.b16 %v1168
  %v1283 = vunpack.c.l.b16 %v1169
  %v1284 = vunpack.c.l.b16 %v1170
  %v1285 = vunpack.c.l.b16 %v1171
  %v1286 = vunpack.c.l.b16 %v1172
  %v1287 = vunpack.c.l.b16 %v1173
  %v1288 = vunpack.c.l.b16 %v1174
  %v1289 = vunpack.c.l.b16 %v1175
  %v1290 = vunpack.c.l.b16 %v1176
  %v1291 = vunpack.c.l.b16 %v1177
  %v1292 = vunpack.c.l.b16 %v1178
  %v1293 = vunpack.c.l.b16 %v1179
  %v1294 = vunpack.c.l.b16 %v1180
  %v1295 = vunpack.c.l.b16 %v1181
  %v1296 = vunpack.c.l.b16 %v1182
  %v1297 = vunpack.c.l.b16 %v1183
  %v1298 = vunpack.c.l.b16 %v1184
  %v1299 = vunpack.c.l.b16 %v1185
  %v1300 = vunpack.c.l.b16 %v1186
  %v1301 = vunpack.c.l.b16 %v1187
  %v1302 = vunpack.c.l.b16 %v1188
  %v1303 = vunpack.c.l.b16 %v1189
  %v1304 = vunpack.c.l.b16 %v1190
  %v1305 = vunpack.c.l.b16 %v1191
  %v1306 = vunpack.c.l.b16 %v1192
  %v1307 = vunpack.c.l.b16 %v1193
  %v1308 = vunpack.c.l.b16 %v1194
  %v1309 = vunpack.c.l.b16 %v1195
  %v1310 = vunpack.c.l.b16 %v1196
  %v1311 = vunpack.c.l.b16 %v1197
  %v1312 = vunpack.c.l.b16 %v1198
  %v1313 = vunpack.c.l.b16 %v1199
  %v1314 = vunpack.c.l.b16 %v1200
  %v1315 = vunpack.c.l.b16 %v1201
  %v1316 = vunpack.c.l.b16 %v1202
  %v1317 = vpack.c.b16 %v1261, %v1260
  %v1318 = vpack.c.b16 %v1263, %v1262
  %v1319 = vpack.c.b16 %v1265, %v1264
  %v1320 = vpack.c.b16 %v1267, %v1266
  %v1321 = vpack.c.b16 %v1269, %v1268
  %v1322 = vpack.c.b16 %v1271, %v1270
  %v1323 = vpack.c.b16 %v1273, %v1272
  %v1324 = vpack.c.b16 %v1275, %v1274
  %v1325 = vpack.c.b16 %v1277, %v1276
  %v1326 = vpack.c.b16 %v1279, %v1278
  %v1327 = vpack.c.b16 %v1281, %v1280
  %v1328 = vpack.c.b16 %v1283, %v1282
  %v1329 = vpack.c.b16 %v1285, %v1284
  %v1330 = vpack.c.b16 %v1287, %v1286
  %v1331 = vpack.c.b16 %v1289, %v1288
  %v1332 = vpack.c.b16 %v1291, %v1290
  %v1333 = vpack.c.b16 %v1293, %v1292
  %v1334 = vpack.c.b16 %v1295, %v1294
  %v1335 = vpack.c.b16 %v1297, %v1296
  %v1336 = vpack.c.b16 %v1299, %v1298
  %v1337 = vpack.c.b16 %v1301, %v1300
  %v1338 = vpack.c.b16 %v1303, %v1302
  %v1339 = vpack.c.b16 %v1305, %v1304
  %v1340 = vpack.c.b16 %v1307, %v1306
  %v1341 = vpack.c.b16 %v1309, %v1308
  %v1342 = vpack.c.b16 %v1311, %v1310
  %v1343 = vpack.c.b16 %v1313, %v1312
  %v1344 = vpack.c.b16 %v1315, %v1314
  %v1345 = vpack.c.b16 %v1316, %v1316
  %v1347 = vsel %vm243, %v1317, 0
  %v1350 = vsel %vm243, %v1318, 0
  %v1353 = vsel %vm243, %v1319, 0
  %v1356 = vsel %vm243, %v1320, 0
  %v1359 = vsel %vm243, %v1321, 0
  %v1362 = vsel %vm243, %v1322, 0
  %v1365 = vsel %vm243, %v1323, 0
  %v1368 = vsel %vm243, %v1324, 0
  %v1371 = vsel %vm243, %v1325, 0
  %v1374 = vsel %vm243, %v1326, 0
  %v1377 = vsel %vm243, %v1327, 0
  %v1380 = vsel %vm243, %v1328, 0
  %v1383 = vsel %vm243, %v1329, 0
  %v1386 = vsel %vm243, %v1330, 0
  %v1389 = vsel %vm243, %v1331, 0
  %v1392 = vsel %vm243, %v1332, 0
  %v1395 = vsel %vm243, %v1333, 0
  %v1398 = vsel %vm243, %v1334, 0
  %v1401 = vsel %vm243, %v1335, 0
  %v1404 = vsel %vm243, %v1336, 0
  %v1407 = vsel %vm243, %v1337, 0
  %v1410 = vsel %vm243, %v1338, 0
  %v1413 = vsel %vm243, %v1339, 0
  %v1416 = vsel %vm243, %v1340, 0
  %v1419 = vsel %vm243, %v1341, 0
  %v1422 = vsel %vm243, %v1342, 0
  %v1425 = vsel %vm243, %v1343, 0
  %v1428 = vsel %vm243, %v1344, 0
  %v1431 = vsel %vm243, %v1345, 0
  %1433 = vmatprep.subr.bf16.mxu0 0
  %1434 = vmatpush1.bf16.msra.mxu0 %v239
  %1435 = vmatprep.subr.bf16.mxu0 0
  %1436 = vmatpush1.bf16.msra.mxu0 %v240
  %1437 = vmatprep.subr.bf16.mxu0 0
  %1438 = vmatpush1.bf16.msra.mxu0 0
  %1439 = vmatprep.subr.bf16.mxu0 0
  %1440 = vmatpush1.bf16.msra.mxu0 0
  %1441 = vmatprep.subr.bf16.mxu0 0
  %1442 = vmatpush1.bf16.msra.mxu0 0
  %1443 = vmatprep.subr.bf16.mxu0 0
  %1444 = vmatpush1.bf16.msra.mxu0 0
  %1445 = vmatprep.subr.bf16.mxu0 0
  %1446 = vmatpush1.bf16.msra.mxu0 0
  %1447 = vmatprep.subr.bf16.mxu0 0
  %1448 = vmatpush1.bf16.msra.mxu0 0
  %1449 = vmatprep.subr.bf16.mxu0 0
  %1450 = vmatpush1.bf16.msra.mxu0 0
  %1451 = vmatprep.subr.bf16.mxu0 0
  %1452 = vmatpush1.bf16.msra.mxu0 0
  %1453 = vmatprep.subr.bf16.mxu0 0
  %1454 = vmatpush1.bf16.msra.mxu0 0
  %1455 = vmatprep.subr.bf16.mxu0 0
  %1456 = vmatpush1.bf16.msra.mxu0 0
  %1457 = vmatprep.subr.bf16.mxu0 0
  %1458 = vmatpush1.bf16.msra.mxu0 0
  %1459 = vmatprep.subr.bf16.mxu0 0
  %1460 = vmatpush1.bf16.msra.mxu0 0
  %1461 = vmatprep.subr.bf16.mxu0 0
  %1462 = vmatpush1.bf16.msra.mxu0 0
  %1463 = vmatprep.subr.bf16.mxu0 0
  %1464 = vmatpush1.bf16.msra.mxu0 0
  %1465 = vmatprep.mubr.bf16.mxu0 0
  %1466 = vmatmul.mubr.bf16.gmra.mrb[0].mxu0 %v1347
  %v1467 = vpop.f32.mrb[0].mxu0
  %v1468 = vadd.f32 0.0, %v1467
  %v1469 = vpop.f32.mrb[0].mxu0
  %v1470 = vpop.f32.mrb[0].mxu0
  %v1471 = vadd.f32 0.0, %v1470
  %v1472 = vpop.f32.mrb[0].mxu0
  %1473 = vmatprep.mubr.bf16.mxu0 0
  %1474 = vmatmul.mubr.bf16.gmra.mrb[0].mxu0 %v1350
  %v1475 = vpop.f32.mrb[0].mxu0
  %v1476 = vadd.f32 0.0, %v1475
  %v1477 = vpop.f32.mrb[0].mxu0
  %v1478 = vpop.f32.mrb[0].mxu0
  %v1479 = vadd.f32 0.0, %v1478
  %v1480 = vpop.f32.mrb[0].mxu0
  %1481 = vmatprep.mubr.bf16.mxu0 0
  %1482 = vmatmul.mubr.bf16.gmra.mrb[0].mxu0 %v1353
  %v1483 = vpop.f32.mrb[0].mxu0
  %v1484 = vadd.f32 0.0, %v1483
  %v1485 = vpop.f32.mrb[0].mxu0
  %v1486 = vpop.f32.mrb[0].mxu0
  %v1487 = vadd.f32 0.0, %v1486
  %v1488 = vpop.f32.mrb[0].mxu0
  %1489 = vmatprep.mubr.bf16.mxu0 0
  %1490 = vmatmul.mubr.bf16.gmra.mrb[0].mxu0 %v1356
  %v1491 = vpop.f32.mrb[0].mxu0
  %v1492 = vadd.f32 0.0, %v1491
  %v1493 = vpop.f32.mrb[0].mxu0
  %v1494 = vpop.f32.mrb[0].mxu0
  %v1495 = vadd.f32 0.0, %v1494
  %v1496 = vpop.f32.mrb[0].mxu0
  %1497 = vmatprep.mubr.bf16.mxu0 0
  %1498 = vmatmul.mubr.bf16.gmra.mrb[0].mxu0 %v1359
  %v1499 = vpop.f32.mrb[0].mxu0
  %v1500 = vadd.f32 0.0, %v1499
  %v1501 = vpop.f32.mrb[0].mxu0
  %v1502 = vpop.f32.mrb[0].mxu0
  %v1503 = vadd.f32 0.0, %v1502
  %v1504 = vpop.f32.mrb[0].mxu0
  %1505 = vmatprep.mubr.bf16.mxu0 0
  %1506 = vmatmul.mubr.bf16.gmra.mrb[0].mxu0 %v1362
  %v1507 = vpop.f32.mrb[0].mxu0
  %v1508 = vadd.f32 0.0, %v1507
  %v1509 = vpop.f32.mrb[0].mxu0
  %v1510 = vpop.f32.mrb[0].mxu0
  %v1511 = vadd.f32 0.0, %v1510
  %v1512 = vpop.f32.mrb[0].mxu0
  %1513 = vmatprep.mubr.bf16.mxu0 0
  %1514 = vmatmul.mubr.bf16.gmra.mrb[0].mxu0 %v1365
  %v1515 = vpop.f32.mrb[0].mxu0
  %v1516 = vadd.f32 0.0, %v1515
  %v1517 = vpop.f32.mrb[0].mxu0
  %v1518 = vpop.f32.mrb[0].mxu0
  %v1519 = vadd.f32 0.0, %v1518
  %v1520 = vpop.f32.mrb[0].mxu0
  %1521 = vmatprep.mubr.bf16.mxu0 0
  %1522 = vmatmul.mubr.bf16.gmra.mrb[0].mxu0 %v1368
  %v1523 = vpop.f32.mrb[0].mxu0
  %v1524 = vadd.f32 0.0, %v1523
  %v1525 = vpop.f32.mrb[0].mxu0
  %v1526 = vpop.f32.mrb[0].mxu0
  %v1527 = vadd.f32 0.0, %v1526
  %v1528 = vpop.f32.mrb[0].mxu0
  %1529 = vmatprep.mubr.bf16.mxu0 0
  %1530 = vmatmul.mubr.bf16.gmra.mrb[0].mxu0 %v1371
  %v1531 = vpop.f32.mrb[0].mxu0
  %v1532 = vadd.f32 0.0, %v1531
  %v1533 = vpop.f32.mrb[0].mxu0
  %v1534 = vpop.f32.mrb[0].mxu0
  %v1535 = vadd.f32 0.0, %v1534
  %v1536 = vpop.f32.mrb[0].mxu0
  %1537 = vmatprep.mubr.bf16.mxu0 0
  %1538 = vmatmul.mubr.bf16.gmra.mrb[0].mxu0 %v1374
  %v1539 = vpop.f32.mrb[0].mxu0
  %v1540 = vadd.f32 0.0, %v1539
  %v1541 = vpop.f32.mrb[0].mxu0
  %v1542 = vpop.f32.mrb[0].mxu0
  %v1543 = vadd.f32 0.0, %v1542
  %v1544 = vpop.f32.mrb[0].mxu0
  %1545 = vmatprep.mubr.bf16.mxu0 0
  %1546 = vmatmul.mubr.bf16.gmra.mrb[0].mxu0 %v1377
  %v1547 = vpop.f32.mrb[0].mxu0
  %v1548 = vadd.f32 0.0, %v1547
  %v1549 = vpop.f32.mrb[0].mxu0
  %v1550 = vpop.f32.mrb[0].mxu0
  %v1551 = vadd.f32 0.0, %v1550
  %v1552 = vpop.f32.mrb[0].mxu0
  %1553 = vmatprep.mubr.bf16.mxu0 0
  %1554 = vmatmul.mubr.bf16.gmra.mrb[0].mxu0 %v1380
  %v1555 = vpop.f32.mrb[0].mxu0
  %v1556 = vadd.f32 0.0, %v1555
  %v1557 = vpop.f32.mrb[0].mxu0
  %v1558 = vpop.f32.mrb[0].mxu0
  %v1559 = vadd.f32 0.0, %v1558
  %v1560 = vpop.f32.mrb[0].mxu0
  %1561 = vmatprep.mubr.bf16.mxu0 0
  %1562 = vmatmul.mubr.bf16.gmra.mrb[0].mxu0 %v1383
  %v1563 = vpop.f32.mrb[0].mxu0
  %v1564 = vadd.f32 0.0, %v1563
  %v1565 = vpop.f32.mrb[0].mxu0
  %v1566 = vpop.f32.mrb[0].mxu0
  %v1567 = vadd.f32 0.0, %v1566
  %v1568 = vpop.f32.mrb[0].mxu0
  %1569 = vmatprep.mubr.bf16.mxu0 0
  %1570 = vmatmul.mubr.bf16.gmra.mrb[0].mxu0 %v1386
  %v1571 = vpop.f32.mrb[0].mxu0
  %v1572 = vadd.f32 0.0, %v1571
  %v1573 = vpop.f32.mrb[0].mxu0
  %v1574 = vpop.f32.mrb[0].mxu0
  %v1575 = vadd.f32 0.0, %v1574
  %v1576 = vpop.f32.mrb[0].mxu0
  %1577 = vmatprep.mubr.bf16.mxu0 0
  %1578 = vmatmul.mubr.bf16.gmra.mrb[0].mxu0 %v1389
  %v1579 = vpop.f32.mrb[0].mxu0
  %v1580 = vadd.f32 0.0, %v1579
  %v1581 = vpop.f32.mrb[0].mxu0
  %v1582 = vpop.f32.mrb[0].mxu0
  %v1583 = vadd.f32 0.0, %v1582
  %v1584 = vpop.f32.mrb[0].mxu0
  %1585 = vmatprep.mubr.bf16.mxu0 0
  %1586 = vmatmul.mubr.bf16.gmra.mrb[0].mxu0 %v1392
  %v1587 = vpop.f32.mrb[0].mxu0
  %v1588 = vadd.f32 0.0, %v1587
  %v1589 = vpop.f32.mrb[0].mxu0
  %v1590 = vpop.f32.mrb[0].mxu0
  %v1591 = vadd.f32 0.0, %v1590
  %v1592 = vpop.f32.mrb[0].mxu0
  %1593 = vmatprep.mubr.bf16.mxu0 0
  %1594 = vmatmul.mubr.bf16.gmra.mrb[0].mxu0 %v1395
  %v1595 = vpop.f32.mrb[0].mxu0
  %v1596 = vadd.f32 0.0, %v1595
  %v1597 = vpop.f32.mrb[0].mxu0
  %v1598 = vpop.f32.mrb[0].mxu0
  %v1599 = vadd.f32 0.0, %v1598
  %v1600 = vpop.f32.mrb[0].mxu0
  %1601 = vmatprep.mubr.bf16.mxu0 0
  %1602 = vmatmul.mubr.bf16.gmra.mrb[0].mxu0 %v1398
  %v1603 = vpop.f32.mrb[0].mxu0
  %v1604 = vadd.f32 0.0, %v1603
  %v1605 = vpop.f32.mrb[0].mxu0
  %v1606 = vpop.f32.mrb[0].mxu0
  %v1607 = vadd.f32 0.0, %v1606
  %v1608 = vpop.f32.mrb[0].mxu0
  %1609 = vmatprep.mubr.bf16.mxu0 0
  %1610 = vmatmul.mubr.bf16.gmra.mrb[0].mxu0 %v1401
  %v1611 = vpop.f32.mrb[0].mxu0
  %v1612 = vadd.f32 0.0, %v1611
  %v1613 = vpop.f32.mrb[0].mxu0
  %v1614 = vpop.f32.mrb[0].mxu0
  %v1615 = vadd.f32 0.0, %v1614
  %v1616 = vpop.f32.mrb[0].mxu0
  %1617 = vmatprep.mubr.bf16.mxu0 0
  %1618 = vmatmul.mubr.bf16.gmra.mrb[0].mxu0 %v1404
  %v1619 = vpop.f32.mrb[0].mxu0
  %v1620 = vadd.f32 0.0, %v1619
  %v1621 = vpop.f32.mrb[0].mxu0
  %v1622 = vpop.f32.mrb[0].mxu0
  %v1623 = vadd.f32 0.0, %v1622
  %v1624 = vpop.f32.mrb[0].mxu0
  %1625 = vmatprep.mubr.bf16.mxu0 0
  %1626 = vmatmul.mubr.bf16.gmra.mrb[0].mxu0 %v1407
  %v1627 = vpop.f32.mrb[0].mxu0
  %v1628 = vadd.f32 0.0, %v1627
  %v1629 = vpop.f32.mrb[0].mxu0
  %v1630 = vpop.f32.mrb[0].mxu0
  %v1631 = vadd.f32 0.0, %v1630
  %v1632 = vpop.f32.mrb[0].mxu0
  %1633 = vmatprep.mubr.bf16.mxu0 0
  %1634 = vmatmul.mubr.bf16.gmra.mrb[0].mxu0 %v1410
  %v1635 = vpop.f32.mrb[0].mxu0
  %v1636 = vadd.f32 0.0, %v1635
  %v1637 = vpop.f32.mrb[0].mxu0
  %v1638 = vpop.f32.mrb[0].mxu0
  %v1639 = vadd.f32 0.0, %v1638
  %v1640 = vpop.f32.mrb[0].mxu0
  %1641 = vmatprep.mubr.bf16.mxu0 0
  %1642 = vmatmul.mubr.bf16.gmra.mrb[0].mxu0 %v1413
  %v1643 = vpop.f32.mrb[0].mxu0
  %v1644 = vadd.f32 0.0, %v1643
  %v1645 = vpop.f32.mrb[0].mxu0
  %v1646 = vpop.f32.mrb[0].mxu0
  %v1647 = vadd.f32 0.0, %v1646
  %v1648 = vpop.f32.mrb[0].mxu0
  %1649 = vmatprep.mubr.bf16.mxu0 0
  %1650 = vmatmul.mubr.bf16.gmra.mrb[0].mxu0 %v1416
  %v1651 = vpop.f32.mrb[0].mxu0
  %v1652 = vadd.f32 0.0, %v1651
  %v1653 = vpop.f32.mrb[0].mxu0
  %v1654 = vpop.f32.mrb[0].mxu0
  %v1655 = vadd.f32 0.0, %v1654
  %v1656 = vpop.f32.mrb[0].mxu0
  %1657 = vmatprep.mubr.bf16.mxu0 0
  %1658 = vmatmul.mubr.bf16.gmra.mrb[0].mxu0 %v1419
  %v1659 = vpop.f32.mrb[0].mxu0
  %v1660 = vadd.f32 0.0, %v1659
  %v1661 = vpop.f32.mrb[0].mxu0
  %v1662 = vpop.f32.mrb[0].mxu0
  %v1663 = vadd.f32 0.0, %v1662
  %v1664 = vpop.f32.mrb[0].mxu0
  %1665 = vmatprep.mubr.bf16.mxu0 0
  %1666 = vmatmul.mubr.bf16.gmra.mrb[0].mxu0 %v1422
  %v1667 = vpop.f32.mrb[0].mxu0
  %v1668 = vadd.f32 0.0, %v1667
  %v1669 = vpop.f32.mrb[0].mxu0
  %v1670 = vpop.f32.mrb[0].mxu0
  %v1671 = vadd.f32 0.0, %v1670
  %v1672 = vpop.f32.mrb[0].mxu0
  %1673 = vmatprep.mubr.bf16.mxu0 0
  %1674 = vmatmul.mubr.bf16.gmra.mrb[0].mxu0 %v1425
  %v1675 = vpop.f32.mrb[0].mxu0
  %v1676 = vadd.f32 0.0, %v1675
  %v1677 = vpop.f32.mrb[0].mxu0
  %v1678 = vpop.f32.mrb[0].mxu0
  %v1679 = vadd.f32 0.0, %v1678
  %v1680 = vpop.f32.mrb[0].mxu0
  %1681 = vmatprep.mubr.bf16.mxu0 0
  %1682 = vmatmul.mubr.bf16.gmra.mrb[0].mxu0 %v1428
  %v1683 = vpop.f32.mrb[0].mxu0
  %v1684 = vadd.f32 0.0, %v1683
  %v1685 = vpop.f32.mrb[0].mxu0
  %v1686 = vpop.f32.mrb[0].mxu0
  %v1687 = vadd.f32 0.0, %v1686
  %v1688 = vpop.f32.mrb[0].mxu0
  %1689 = vmatprep.mubr.bf16.mxu0 0
  %1690 = vmatmul.mubr.bf16.gmra.mrb[0].mxu0 %v1431
  %v1691 = vpop.f32.mrb[0].mxu0
  %v1692 = vadd.f32 0.0, %v1691
  %v1693 = vpop.f32.mrb[0].mxu0
  %v1694 = vpop.f32.mrb[0].mxu0
  %v1695 = vpop.f32.mrb[0].mxu0
  %1696 = vdwg.mxu0
  %v1697 = vld [vmem:[%s3] sm:$0xf]
  %v1698 = vld [vmem:[%s3 + $0x4] sm:$0xf]
  %v1699 = vld [vmem:[%s3 + $0x8] sm:$0xf]
  %v1700 = vld [vmem:[%s3 + $0xc] sm:$0xf]
  %v1701 = vld [vmem:[%s3 + $0x10] sm:$0xf]
  %v1702 = vld [vmem:[%s3 + $0x14] sm:$0xf]
  %v1703 = vld [vmem:[%s3 + $0x18] sm:$0xf]
  %v1704 = vld [vmem:[%s3 + $0x1c] sm:$0xf]
  %v1705 = vld [vmem:[%s3 + $0x20] sm:$0xf]
  %v1706 = vld [vmem:[%s3 + $0x24] sm:$0xf]
  %v1707 = vld [vmem:[%s3 + $0x28] sm:$0xf]
  %v1708 = vld [vmem:[%s3 + $0x2c] sm:$0xf]
  %v1709 = vld [vmem:[%s3 + $0x30] sm:$0xf]
  %v1710 = vld [vmem:[%s3 + $0x34] sm:$0xf]
  %v1711 = vld [vmem:[%s3 + $0x38] sm:$0xf]
  %v1712 = vld [vmem:[%s3 + $0x3c] sm:$0xf]
  %v1713 = vld [vmem:[%s3 + $0x40] sm:$0xf]
  %v1714 = vld [vmem:[%s3 + $0x44] sm:$0xf]
  %v1715 = vld [vmem:[%s3 + $0x48] sm:$0xf]
  %v1716 = vld [vmem:[%s3 + $0x4c] sm:$0xf]
  %v1717 = vld [vmem:[%s3 + $0x50] sm:$0xf]
  %v1718 = vld [vmem:[%s3 + $0x54] sm:$0xf]
  %v1719 = vld [vmem:[%s3 + $0x58] sm:$0xf]
  %v1720 = vld [vmem:[%s3 + $0x5c] sm:$0xf]
  %v1721 = vld [vmem:[%s3 + $0x60] sm:$0xf]
  %v1722 = vld [vmem:[%s3 + $0x64] sm:$0xf]
  %v1723 = vld [vmem:[%s3 + $0x68] sm:$0xf]
  %v1724 = vld [vmem:[%s3 + $0x6c] sm:$0xf]
  %v1725 = vld [vmem:[%s3 + $0x70] sm:$0xf]
  %v1726 = vld [vmem:[%s3 + $0x74] sm:$0xf]
  %v1727 = vld [vmem:[%s3 + $0x78] sm:$0xf]
  %v1728 = vld [vmem:[%s3 + $0x7c] sm:$0xf]
  %v1729 = vld [vmem:[%s3 + $0x80] sm:$0xf]
  %v1730 = vld [vmem:[%s3 + $0x84] sm:$0xf]
  %v1731 = vld [vmem:[%s3 + $0x88] sm:$0xf]
  %v1732 = vld [vmem:[%s3 + $0x8c] sm:$0xf]
  %v1733 = vld [vmem:[%s3 + $0x90] sm:$0xf]
  %v1734 = vld [vmem:[%s3 + $0x94] sm:$0xf]
  %v1735 = vld [vmem:[%s3 + $0x98] sm:$0xf]
  %v1736 = vld [vmem:[%s3 + $0x9c] sm:$0xf]
  %v1737 = vld [vmem:[%s3 + $0xa0] sm:$0xf]
  %v1738 = vld [vmem:[%s3 + $0xa4] sm:$0xf]
  %v1739 = vld [vmem:[%s3 + $0xa8] sm:$0xf]
  %v1740 = vld [vmem:[%s3 + $0xac] sm:$0xf]
  %v1741 = vld [vmem:[%s3 + $0xb0] sm:$0xf]
  %v1742 = vld [vmem:[%s3 + $0xb4] sm:$0xf]
  %v1743 = vld [vmem:[%s3 + $0xb8] sm:$0xf]
  %v1744 = vld [vmem:[%s3 + $0xbc] sm:$0xf]
  %v1745 = vld [vmem:[%s3 + $0xc0] sm:$0xf]
  %v1746 = vld [vmem:[%s3 + $0xc4] sm:$0xf]
  %v1747 = vld [vmem:[%s3 + $0xc8] sm:$0xf]
  %v1748 = vld [vmem:[%s3 + $0xcc] sm:$0xf]
  %v1749 = vld [vmem:[%s3 + $0xd0] sm:$0xf]
  %v1750 = vld [vmem:[%s3 + $0xd4] sm:$0xf]
  %v1751 = vld [vmem:[%s3 + $0xd8] sm:$0xf]
  %v1752 = vld [vmem:[%s3 + $0xdc] sm:$0xf]
  %v1753 = vld [vmem:[%s3 + $0xe0] sm:$0x1]
  %v1811 = vunpack.c.l.b16 %v1697
  %v1812 = vunpack.c.l.b16 %v1698
  %v1813 = vunpack.c.l.b16 %v1699
  %v1814 = vunpack.c.l.b16 %v1700
  %v1815 = vunpack.c.l.b16 %v1701
  %v1816 = vunpack.c.l.b16 %v1702
  %v1817 = vunpack.c.l.b16 %v1703
  %v1818 = vunpack.c.l.b16 %v1704
  %v1819 = vunpack.c.l.b16 %v1705
  %v1820 = vunpack.c.l.b16 %v1706
  %v1821 = vunpack.c.l.b16 %v1707
  %v1822 = vunpack.c.l.b16 %v1708
  %v1823 = vunpack.c.l.b16 %v1709
  %v1824 = vunpack.c.l.b16 %v1710
  %v1825 = vunpack.c.l.b16 %v1711
  %v1826 = vunpack.c.l.b16 %v1712
  %v1827 = vunpack.c.l.b16 %v1713
  %v1828 = vunpack.c.l.b16 %v1714
  %v1829 = vunpack.c.l.b16 %v1715
  %v1830 = vunpack.c.l.b16 %v1716
  %v1831 = vunpack.c.l.b16 %v1717
  %v1832 = vunpack.c.l.b16 %v1718
  %v1833 = vunpack.c.l.b16 %v1719
  %v1834 = vunpack.c.l.b16 %v1720
  %v1835 = vunpack.c.l.b16 %v1721
  %v1836 = vunpack.c.l.b16 %v1722
  %v1837 = vunpack.c.l.b16 %v1723
  %v1838 = vunpack.c.l.b16 %v1724
  %v1839 = vunpack.c.l.b16 %v1725
  %v1840 = vunpack.c.l.b16 %v1726
  %v1841 = vunpack.c.l.b16 %v1727
  %v1842 = vunpack.c.l.b16 %v1728
  %v1843 = vunpack.c.l.b16 %v1729
  %v1844 = vunpack.c.l.b16 %v1730
  %v1845 = vunpack.c.l.b16 %v1731
  %v1846 = vunpack.c.l.b16 %v1732
  %v1847 = vunpack.c.l.b16 %v1733
  %v1848 = vunpack.c.l.b16 %v1734
  %v1849 = vunpack.c.l.b16 %v1735
  %v1850 = vunpack.c.l.b16 %v1736
  %v1851 = vunpack.c.l.b16 %v1737
  %v1852 = vunpack.c.l.b16 %v1738
  %v1853 = vunpack.c.l.b16 %v1739
  %v1854 = vunpack.c.l.b16 %v1740
  %v1855 = vunpack.c.l.b16 %v1741
  %v1856 = vunpack.c.l.b16 %v1742
  %v1857 = vunpack.c.l.b16 %v1743
  %v1858 = vunpack.c.l.b16 %v1744
  %v1859 = vunpack.c.l.b16 %v1745
  %v1860 = vunpack.c.l.b16 %v1746
  %v1861 = vunpack.c.l.b16 %v1747
  %v1862 = vunpack.c.l.b16 %v1748
  %v1863 = vunpack.c.l.b16 %v1749
  %v1864 = vunpack.c.l.b16 %v1750
  %v1865 = vunpack.c.l.b16 %v1751
  %v1866 = vunpack.c.l.b16 %v1752
  %v1867 = vunpack.c.l.b16 %v1753
  %v1868 = vpack.c.b16 %v1812, %v1811
  %v1869 = vpack.c.b16 %v1814, %v1813
  %v1870 = vpack.c.b16 %v1816, %v1815
  %v1871 = vpack.c.b16 %v1818, %v1817
  %v1872 = vpack.c.b16 %v1820, %v1819
  %v1873 = vpack.c.b16 %v1822, %v1821
  %v1874 = vpack.c.b16 %v1824, %v1823
  %v1875 = vpack.c.b16 %v1826, %v1825
  %v1876 = vpack.c.b16 %v1828, %v1827
  %v1877 = vpack.c.b16 %v1830, %v1829
  %v1878 = vpack.c.b16 %v1832, %v1831
  %v1879 = vpack.c.b16 %v1834, %v1833
  %v1880 = vpack.c.b16 %v1836, %v1835
  %v1881 = vpack.c.b16 %v1838, %v1837
  %v1882 = vpack.c.b16 %v1840, %v1839
  %v1883 = vpack.c.b16 %v1842, %v1841
  %v1884 = vpack.c.b16 %v1844, %v1843
  %v1885 = vpack.c.b16 %v1846, %v1845
  %v1886 = vpack.c.b16 %v1848, %v1847
  %v1887 = vpack.c.b16 %v1850, %v1849
  %v1888 = vpack.c.b16 %v1852, %v1851
  %v1889 = vpack.c.b16 %v1854, %v1853
  %v1890 = vpack.c.b16 %v1856, %v1855
  %v1891 = vpack.c.b16 %v1858, %v1857
  %v1892 = vpack.c.b16 %v1860, %v1859
  %v1893 = vpack.c.b16 %v1862, %v1861
  %v1894 = vpack.c.b16 %v1864, %v1863
  %v1895 = vpack.c.b16 %v1866, %v1865
  %v1896 = vpack.c.b16 %v1867, %v1867
  %v1898 = vsel %vm243, %v1868, 0
  %v1901 = vsel %vm243, %v1869, 0
  %v1904 = vsel %vm243, %v1870, 0
  %v1907 = vsel %vm243, %v1871, 0
  %v1910 = vsel %vm243, %v1872, 0
  %v1913 = vsel %vm243, %v1873, 0
  %v1916 = vsel %vm243, %v1874, 0
  %v1919 = vsel %vm243, %v1875, 0
  %v1922 = vsel %vm243, %v1876, 0
  %v1925 = vsel %vm243, %v1877, 0
  %v1928 = vsel %vm243, %v1878, 0
  %v1931 = vsel %vm243, %v1879, 0
  %v1934 = vsel %vm243, %v1880, 0
  %v1937 = vsel %vm243, %v1881, 0
  %v1940 = vsel %vm243, %v1882, 0
  %v1943 = vsel %vm243, %v1883, 0
  %v1946 = vsel %vm243, %v1884, 0
  %v1949 = vsel %vm243, %v1885, 0
  %v1952 = vsel %vm243, %v1886, 0
  %v1955 = vsel %vm243, %v1887, 0
  %v1958 = vsel %vm243, %v1888, 0
  %v1961 = vsel %vm243, %v1889, 0
  %v1964 = vsel %vm243, %v1890, 0
  %v1967 = vsel %vm243, %v1891, 0
  %v1970 = vsel %vm243, %v1892, 0
  %v1973 = vsel %vm243, %v1893, 0
  %v1976 = vsel %vm243, %v1894, 0
  %v1979 = vsel %vm243, %v1895, 0
  %v1982 = vsel %vm243, %v1896, 0
  %1984 = vmatprep.subr.bf16.mxu0 0
  %1985 = vmatpush1.bf16.msra.mxu0 %v239
  %1986 = vmatprep.subr.bf16.mxu0 0
  %1987 = vmatpush1.bf16.msra.mxu0 %v240
  %1988 = vmatprep.subr.bf16.mxu0 0
  %1989 = vmatpush1.bf16.msra.mxu0 0
  %1990 = vmatprep.subr.bf16.mxu0 0
  %1991 = vmatpush1.bf16.msra.mxu0 0
  %1992 = vmatprep.subr.bf16.mxu0 0
  %1993 = vmatpush1.bf16.msra.mxu0 0
  %1994 = vmatprep.subr.bf16.mxu0 0
  %1995 = vmatpush1.bf16.msra.mxu0 0
  %1996 = vmatprep.subr.bf16.mxu0 0
  %1997 = vmatpush1.bf16.msra.mxu0 0
  %1998 = vmatprep.subr.bf16.mxu0 0
  %1999 = vmatpush1.bf16.msra.mxu0 0
  %2000 = vmatprep.subr.bf16.mxu0 0
  %2001 = vmatpush1.bf16.msra.mxu0 0
  %2002 = vmatprep.subr.bf16.mxu0 0
  %2003 = vmatpush1.bf16.msra.mxu0 0
  %2004 = vmatprep.subr.bf16.mxu0 0
  %2005 = vmatpush1.bf16.msra.mxu0 0
  %2006 = vmatprep.subr.bf16.mxu0 0
  %2007 = vmatpush1.bf16.msra.mxu0 0
  %2008 = vmatprep.subr.bf16.mxu0 0
  %2009 = vmatpush1.bf16.msra.mxu0 0
  %2010 = vmatprep.subr.bf16.mxu0 0
  %2011 = vmatpush1.bf16.msra.mxu0 0
  %2012 = vmatprep.subr.bf16.mxu0 0
  %2013 = vmatpush1.bf16.msra.mxu0 0
  %2014 = vmatprep.subr.bf16.mxu0 0
  %2015 = vmatpush1.bf16.msra.mxu0 0
  %2016 = vmatprep.mubr.bf16.mxu0 0
  %2017 = vmatmul.mubr.bf16.gmra.mrb[0].mxu0 %v1898
  %v2018 = vpop.f32.mrb[0].mxu0
  %v2019 = vadd.f32 0.0, %v2018
  %v2020 = vpop.f32.mrb[0].mxu0
  %v2021 = vpop.f32.mrb[0].mxu0
  %v2022 = vadd.f32 0.0, %v2021
  %v2023 = vpop.f32.mrb[0].mxu0
  %2024 = vmatprep.mubr.bf16.mxu0 0
  %2025 = vmatmul.mubr.bf16.gmra.mrb[0].mxu0 %v1901
  %v2026 = vpop.f32.mrb[0].mxu0
  %v2027 = vadd.f32 0.0, %v2026
  %v2028 = vpop.f32.mrb[0].mxu0
  %v2029 = vpop.f32.mrb[0].mxu0
  %v2030 = vadd.f32 0.0, %v2029
  %v2031 = vpop.f32.mrb[0].mxu0
  %2032 = vmatprep.mubr.bf16.mxu0 0
  %2033 = vmatmul.mubr.bf16.gmra.mrb[0].mxu0 %v1904
  %v2034 = vpop.f32.mrb[0].mxu0
  %v2035 = vadd.f32 0.0, %v2034
  %v2036 = vpop.f32.mrb[0].mxu0
  %v2037 = vpop.f32.mrb[0].mxu0
  %v2038 = vadd.f32 0.0, %v2037
  %v2039 = vpop.f32.mrb[0].mxu0
  %2040 = vmatprep.mubr.bf16.mxu0 0
  %2041 = vmatmul.mubr.bf16.gmra.mrb[0].mxu0 %v1907
  %v2042 = vpop.f32.mrb[0].mxu0
  %v2043 = vadd.f32 0.0, %v2042
  %v2044 = vpop.f32.mrb[0].mxu0
  %v2045 = vpop.f32.mrb[0].mxu0
  %v2046 = vadd.f32 0.0, %v2045
  %v2047 = vpop.f32.mrb[0].mxu0
  %2048 = vmatprep.mubr.bf16.mxu0 0
  %2049 = vmatmul.mubr.bf16.gmra.mrb[0].mxu0 %v1910
  %v2050 = vpop.f32.mrb[0].mxu0
  %v2051 = vadd.f32 0.0, %v2050
  %v2052 = vpop.f32.mrb[0].mxu0
  %v2053 = vpop.f32.mrb[0].mxu0
  %v2054 = vadd.f32 0.0, %v2053
  %v2055 = vpop.f32.mrb[0].mxu0
  %2056 = vmatprep.mubr.bf16.mxu0 0
  %2057 = vmatmul.mubr.bf16.gmra.mrb[0].mxu0 %v1913
  %v2058 = vpop.f32.mrb[0].mxu0
  %v2059 = vadd.f32 0.0, %v2058
  %v2060 = vpop.f32.mrb[0].mxu0
  %v2061 = vpop.f32.mrb[0].mxu0
  %v2062 = vadd.f32 0.0, %v2061
  %v2063 = vpop.f32.mrb[0].mxu0
  %2064 = vmatprep.mubr.bf16.mxu0 0
  %2065 = vmatmul.mubr.bf16.gmra.mrb[0].mxu0 %v1916
  %v2066 = vpop.f32.mrb[0].mxu0
  %v2067 = vadd.f32 0.0, %v2066
  %v2068 = vpop.f32.mrb[0].mxu0
  %v2069 = vpop.f32.mrb[0].mxu0
  %v2070 = vadd.f32 0.0, %v2069
  %v2071 = vpop.f32.mrb[0].mxu0
  %2072 = vmatprep.mubr.bf16.mxu0 0
  %2073 = vmatmul.mubr.bf16.gmra.mrb[0].mxu0 %v1919
  %v2074 = vpop.f32.mrb[0].mxu0
  %v2075 = vadd.f32 0.0, %v2074
  %v2076 = vpop.f32.mrb[0].mxu0
  %v2077 = vpop.f32.mrb[0].mxu0
  %v2078 = vadd.f32 0.0, %v2077
  %v2079 = vpop.f32.mrb[0].mxu0
  %2080 = vmatprep.mubr.bf16.mxu0 0
  %2081 = vmatmul.mubr.bf16.gmra.mrb[0].mxu0 %v1922
  %v2082 = vpop.f32.mrb[0].mxu0
  %v2083 = vadd.f32 0.0, %v2082
  %v2084 = vpop.f32.mrb[0].mxu0
  %v2085 = vpop.f32.mrb[0].mxu0
  %v2086 = vadd.f32 0.0, %v2085
  %v2087 = vpop.f32.mrb[0].mxu0
  %2088 = vmatprep.mubr.bf16.mxu0 0
  %2089 = vmatmul.mubr.bf16.gmra.mrb[0].mxu0 %v1925
  %v2090 = vpop.f32.mrb[0].mxu0
  %v2091 = vadd.f32 0.0, %v2090
  %v2092 = vpop.f32.mrb[0].mxu0
  %v2093 = vpop.f32.mrb[0].mxu0
  %v2094 = vadd.f32 0.0, %v2093
  %v2095 = vpop.f32.mrb[0].mxu0
  %2096 = vmatprep.mubr.bf16.mxu0 0
  %2097 = vmatmul.mubr.bf16.gmra.mrb[0].mxu0 %v1928
  %v2098 = vpop.f32.mrb[0].mxu0
  %v2099 = vadd.f32 0.0, %v2098
  %v2100 = vpop.f32.mrb[0].mxu0
  %v2101 = vpop.f32.mrb[0].mxu0
  %v2102 = vadd.f32 0.0, %v2101
  %v2103 = vpop.f32.mrb[0].mxu0
  %2104 = vmatprep.mubr.bf16.mxu0 0
  %2105 = vmatmul.mubr.bf16.gmra.mrb[0].mxu0 %v1931
  %v2106 = vpop.f32.mrb[0].mxu0
  %v2107 = vadd.f32 0.0, %v2106
  %v2108 = vpop.f32.mrb[0].mxu0
  %v2109 = vpop.f32.mrb[0].mxu0
  %v2110 = vadd.f32 0.0, %v2109
  %v2111 = vpop.f32.mrb[0].mxu0
  %2112 = vmatprep.mubr.bf16.mxu0 0
  %2113 = vmatmul.mubr.bf16.gmra.mrb[0].mxu0 %v1934
  %v2114 = vpop.f32.mrb[0].mxu0
  %v2115 = vadd.f32 0.0, %v2114
  %v2116 = vpop.f32.mrb[0].mxu0
  %v2117 = vpop.f32.mrb[0].mxu0
  %v2118 = vadd.f32 0.0, %v2117
  %v2119 = vpop.f32.mrb[0].mxu0
  %2120 = vmatprep.mubr.bf16.mxu0 0
  %2121 = vmatmul.mubr.bf16.gmra.mrb[0].mxu0 %v1937
  %v2122 = vpop.f32.mrb[0].mxu0
  %v2123 = vadd.f32 0.0, %v2122
  %v2124 = vpop.f32.mrb[0].mxu0
  %v2125 = vpop.f32.mrb[0].mxu0
  %v2126 = vadd.f32 0.0, %v2125
  %v2127 = vpop.f32.mrb[0].mxu0
  %2128 = vmatprep.mubr.bf16.mxu0 0
  %2129 = vmatmul.mubr.bf16.gmra.mrb[0].mxu0 %v1940
  %v2130 = vpop.f32.mrb[0].mxu0
  %v2131 = vadd.f32 0.0, %v2130
  %v2132 = vpop.f32.mrb[0].mxu0
  %v2133 = vpop.f32.mrb[0].mxu0
  %v2134 = vadd.f32 0.0, %v2133
  %v2135 = vpop.f32.mrb[0].mxu0
  %2136 = vmatprep.mubr.bf16.mxu0 0
  %2137 = vmatmul.mubr.bf16.gmra.mrb[0].mxu0 %v1943
  %v2138 = vpop.f32.mrb[0].mxu0
  %v2139 = vadd.f32 0.0, %v2138
  %v2140 = vpop.f32.mrb[0].mxu0
  %v2141 = vpop.f32.mrb[0].mxu0
  %v2142 = vadd.f32 0.0, %v2141
  %v2143 = vpop.f32.mrb[0].mxu0
  %2144 = vmatprep.mubr.bf16.mxu0 0
  %2145 = vmatmul.mubr.bf16.gmra.mrb[0].mxu0 %v1946
  %v2146 = vpop.f32.mrb[0].mxu0
  %v2147 = vadd.f32 0.0, %v2146
  %v2148 = vpop.f32.mrb[0].mxu0
  %v2149 = vpop.f32.mrb[0].mxu0
  %v2150 = vadd.f32 0.0, %v2149
  %v2151 = vpop.f32.mrb[0].mxu0
  %2152 = vmatprep.mubr.bf16.mxu0 0
  %2153 = vmatmul.mubr.bf16.gmra.mrb[0].mxu0 %v1949
  %v2154 = vpop.f32.mrb[0].mxu0
  %v2155 = vadd.f32 0.0, %v2154
  %v2156 = vpop.f32.mrb[0].mxu0
  %v2157 = vpop.f32.mrb[0].mxu0
  %v2158 = vadd.f32 0.0, %v2157
  %v2159 = vpop.f32.mrb[0].mxu0
  %2160 = vmatprep.mubr.bf16.mxu0 0
  %2161 = vmatmul.mubr.bf16.gmra.mrb[0].mxu0 %v1952
  %v2162 = vpop.f32.mrb[0].mxu0
  %v2163 = vadd.f32 0.0, %v2162
  %v2164 = vpop.f32.mrb[0].mxu0
  %v2165 = vpop.f32.mrb[0].mxu0
  %v2166 = vadd.f32 0.0, %v2165
  %v2167 = vpop.f32.mrb[0].mxu0
  %2168 = vmatprep.mubr.bf16.mxu0 0
  %2169 = vmatmul.mubr.bf16.gmra.mrb[0].mxu0 %v1955
  %v2170 = vpop.f32.mrb[0].mxu0
  %v2171 = vadd.f32 0.0, %v2170
  %v2172 = vpop.f32.mrb[0].mxu0
  %v2173 = vpop.f32.mrb[0].mxu0
  %v2174 = vadd.f32 0.0, %v2173
  %v2175 = vpop.f32.mrb[0].mxu0
  %2176 = vmatprep.mubr.bf16.mxu0 0
  %2177 = vmatmul.mubr.bf16.gmra.mrb[0].mxu0 %v1958
  %v2178 = vpop.f32.mrb[0].mxu0
  %v2179 = vadd.f32 0.0, %v2178
  %v2180 = vpop.f32.mrb[0].mxu0
  %v2181 = vpop.f32.mrb[0].mxu0
  %v2182 = vadd.f32 0.0, %v2181
  %v2183 = vpop.f32.mrb[0].mxu0
  %2184 = vmatprep.mubr.bf16.mxu0 0
  %2185 = vmatmul.mubr.bf16.gmra.mrb[0].mxu0 %v1961
  %v2186 = vpop.f32.mrb[0].mxu0
  %v2187 = vadd.f32 0.0, %v2186
  %v2188 = vpop.f32.mrb[0].mxu0
  %v2189 = vpop.f32.mrb[0].mxu0
  %v2190 = vadd.f32 0.0, %v2189
  %v2191 = vpop.f32.mrb[0].mxu0
  %2192 = vmatprep.mubr.bf16.mxu0 0
  %2193 = vmatmul.mubr.bf16.gmra.mrb[0].mxu0 %v1964
  %v2194 = vpop.f32.mrb[0].mxu0
  %v2195 = vadd.f32 0.0, %v2194
  %v2196 = vpop.f32.mrb[0].mxu0
  %v2197 = vpop.f32.mrb[0].mxu0
  %v2198 = vadd.f32 0.0, %v2197
  %v2199 = vpop.f32.mrb[0].mxu0
  %2200 = vmatprep.mubr.bf16.mxu0 0
  %2201 = vmatmul.mubr.bf16.gmra.mrb[0].mxu0 %v1967
  %v2202 = vpop.f32.mrb[0].mxu0
  %v2203 = vadd.f32 0.0, %v2202
  %v2204 = vpop.f32.mrb[0].mxu0
  %v2205 = vpop.f32.mrb[0].mxu0
  %v2206 = vadd.f32 0.0, %v2205
  %v2207 = vpop.f32.mrb[0].mxu0
  %2208 = vmatprep.mubr.bf16.mxu0 0
  %2209 = vmatmul.mubr.bf16.gmra.mrb[0].mxu0 %v1970
  %v2210 = vpop.f32.mrb[0].mxu0
  %v2211 = vadd.f32 0.0, %v2210
  %v2212 = vpop.f32.mrb[0].mxu0
  %v2213 = vpop.f32.mrb[0].mxu0
  %v2214 = vadd.f32 0.0, %v2213
  %v2215 = vpop.f32.mrb[0].mxu0
  %2216 = vmatprep.mubr.bf16.mxu0 0
  %2217 = vmatmul.mubr.bf16.gmra.mrb[0].mxu0 %v1973
  %v2218 = vpop.f32.mrb[0].mxu0
  %v2219 = vadd.f32 0.0, %v2218
  %v2220 = vpop.f32.mrb[0].mxu0
  %v2221 = vpop.f32.mrb[0].mxu0
  %v2222 = vadd.f32 0.0, %v2221
  %v2223 = vpop.f32.mrb[0].mxu0
  %2224 = vmatprep.mubr.bf16.mxu0 0
  %2225 = vmatmul.mubr.bf16.gmra.mrb[0].mxu0 %v1976
  %v2226 = vpop.f32.mrb[0].mxu0
  %v2227 = vadd.f32 0.0, %v2226
  %v2228 = vpop.f32.mrb[0].mxu0
  %v2229 = vpop.f32.mrb[0].mxu0
  %v2230 = vadd.f32 0.0, %v2229
  %v2231 = vpop.f32.mrb[0].mxu0
  %2232 = vmatprep.mubr.bf16.mxu0 0
  %2233 = vmatmul.mubr.bf16.gmra.mrb[0].mxu0 %v1979
  %v2234 = vpop.f32.mrb[0].mxu0
  %v2235 = vadd.f32 0.0, %v2234
  %v2236 = vpop.f32.mrb[0].mxu0
  %v2237 = vpop.f32.mrb[0].mxu0
  %v2238 = vadd.f32 0.0, %v2237
  %v2239 = vpop.f32.mrb[0].mxu0
  %2240 = vmatprep.mubr.bf16.mxu0 0
  %2241 = vmatmul.mubr.bf16.gmra.mrb[0].mxu0 %v1982
  %v2242 = vpop.f32.mrb[0].mxu0
  %v2243 = vadd.f32 0.0, %v2242
  %v2244 = vpop.f32.mrb[0].mxu0
  %v2245 = vpop.f32.mrb[0].mxu0
  %v2246 = vpop.f32.mrb[0].mxu0
  %2247 = vdwg.mxu0
  %v2248 = vld [vmem:[%s5] sm:$0x1]
  %v2249 = vld [vmem:[%s6] sm:$0x1]
  %vm2250 = vcmask 130048
  %v2251 = vsel %vm2250, %v366, 0.0
  %v2252 = vsel %vm2250, %v369, 0.0
  %v2253 = vadd.f32 %v2251, %v2252
  %v2254 = vsel %vm2250, %v374, 0.0
  %v2255 = vadd.f32 %v2253, %v2254
  %v2256 = vsel %vm2250, %v377, 0.0
  %v2257 = vadd.f32 %v2255, %v2256
  %v2258 = vsel %vm2250, %v382, 0.0
  %v2259 = vadd.f32 %v2257, %v2258
  %v2260 = vsel %vm2250, %v385, 0.0
  %v2261 = vadd.f32 %v2259, %v2260
  %v2262 = vsel %vm2250, %v390, 0.0
  %v2263 = vadd.f32 %v2261, %v2262
  %v2264 = vsel %vm2250, %v393, 0.0
  %v2265 = vadd.f32 %v2263, %v2264
  %v2266 = vsel %vm2250, %v398, 0.0
  %v2267 = vadd.f32 %v2265, %v2266
  %v2268 = vsel %vm2250, %v401, 0.0
  %v2269 = vadd.f32 %v2267, %v2268
  %v2270 = vsel %vm2250, %v406, 0.0
  %v2271 = vadd.f32 %v2269, %v2270
  %v2272 = vsel %vm2250, %v409, 0.0
  %v2273 = vadd.f32 %v2271, %v2272
  %v2274 = vsel %vm2250, %v414, 0.0
  %v2275 = vadd.f32 %v2273, %v2274
  %v2276 = vsel %vm2250, %v417, 0.0
  %v2277 = vadd.f32 %v2275, %v2276
  %v2278 = vsel %vm2250, %v422, 0.0
  %v2279 = vadd.f32 %v2277, %v2278
  %v2280 = vsel %vm2250, %v425, 0.0
  %v2281 = vadd.f32 %v2279, %v2280
  %v2282 = vsel %vm2250, %v430, 0.0
  %v2283 = vadd.f32 %v2281, %v2282
  %v2284 = vsel %vm2250, %v433, 0.0
  %v2285 = vadd.f32 %v2283, %v2284
  %v2286 = vsel %vm2250, %v438, 0.0
  %v2287 = vadd.f32 %v2285, %v2286
  %v2288 = vsel %vm2250, %v441, 0.0
  %v2289 = vadd.f32 %v2287, %v2288
  %v2290 = vsel %vm2250, %v446, 0.0
  %v2291 = vadd.f32 %v2289, %v2290
  %v2292 = vsel %vm2250, %v449, 0.0
  %v2293 = vadd.f32 %v2291, %v2292
  %v2294 = vsel %vm2250, %v454, 0.0
  %v2295 = vadd.f32 %v2293, %v2294
  %v2296 = vsel %vm2250, %v457, 0.0
  %v2297 = vadd.f32 %v2295, %v2296
  %v2298 = vsel %vm2250, %v462, 0.0
  %v2299 = vadd.f32 %v2297, %v2298
  %v2300 = vsel %vm2250, %v465, 0.0
  %v2301 = vadd.f32 %v2299, %v2300
  %v2302 = vsel %vm2250, %v470, 0.0
  %v2303 = vadd.f32 %v2301, %v2302
  %v2304 = vsel %vm2250, %v473, 0.0
  %v2305 = vadd.f32 %v2303, %v2304
  %v2306 = vsel %vm2250, %v478, 0.0
  %v2307 = vadd.f32 %v2305, %v2306
  %v2308 = vsel %vm2250, %v481, 0.0
  %v2309 = vadd.f32 %v2307, %v2308
  %v2310 = vsel %vm2250, %v486, 0.0
  %v2311 = vadd.f32 %v2309, %v2310
  %v2312 = vsel %vm2250, %v489, 0.0
  %v2313 = vadd.f32 %v2311, %v2312
  %v2314 = vsel %vm2250, %v494, 0.0
  %v2315 = vadd.f32 %v2313, %v2314
  %v2316 = vsel %vm2250, %v497, 0.0
  %v2317 = vadd.f32 %v2315, %v2316
  %v2318 = vsel %vm2250, %v502, 0.0
  %v2319 = vadd.f32 %v2317, %v2318
  %v2320 = vsel %vm2250, %v505, 0.0
  %v2321 = vadd.f32 %v2319, %v2320
  %v2322 = vsel %vm2250, %v510, 0.0
  %v2323 = vadd.f32 %v2321, %v2322
  %v2324 = vsel %vm2250, %v513, 0.0
  %v2325 = vadd.f32 %v2323, %v2324
  %v2326 = vsel %vm2250, %v518, 0.0
  %v2327 = vadd.f32 %v2325, %v2326
  %v2328 = vsel %vm2250, %v521, 0.0
  %v2329 = vadd.f32 %v2327, %v2328
  %v2330 = vsel %vm2250, %v526, 0.0
  %v2331 = vadd.f32 %v2329, %v2330
  %v2332 = vsel %vm2250, %v529, 0.0
  %v2333 = vadd.f32 %v2331, %v2332
  %v2334 = vsel %vm2250, %v534, 0.0
  %v2335 = vadd.f32 %v2333, %v2334
  %v2336 = vsel %vm2250, %v537, 0.0
  %v2337 = vadd.f32 %v2335, %v2336
  %v2338 = vsel %vm2250, %v542, 0.0
  %v2339 = vadd.f32 %v2337, %v2338
  %v2340 = vsel %vm2250, %v545, 0.0
  %v2341 = vadd.f32 %v2339, %v2340
  %v2342 = vsel %vm2250, %v550, 0.0
  %v2343 = vadd.f32 %v2341, %v2342
  %v2344 = vsel %vm2250, %v553, 0.0
  %v2345 = vadd.f32 %v2343, %v2344
  %v2346 = vsel %vm2250, %v558, 0.0
  %v2347 = vadd.f32 %v2345, %v2346
  %v2348 = vsel %vm2250, %v561, 0.0
  %v2349 = vadd.f32 %v2347, %v2348
  %v2350 = vsel %vm2250, %v566, 0.0
  %v2351 = vadd.f32 %v2349, %v2350
  %v2352 = vsel %vm2250, %v569, 0.0
  %v2353 = vadd.f32 %v2351, %v2352
  %v2354 = vsel %vm2250, %v574, 0.0
  %v2355 = vadd.f32 %v2353, %v2354
  %v2356 = vsel %vm2250, %v577, 0.0
  %v2357 = vadd.f32 %v2355, %v2356
  %v2358 = vsel %vm2250, %v582, 0.0
  %v2359 = vadd.f32 %v2357, %v2358
  %v2360 = vsel %vm2250, %v585, 0.0
  %v2361 = vadd.f32 %v2359, %v2360
  %vm2362 = vcmask 123904
  %v2363 = vsel %vm2362, %v590, 0.0
  %v2364 = vadd.f32 %v2361, %v2363
  %v2365 = vrot.slane %v2364, 4
  %v2366 = vadd.f32 %v2364, %v2365
  %v2367 = vrot.slane %v2366, 2
  %v2368 = vadd.f32 %v2366, %v2367
  %v2369 = vrot.slane %v2368, 1
  %v2370 = vadd.f32 %v2368, %v2369
  %v2371 = vmul.f32 %v366, %v366
  %v2372 = vmul.f32 %v369, %v369
  %v2373 = vmul.f32 %v374, %v374
  %v2374 = vmul.f32 %v377, %v377
  %v2375 = vmul.f32 %v382, %v382
  %v2376 = vmul.f32 %v385, %v385
  %v2377 = vmul.f32 %v390, %v390
  %v2378 = vmul.f32 %v393, %v393
  %v2379 = vmul.f32 %v398, %v398
  %v2380 = vmul.f32 %v401, %v401
  %v2381 = vmul.f32 %v406, %v406
  %v2382 = vmul.f32 %v409, %v409
  %v2383 = vmul.f32 %v414, %v414
  %v2384 = vmul.f32 %v417, %v417
  %v2385 = vmul.f32 %v422, %v422
  %v2386 = vmul.f32 %v425, %v425
  %v2387 = vmul.f32 %v430, %v430
  %v2388 = vmul.f32 %v433, %v433
  %v2389 = vmul.f32 %v438, %v438
  %v2390 = vmul.f32 %v441, %v441
  %v2391 = vmul.f32 %v446, %v446
  %v2392 = vmul.f32 %v449, %v449
  %v2393 = vmul.f32 %v454, %v454
  %v2394 = vmul.f32 %v457, %v457
  %v2395 = vmul.f32 %v462, %v462
  %v2396 = vmul.f32 %v465, %v465
  %v2397 = vmul.f32 %v470, %v470
  %v2398 = vmul.f32 %v473, %v473
  %v2399 = vmul.f32 %v478, %v478
  %v2400 = vmul.f32 %v481, %v481
  %v2401 = vmul.f32 %v486, %v486
  %v2402 = vmul.f32 %v489, %v489
  %v2403 = vmul.f32 %v494, %v494
  %v2404 = vmul.f32 %v497, %v497
  %v2405 = vmul.f32 %v502, %v502
  %v2406 = vmul.f32 %v505, %v505
  %v2407 = vmul.f32 %v510, %v510
  %v2408 = vmul.f32 %v513, %v513
  %v2409 = vmul.f32 %v518, %v518
  %v2410 = vmul.f32 %v521, %v521
  %v2411 = vmul.f32 %v526, %v526
  %v2412 = vmul.f32 %v529, %v529
  %v2413 = vmul.f32 %v534, %v534
  %v2414 = vmul.f32 %v537, %v537
  %v2415 = vmul.f32 %v542, %v542
  %v2416 = vmul.f32 %v545, %v545
  %v2417 = vmul.f32 %v550, %v550
  %v2418 = vmul.f32 %v553, %v553
  %v2419 = vmul.f32 %v558, %v558
  %v2420 = vmul.f32 %v561, %v561
  %v2421 = vmul.f32 %v566, %v566
  %v2422 = vmul.f32 %v569, %v569
  %v2423 = vmul.f32 %v574, %v574
  %v2424 = vmul.f32 %v577, %v577
  %v2425 = vmul.f32 %v582, %v582
  %v2426 = vmul.f32 %v585, %v585
  %v2427 = vmul.f32 %v590, %v590
  %v2428 = vsel %vm2250, %v2371, 0.0
  %v2429 = vsel %vm2250, %v2372, 0.0
  %v2430 = vadd.f32 %v2428, %v2429
  %v2431 = vsel %vm2250, %v2373, 0.0
  %v2432 = vadd.f32 %v2430, %v2431
  %v2433 = vsel %vm2250, %v2374, 0.0
  %v2434 = vadd.f32 %v2432, %v2433
  %v2435 = vsel %vm2250, %v2375, 0.0
  %v2436 = vadd.f32 %v2434, %v2435
  %v2437 = vsel %vm2250, %v2376, 0.0
  %v2438 = vadd.f32 %v2436, %v2437
  %v2439 = vsel %vm2250, %v2377, 0.0
  %v2440 = vadd.f32 %v2438, %v2439
  %v2441 = vsel %vm2250, %v2378, 0.0
  %v2442 = vadd.f32 %v2440, %v2441
  %v2443 = vsel %vm2250, %v2379, 0.0
  %v2444 = vadd.f32 %v2442, %v2443
  %v2445 = vsel %vm2250, %v2380, 0.0
  %v2446 = vadd.f32 %v2444, %v2445
  %v2447 = vsel %vm2250, %v2381, 0.0
  %v2448 = vadd.f32 %v2446, %v2447
  %v2449 = vsel %vm2250, %v2382, 0.0
  %v2450 = vadd.f32 %v2448, %v2449
  %v2451 = vsel %vm2250, %v2383, 0.0
  %v2452 = vadd.f32 %v2450, %v2451
  %v2453 = vsel %vm2250, %v2384, 0.0
  %v2454 = vadd.f32 %v2452, %v2453
  %v2455 = vsel %vm2250, %v2385, 0.0
  %v2456 = vadd.f32 %v2454, %v2455
  %v2457 = vsel %vm2250, %v2386, 0.0
  %v2458 = vadd.f32 %v2456, %v2457
  %v2459 = vsel %vm2250, %v2387, 0.0
  %v2460 = vadd.f32 %v2458, %v2459
  %v2461 = vsel %vm2250, %v2388, 0.0
  %v2462 = vadd.f32 %v2460, %v2461
  %v2463 = vsel %vm2250, %v2389, 0.0
  %v2464 = vadd.f32 %v2462, %v2463
  %v2465 = vsel %vm2250, %v2390, 0.0
  %v2466 = vadd.f32 %v2464, %v2465
  %v2467 = vsel %vm2250, %v2391, 0.0
  %v2468 = vadd.f32 %v2466, %v2467
  %v2469 = vsel %vm2250, %v2392, 0.0
  %v2470 = vadd.f32 %v2468, %v2469
  %v2471 = vsel %vm2250, %v2393, 0.0
  %v2472 = vadd.f32 %v2470, %v2471
  %v2473 = vsel %vm2250, %v2394, 0.0
  %v2474 = vadd.f32 %v2472, %v2473
  %v2475 = vsel %vm2250, %v2395, 0.0
  %v2476 = vadd.f32 %v2474, %v2475
  %v2477 = vsel %vm2250, %v2396, 0.0
  %v2478 = vadd.f32 %v2476, %v2477
  %v2479 = vsel %vm2250, %v2397, 0.0
  %v2480 = vadd.f32 %v2478, %v2479
  %v2481 = vsel %vm2250, %v2398, 0.0
  %v2482 = vadd.f32 %v2480, %v2481
  %v2483 = vsel %vm2250, %v2399, 0.0
  %v2484 = vadd.f32 %v2482, %v2483
  %v2485 = vsel %vm2250, %v2400, 0.0
  %v2486 = vadd.f32 %v2484, %v2485
  %v2487 = vsel %vm2250, %v2401, 0.0
  %v2488 = vadd.f32 %v2486, %v2487
  %v2489 = vsel %vm2250, %v2402, 0.0
  %v2490 = vadd.f32 %v2488, %v2489
  %v2491 = vsel %vm2250, %v2403, 0.0
  %v2492 = vadd.f32 %v2490, %v2491
  %v2493 = vsel %vm2250, %v2404, 0.0
  %v2494 = vadd.f32 %v2492, %v2493
  %v2495 = vsel %vm2250, %v2405, 0.0
  %v2496 = vadd.f32 %v2494, %v2495
  %v2497 = vsel %vm2250, %v2406, 0.0
  %v2498 = vadd.f32 %v2496, %v2497
  %v2499 = vsel %vm2250, %v2407, 0.0
  %v2500 = vadd.f32 %v2498, %v2499
  %v2501 = vsel %vm2250, %v2408, 0.0
  %v2502 = vadd.f32 %v2500, %v2501
  %v2503 = vsel %vm2250, %v2409, 0.0
  %v2504 = vadd.f32 %v2502, %v2503
  %v2505 = vsel %vm2250, %v2410, 0.0
  %v2506 = vadd.f32 %v2504, %v2505
  %v2507 = vsel %vm2250, %v2411, 0.0
  %v2508 = vadd.f32 %v2506, %v2507
  %v2509 = vsel %vm2250, %v2412, 0.0
  %v2510 = vadd.f32 %v2508, %v2509
  %v2511 = vsel %vm2250, %v2413, 0.0
  %v2512 = vadd.f32 %v2510, %v2511
  %v2513 = vsel %vm2250, %v2414, 0.0
  %v2514 = vadd.f32 %v2512, %v2513
  %v2515 = vsel %vm2250, %v2415, 0.0
  %v2516 = vadd.f32 %v2514, %v2515
  %v2517 = vsel %vm2250, %v2416, 0.0
  %v2518 = vadd.f32 %v2516, %v2517
  %v2519 = vsel %vm2250, %v2417, 0.0
  %v2520 = vadd.f32 %v2518, %v2519
  %v2521 = vsel %vm2250, %v2418, 0.0
  %v2522 = vadd.f32 %v2520, %v2521
  %v2523 = vsel %vm2250, %v2419, 0.0
  %v2524 = vadd.f32 %v2522, %v2523
  %v2525 = vsel %vm2250, %v2420, 0.0
  %v2526 = vadd.f32 %v2524, %v2525
  %v2527 = vsel %vm2250, %v2421, 0.0
  %v2528 = vadd.f32 %v2526, %v2527
  %v2529 = vsel %vm2250, %v2422, 0.0
  %v2530 = vadd.f32 %v2528, %v2529
  %v2531 = vsel %vm2250, %v2423, 0.0
  %v2532 = vadd.f32 %v2530, %v2531
  %v2533 = vsel %vm2250, %v2424, 0.0
  %v2534 = vadd.f32 %v2532, %v2533
  %v2535 = vsel %vm2250, %v2425, 0.0
  %v2536 = vadd.f32 %v2534, %v2535
  %v2537 = vsel %vm2250, %v2426, 0.0
  %v2538 = vadd.f32 %v2536, %v2537
  %v2539 = vsel %vm2362, %v2427, 0.0
  %v2540 = vadd.f32 %v2538, %v2539
  %v2541 = vrot.slane %v2540, 4
  %v2542 = vadd.f32 %v2540, %v2541
  %v2543 = vrot.slane %v2542, 2
  %v2544 = vadd.f32 %v2542, %v2543
  %v2545 = vrot.slane %v2544, 1
  %v2546 = vadd.f32 %v2544, %v2545
  %v2547 = vsel %vm2250, %v917, 0.0
  %v2548 = vsel %vm2250, %v920, 0.0
  %v2549 = vadd.f32 %v2547, %v2548
  %v2550 = vsel %vm2250, %v925, 0.0
  %v2551 = vadd.f32 %v2549, %v2550
  %v2552 = vsel %vm2250, %v928, 0.0
  %v2553 = vadd.f32 %v2551, %v2552
  %v2554 = vsel %vm2250, %v933, 0.0
  %v2555 = vadd.f32 %v2553, %v2554
  %v2556 = vsel %vm2250, %v936, 0.0
  %v2557 = vadd.f32 %v2555, %v2556
  %v2558 = vsel %vm2250, %v941, 0.0
  %v2559 = vadd.f32 %v2557, %v2558
  %v2560 = vsel %vm2250, %v944, 0.0
  %v2561 = vadd.f32 %v2559, %v2560
  %v2562 = vsel %vm2250, %v949, 0.0
  %v2563 = vadd.f32 %v2561, %v2562
  %v2564 = vsel %vm2250, %v952, 0.0
  %v2565 = vadd.f32 %v2563, %v2564
  %v2566 = vsel %vm2250, %v957, 0.0
  %v2567 = vadd.f32 %v2565, %v2566
  %v2568 = vsel %vm2250, %v960, 0.0
  %v2569 = vadd.f32 %v2567, %v2568
  %v2570 = vsel %vm2250, %v965, 0.0
  %v2571 = vadd.f32 %v2569, %v2570
  %v2572 = vsel %vm2250, %v968, 0.0
  %v2573 = vadd.f32 %v2571, %v2572
  %v2574 = vsel %vm2250, %v973, 0.0
  %v2575 = vadd.f32 %v2573, %v2574
  %v2576 = vsel %vm2250, %v976, 0.0
  %v2577 = vadd.f32 %v2575, %v2576
  %v2578 = vsel %vm2250, %v981, 0.0
  %v2579 = vadd.f32 %v2577, %v2578
  %v2580 = vsel %vm2250, %v984, 0.0
  %v2581 = vadd.f32 %v2579, %v2580
  %v2582 = vsel %vm2250, %v989, 0.0
  %v2583 = vadd.f32 %v2581, %v2582
  %v2584 = vsel %vm2250, %v992, 0.0
  %v2585 = vadd.f32 %v2583, %v2584
  %v2586 = vsel %vm2250, %v997, 0.0
  %v2587 = vadd.f32 %v2585, %v2586
  %v2588 = vsel %vm2250, %v1000, 0.0
  %v2589 = vadd.f32 %v2587, %v2588
  %v2590 = vsel %vm2250, %v1005, 0.0
  %v2591 = vadd.f32 %v2589, %v2590
  %v2592 = vsel %vm2250, %v1008, 0.0
  %v2593 = vadd.f32 %v2591, %v2592
  %v2594 = vsel %vm2250, %v1013, 0.0
  %v2595 = vadd.f32 %v2593, %v2594
  %v2596 = vsel %vm2250, %v1016, 0.0
  %v2597 = vadd.f32 %v2595, %v2596
  %v2598 = vsel %vm2250, %v1021, 0.0
  %v2599 = vadd.f32 %v2597, %v2598
  %v2600 = vsel %vm2250, %v1024, 0.0
  %v2601 = vadd.f32 %v2599, %v2600
  %v2602 = vsel %vm2250, %v1029, 0.0
  %v2603 = vadd.f32 %v2601, %v2602
  %v2604 = vsel %vm2250, %v1032, 0.0
  %v2605 = vadd.f32 %v2603, %v2604
  %v2606 = vsel %vm2250, %v1037, 0.0
  %v2607 = vadd.f32 %v2605, %v2606
  %v2608 = vsel %vm2250, %v1040, 0.0
  %v2609 = vadd.f32 %v2607, %v2608
  %v2610 = vsel %vm2250, %v1045, 0.0
  %v2611 = vadd.f32 %v2609, %v2610
  %v2612 = vsel %vm2250, %v1048, 0.0
  %v2613 = vadd.f32 %v2611, %v2612
  %v2614 = vsel %vm2250, %v1053, 0.0
  %v2615 = vadd.f32 %v2613, %v2614
  %v2616 = vsel %vm2250, %v1056, 0.0
  %v2617 = vadd.f32 %v2615, %v2616
  %v2618 = vsel %vm2250, %v1061, 0.0
  %v2619 = vadd.f32 %v2617, %v2618
  %v2620 = vsel %vm2250, %v1064, 0.0
  %v2621 = vadd.f32 %v2619, %v2620
  %v2622 = vsel %vm2250, %v1069, 0.0
  %v2623 = vadd.f32 %v2621, %v2622
  %v2624 = vsel %vm2250, %v1072, 0.0
  %v2625 = vadd.f32 %v2623, %v2624
  %v2626 = vsel %vm2250, %v1077, 0.0
  %v2627 = vadd.f32 %v2625, %v2626
  %v2628 = vsel %vm2250, %v1080, 0.0
  %v2629 = vadd.f32 %v2627, %v2628
  %v2630 = vsel %vm2250, %v1085, 0.0
  %v2631 = vadd.f32 %v2629, %v2630
  %v2632 = vsel %vm2250, %v1088, 0.0
  %v2633 = vadd.f32 %v2631, %v2632
  %v2634 = vsel %vm2250, %v1093, 0.0
  %v2635 = vadd.f32 %v2633, %v2634
  %v2636 = vsel %vm2250, %v1096, 0.0
  %v2637 = vadd.f32 %v2635, %v2636
  %v2638 = vsel %vm2250, %v1101, 0.0
  %v2639 = vadd.f32 %v2637, %v2638
  %v2640 = vsel %vm2250, %v1104, 0.0
  %v2641 = vadd.f32 %v2639, %v2640
  %v2642 = vsel %vm2250, %v1109, 0.0
  %v2643 = vadd.f32 %v2641, %v2642
  %v2644 = vsel %vm2250, %v1112, 0.0
  %v2645 = vadd.f32 %v2643, %v2644
  %v2646 = vsel %vm2250, %v1117, 0.0
  %v2647 = vadd.f32 %v2645, %v2646
  %v2648 = vsel %vm2250, %v1120, 0.0
  %v2649 = vadd.f32 %v2647, %v2648
  %v2650 = vsel %vm2250, %v1125, 0.0
  %v2651 = vadd.f32 %v2649, %v2650
  %v2652 = vsel %vm2250, %v1128, 0.0
  %v2653 = vadd.f32 %v2651, %v2652
  %v2654 = vsel %vm2250, %v1133, 0.0
  %v2655 = vadd.f32 %v2653, %v2654
  %v2656 = vsel %vm2250, %v1136, 0.0
  %v2657 = vadd.f32 %v2655, %v2656
  %v2658 = vsel %vm2362, %v1141, 0.0
  %v2659 = vadd.f32 %v2657, %v2658
  %v2660 = vrot.slane %v2659, 4
  %v2661 = vadd.f32 %v2659, %v2660
  %v2662 = vrot.slane %v2661, 2
  %v2663 = vadd.f32 %v2661, %v2662
  %v2664 = vrot.slane %v2663, 1
  %v2665 = vadd.f32 %v2663, %v2664
  %v2666 = vadd.f32 %v2370, %v2665
  %v2667 = vmul.f32 %v917, %v917
  %v2668 = vmul.f32 %v920, %v920
  %v2669 = vmul.f32 %v925, %v925
  %v2670 = vmul.f32 %v928, %v928
  %v2671 = vmul.f32 %v933, %v933
  %v2672 = vmul.f32 %v936, %v936
  %v2673 = vmul.f32 %v941, %v941
  %v2674 = vmul.f32 %v944, %v944
  %v2675 = vmul.f32 %v949, %v949
  %v2676 = vmul.f32 %v952, %v952
  %v2677 = vmul.f32 %v957, %v957
  %v2678 = vmul.f32 %v960, %v960
  %v2679 = vmul.f32 %v965, %v965
  %v2680 = vmul.f32 %v968, %v968
  %v2681 = vmul.f32 %v973, %v973
  %v2682 = vmul.f32 %v976, %v976
  %v2683 = vmul.f32 %v981, %v981
  %v2684 = vmul.f32 %v984, %v984
  %v2685 = vmul.f32 %v989, %v989
  %v2686 = vmul.f32 %v992, %v992
  %v2687 = vmul.f32 %v997, %v997
  %v2688 = vmul.f32 %v1000, %v1000
  %v2689 = vmul.f32 %v1005, %v1005
  %v2690 = vmul.f32 %v1008, %v1008
  %v2691 = vmul.f32 %v1013, %v1013
  %v2692 = vmul.f32 %v1016, %v1016
  %v2693 = vmul.f32 %v1021, %v1021
  %v2694 = vmul.f32 %v1024, %v1024
  %v2695 = vmul.f32 %v1029, %v1029
  %v2696 = vmul.f32 %v1032, %v1032
  %v2697 = vmul.f32 %v1037, %v1037
  %v2698 = vmul.f32 %v1040, %v1040
  %v2699 = vmul.f32 %v1045, %v1045
  %v2700 = vmul.f32 %v1048, %v1048
  %v2701 = vmul.f32 %v1053, %v1053
  %v2702 = vmul.f32 %v1056, %v1056
  %v2703 = vmul.f32 %v1061, %v1061
  %v2704 = vmul.f32 %v1064, %v1064
  %v2705 = vmul.f32 %v1069, %v1069
  %v2706 = vmul.f32 %v1072, %v1072
  %v2707 = vmul.f32 %v1077, %v1077
  %v2708 = vmul.f32 %v1080, %v1080
  %v2709 = vmul.f32 %v1085, %v1085
  %v2710 = vmul.f32 %v1088, %v1088
  %v2711 = vmul.f32 %v1093, %v1093
  %v2712 = vmul.f32 %v1096, %v1096
  %v2713 = vmul.f32 %v1101, %v1101
  %v2714 = vmul.f32 %v1104, %v1104
  %v2715 = vmul.f32 %v1109, %v1109
  %v2716 = vmul.f32 %v1112, %v1112
  %v2717 = vmul.f32 %v1117, %v1117
  %v2718 = vmul.f32 %v1120, %v1120
  %v2719 = vmul.f32 %v1125, %v1125
  %v2720 = vmul.f32 %v1128, %v1128
  %v2721 = vmul.f32 %v1133, %v1133
  %v2722 = vmul.f32 %v1136, %v1136
  %v2723 = vmul.f32 %v1141, %v1141
  %v2724 = vsel %vm2250, %v2667, 0.0
  %v2725 = vsel %vm2250, %v2668, 0.0
  %v2726 = vadd.f32 %v2724, %v2725
  %v2727 = vsel %vm2250, %v2669, 0.0
  %v2728 = vadd.f32 %v2726, %v2727
  %v2729 = vsel %vm2250, %v2670, 0.0
  %v2730 = vadd.f32 %v2728, %v2729
  %v2731 = vsel %vm2250, %v2671, 0.0
  %v2732 = vadd.f32 %v2730, %v2731
  %v2733 = vsel %vm2250, %v2672, 0.0
  %v2734 = vadd.f32 %v2732, %v2733
  %v2735 = vsel %vm2250, %v2673, 0.0
  %v2736 = vadd.f32 %v2734, %v2735
  %v2737 = vsel %vm2250, %v2674, 0.0
  %v2738 = vadd.f32 %v2736, %v2737
  %v2739 = vsel %vm2250, %v2675, 0.0
  %v2740 = vadd.f32 %v2738, %v2739
  %v2741 = vsel %vm2250, %v2676, 0.0
  %v2742 = vadd.f32 %v2740, %v2741
  %v2743 = vsel %vm2250, %v2677, 0.0
  %v2744 = vadd.f32 %v2742, %v2743
  %v2745 = vsel %vm2250, %v2678, 0.0
  %v2746 = vadd.f32 %v2744, %v2745
  %v2747 = vsel %vm2250, %v2679, 0.0
  %v2748 = vadd.f32 %v2746, %v2747
  %v2749 = vsel %vm2250, %v2680, 0.0
  %v2750 = vadd.f32 %v2748, %v2749
  %v2751 = vsel %vm2250, %v2681, 0.0
  %v2752 = vadd.f32 %v2750, %v2751
  %v2753 = vsel %vm2250, %v2682, 0.0
  %v2754 = vadd.f32 %v2752, %v2753
  %v2755 = vsel %vm2250, %v2683, 0.0
  %v2756 = vadd.f32 %v2754, %v2755
  %v2757 = vsel %vm2250, %v2684, 0.0
  %v2758 = vadd.f32 %v2756, %v2757
  %v2759 = vsel %vm2250, %v2685, 0.0
  %v2760 = vadd.f32 %v2758, %v2759
  %v2761 = vsel %vm2250, %v2686, 0.0
  %v2762 = vadd.f32 %v2760, %v2761
  %v2763 = vsel %vm2250, %v2687, 0.0
  %v2764 = vadd.f32 %v2762, %v2763
  %v2765 = vsel %vm2250, %v2688, 0.0
  %v2766 = vadd.f32 %v2764, %v2765
  %v2767 = vsel %vm2250, %v2689, 0.0
  %v2768 = vadd.f32 %v2766, %v2767
  %v2769 = vsel %vm2250, %v2690, 0.0
  %v2770 = vadd.f32 %v2768, %v2769
  %v2771 = vsel %vm2250, %v2691, 0.0
  %v2772 = vadd.f32 %v2770, %v2771
  %v2773 = vsel %vm2250, %v2692, 0.0
  %v2774 = vadd.f32 %v2772, %v2773
  %v2775 = vsel %vm2250, %v2693, 0.0
  %v2776 = vadd.f32 %v2774, %v2775
  %v2777 = vsel %vm2250, %v2694, 0.0
  %v2778 = vadd.f32 %v2776, %v2777
  %v2779 = vsel %vm2250, %v2695, 0.0
  %v2780 = vadd.f32 %v2778, %v2779
  %v2781 = vsel %vm2250, %v2696, 0.0
  %v2782 = vadd.f32 %v2780, %v2781
  %v2783 = vsel %vm2250, %v2697, 0.0
  %v2784 = vadd.f32 %v2782, %v2783
  %v2785 = vsel %vm2250, %v2698, 0.0
  %v2786 = vadd.f32 %v2784, %v2785
  %v2787 = vsel %vm2250, %v2699, 0.0
  %v2788 = vadd.f32 %v2786, %v2787
  %v2789 = vsel %vm2250, %v2700, 0.0
  %v2790 = vadd.f32 %v2788, %v2789
  %v2791 = vsel %vm2250, %v2701, 0.0
  %v2792 = vadd.f32 %v2790, %v2791
  %v2793 = vsel %vm2250, %v2702, 0.0
  %v2794 = vadd.f32 %v2792, %v2793
  %v2795 = vsel %vm2250, %v2703, 0.0
  %v2796 = vadd.f32 %v2794, %v2795
  %v2797 = vsel %vm2250, %v2704, 0.0
  %v2798 = vadd.f32 %v2796, %v2797
  %v2799 = vsel %vm2250, %v2705, 0.0
  %v2800 = vadd.f32 %v2798, %v2799
  %v2801 = vsel %vm2250, %v2706, 0.0
  %v2802 = vadd.f32 %v2800, %v2801
  %v2803 = vsel %vm2250, %v2707, 0.0
  %v2804 = vadd.f32 %v2802, %v2803
  %v2805 = vsel %vm2250, %v2708, 0.0
  %v2806 = vadd.f32 %v2804, %v2805
  %v2807 = vsel %vm2250, %v2709, 0.0
  %v2808 = vadd.f32 %v2806, %v2807
  %v2809 = vsel %vm2250, %v2710, 0.0
  %v2810 = vadd.f32 %v2808, %v2809
  %v2811 = vsel %vm2250, %v2711, 0.0
  %v2812 = vadd.f32 %v2810, %v2811
  %v2813 = vsel %vm2250, %v2712, 0.0
  %v2814 = vadd.f32 %v2812, %v2813
  %v2815 = vsel %vm2250, %v2713, 0.0
  %v2816 = vadd.f32 %v2814, %v2815
  %v2817 = vsel %vm2250, %v2714, 0.0
  %v2818 = vadd.f32 %v2816, %v2817
  %v2819 = vsel %vm2250, %v2715, 0.0
  %v2820 = vadd.f32 %v2818, %v2819
  %v2821 = vsel %vm2250, %v2716, 0.0
  %v2822 = vadd.f32 %v2820, %v2821
  %v2823 = vsel %vm2250, %v2717, 0.0
  %v2824 = vadd.f32 %v2822, %v2823
  %v2825 = vsel %vm2250, %v2718, 0.0
  %v2826 = vadd.f32 %v2824, %v2825
  %v2827 = vsel %vm2250, %v2719, 0.0
  %v2828 = vadd.f32 %v2826, %v2827
  %v2829 = vsel %vm2250, %v2720, 0.0
  %v2830 = vadd.f32 %v2828, %v2829
  %v2831 = vsel %vm2250, %v2721, 0.0
  %v2832 = vadd.f32 %v2830, %v2831
  %v2833 = vsel %vm2250, %v2722, 0.0
  %v2834 = vadd.f32 %v2832, %v2833
  %v2835 = vsel %vm2362, %v2723, 0.0
  %v2836 = vadd.f32 %v2834, %v2835
  %v2837 = vrot.slane %v2836, 4
  %v2838 = vadd.f32 %v2836, %v2837
  %v2839 = vrot.slane %v2838, 2
  %v2840 = vadd.f32 %v2838, %v2839
  %v2841 = vrot.slane %v2840, 1
  %v2842 = vadd.f32 %v2840, %v2841
  %v2843 = vadd.f32 %v2546, %v2842
  %v2844 = vsel %vm2250, %v1468, 0.0
  %v2845 = vsel %vm2250, %v1471, 0.0
  %v2846 = vadd.f32 %v2844, %v2845
  %v2847 = vsel %vm2250, %v1476, 0.0
  %v2848 = vadd.f32 %v2846, %v2847
  %v2849 = vsel %vm2250, %v1479, 0.0
  %v2850 = vadd.f32 %v2848, %v2849
  %v2851 = vsel %vm2250, %v1484, 0.0
  %v2852 = vadd.f32 %v2850, %v2851
  %v2853 = vsel %vm2250, %v1487, 0.0
  %v2854 = vadd.f32 %v2852, %v2853
  %v2855 = vsel %vm2250, %v1492, 0.0
  %v2856 = vadd.f32 %v2854, %v2855
  %v2857 = vsel %vm2250, %v1495, 0.0
  %v2858 = vadd.f32 %v2856, %v2857
  %v2859 = vsel %vm2250, %v1500, 0.0
  %v2860 = vadd.f32 %v2858, %v2859
  %v2861 = vsel %vm2250, %v1503, 0.0
  %v2862 = vadd.f32 %v2860, %v2861
  %v2863 = vsel %vm2250, %v1508, 0.0
  %v2864 = vadd.f32 %v2862, %v2863
  %v2865 = vsel %vm2250, %v1511, 0.0
  %v2866 = vadd.f32 %v2864, %v2865
  %v2867 = vsel %vm2250, %v1516, 0.0
  %v2868 = vadd.f32 %v2866, %v2867
  %v2869 = vsel %vm2250, %v1519, 0.0
  %v2870 = vadd.f32 %v2868, %v2869
  %v2871 = vsel %vm2250, %v1524, 0.0
  %v2872 = vadd.f32 %v2870, %v2871
  %v2873 = vsel %vm2250, %v1527, 0.0
  %v2874 = vadd.f32 %v2872, %v2873
  %v2875 = vsel %vm2250, %v1532, 0.0
  %v2876 = vadd.f32 %v2874, %v2875
  %v2877 = vsel %vm2250, %v1535, 0.0
  %v2878 = vadd.f32 %v2876, %v2877
  %v2879 = vsel %vm2250, %v1540, 0.0
  %v2880 = vadd.f32 %v2878, %v2879
  %v2881 = vsel %vm2250, %v1543, 0.0
  %v2882 = vadd.f32 %v2880, %v2881
  %v2883 = vsel %vm2250, %v1548, 0.0
  %v2884 = vadd.f32 %v2882, %v2883
  %v2885 = vsel %vm2250, %v1551, 0.0
  %v2886 = vadd.f32 %v2884, %v2885
  %v2887 = vsel %vm2250, %v1556, 0.0
  %v2888 = vadd.f32 %v2886, %v2887
  %v2889 = vsel %vm2250, %v1559, 0.0
  %v2890 = vadd.f32 %v2888, %v2889
  %v2891 = vsel %vm2250, %v1564, 0.0
  %v2892 = vadd.f32 %v2890, %v2891
  %v2893 = vsel %vm2250, %v1567, 0.0
  %v2894 = vadd.f32 %v2892, %v2893
  %v2895 = vsel %vm2250, %v1572, 0.0
  %v2896 = vadd.f32 %v2894, %v2895
  %v2897 = vsel %vm2250, %v1575, 0.0
  %v2898 = vadd.f32 %v2896, %v2897
  %v2899 = vsel %vm2250, %v1580, 0.0
  %v2900 = vadd.f32 %v2898, %v2899
  %v2901 = vsel %vm2250, %v1583, 0.0
  %v2902 = vadd.f32 %v2900, %v2901
  %v2903 = vsel %vm2250, %v1588, 0.0
  %v2904 = vadd.f32 %v2902, %v2903
  %v2905 = vsel %vm2250, %v1591, 0.0
  %v2906 = vadd.f32 %v2904, %v2905
  %v2907 = vsel %vm2250, %v1596, 0.0
  %v2908 = vadd.f32 %v2906, %v2907
  %v2909 = vsel %vm2250, %v1599, 0.0
  %v2910 = vadd.f32 %v2908, %v2909
  %v2911 = vsel %vm2250, %v1604, 0.0
  %v2912 = vadd.f32 %v2910, %v2911
  %v2913 = vsel %vm2250, %v1607, 0.0
  %v2914 = vadd.f32 %v2912, %v2913
  %v2915 = vsel %vm2250, %v1612, 0.0
  %v2916 = vadd.f32 %v2914, %v2915
  %v2917 = vsel %vm2250, %v1615, 0.0
  %v2918 = vadd.f32 %v2916, %v2917
  %v2919 = vsel %vm2250, %v1620, 0.0
  %v2920 = vadd.f32 %v2918, %v2919
  %v2921 = vsel %vm2250, %v1623, 0.0
  %v2922 = vadd.f32 %v2920, %v2921
  %v2923 = vsel %vm2250, %v1628, 0.0
  %v2924 = vadd.f32 %v2922, %v2923
  %v2925 = vsel %vm2250, %v1631, 0.0
  %v2926 = vadd.f32 %v2924, %v2925
  %v2927 = vsel %vm2250, %v1636, 0.0
  %v2928 = vadd.f32 %v2926, %v2927
  %v2929 = vsel %vm2250, %v1639, 0.0
  %v2930 = vadd.f32 %v2928, %v2929
  %v2931 = vsel %vm2250, %v1644, 0.0
  %v2932 = vadd.f32 %v2930, %v2931
  %v2933 = vsel %vm2250, %v1647, 0.0
  %v2934 = vadd.f32 %v2932, %v2933
  %v2935 = vsel %vm2250, %v1652, 0.0
  %v2936 = vadd.f32 %v2934, %v2935
  %v2937 = vsel %vm2250, %v1655, 0.0
  %v2938 = vadd.f32 %v2936, %v2937
  %v2939 = vsel %vm2250, %v1660, 0.0
  %v2940 = vadd.f32 %v2938, %v2939
  %v2941 = vsel %vm2250, %v1663, 0.0
  %v2942 = vadd.f32 %v2940, %v2941
  %v2943 = vsel %vm2250, %v1668, 0.0
  %v2944 = vadd.f32 %v2942, %v2943
  %v2945 = vsel %vm2250, %v1671, 0.0
  %v2946 = vadd.f32 %v2944, %v2945
  %v2947 = vsel %vm2250, %v1676, 0.0
  %v2948 = vadd.f32 %v2946, %v2947
  %v2949 = vsel %vm2250, %v1679, 0.0
  %v2950 = vadd.f32 %v2948, %v2949
  %v2951 = vsel %vm2250, %v1684, 0.0
  %v2952 = vadd.f32 %v2950, %v2951
  %v2953 = vsel %vm2250, %v1687, 0.0
  %v2954 = vadd.f32 %v2952, %v2953
  %v2955 = vsel %vm2362, %v1692, 0.0
  %v2956 = vadd.f32 %v2954, %v2955
  %v2957 = vrot.slane %v2956, 4
  %v2958 = vadd.f32 %v2956, %v2957
  %v2959 = vrot.slane %v2958, 2
  %v2960 = vadd.f32 %v2958, %v2959
  %v2961 = vrot.slane %v2960, 1
  %v2962 = vadd.f32 %v2960, %v2961
  %v2963 = vadd.f32 %v2666, %v2962
  %v2964 = vmul.f32 %v1468, %v1468
  %v2965 = vmul.f32 %v1471, %v1471
  %v2966 = vmul.f32 %v1476, %v1476
  %v2967 = vmul.f32 %v1479, %v1479
  %v2968 = vmul.f32 %v1484, %v1484
  %v2969 = vmul.f32 %v1487, %v1487
  %v2970 = vmul.f32 %v1492, %v1492
  %v2971 = vmul.f32 %v1495, %v1495
  %v2972 = vmul.f32 %v1500, %v1500
  %v2973 = vmul.f32 %v1503, %v1503
  %v2974 = vmul.f32 %v1508, %v1508
  %v2975 = vmul.f32 %v1511, %v1511
  %v2976 = vmul.f32 %v1516, %v1516
  %v2977 = vmul.f32 %v1519, %v1519
  %v2978 = vmul.f32 %v1524, %v1524
  %v2979 = vmul.f32 %v1527, %v1527
  %v2980 = vmul.f32 %v1532, %v1532
  %v2981 = vmul.f32 %v1535, %v1535
  %v2982 = vmul.f32 %v1540, %v1540
  %v2983 = vmul.f32 %v1543, %v1543
  %v2984 = vmul.f32 %v1548, %v1548
  %v2985 = vmul.f32 %v1551, %v1551
  %v2986 = vmul.f32 %v1556, %v1556
  %v2987 = vmul.f32 %v1559, %v1559
  %v2988 = vmul.f32 %v1564, %v1564
  %v2989 = vmul.f32 %v1567, %v1567
  %v2990 = vmul.f32 %v1572, %v1572
  %v2991 = vmul.f32 %v1575, %v1575
  %v2992 = vmul.f32 %v1580, %v1580
  %v2993 = vmul.f32 %v1583, %v1583
  %v2994 = vmul.f32 %v1588, %v1588
  %v2995 = vmul.f32 %v1591, %v1591
  %v2996 = vmul.f32 %v1596, %v1596
  %v2997 = vmul.f32 %v1599, %v1599
  %v2998 = vmul.f32 %v1604, %v1604
  %v2999 = vmul.f32 %v1607, %v1607
  %v3000 = vmul.f32 %v1612, %v1612
  %v3001 = vmul.f32 %v1615, %v1615
  %v3002 = vmul.f32 %v1620, %v1620
  %v3003 = vmul.f32 %v1623, %v1623
  %v3004 = vmul.f32 %v1628, %v1628
  %v3005 = vmul.f32 %v1631, %v1631
  %v3006 = vmul.f32 %v1636, %v1636
  %v3007 = vmul.f32 %v1639, %v1639
  %v3008 = vmul.f32 %v1644, %v1644
  %v3009 = vmul.f32 %v1647, %v1647
  %v3010 = vmul.f32 %v1652, %v1652
  %v3011 = vmul.f32 %v1655, %v1655
  %v3012 = vmul.f32 %v1660, %v1660
  %v3013 = vmul.f32 %v1663, %v1663
  %v3014 = vmul.f32 %v1668, %v1668
  %v3015 = vmul.f32 %v1671, %v1671
  %v3016 = vmul.f32 %v1676, %v1676
  %v3017 = vmul.f32 %v1679, %v1679
  %v3018 = vmul.f32 %v1684, %v1684
  %v3019 = vmul.f32 %v1687, %v1687
  %v3020 = vmul.f32 %v1692, %v1692
  %v3021 = vsel %vm2250, %v2964, 0.0
  %v3022 = vsel %vm2250, %v2965, 0.0
  %v3023 = vadd.f32 %v3021, %v3022
  %v3024 = vsel %vm2250, %v2966, 0.0
  %v3025 = vadd.f32 %v3023, %v3024
  %v3026 = vsel %vm2250, %v2967, 0.0
  %v3027 = vadd.f32 %v3025, %v3026
  %v3028 = vsel %vm2250, %v2968, 0.0
  %v3029 = vadd.f32 %v3027, %v3028
  %v3030 = vsel %vm2250, %v2969, 0.0
  %v3031 = vadd.f32 %v3029, %v3030
  %v3032 = vsel %vm2250, %v2970, 0.0
  %v3033 = vadd.f32 %v3031, %v3032
  %v3034 = vsel %vm2250, %v2971, 0.0
  %v3035 = vadd.f32 %v3033, %v3034
  %v3036 = vsel %vm2250, %v2972, 0.0
  %v3037 = vadd.f32 %v3035, %v3036
  %v3038 = vsel %vm2250, %v2973, 0.0
  %v3039 = vadd.f32 %v3037, %v3038
  %v3040 = vsel %vm2250, %v2974, 0.0
  %v3041 = vadd.f32 %v3039, %v3040
  %v3042 = vsel %vm2250, %v2975, 0.0
  %v3043 = vadd.f32 %v3041, %v3042
  %v3044 = vsel %vm2250, %v2976, 0.0
  %v3045 = vadd.f32 %v3043, %v3044
  %v3046 = vsel %vm2250, %v2977, 0.0
  %v3047 = vadd.f32 %v3045, %v3046
  %v3048 = vsel %vm2250, %v2978, 0.0
  %v3049 = vadd.f32 %v3047, %v3048
  %v3050 = vsel %vm2250, %v2979, 0.0
  %v3051 = vadd.f32 %v3049, %v3050
  %v3052 = vsel %vm2250, %v2980, 0.0
  %v3053 = vadd.f32 %v3051, %v3052
  %v3054 = vsel %vm2250, %v2981, 0.0
  %v3055 = vadd.f32 %v3053, %v3054
  %v3056 = vsel %vm2250, %v2982, 0.0
  %v3057 = vadd.f32 %v3055, %v3056
  %v3058 = vsel %vm2250, %v2983, 0.0
  %v3059 = vadd.f32 %v3057, %v3058
  %v3060 = vsel %vm2250, %v2984, 0.0
  %v3061 = vadd.f32 %v3059, %v3060
  %v3062 = vsel %vm2250, %v2985, 0.0
  %v3063 = vadd.f32 %v3061, %v3062
  %v3064 = vsel %vm2250, %v2986, 0.0
  %v3065 = vadd.f32 %v3063, %v3064
  %v3066 = vsel %vm2250, %v2987, 0.0
  %v3067 = vadd.f32 %v3065, %v3066
  %v3068 = vsel %vm2250, %v2988, 0.0
  %v3069 = vadd.f32 %v3067, %v3068
  %v3070 = vsel %vm2250, %v2989, 0.0
  %v3071 = vadd.f32 %v3069, %v3070
  %v3072 = vsel %vm2250, %v2990, 0.0
  %v3073 = vadd.f32 %v3071, %v3072
  %v3074 = vsel %vm2250, %v2991, 0.0
  %v3075 = vadd.f32 %v3073, %v3074
  %v3076 = vsel %vm2250, %v2992, 0.0
  %v3077 = vadd.f32 %v3075, %v3076
  %v3078 = vsel %vm2250, %v2993, 0.0
  %v3079 = vadd.f32 %v3077, %v3078
  %v3080 = vsel %vm2250, %v2994, 0.0
  %v3081 = vadd.f32 %v3079, %v3080
  %v3082 = vsel %vm2250, %v2995, 0.0
  %v3083 = vadd.f32 %v3081, %v3082
  %v3084 = vsel %vm2250, %v2996, 0.0
  %v3085 = vadd.f32 %v3083, %v3084
  %v3086 = vsel %vm2250, %v2997, 0.0
  %v3087 = vadd.f32 %v3085, %v3086
  %v3088 = vsel %vm2250, %v2998, 0.0
  %v3089 = vadd.f32 %v3087, %v3088
  %v3090 = vsel %vm2250, %v2999, 0.0
  %v3091 = vadd.f32 %v3089, %v3090
  %v3092 = vsel %vm2250, %v3000, 0.0
  %v3093 = vadd.f32 %v3091, %v3092
  %v3094 = vsel %vm2250, %v3001, 0.0
  %v3095 = vadd.f32 %v3093, %v3094
  %v3096 = vsel %vm2250, %v3002, 0.0
  %v3097 = vadd.f32 %v3095, %v3096
  %v3098 = vsel %vm2250, %v3003, 0.0
  %v3099 = vadd.f32 %v3097, %v3098
  %v3100 = vsel %vm2250, %v3004, 0.0
  %v3101 = vadd.f32 %v3099, %v3100
  %v3102 = vsel %vm2250, %v3005, 0.0
  %v3103 = vadd.f32 %v3101, %v3102
  %v3104 = vsel %vm2250, %v3006, 0.0
  %v3105 = vadd.f32 %v3103, %v3104
  %v3106 = vsel %vm2250, %v3007, 0.0
  %v3107 = vadd.f32 %v3105, %v3106
  %v3108 = vsel %vm2250, %v3008, 0.0
  %v3109 = vadd.f32 %v3107, %v3108
  %v3110 = vsel %vm2250, %v3009, 0.0
  %v3111 = vadd.f32 %v3109, %v3110
  %v3112 = vsel %vm2250, %v3010, 0.0
  %v3113 = vadd.f32 %v3111, %v3112
  %v3114 = vsel %vm2250, %v3011, 0.0
  %v3115 = vadd.f32 %v3113, %v3114
  %v3116 = vsel %vm2250, %v3012, 0.0
  %v3117 = vadd.f32 %v3115, %v3116
  %v3118 = vsel %vm2250, %v3013, 0.0
  %v3119 = vadd.f32 %v3117, %v3118
  %v3120 = vsel %vm2250, %v3014, 0.0
  %v3121 = vadd.f32 %v3119, %v3120
  %v3122 = vsel %vm2250, %v3015, 0.0
  %v3123 = vadd.f32 %v3121, %v3122
  %v3124 = vsel %vm2250, %v3016, 0.0
  %v3125 = vadd.f32 %v3123, %v3124
  %v3126 = vsel %vm2250, %v3017, 0.0
  %v3127 = vadd.f32 %v3125, %v3126
  %v3128 = vsel %vm2250, %v3018, 0.0
  %v3129 = vadd.f32 %v3127, %v3128
  %v3130 = vsel %vm2250, %v3019, 0.0
  %v3131 = vadd.f32 %v3129, %v3130
  %v3132 = vsel %vm2362, %v3020, 0.0
  %v3133 = vadd.f32 %v3131, %v3132
  %v3134 = vrot.slane %v3133, 4
  %v3135 = vadd.f32 %v3133, %v3134
  %v3136 = vrot.slane %v3135, 2
  %v3137 = vadd.f32 %v3135, %v3136
  %v3138 = vrot.slane %v3137, 1
  %v3139 = vadd.f32 %v3137, %v3138
  %v3140 = vadd.f32 %v2843, %v3139
  %v3141 = vsel %vm2250, %v2019, 0.0
  %v3142 = vsel %vm2250, %v2022, 0.0
  %v3143 = vadd.f32 %v3141, %v3142
  %v3144 = vsel %vm2250, %v2027, 0.0
  %v3145 = vadd.f32 %v3143, %v3144
  %v3146 = vsel %vm2250, %v2030, 0.0
  %v3147 = vadd.f32 %v3145, %v3146
  %v3148 = vsel %vm2250, %v2035, 0.0
  %v3149 = vadd.f32 %v3147, %v3148
  %v3150 = vsel %vm2250, %v2038, 0.0
  %v3151 = vadd.f32 %v3149, %v3150
  %v3152 = vsel %vm2250, %v2043, 0.0
  %v3153 = vadd.f32 %v3151, %v3152
  %v3154 = vsel %vm2250, %v2046, 0.0
  %v3155 = vadd.f32 %v3153, %v3154
  %v3156 = vsel %vm2250, %v2051, 0.0
  %v3157 = vadd.f32 %v3155, %v3156
  %v3158 = vsel %vm2250, %v2054, 0.0
  %v3159 = vadd.f32 %v3157, %v3158
  %v3160 = vsel %vm2250, %v2059, 0.0
  %v3161 = vadd.f32 %v3159, %v3160
  %v3162 = vsel %vm2250, %v2062, 0.0
  %v3163 = vadd.f32 %v3161, %v3162
  %v3164 = vsel %vm2250, %v2067, 0.0
  %v3165 = vadd.f32 %v3163, %v3164
  %v3166 = vsel %vm2250, %v2070, 0.0
  %v3167 = vadd.f32 %v3165, %v3166
  %v3168 = vsel %vm2250, %v2075, 0.0
  %v3169 = vadd.f32 %v3167, %v3168
  %v3170 = vsel %vm2250, %v2078, 0.0
  %v3171 = vadd.f32 %v3169, %v3170
  %v3172 = vsel %vm2250, %v2083, 0.0
  %v3173 = vadd.f32 %v3171, %v3172
  %v3174 = vsel %vm2250, %v2086, 0.0
  %v3175 = vadd.f32 %v3173, %v3174
  %v3176 = vsel %vm2250, %v2091, 0.0
  %v3177 = vadd.f32 %v3175, %v3176
  %v3178 = vsel %vm2250, %v2094, 0.0
  %v3179 = vadd.f32 %v3177, %v3178
  %v3180 = vsel %vm2250, %v2099, 0.0
  %v3181 = vadd.f32 %v3179, %v3180
  %v3182 = vsel %vm2250, %v2102, 0.0
  %v3183 = vadd.f32 %v3181, %v3182
  %v3184 = vsel %vm2250, %v2107, 0.0
  %v3185 = vadd.f32 %v3183, %v3184
  %v3186 = vsel %vm2250, %v2110, 0.0
  %v3187 = vadd.f32 %v3185, %v3186
  %v3188 = vsel %vm2250, %v2115, 0.0
  %v3189 = vadd.f32 %v3187, %v3188
  %v3190 = vsel %vm2250, %v2118, 0.0
  %v3191 = vadd.f32 %v3189, %v3190
  %v3192 = vsel %vm2250, %v2123, 0.0
  %v3193 = vadd.f32 %v3191, %v3192
  %v3194 = vsel %vm2250, %v2126, 0.0
  %v3195 = vadd.f32 %v3193, %v3194
  %v3196 = vsel %vm2250, %v2131, 0.0
  %v3197 = vadd.f32 %v3195, %v3196
  %v3198 = vsel %vm2250, %v2134, 0.0
  %v3199 = vadd.f32 %v3197, %v3198
  %v3200 = vsel %vm2250, %v2139, 0.0
  %v3201 = vadd.f32 %v3199, %v3200
  %v3202 = vsel %vm2250, %v2142, 0.0
  %v3203 = vadd.f32 %v3201, %v3202
  %v3204 = vsel %vm2250, %v2147, 0.0
  %v3205 = vadd.f32 %v3203, %v3204
  %v3206 = vsel %vm2250, %v2150, 0.0
  %v3207 = vadd.f32 %v3205, %v3206
  %v3208 = vsel %vm2250, %v2155, 0.0
  %v3209 = vadd.f32 %v3207, %v3208
  %v3210 = vsel %vm2250, %v2158, 0.0
  %v3211 = vadd.f32 %v3209, %v3210
  %v3212 = vsel %vm2250, %v2163, 0.0
  %v3213 = vadd.f32 %v3211, %v3212
  %v3214 = vsel %vm2250, %v2166, 0.0
  %v3215 = vadd.f32 %v3213, %v3214
  %v3216 = vsel %vm2250, %v2171, 0.0
  %v3217 = vadd.f32 %v3215, %v3216
  %v3218 = vsel %vm2250, %v2174, 0.0
  %v3219 = vadd.f32 %v3217, %v3218
  %v3220 = vsel %vm2250, %v2179, 0.0
  %v3221 = vadd.f32 %v3219, %v3220
  %v3222 = vsel %vm2250, %v2182, 0.0
  %v3223 = vadd.f32 %v3221, %v3222
  %v3224 = vsel %vm2250, %v2187, 0.0
  %v3225 = vadd.f32 %v3223, %v3224
  %v3226 = vsel %vm2250, %v2190, 0.0
  %v3227 = vadd.f32 %v3225, %v3226
  %v3228 = vsel %vm2250, %v2195, 0.0
  %v3229 = vadd.f32 %v3227, %v3228
  %v3230 = vsel %vm2250, %v2198, 0.0
  %v3231 = vadd.f32 %v3229, %v3230
  %v3232 = vsel %vm2250, %v2203, 0.0
  %v3233 = vadd.f32 %v3231, %v3232
  %v3234 = vsel %vm2250, %v2206, 0.0
  %v3235 = vadd.f32 %v3233, %v3234
  %v3236 = vsel %vm2250, %v2211, 0.0
  %v3237 = vadd.f32 %v3235, %v3236
  %v3238 = vsel %vm2250, %v2214, 0.0
  %v3239 = vadd.f32 %v3237, %v3238
  %v3240 = vsel %vm2250, %v2219, 0.0
  %v3241 = vadd.f32 %v3239, %v3240
  %v3242 = vsel %vm2250, %v2222, 0.0
  %v3243 = vadd.f32 %v3241, %v3242
  %v3244 = vsel %vm2250, %v2227, 0.0
  %v3245 = vadd.f32 %v3243, %v3244
  %v3246 = vsel %vm2250, %v2230, 0.0
  %v3247 = vadd.f32 %v3245, %v3246
  %v3248 = vsel %vm2250, %v2235, 0.0
  %v3249 = vadd.f32 %v3247, %v3248
  %v3250 = vsel %vm2250, %v2238, 0.0
  %v3251 = vadd.f32 %v3249, %v3250
  %v3252 = vsel %vm2362, %v2243, 0.0
  %v3253 = vadd.f32 %v3251, %v3252
  %v3254 = vrot.slane %v3253, 4
  %v3255 = vadd.f32 %v3253, %v3254
  %v3256 = vrot.slane %v3255, 2
  %v3257 = vadd.f32 %v3255, %v3256
  %v3258 = vrot.slane %v3257, 1
  %v3259 = vadd.f32 %v3257, %v3258
  %v3260 = vadd.f32 %v2963, %v3259
  %v3261 = vmul.f32 %v2019, %v2019
  %v3262 = vmul.f32 %v2022, %v2022
  %v3263 = vmul.f32 %v2027, %v2027
  %v3264 = vmul.f32 %v2030, %v2030
  %v3265 = vmul.f32 %v2035, %v2035
  %v3266 = vmul.f32 %v2038, %v2038
  %v3267 = vmul.f32 %v2043, %v2043
  %v3268 = vmul.f32 %v2046, %v2046
  %v3269 = vmul.f32 %v2051, %v2051
  %v3270 = vmul.f32 %v2054, %v2054
  %v3271 = vmul.f32 %v2059, %v2059
  %v3272 = vmul.f32 %v2062, %v2062
  %v3273 = vmul.f32 %v2067, %v2067
  %v3274 = vmul.f32 %v2070, %v2070
  %v3275 = vmul.f32 %v2075, %v2075
  %v3276 = vmul.f32 %v2078, %v2078
  %v3277 = vmul.f32 %v2083, %v2083
  %v3278 = vmul.f32 %v2086, %v2086
  %v3279 = vmul.f32 %v2091, %v2091
  %v3280 = vmul.f32 %v2094, %v2094
  %v3281 = vmul.f32 %v2099, %v2099
  %v3282 = vmul.f32 %v2102, %v2102
  %v3283 = vmul.f32 %v2107, %v2107
  %v3284 = vmul.f32 %v2110, %v2110
  %v3285 = vmul.f32 %v2115, %v2115
  %v3286 = vmul.f32 %v2118, %v2118
  %v3287 = vmul.f32 %v2123, %v2123
  %v3288 = vmul.f32 %v2126, %v2126
  %v3289 = vmul.f32 %v2131, %v2131
  %v3290 = vmul.f32 %v2134, %v2134
  %v3291 = vmul.f32 %v2139, %v2139
  %v3292 = vmul.f32 %v2142, %v2142
  %v3293 = vmul.f32 %v2147, %v2147
  %v3294 = vmul.f32 %v2150, %v2150
  %v3295 = vmul.f32 %v2155, %v2155
  %v3296 = vmul.f32 %v2158, %v2158
  %v3297 = vmul.f32 %v2163, %v2163
  %v3298 = vmul.f32 %v2166, %v2166
  %v3299 = vmul.f32 %v2171, %v2171
  %v3300 = vmul.f32 %v2174, %v2174
  %v3301 = vmul.f32 %v2179, %v2179
  %v3302 = vmul.f32 %v2182, %v2182
  %v3303 = vmul.f32 %v2187, %v2187
  %v3304 = vmul.f32 %v2190, %v2190
  %v3305 = vmul.f32 %v2195, %v2195
  %v3306 = vmul.f32 %v2198, %v2198
  %v3307 = vmul.f32 %v2203, %v2203
  %v3308 = vmul.f32 %v2206, %v2206
  %v3309 = vmul.f32 %v2211, %v2211
  %v3310 = vmul.f32 %v2214, %v2214
  %v3311 = vmul.f32 %v2219, %v2219
  %v3312 = vmul.f32 %v2222, %v2222
  %v3313 = vmul.f32 %v2227, %v2227
  %v3314 = vmul.f32 %v2230, %v2230
  %v3315 = vmul.f32 %v2235, %v2235
  %v3316 = vmul.f32 %v2238, %v2238
  %v3317 = vmul.f32 %v2243, %v2243
  %v3318 = vsel %vm2250, %v3261, 0.0
  %v3319 = vsel %vm2250, %v3262, 0.0
  %v3320 = vadd.f32 %v3318, %v3319
  %v3321 = vsel %vm2250, %v3263, 0.0
  %v3322 = vadd.f32 %v3320, %v3321
  %v3323 = vsel %vm2250, %v3264, 0.0
  %v3324 = vadd.f32 %v3322, %v3323
  %v3325 = vsel %vm2250, %v3265, 0.0
  %v3326 = vadd.f32 %v3324, %v3325
  %v3327 = vsel %vm2250, %v3266, 0.0
  %v3328 = vadd.f32 %v3326, %v3327
  %v3329 = vsel %vm2250, %v3267, 0.0
  %v3330 = vadd.f32 %v3328, %v3329
  %v3331 = vsel %vm2250, %v3268, 0.0
  %v3332 = vadd.f32 %v3330, %v3331
  %v3333 = vsel %vm2250, %v3269, 0.0
  %v3334 = vadd.f32 %v3332, %v3333
  %v3335 = vsel %vm2250, %v3270, 0.0
  %v3336 = vadd.f32 %v3334, %v3335
  %v3337 = vsel %vm2250, %v3271, 0.0
  %v3338 = vadd.f32 %v3336, %v3337
  %v3339 = vsel %vm2250, %v3272, 0.0
  %v3340 = vadd.f32 %v3338, %v3339
  %v3341 = vsel %vm2250, %v3273, 0.0
  %v3342 = vadd.f32 %v3340, %v3341
  %v3343 = vsel %vm2250, %v3274, 0.0
  %v3344 = vadd.f32 %v3342, %v3343
  %v3345 = vsel %vm2250, %v3275, 0.0
  %v3346 = vadd.f32 %v3344, %v3345
  %v3347 = vsel %vm2250, %v3276, 0.0
  %v3348 = vadd.f32 %v3346, %v3347
  %v3349 = vsel %vm2250, %v3277, 0.0
  %v3350 = vadd.f32 %v3348, %v3349
  %v3351 = vsel %vm2250, %v3278, 0.0
  %v3352 = vadd.f32 %v3350, %v3351
  %v3353 = vsel %vm2250, %v3279, 0.0
  %v3354 = vadd.f32 %v3352, %v3353
  %v3355 = vsel %vm2250, %v3280, 0.0
  %v3356 = vadd.f32 %v3354, %v3355
  %v3357 = vsel %vm2250, %v3281, 0.0
  %v3358 = vadd.f32 %v3356, %v3357
  %v3359 = vsel %vm2250, %v3282, 0.0
  %v3360 = vadd.f32 %v3358, %v3359
  %v3361 = vsel %vm2250, %v3283, 0.0
  %v3362 = vadd.f32 %v3360, %v3361
  %v3363 = vsel %vm2250, %v3284, 0.0
  %v3364 = vadd.f32 %v3362, %v3363
  %v3365 = vsel %vm2250, %v3285, 0.0
  %v3366 = vadd.f32 %v3364, %v3365
  %v3367 = vsel %vm2250, %v3286, 0.0
  %v3368 = vadd.f32 %v3366, %v3367
  %v3369 = vsel %vm2250, %v3287, 0.0
  %v3370 = vadd.f32 %v3368, %v3369
  %v3371 = vsel %vm2250, %v3288, 0.0
  %v3372 = vadd.f32 %v3370, %v3371
  %v3373 = vsel %vm2250, %v3289, 0.0
  %v3374 = vadd.f32 %v3372, %v3373
  %v3375 = vsel %vm2250, %v3290, 0.0
  %v3376 = vadd.f32 %v3374, %v3375
  %v3377 = vsel %vm2250, %v3291, 0.0
  %v3378 = vadd.f32 %v3376, %v3377
  %v3379 = vsel %vm2250, %v3292, 0.0
  %v3380 = vadd.f32 %v3378, %v3379
  %v3381 = vsel %vm2250, %v3293, 0.0
  %v3382 = vadd.f32 %v3380, %v3381
  %v3383 = vsel %vm2250, %v3294, 0.0
  %v3384 = vadd.f32 %v3382, %v3383
  %v3385 = vsel %vm2250, %v3295, 0.0
  %v3386 = vadd.f32 %v3384, %v3385
  %v3387 = vsel %vm2250, %v3296, 0.0
  %v3388 = vadd.f32 %v3386, %v3387
  %v3389 = vsel %vm2250, %v3297, 0.0
  %v3390 = vadd.f32 %v3388, %v3389
  %v3391 = vsel %vm2250, %v3298, 0.0
  %v3392 = vadd.f32 %v3390, %v3391
  %v3393 = vsel %vm2250, %v3299, 0.0
  %v3394 = vadd.f32 %v3392, %v3393
  %v3395 = vsel %vm2250, %v3300, 0.0
  %v3396 = vadd.f32 %v3394, %v3395
  %v3397 = vsel %vm2250, %v3301, 0.0
  %v3398 = vadd.f32 %v3396, %v3397
  %v3399 = vsel %vm2250, %v3302, 0.0
  %v3400 = vadd.f32 %v3398, %v3399
  %v3401 = vsel %vm2250, %v3303, 0.0
  %v3402 = vadd.f32 %v3400, %v3401
  %v3403 = vsel %vm2250, %v3304, 0.0
  %v3404 = vadd.f32 %v3402, %v3403
  %v3405 = vsel %vm2250, %v3305, 0.0
  %v3406 = vadd.f32 %v3404, %v3405
  %v3407 = vsel %vm2250, %v3306, 0.0
  %v3408 = vadd.f32 %v3406, %v3407
  %v3409 = vsel %vm2250, %v3307, 0.0
  %v3410 = vadd.f32 %v3408, %v3409
  %v3411 = vsel %vm2250, %v3308, 0.0
  %v3412 = vadd.f32 %v3410, %v3411
  %v3413 = vsel %vm2250, %v3309, 0.0
  %v3414 = vadd.f32 %v3412, %v3413
  %v3415 = vsel %vm2250, %v3310, 0.0
  %v3416 = vadd.f32 %v3414, %v3415
  %v3417 = vsel %vm2250, %v3311, 0.0
  %v3418 = vadd.f32 %v3416, %v3417
  %v3419 = vsel %vm2250, %v3312, 0.0
  %v3420 = vadd.f32 %v3418, %v3419
  %v3421 = vsel %vm2250, %v3313, 0.0
  %v3422 = vadd.f32 %v3420, %v3421
  %v3423 = vsel %vm2250, %v3314, 0.0
  %v3424 = vadd.f32 %v3422, %v3423
  %v3425 = vsel %vm2250, %v3315, 0.0
  %v3426 = vadd.f32 %v3424, %v3425
  %v3427 = vsel %vm2250, %v3316, 0.0
  %v3428 = vadd.f32 %v3426, %v3427
  %v3429 = vsel %vm2362, %v3317, 0.0
  %v3430 = vadd.f32 %v3428, %v3429
  %v3431 = vrot.slane %v3430, 4
  %v3432 = vadd.f32 %v3430, %v3431
  %v3433 = vrot.slane %v3432, 2
  %v3434 = vadd.f32 %v3432, %v3433
  %v3435 = vrot.slane %v3434, 1
  %v3436 = vadd.f32 %v3434, %v3435
  %v3437 = vadd.f32 %v3140, %v3436
  %v3438 = vmul.f32 %v3260, 0.00055555557
  %v3439 = vmul.f32 %v3437, 0.00055555557
  %v3440 = vmul.f32 %v3438, %v3438
  %v3441 = vsub.f32 %v3439, %v3440
  %v3442 = vmax.f32 %v3441, 0.0
  %v3443 = vadd.f32 %v3442, 1e-05
  %v3444 = vrsqrt.pop %v3443
  %v3445 = vmul.f32 %v2248, %v3444
  %v3446 = vmul.f32 %v3438, %v3445
  %v3447 = vsub.f32 %v2249, %v3446
  %v3448 = vmax.f32 %v366, %v917
  %v3449 = vmax.f32 %v369, %v920
  %v3450 = vmax.f32 %v374, %v925
  %v3451 = vmax.f32 %v377, %v928
  %v3452 = vmax.f32 %v382, %v933
  %v3453 = vmax.f32 %v385, %v936
  %v3454 = vmax.f32 %v390, %v941
  %v3455 = vmax.f32 %v393, %v944
  %v3456 = vmax.f32 %v398, %v949
  %v3457 = vmax.f32 %v401, %v952
  %v3458 = vmax.f32 %v406, %v957
  %v3459 = vmax.f32 %v409, %v960
  %v3460 = vmax.f32 %v414, %v965
  %v3461 = vmax.f32 %v417, %v968
  %v3462 = vmax.f32 %v422, %v973
  %v3463 = vmax.f32 %v425, %v976
  %v3464 = vmax.f32 %v430, %v981
  %v3465 = vmax.f32 %v433, %v984
  %v3466 = vmax.f32 %v438, %v989
  %v3467 = vmax.f32 %v441, %v992
  %v3468 = vmax.f32 %v446, %v997
  %v3469 = vmax.f32 %v449, %v1000
  %v3470 = vmax.f32 %v454, %v1005
  %v3471 = vmax.f32 %v457, %v1008
  %v3472 = vmax.f32 %v462, %v1013
  %v3473 = vmax.f32 %v465, %v1016
  %v3474 = vmax.f32 %v470, %v1021
  %v3475 = vmax.f32 %v473, %v1024
  %v3476 = vmax.f32 %v478, %v1029
  %v3477 = vmax.f32 %v481, %v1032
  %v3478 = vmax.f32 %v486, %v1037
  %v3479 = vmax.f32 %v489, %v1040
  %v3480 = vmax.f32 %v494, %v1045
  %v3481 = vmax.f32 %v497, %v1048
  %v3482 = vmax.f32 %v502, %v1053
  %v3483 = vmax.f32 %v505, %v1056
  %v3484 = vmax.f32 %v510, %v1061
  %v3485 = vmax.f32 %v513, %v1064
  %v3486 = vmax.f32 %v518, %v1069
  %v3487 = vmax.f32 %v521, %v1072
  %v3488 = vmax.f32 %v526, %v1077
  %v3489 = vmax.f32 %v529, %v1080
  %v3490 = vmax.f32 %v534, %v1085
  %v3491 = vmax.f32 %v537, %v1088
  %v3492 = vmax.f32 %v542, %v1093
  %v3493 = vmax.f32 %v545, %v1096
  %v3494 = vmax.f32 %v550, %v1101
  %v3495 = vmax.f32 %v553, %v1104
  %v3496 = vmax.f32 %v558, %v1109
  %v3497 = vmax.f32 %v561, %v1112
  %v3498 = vmax.f32 %v566, %v1117
  %v3499 = vmax.f32 %v569, %v1120
  %v3500 = vmax.f32 %v574, %v1125
  %v3501 = vmax.f32 %v577, %v1128
  %v3502 = vmax.f32 %v582, %v1133
  %v3503 = vmax.f32 %v585, %v1136
  %v3504 = vmax.f32 %v590, %v1141
  %v3505 = vmax.f32 %v1468, %v2019
  %v3506 = vmax.f32 %v1471, %v2022
  %v3507 = vmax.f32 %v1476, %v2027
  %v3508 = vmax.f32 %v1479, %v2030
  %v3509 = vmax.f32 %v1484, %v2035
  %v3510 = vmax.f32 %v1487, %v2038
  %v3511 = vmax.f32 %v1492, %v2043
  %v3512 = vmax.f32 %v1495, %v2046
  %v3513 = vmax.f32 %v1500, %v2051
  %v3514 = vmax.f32 %v1503, %v2054
  %v3515 = vmax.f32 %v1508, %v2059
  %v3516 = vmax.f32 %v1511, %v2062
  %v3517 = vmax.f32 %v1516, %v2067
  %v3518 = vmax.f32 %v1519, %v2070
  %v3519 = vmax.f32 %v1524, %v2075
  %v3520 = vmax.f32 %v1527, %v2078
  %v3521 = vmax.f32 %v1532, %v2083
  %v3522 = vmax.f32 %v1535, %v2086
  %v3523 = vmax.f32 %v1540, %v2091
  %v3524 = vmax.f32 %v1543, %v2094
  %v3525 = vmax.f32 %v1548, %v2099
  %v3526 = vmax.f32 %v1551, %v2102
  %v3527 = vmax.f32 %v1556, %v2107
  %v3528 = vmax.f32 %v1559, %v2110
  %v3529 = vmax.f32 %v1564, %v2115
  %v3530 = vmax.f32 %v1567, %v2118
  %v3531 = vmax.f32 %v1572, %v2123
  %v3532 = vmax.f32 %v1575, %v2126
  %v3533 = vmax.f32 %v1580, %v2131
  %v3534 = vmax.f32 %v1583, %v2134
  %v3535 = vmax.f32 %v1588, %v2139
  %v3536 = vmax.f32 %v1591, %v2142
  %v3537 = vmax.f32 %v1596, %v2147
  %v3538 = vmax.f32 %v1599, %v2150
  %v3539 = vmax.f32 %v1604, %v2155
  %v3540 = vmax.f32 %v1607, %v2158
  %v3541 = vmax.f32 %v1612, %v2163
  %v3542 = vmax.f32 %v1615, %v2166
  %v3543 = vmax.f32 %v1620, %v2171
  %v3544 = vmax.f32 %v1623, %v2174
  %v3545 = vmax.f32 %v1628, %v2179
  %v3546 = vmax.f32 %v1631, %v2182
  %v3547 = vmax.f32 %v1636, %v2187
  %v3548 = vmax.f32 %v1639, %v2190
  %v3549 = vmax.f32 %v1644, %v2195
  %v3550 = vmax.f32 %v1647, %v2198
  %v3551 = vmax.f32 %v1652, %v2203
  %v3552 = vmax.f32 %v1655, %v2206
  %v3553 = vmax.f32 %v1660, %v2211
  %v3554 = vmax.f32 %v1663, %v2214
  %v3555 = vmax.f32 %v1668, %v2219
  %v3556 = vmax.f32 %v1671, %v2222
  %v3557 = vmax.f32 %v1676, %v2227
  %v3558 = vmax.f32 %v1679, %v2230
  %v3559 = vmax.f32 %v1684, %v2235
  %v3560 = vmax.f32 %v1687, %v2238
  %v3561 = vmax.f32 %v1692, %v2243
  %v3562 = vmax.f32 %v3448, %v3505
  %v3563 = vmax.f32 %v3449, %v3506
  %v3564 = vmax.f32 %v3450, %v3507
  %v3565 = vmax.f32 %v3451, %v3508
  %v3566 = vmax.f32 %v3452, %v3509
  %v3567 = vmax.f32 %v3453, %v3510
  %v3568 = vmax.f32 %v3454, %v3511
  %v3569 = vmax.f32 %v3455, %v3512
  %v3570 = vmax.f32 %v3456, %v3513
  %v3571 = vmax.f32 %v3457, %v3514
  %v3572 = vmax.f32 %v3458, %v3515
  %v3573 = vmax.f32 %v3459, %v3516
  %v3574 = vmax.f32 %v3460, %v3517
  %v3575 = vmax.f32 %v3461, %v3518
  %v3576 = vmax.f32 %v3462, %v3519
  %v3577 = vmax.f32 %v3463, %v3520
  %v3578 = vmax.f32 %v3464, %v3521
  %v3579 = vmax.f32 %v3465, %v3522
  %v3580 = vmax.f32 %v3466, %v3523
  %v3581 = vmax.f32 %v3467, %v3524
  %v3582 = vmax.f32 %v3468, %v3525
  %v3583 = vmax.f32 %v3469, %v3526
  %v3584 = vmax.f32 %v3470, %v3527
  %v3585 = vmax.f32 %v3471, %v3528
  %v3586 = vmax.f32 %v3472, %v3529
  %v3587 = vmax.f32 %v3473, %v3530
  %v3588 = vmax.f32 %v3474, %v3531
  %v3589 = vmax.f32 %v3475, %v3532
  %v3590 = vmax.f32 %v3476, %v3533
  %v3591 = vmax.f32 %v3477, %v3534
  %v3592 = vmax.f32 %v3478, %v3535
  %v3593 = vmax.f32 %v3479, %v3536
  %v3594 = vmax.f32 %v3480, %v3537
  %v3595 = vmax.f32 %v3481, %v3538
  %v3596 = vmax.f32 %v3482, %v3539
  %v3597 = vmax.f32 %v3483, %v3540
  %v3598 = vmax.f32 %v3484, %v3541
  %v3599 = vmax.f32 %v3485, %v3542
  %v3600 = vmax.f32 %v3486, %v3543
  %v3601 = vmax.f32 %v3487, %v3544
  %v3602 = vmax.f32 %v3488, %v3545
  %v3603 = vmax.f32 %v3489, %v3546
  %v3604 = vmax.f32 %v3490, %v3547
  %v3605 = vmax.f32 %v3491, %v3548
  %v3606 = vmax.f32 %v3492, %v3549
  %v3607 = vmax.f32 %v3493, %v3550
  %v3608 = vmax.f32 %v3494, %v3551
  %v3609 = vmax.f32 %v3495, %v3552
  %v3610 = vmax.f32 %v3496, %v3553
  %v3611 = vmax.f32 %v3497, %v3554
  %v3612 = vmax.f32 %v3498, %v3555
  %v3613 = vmax.f32 %v3499, %v3556
  %v3614 = vmax.f32 %v3500, %v3557
  %v3615 = vmax.f32 %v3501, %v3558
  %v3616 = vmax.f32 %v3502, %v3559
  %v3617 = vmax.f32 %v3503, %v3560
  %v3618 = vmax.f32 %v3504, %v3561
  %v3619 = vmin.f32 %v366, %v917
  %v3620 = vmin.f32 %v369, %v920
  %v3621 = vmin.f32 %v374, %v925
  %v3622 = vmin.f32 %v377, %v928
  %v3623 = vmin.f32 %v382, %v933
  %v3624 = vmin.f32 %v385, %v936
  %v3625 = vmin.f32 %v390, %v941
  %v3626 = vmin.f32 %v393, %v944
  %v3627 = vmin.f32 %v398, %v949
  %v3628 = vmin.f32 %v401, %v952
  %v3629 = vmin.f32 %v406, %v957
  %v3630 = vmin.f32 %v409, %v960
  %v3631 = vmin.f32 %v414, %v965
  %v3632 = vmin.f32 %v417, %v968
  %v3633 = vmin.f32 %v422, %v973
  %v3634 = vmin.f32 %v425, %v976
  %v3635 = vmin.f32 %v430, %v981
  %v3636 = vmin.f32 %v433, %v984
  %v3637 = vmin.f32 %v438, %v989
  %v3638 = vmin.f32 %v441, %v992
  %v3639 = vmin.f32 %v446, %v997
  %v3640 = vmin.f32 %v449, %v1000
  %v3641 = vmin.f32 %v454, %v1005
  %v3642 = vmin.f32 %v457, %v1008
  %v3643 = vmin.f32 %v462, %v1013
  %v3644 = vmin.f32 %v465, %v1016
  %v3645 = vmin.f32 %v470, %v1021
  %v3646 = vmin.f32 %v473, %v1024
  %v3647 = vmin.f32 %v478, %v1029
  %v3648 = vmin.f32 %v481, %v1032
  %v3649 = vmin.f32 %v486, %v1037
  %v3650 = vmin.f32 %v489, %v1040
  %v3651 = vmin.f32 %v494, %v1045
  %v3652 = vmin.f32 %v497, %v1048
  %v3653 = vmin.f32 %v502, %v1053
  %v3654 = vmin.f32 %v505, %v1056
  %v3655 = vmin.f32 %v510, %v1061
  %v3656 = vmin.f32 %v513, %v1064
  %v3657 = vmin.f32 %v518, %v1069
  %v3658 = vmin.f32 %v521, %v1072
  %v3659 = vmin.f32 %v526, %v1077
  %v3660 = vmin.f32 %v529, %v1080
  %v3661 = vmin.f32 %v534, %v1085
  %v3662 = vmin.f32 %v537, %v1088
  %v3663 = vmin.f32 %v542, %v1093
  %v3664 = vmin.f32 %v545, %v1096
  %v3665 = vmin.f32 %v550, %v1101
  %v3666 = vmin.f32 %v553, %v1104
  %v3667 = vmin.f32 %v558, %v1109
  %v3668 = vmin.f32 %v561, %v1112
  %v3669 = vmin.f32 %v566, %v1117
  %v3670 = vmin.f32 %v569, %v1120
  %v3671 = vmin.f32 %v574, %v1125
  %v3672 = vmin.f32 %v577, %v1128
  %v3673 = vmin.f32 %v582, %v1133
  %v3674 = vmin.f32 %v585, %v1136
  %v3675 = vmin.f32 %v590, %v1141
  %v3676 = vmin.f32 %v1468, %v2019
  %v3677 = vmin.f32 %v1471, %v2022
  %v3678 = vmin.f32 %v1476, %v2027
  %v3679 = vmin.f32 %v1479, %v2030
  %v3680 = vmin.f32 %v1484, %v2035
  %v3681 = vmin.f32 %v1487, %v2038
  %v3682 = vmin.f32 %v1492, %v2043
  %v3683 = vmin.f32 %v1495, %v2046
  %v3684 = vmin.f32 %v1500, %v2051
  %v3685 = vmin.f32 %v1503, %v2054
  %v3686 = vmin.f32 %v1508, %v2059
  %v3687 = vmin.f32 %v1511, %v2062
  %v3688 = vmin.f32 %v1516, %v2067
  %v3689 = vmin.f32 %v1519, %v2070
  %v3690 = vmin.f32 %v1524, %v2075
  %v3691 = vmin.f32 %v1527, %v2078
  %v3692 = vmin.f32 %v1532, %v2083
  %v3693 = vmin.f32 %v1535, %v2086
  %v3694 = vmin.f32 %v1540, %v2091
  %v3695 = vmin.f32 %v1543, %v2094
  %v3696 = vmin.f32 %v1548, %v2099
  %v3697 = vmin.f32 %v1551, %v2102
  %v3698 = vmin.f32 %v1556, %v2107
  %v3699 = vmin.f32 %v1559, %v2110
  %v3700 = vmin.f32 %v1564, %v2115
  %v3701 = vmin.f32 %v1567, %v2118
  %v3702 = vmin.f32 %v1572, %v2123
  %v3703 = vmin.f32 %v1575, %v2126
  %v3704 = vmin.f32 %v1580, %v2131
  %v3705 = vmin.f32 %v1583, %v2134
  %v3706 = vmin.f32 %v1588, %v2139
  %v3707 = vmin.f32 %v1591, %v2142
  %v3708 = vmin.f32 %v1596, %v2147
  %v3709 = vmin.f32 %v1599, %v2150
  %v3710 = vmin.f32 %v1604, %v2155
  %v3711 = vmin.f32 %v1607, %v2158
  %v3712 = vmin.f32 %v1612, %v2163
  %v3713 = vmin.f32 %v1615, %v2166
  %v3714 = vmin.f32 %v1620, %v2171
  %v3715 = vmin.f32 %v1623, %v2174
  %v3716 = vmin.f32 %v1628, %v2179
  %v3717 = vmin.f32 %v1631, %v2182
  %v3718 = vmin.f32 %v1636, %v2187
  %v3719 = vmin.f32 %v1639, %v2190
  %v3720 = vmin.f32 %v1644, %v2195
  %v3721 = vmin.f32 %v1647, %v2198
  %v3722 = vmin.f32 %v1652, %v2203
  %v3723 = vmin.f32 %v1655, %v2206
  %v3724 = vmin.f32 %v1660, %v2211
  %v3725 = vmin.f32 %v1663, %v2214
  %v3726 = vmin.f32 %v1668, %v2219
  %v3727 = vmin.f32 %v1671, %v2222
  %v3728 = vmin.f32 %v1676, %v2227
  %v3729 = vmin.f32 %v1679, %v2230
  %v3730 = vmin.f32 %v1684, %v2235
  %v3731 = vmin.f32 %v1687, %v2238
  %v3732 = vmin.f32 %v1692, %v2243
  %v3733 = vmin.f32 %v3619, %v3676
  %v3734 = vmin.f32 %v3620, %v3677
  %v3735 = vmin.f32 %v3621, %v3678
  %v3736 = vmin.f32 %v3622, %v3679
  %v3737 = vmin.f32 %v3623, %v3680
  %v3738 = vmin.f32 %v3624, %v3681
  %v3739 = vmin.f32 %v3625, %v3682
  %v3740 = vmin.f32 %v3626, %v3683
  %v3741 = vmin.f32 %v3627, %v3684
  %v3742 = vmin.f32 %v3628, %v3685
  %v3743 = vmin.f32 %v3629, %v3686
  %v3744 = vmin.f32 %v3630, %v3687
  %v3745 = vmin.f32 %v3631, %v3688
  %v3746 = vmin.f32 %v3632, %v3689
  %v3747 = vmin.f32 %v3633, %v3690
  %v3748 = vmin.f32 %v3634, %v3691
  %v3749 = vmin.f32 %v3635, %v3692
  %v3750 = vmin.f32 %v3636, %v3693
  %v3751 = vmin.f32 %v3637, %v3694
  %v3752 = vmin.f32 %v3638, %v3695
  %v3753 = vmin.f32 %v3639, %v3696
  %v3754 = vmin.f32 %v3640, %v3697
  %v3755 = vmin.f32 %v3641, %v3698
  %v3756 = vmin.f32 %v3642, %v3699
  %v3757 = vmin.f32 %v3643, %v3700
  %v3758 = vmin.f32 %v3644, %v3701
  %v3759 = vmin.f32 %v3645, %v3702
  %v3760 = vmin.f32 %v3646, %v3703
  %v3761 = vmin.f32 %v3647, %v3704
  %v3762 = vmin.f32 %v3648, %v3705
  %v3763 = vmin.f32 %v3649, %v3706
  %v3764 = vmin.f32 %v3650, %v3707
  %v3765 = vmin.f32 %v3651, %v3708
  %v3766 = vmin.f32 %v3652, %v3709
  %v3767 = vmin.f32 %v3653, %v3710
  %v3768 = vmin.f32 %v3654, %v3711
  %v3769 = vmin.f32 %v3655, %v3712
  %v3770 = vmin.f32 %v3656, %v3713
  %v3771 = vmin.f32 %v3657, %v3714
  %v3772 = vmin.f32 %v3658, %v3715
  %v3773 = vmin.f32 %v3659, %v3716
  %v3774 = vmin.f32 %v3660, %v3717
  %v3775 = vmin.f32 %v3661, %v3718
  %v3776 = vmin.f32 %v3662, %v3719
  %v3777 = vmin.f32 %v3663, %v3720
  %v3778 = vmin.f32 %v3664, %v3721
  %v3779 = vmin.f32 %v3665, %v3722
  %v3780 = vmin.f32 %v3666, %v3723
  %v3781 = vmin.f32 %v3667, %v3724
  %v3782 = vmin.f32 %v3668, %v3725
  %v3783 = vmin.f32 %v3669, %v3726
  %v3784 = vmin.f32 %v3670, %v3727
  %v3785 = vmin.f32 %v3671, %v3728
  %v3786 = vmin.f32 %v3672, %v3729
  %v3787 = vmin.f32 %v3673, %v3730
  %v3788 = vmin.f32 %v3674, %v3731
  %v3789 = vmin.f32 %v3675, %v3732
  %vm3790 = vcmp.ge.f32.partialorder %v3445, 0.0
  %v3791 = vsel %vm3790, 1, 0
  %v3792 = vlaneseq
  %v3793 = vshrl.u32 %v3792, 7
  %v3794 = vsub.s32 0, %v3793
  %v3795 = vrot.slane %v3791, %v3794
  %vm3796 = vcmp.eq.s32.totalorder %v3795, 1
  %v3797 = vsel %vm3796, %v3562, %v3733
  %v3798 = vsel %vm3796, %v3563, %v3734
  %v3799 = vsel %vm3796, %v3564, %v3735
  %v3800 = vsel %vm3796, %v3565, %v3736
  %v3801 = vsel %vm3796, %v3566, %v3737
  %v3802 = vsel %vm3796, %v3567, %v3738
  %v3803 = vsel %vm3796, %v3568, %v3739
  %v3804 = vsel %vm3796, %v3569, %v3740
  %v3805 = vsel %vm3796, %v3570, %v3741
  %v3806 = vsel %vm3796, %v3571, %v3742
  %v3807 = vsel %vm3796, %v3572, %v3743
  %v3808 = vsel %vm3796, %v3573, %v3744
  %v3809 = vsel %vm3796, %v3574, %v3745
  %v3810 = vsel %vm3796, %v3575, %v3746
  %v3811 = vsel %vm3796, %v3576, %v3747
  %v3812 = vsel %vm3796, %v3577, %v3748
  %v3813 = vsel %vm3796, %v3578, %v3749
  %v3814 = vsel %vm3796, %v3579, %v3750
  %v3815 = vsel %vm3796, %v3580, %v3751
  %v3816 = vsel %vm3796, %v3581, %v3752
  %v3817 = vsel %vm3796, %v3582, %v3753
  %v3818 = vsel %vm3796, %v3583, %v3754
  %v3819 = vsel %vm3796, %v3584, %v3755
  %v3820 = vsel %vm3796, %v3585, %v3756
  %v3821 = vsel %vm3796, %v3586, %v3757
  %v3822 = vsel %vm3796, %v3587, %v3758
  %v3823 = vsel %vm3796, %v3588, %v3759
  %v3824 = vsel %vm3796, %v3589, %v3760
  %v3825 = vsel %vm3796, %v3590, %v3761
  %v3826 = vsel %vm3796, %v3591, %v3762
  %v3827 = vsel %vm3796, %v3592, %v3763
  %v3828 = vsel %vm3796, %v3593, %v3764
  %v3829 = vsel %vm3796, %v3594, %v3765
  %v3830 = vsel %vm3796, %v3595, %v3766
  %v3831 = vsel %vm3796, %v3596, %v3767
  %v3832 = vsel %vm3796, %v3597, %v3768
  %v3833 = vsel %vm3796, %v3598, %v3769
  %v3834 = vsel %vm3796, %v3599, %v3770
  %v3835 = vsel %vm3796, %v3600, %v3771
  %v3836 = vsel %vm3796, %v3601, %v3772
  %v3837 = vsel %vm3796, %v3602, %v3773
  %v3838 = vsel %vm3796, %v3603, %v3774
  %v3839 = vsel %vm3796, %v3604, %v3775
  %v3840 = vsel %vm3796, %v3605, %v3776
  %v3841 = vsel %vm3796, %v3606, %v3777
  %v3842 = vsel %vm3796, %v3607, %v3778
  %v3843 = vsel %vm3796, %v3608, %v3779
  %v3844 = vsel %vm3796, %v3609, %v3780
  %v3845 = vsel %vm3796, %v3610, %v3781
  %v3846 = vsel %vm3796, %v3611, %v3782
  %v3847 = vsel %vm3796, %v3612, %v3783
  %v3848 = vsel %vm3796, %v3613, %v3784
  %v3849 = vsel %vm3796, %v3614, %v3785
  %v3850 = vsel %vm3796, %v3615, %v3786
  %v3851 = vsel %vm3796, %v3616, %v3787
  %v3852 = vsel %vm3796, %v3617, %v3788
  %v3853 = vsel %vm3796, %v3618, %v3789
  %v3855 = vlaneseq
  %v3856 = vshrl.u32 %v3855, 7
  %v3857 = vsub.s32 0, %v3856
  %v3858 = vrot.slane %v3445, %v3857
  %v3860 = vmul.f32 %v3858, %v3797
  %v3861 = vmul.f32 %v3858, %v3798
  %v3862 = vmul.f32 %v3858, %v3799
  %v3863 = vmul.f32 %v3858, %v3800
  %v3864 = vmul.f32 %v3858, %v3801
  %v3865 = vmul.f32 %v3858, %v3802
  %v3866 = vmul.f32 %v3858, %v3803
  %v3867 = vmul.f32 %v3858, %v3804
  %v3868 = vmul.f32 %v3858, %v3805
  %v3869 = vmul.f32 %v3858, %v3806
  %v3870 = vmul.f32 %v3858, %v3807
  %v3871 = vmul.f32 %v3858, %v3808
  %v3872 = vmul.f32 %v3858, %v3809
  %v3873 = vmul.f32 %v3858, %v3810
  %v3874 = vmul.f32 %v3858, %v3811
  %v3875 = vmul.f32 %v3858, %v3812
  %v3876 = vmul.f32 %v3858, %v3813
  %v3877 = vmul.f32 %v3858, %v3814
  %v3878 = vmul.f32 %v3858, %v3815
  %v3879 = vmul.f32 %v3858, %v3816
  %v3880 = vmul.f32 %v3858, %v3817
  %v3881 = vmul.f32 %v3858, %v3818
  %v3882 = vmul.f32 %v3858, %v3819
  %v3883 = vmul.f32 %v3858, %v3820
  %v3884 = vmul.f32 %v3858, %v3821
  %v3885 = vmul.f32 %v3858, %v3822
  %v3886 = vmul.f32 %v3858, %v3823
  %v3887 = vmul.f32 %v3858, %v3824
  %v3888 = vmul.f32 %v3858, %v3825
  %v3889 = vmul.f32 %v3858, %v3826
  %v3890 = vmul.f32 %v3858, %v3827
  %v3891 = vmul.f32 %v3858, %v3828
  %v3892 = vmul.f32 %v3858, %v3829
  %v3893 = vmul.f32 %v3858, %v3830
  %v3894 = vmul.f32 %v3858, %v3831
  %v3895 = vmul.f32 %v3858, %v3832
  %v3896 = vmul.f32 %v3858, %v3833
  %v3897 = vmul.f32 %v3858, %v3834
  %v3898 = vmul.f32 %v3858, %v3835
  %v3899 = vmul.f32 %v3858, %v3836
  %v3900 = vmul.f32 %v3858, %v3837
  %v3901 = vmul.f32 %v3858, %v3838
  %v3902 = vmul.f32 %v3858, %v3839
  %v3903 = vmul.f32 %v3858, %v3840
  %v3904 = vmul.f32 %v3858, %v3841
  %v3905 = vmul.f32 %v3858, %v3842
  %v3906 = vmul.f32 %v3858, %v3843
  %v3907 = vmul.f32 %v3858, %v3844
  %v3908 = vmul.f32 %v3858, %v3845
  %v3909 = vmul.f32 %v3858, %v3846
  %v3910 = vmul.f32 %v3858, %v3847
  %v3911 = vmul.f32 %v3858, %v3848
  %v3912 = vmul.f32 %v3858, %v3849
  %v3913 = vmul.f32 %v3858, %v3850
  %v3914 = vmul.f32 %v3858, %v3851
  %v3915 = vmul.f32 %v3858, %v3852
  %v3916 = vmul.f32 %v3858, %v3853
  %v3918 = vlaneseq
  %v3919 = vshrl.u32 %v3918, 7
  %v3920 = vsub.s32 0, %v3919
  %v3921 = vrot.slane %v3447, %v3920
  %v3923 = vadd.f32 %v3860, %v3921
  %v3924 = vadd.f32 %v3861, %v3921
  %v3925 = vadd.f32 %v3862, %v3921
  %v3926 = vadd.f32 %v3863, %v3921
  %v3927 = vadd.f32 %v3864, %v3921
  %v3928 = vadd.f32 %v3865, %v3921
  %v3929 = vadd.f32 %v3866, %v3921
  %v3930 = vadd.f32 %v3867, %v3921
  %v3931 = vadd.f32 %v3868, %v3921
  %v3932 = vadd.f32 %v3869, %v3921
  %v3933 = vadd.f32 %v3870, %v3921
  %v3934 = vadd.f32 %v3871, %v3921
  %v3935 = vadd.f32 %v3872, %v3921
  %v3936 = vadd.f32 %v3873, %v3921
  %v3937 = vadd.f32 %v3874, %v3921
  %v3938 = vadd.f32 %v3875, %v3921
  %v3939 = vadd.f32 %v3876, %v3921
  %v3940 = vadd.f32 %v3877, %v3921
  %v3941 = vadd.f32 %v3878, %v3921
  %v3942 = vadd.f32 %v3879, %v3921
  %v3943 = vadd.f32 %v3880, %v3921
  %v3944 = vadd.f32 %v3881, %v3921
  %v3945 = vadd.f32 %v3882, %v3921
  %v3946 = vadd.f32 %v3883, %v3921
  %v3947 = vadd.f32 %v3884, %v3921
  %v3948 = vadd.f32 %v3885, %v3921
  %v3949 = vadd.f32 %v3886, %v3921
  %v3950 = vadd.f32 %v3887, %v3921
  %v3951 = vadd.f32 %v3888, %v3921
  %v3952 = vadd.f32 %v3889, %v3921
  %v3953 = vadd.f32 %v3890, %v3921
  %v3954 = vadd.f32 %v3891, %v3921
  %v3955 = vadd.f32 %v3892, %v3921
  %v3956 = vadd.f32 %v3893, %v3921
  %v3957 = vadd.f32 %v3894, %v3921
  %v3958 = vadd.f32 %v3895, %v3921
  %v3959 = vadd.f32 %v3896, %v3921
  %v3960 = vadd.f32 %v3897, %v3921
  %v3961 = vadd.f32 %v3898, %v3921
  %v3962 = vadd.f32 %v3899, %v3921
  %v3963 = vadd.f32 %v3900, %v3921
  %v3964 = vadd.f32 %v3901, %v3921
  %v3965 = vadd.f32 %v3902, %v3921
  %v3966 = vadd.f32 %v3903, %v3921
  %v3967 = vadd.f32 %v3904, %v3921
  %v3968 = vadd.f32 %v3905, %v3921
  %v3969 = vadd.f32 %v3906, %v3921
  %v3970 = vadd.f32 %v3907, %v3921
  %v3971 = vadd.f32 %v3908, %v3921
  %v3972 = vadd.f32 %v3909, %v3921
  %v3973 = vadd.f32 %v3910, %v3921
  %v3974 = vadd.f32 %v3911, %v3921
  %v3975 = vadd.f32 %v3912, %v3921
  %v3976 = vadd.f32 %v3913, %v3921
  %v3977 = vadd.f32 %v3914, %v3921
  %v3978 = vadd.f32 %v3915, %v3921
  %v3979 = vadd.f32 %v3916, %v3921
  %v3980 = vmax.f32 %v3923, 0.0
  %v3981 = vmax.f32 %v3924, 0.0
  %v3982 = vmax.f32 %v3925, 0.0
  %v3983 = vmax.f32 %v3926, 0.0
  %v3984 = vmax.f32 %v3927, 0.0
  %v3985 = vmax.f32 %v3928, 0.0
  %v3986 = vmax.f32 %v3929, 0.0
  %v3987 = vmax.f32 %v3930, 0.0
  %v3988 = vmax.f32 %v3931, 0.0
  %v3989 = vmax.f32 %v3932, 0.0
  %v3990 = vmax.f32 %v3933, 0.0
  %v3991 = vmax.f32 %v3934, 0.0
  %v3992 = vmax.f32 %v3935, 0.0
  %v3993 = vmax.f32 %v3936, 0.0
  %v3994 = vmax.f32 %v3937, 0.0
  %v3995 = vmax.f32 %v3938, 0.0
  %v3996 = vmax.f32 %v3939, 0.0
  %v3997 = vmax.f32 %v3940, 0.0
  %v3998 = vmax.f32 %v3941, 0.0
  %v3999 = vmax.f32 %v3942, 0.0
  %v4000 = vmax.f32 %v3943, 0.0
  %v4001 = vmax.f32 %v3944, 0.0
  %v4002 = vmax.f32 %v3945, 0.0
  %v4003 = vmax.f32 %v3946, 0.0
  %v4004 = vmax.f32 %v3947, 0.0
  %v4005 = vmax.f32 %v3948, 0.0
  %v4006 = vmax.f32 %v3949, 0.0
  %v4007 = vmax.f32 %v3950, 0.0
  %v4008 = vmax.f32 %v3951, 0.0
  %v4009 = vmax.f32 %v3952, 0.0
  %v4010 = vmax.f32 %v3953, 0.0
  %v4011 = vmax.f32 %v3954, 0.0
  %v4012 = vmax.f32 %v3955, 0.0
  %v4013 = vmax.f32 %v3956, 0.0
  %v4014 = vmax.f32 %v3957, 0.0
  %v4015 = vmax.f32 %v3958, 0.0
  %v4016 = vmax.f32 %v3959, 0.0
  %v4017 = vmax.f32 %v3960, 0.0
  %v4018 = vmax.f32 %v3961, 0.0
  %v4019 = vmax.f32 %v3962, 0.0
  %v4020 = vmax.f32 %v3963, 0.0
  %v4021 = vmax.f32 %v3964, 0.0
  %v4022 = vmax.f32 %v3965, 0.0
  %v4023 = vmax.f32 %v3966, 0.0
  %v4024 = vmax.f32 %v3967, 0.0
  %v4025 = vmax.f32 %v3968, 0.0
  %v4026 = vmax.f32 %v3969, 0.0
  %v4027 = vmax.f32 %v3970, 0.0
  %v4028 = vmax.f32 %v3971, 0.0
  %v4029 = vmax.f32 %v3972, 0.0
  %v4030 = vmax.f32 %v3973, 0.0
  %v4031 = vmax.f32 %v3974, 0.0
  %v4032 = vmax.f32 %v3975, 0.0
  %v4033 = vmax.f32 %v3976, 0.0
  %v4034 = vmax.f32 %v3977, 0.0
  %v4035 = vmax.f32 %v3978, 0.0
  %v4036 = vmax.f32 %v3979, 0.0
  %v4037 = vpack.c.bf16 %v3981, %v3980
  %v4038 = vpack.c.bf16 %v3983, %v3982
  %v4039 = vpack.c.bf16 %v3985, %v3984
  %v4040 = vpack.c.bf16 %v3987, %v3986
  %v4041 = vpack.c.bf16 %v3989, %v3988
  %v4042 = vpack.c.bf16 %v3991, %v3990
  %v4043 = vpack.c.bf16 %v3993, %v3992
  %v4044 = vpack.c.bf16 %v3995, %v3994
  %v4045 = vpack.c.bf16 %v3997, %v3996
  %v4046 = vpack.c.bf16 %v3999, %v3998
  %v4047 = vpack.c.bf16 %v4001, %v4000
  %v4048 = vpack.c.bf16 %v4003, %v4002
  %v4049 = vpack.c.bf16 %v4005, %v4004
  %v4050 = vpack.c.bf16 %v4007, %v4006
  %v4051 = vpack.c.bf16 %v4009, %v4008
  %v4052 = vpack.c.bf16 %v4011, %v4010
  %v4053 = vpack.c.bf16 %v4013, %v4012
  %v4054 = vpack.c.bf16 %v4015, %v4014
  %v4055 = vpack.c.bf16 %v4017, %v4016
  %v4056 = vpack.c.bf16 %v4019, %v4018
  %v4057 = vpack.c.bf16 %v4021, %v4020
  %v4058 = vpack.c.bf16 %v4023, %v4022
  %v4059 = vpack.c.bf16 %v4025, %v4024
  %v4060 = vpack.c.bf16 %v4027, %v4026
  %v4061 = vpack.c.bf16 %v4029, %v4028
  %v4062 = vpack.c.bf16 %v4031, %v4030
  %v4063 = vpack.c.bf16 %v4033, %v4032
  %v4064 = vpack.c.bf16 %v4035, %v4034
  %v4065 = vpack.c.bf16 %v4036, %v4036
  %v4095 = vunpack.c.l.b16 %v4037
  %v4096 = vunpack.c.h.b16 %v4037
  %v4097 = vunpack.c.l.b16 %v4038
  %v4098 = vunpack.c.h.b16 %v4038
  %v4099 = vunpack.c.l.b16 %v4039
  %v4100 = vunpack.c.h.b16 %v4039
  %v4101 = vunpack.c.l.b16 %v4040
  %v4102 = vunpack.c.h.b16 %v4040
  %v4103 = vunpack.c.l.b16 %v4041
  %v4104 = vunpack.c.h.b16 %v4041
  %v4105 = vunpack.c.l.b16 %v4042
  %v4106 = vunpack.c.h.b16 %v4042
  %v4107 = vunpack.c.l.b16 %v4043
  %v4108 = vunpack.c.h.b16 %v4043
  %v4109 = vunpack.c.l.b16 %v4044
  %v4110 = vunpack.c.h.b16 %v4044
  %v4111 = vunpack.c.l.b16 %v4045
  %v4112 = vunpack.c.h.b16 %v4045
  %v4113 = vunpack.c.l.b16 %v4046
  %v4114 = vunpack.c.h.b16 %v4046
  %v4115 = vunpack.c.l.b16 %v4047
  %v4116 = vunpack.c.h.b16 %v4047
  %v4117 = vunpack.c.l.b16 %v4048
  %v4118 = vunpack.c.h.b16 %v4048
  %v4119 = vunpack.c.l.b16 %v4049
  %v4120 = vunpack.c.h.b16 %v4049
  %v4121 = vunpack.c.l.b16 %v4050
  %v4122 = vunpack.c.h.b16 %v4050
  %v4123 = vunpack.c.l.b16 %v4051
  %v4124 = vunpack.c.h.b16 %v4051
  %v4125 = vunpack.c.l.b16 %v4052
  %v4126 = vunpack.c.h.b16 %v4052
  %v4127 = vunpack.c.l.b16 %v4053
  %v4128 = vunpack.c.h.b16 %v4053
  %v4129 = vunpack.c.l.b16 %v4054
  %v4130 = vunpack.c.h.b16 %v4054
  %v4131 = vunpack.c.l.b16 %v4055
  %v4132 = vunpack.c.h.b16 %v4055
  %v4133 = vunpack.c.l.b16 %v4056
  %v4134 = vunpack.c.h.b16 %v4056
  %v4135 = vunpack.c.l.b16 %v4057
  %v4136 = vunpack.c.h.b16 %v4057
  %v4137 = vunpack.c.l.b16 %v4058
  %v4138 = vunpack.c.h.b16 %v4058
  %v4139 = vunpack.c.l.b16 %v4059
  %v4140 = vunpack.c.h.b16 %v4059
  %v4141 = vunpack.c.l.b16 %v4060
  %v4142 = vunpack.c.h.b16 %v4060
  %v4143 = vunpack.c.l.b16 %v4061
  %v4144 = vunpack.c.h.b16 %v4061
  %v4145 = vunpack.c.l.b16 %v4062
  %v4146 = vunpack.c.h.b16 %v4062
  %v4147 = vunpack.c.l.b16 %v4063
  %v4148 = vunpack.c.h.b16 %v4063
  %v4149 = vunpack.c.l.b16 %v4064
  %v4150 = vunpack.c.h.b16 %v4064
  %v4151 = vunpack.c.l.b16 %v4065
  %v4152 = vpack.c.b16 %v4095, %v4095
  %v4153 = vpack.c.b16 %v4096, %v4096
  %v4154 = vpack.c.b16 %v4097, %v4097
  %v4155 = vpack.c.b16 %v4098, %v4098
  %v4156 = vpack.c.b16 %v4099, %v4099
  %v4157 = vpack.c.b16 %v4100, %v4100
  %v4158 = vpack.c.b16 %v4101, %v4101
  %v4159 = vpack.c.b16 %v4102, %v4102
  %v4160 = vpack.c.b16 %v4103, %v4103
  %v4161 = vpack.c.b16 %v4104, %v4104
  %v4162 = vpack.c.b16 %v4105, %v4105
  %v4163 = vpack.c.b16 %v4106, %v4106
  %v4164 = vpack.c.b16 %v4107, %v4107
  %v4165 = vpack.c.b16 %v4108, %v4108
  %v4166 = vpack.c.b16 %v4109, %v4109
  %v4167 = vpack.c.b16 %v4110, %v4110
  %v4168 = vpack.c.b16 %v4111, %v4111
  %v4169 = vpack.c.b16 %v4112, %v4112
  %v4170 = vpack.c.b16 %v4113, %v4113
  %v4171 = vpack.c.b16 %v4114, %v4114
  %v4172 = vpack.c.b16 %v4115, %v4115
  %v4173 = vpack.c.b16 %v4116, %v4116
  %v4174 = vpack.c.b16 %v4117, %v4117
  %v4175 = vpack.c.b16 %v4118, %v4118
  %v4176 = vpack.c.b16 %v4119, %v4119
  %v4177 = vpack.c.b16 %v4120, %v4120
  %v4178 = vpack.c.b16 %v4121, %v4121
  %v4179 = vpack.c.b16 %v4122, %v4122
  %v4180 = vpack.c.b16 %v4123, %v4123
  %v4181 = vpack.c.b16 %v4124, %v4124
  %v4182 = vpack.c.b16 %v4125, %v4125
  %v4183 = vpack.c.b16 %v4126, %v4126
  %v4184 = vpack.c.b16 %v4127, %v4127
  %v4185 = vpack.c.b16 %v4128, %v4128
  %v4186 = vpack.c.b16 %v4129, %v4129
  %v4187 = vpack.c.b16 %v4130, %v4130
  %v4188 = vpack.c.b16 %v4131, %v4131
  %v4189 = vpack.c.b16 %v4132, %v4132
  %v4190 = vpack.c.b16 %v4133, %v4133
  %v4191 = vpack.c.b16 %v4134, %v4134
  %v4192 = vpack.c.b16 %v4135, %v4135
  %v4193 = vpack.c.b16 %v4136, %v4136
  %v4194 = vpack.c.b16 %v4137, %v4137
  %v4195 = vpack.c.b16 %v4138, %v4138
  %v4196 = vpack.c.b16 %v4139, %v4139
  %v4197 = vpack.c.b16 %v4140, %v4140
  %v4198 = vpack.c.b16 %v4141, %v4141
  %v4199 = vpack.c.b16 %v4142, %v4142
  %v4200 = vpack.c.b16 %v4143, %v4143
  %v4201 = vpack.c.b16 %v4144, %v4144
  %v4202 = vpack.c.b16 %v4145, %v4145
  %v4203 = vpack.c.b16 %v4146, %v4146
  %v4204 = vpack.c.b16 %v4147, %v4147
  %v4205 = vpack.c.b16 %v4148, %v4148
  %v4206 = vpack.c.b16 %v4149, %v4149
  %v4207 = vpack.c.b16 %v4150, %v4150
  %v4208 = vpack.c.b16 %v4151, %v4151
  %vm4266 = vcmask 125952
  %4267 = vst.msk [vmem:[%s7] sm:$0xf] %vm4266, %v4152
  %4268 = vst.msk [vmem:[%s7 + $0x4] sm:$0xf] %vm4266, %v4153
  %4269 = vst.msk [vmem:[%s7 + $0x8] sm:$0xf] %vm4266, %v4154
  %4270 = vst.msk [vmem:[%s7 + $0xc] sm:$0xf] %vm4266, %v4155
  %4271 = vst.msk [vmem:[%s7 + $0x10] sm:$0xf] %vm4266, %v4156
  %4272 = vst.msk [vmem:[%s7 + $0x14] sm:$0xf] %vm4266, %v4157
  %4273 = vst.msk [vmem:[%s7 + $0x18] sm:$0xf] %vm4266, %v4158
  %4274 = vst.msk [vmem:[%s7 + $0x1c] sm:$0xf] %vm4266, %v4159
  %4275 = vst.msk [vmem:[%s7 + $0x20] sm:$0xf] %vm4266, %v4160
  %4276 = vst.msk [vmem:[%s7 + $0x24] sm:$0xf] %vm4266, %v4161
  %4277 = vst.msk [vmem:[%s7 + $0x28] sm:$0xf] %vm4266, %v4162
  %4278 = vst.msk [vmem:[%s7 + $0x2c] sm:$0xf] %vm4266, %v4163
  %4279 = vst.msk [vmem:[%s7 + $0x30] sm:$0xf] %vm4266, %v4164
  %4280 = vst.msk [vmem:[%s7 + $0x34] sm:$0xf] %vm4266, %v4165
  %4281 = vst.msk [vmem:[%s7 + $0x38] sm:$0xf] %vm4266, %v4166
  %4282 = vst.msk [vmem:[%s7 + $0x3c] sm:$0xf] %vm4266, %v4167
  %4283 = vst.msk [vmem:[%s7 + $0x40] sm:$0xf] %vm4266, %v4168
  %4284 = vst.msk [vmem:[%s7 + $0x44] sm:$0xf] %vm4266, %v4169
  %4285 = vst.msk [vmem:[%s7 + $0x48] sm:$0xf] %vm4266, %v4170
  %4286 = vst.msk [vmem:[%s7 + $0x4c] sm:$0xf] %vm4266, %v4171
  %4287 = vst.msk [vmem:[%s7 + $0x50] sm:$0xf] %vm4266, %v4172
  %4288 = vst.msk [vmem:[%s7 + $0x54] sm:$0xf] %vm4266, %v4173
  %4289 = vst.msk [vmem:[%s7 + $0x58] sm:$0xf] %vm4266, %v4174
  %4290 = vst.msk [vmem:[%s7 + $0x5c] sm:$0xf] %vm4266, %v4175
  %4291 = vst.msk [vmem:[%s7 + $0x60] sm:$0xf] %vm4266, %v4176
  %4292 = vst.msk [vmem:[%s7 + $0x64] sm:$0xf] %vm4266, %v4177
  %4293 = vst.msk [vmem:[%s7 + $0x68] sm:$0xf] %vm4266, %v4178
  %4294 = vst.msk [vmem:[%s7 + $0x6c] sm:$0xf] %vm4266, %v4179
  %4295 = vst.msk [vmem:[%s7 + $0x70] sm:$0xf] %vm4266, %v4180
  %4296 = vst.msk [vmem:[%s7 + $0x74] sm:$0xf] %vm4266, %v4181
  %4297 = vst.msk [vmem:[%s7 + $0x78] sm:$0xf] %vm4266, %v4182
  %4298 = vst.msk [vmem:[%s7 + $0x7c] sm:$0xf] %vm4266, %v4183
  %4299 = vst.msk [vmem:[%s7 + $0x80] sm:$0xf] %vm4266, %v4184
  %4300 = vst.msk [vmem:[%s7 + $0x84] sm:$0xf] %vm4266, %v4185
  %4301 = vst.msk [vmem:[%s7 + $0x88] sm:$0xf] %vm4266, %v4186
  %4302 = vst.msk [vmem:[%s7 + $0x8c] sm:$0xf] %vm4266, %v4187
  %4303 = vst.msk [vmem:[%s7 + $0x90] sm:$0xf] %vm4266, %v4188
  %4304 = vst.msk [vmem:[%s7 + $0x94] sm:$0xf] %vm4266, %v4189
  %4305 = vst.msk [vmem:[%s7 + $0x98] sm:$0xf] %vm4266, %v4190
  %4306 = vst.msk [vmem:[%s7 + $0x9c] sm:$0xf] %vm4266, %v4191
  %4307 = vst.msk [vmem:[%s7 + $0xa0] sm:$0xf] %vm4266, %v4192
  %4308 = vst.msk [vmem:[%s7 + $0xa4] sm:$0xf] %vm4266, %v4193
  %4309 = vst.msk [vmem:[%s7 + $0xa8] sm:$0xf] %vm4266, %v4194
  %4310 = vst.msk [vmem:[%s7 + $0xac] sm:$0xf] %vm4266, %v4195
  %4311 = vst.msk [vmem:[%s7 + $0xb0] sm:$0xf] %vm4266, %v4196
  %4312 = vst.msk [vmem:[%s7 + $0xb4] sm:$0xf] %vm4266, %v4197
  %4313 = vst.msk [vmem:[%s7 + $0xb8] sm:$0xf] %vm4266, %v4198
  %4314 = vst.msk [vmem:[%s7 + $0xbc] sm:$0xf] %vm4266, %v4199
  %4315 = vst.msk [vmem:[%s7 + $0xc0] sm:$0xf] %vm4266, %v4200
  %4316 = vst.msk [vmem:[%s7 + $0xc4] sm:$0xf] %vm4266, %v4201
  %4317 = vst.msk [vmem:[%s7 + $0xc8] sm:$0xf] %vm4266, %v4202
  %4318 = vst.msk [vmem:[%s7 + $0xcc] sm:$0xf] %vm4266, %v4203
  %4319 = vst.msk [vmem:[%s7 + $0xd0] sm:$0xf] %vm4266, %v4204
  %4320 = vst.msk [vmem:[%s7 + $0xd4] sm:$0xf] %vm4266, %v4205
  %4321 = vst.msk [vmem:[%s7 + $0xd8] sm:$0xf] %vm4266, %v4206
  %4322 = vst.msk [vmem:[%s7 + $0xdc] sm:$0xf] %vm4266, %v4207
  %vm4323 = vcmask 122880
  %4324 = vst.msk [vmem:[%s7 + $0xe0] sm:$0x1] %vm4323, %v4208
  // Predicated region
  $region30: #{forward.3} parent=0 // pred_check
    _
  $region31: #{forward.3} parent=0 // pred_check_branch
    %4326 = sbr.rel (0) target = $region33
  $region32: #{forward.3} parent=0 // pred_region
    _
  $region33: #{forward.3} parent=0 // pred_fallthru
    _
  // Predicated region
  $region34: #{forward.3} parent=0 // pred_check
    _
  $region35: #{forward.3} parent=0 // pred_check_branch
    %4328 = sbr.rel (0) target = $region37
  $region36: #{forward.3} parent=0 // pred_region
    _
  $region37: #{forward.3} parent=0 // pred_fallthru
    _

// kernel: forward.4
$region0: #{forward.4}
  #allocation0 [shape = 'u32[]', space=smem, size = 0x4, offset = 0x4, fixed_abs, tag = 'smem constant byte address 0x4 - core index']
  #allocation1 [shape = 'u32[144,128]{1,0:T(1,128)}', space=vmem, size = 0x12000, scoped, tag = 'internal scratch']
  %s0 = inlined_call_operand.vmem [shape: bf16[72,256], index: 0, kind: input, shape index: {}]
  %s1 = inlined_call_operand.vmem [shape: bf16[72,256], index: 1, kind: input, shape index: {}]
  %s2 = inlined_call_operand.vmem [shape: bf16[72,256], index: 2, kind: input, shape index: {}]
  %s3 = inlined_call_operand.vmem [shape: bf16[72,256], index: 3, kind: input, shape index: {}]
  %s4 = inlined_call_operand.vmem [shape: bf16[256,80], index: 4, kind: input, shape index: {}]
  %s5 = inlined_call_operand.vmem [shape: f32[1,80], index: 5, kind: input, shape index: {}]
  %s6 = inlined_call_operand.vmem [shape: f32[1,80], index: 6, kind: input, shape index: {}]
  %s7 = inlined_call_operand.vmem [shape: bf16[72,80], index: 7, kind: output, shape index: {}]
  %s8 = sld [smem:[#allocation0]]
  $region38: #{forward.4} parent=0
    _
  %s10 = ssub.s32 1, %s8
  %s11 = scalar_select 0, %s10, %s8
  // Predicated region
  $region2: #{forward.4} parent=0 // pred_check
    _
  $region3: #{forward.4} parent=0 // pred_check_branch
    %13 = sbr.rel (0) target = $region5
  $region4: #{forward.4} parent=0 // pred_region
    _
  $region5: #{forward.4} parent=0 // pred_fallthru
    _
  // Predicated region
  $region6: #{forward.4} parent=0 // pred_check
    _
  $region7: #{forward.4} parent=0 // pred_check_branch
    %15 = sbr.rel (0) target = $region9
  $region8: #{forward.4} parent=0 // pred_region
    _
  $region9: #{forward.4} parent=0 // pred_fallthru
    _
  // Predicated region
  $region10: #{forward.4} parent=0 // pred_check
    _
  $region11: #{forward.4} parent=0 // pred_check_branch
    %17 = sbr.rel (0) target = $region13
  $region12: #{forward.4} parent=0 // pred_region
    _
  $region13: #{forward.4} parent=0 // pred_fallthru
    _
  // Predicated region
  $region14: #{forward.4} parent=0 // pred_check
    _
  $region15: #{forward.4} parent=0 // pred_check_branch
    %19 = sbr.rel (0) target = $region17
  $region16: #{forward.4} parent=0 // pred_region
    _
  $region17: #{forward.4} parent=0 // pred_fallthru
    _
  // Predicated region
  $region18: #{forward.4} parent=0 // pred_check
    _
  $region19: #{forward.4} parent=0 // pred_check_branch
    %21 = sbr.rel (0) target = $region21
  $region20: #{forward.4} parent=0 // pred_region
    _
  $region21: #{forward.4} parent=0 // pred_fallthru
    _
  // Predicated region
  $region22: #{forward.4} parent=0 // pred_check
    _
  $region23: #{forward.4} parent=0 // pred_check_branch
    %23 = sbr.rel (0) target = $region25
  $region24: #{forward.4} parent=0 // pred_region
    _
  $region25: #{forward.4} parent=0 // pred_fallthru
    _
  // Predicated region
  $region26: #{forward.4} parent=0 // pred_check
    _
  $region27: #{forward.4} parent=0 // pred_check_branch
    %25 = sbr.rel (0) target = $region29
  $region28: #{forward.4} parent=0 // pred_region
    _
  $region29: #{forward.4} parent=0 // pred_fallthru
    _
  %v27 = vld [vmem:[%s4] sm:$0xf]
  %v28 = vld [vmem:[%s4 + $0x4] sm:$0xf]
  %v29 = vld [vmem:[%s4 + $0x8] sm:$0xf]
  %v30 = vld [vmem:[%s4 + $0xc] sm:$0xf]
  %v31 = vld [vmem:[%s4 + $0x10] sm:$0xf]
  %v32 = vld [vmem:[%s4 + $0x14] sm:$0xf]
  %v33 = vld [vmem:[%s4 + $0x18] sm:$0xf]
  %v34 = vld [vmem:[%s4 + $0x1c] sm:$0xf]
  %v35 = vld [vmem:[%s4 + $0x20] sm:$0xf]
  %v36 = vld [vmem:[%s4 + $0x24] sm:$0xf]
  %v37 = vld [vmem:[%s4 + $0x28] sm:$0xf]
  %v38 = vld [vmem:[%s4 + $0x2c] sm:$0xf]
  %v39 = vld [vmem:[%s4 + $0x30] sm:$0xf]
  %v40 = vld [vmem:[%s4 + $0x34] sm:$0xf]
  %v41 = vld [vmem:[%s4 + $0x38] sm:$0xf]
  %v42 = vld [vmem:[%s4 + $0x3c] sm:$0xf]
  %v43 = vld [vmem:[%s4 + $0x40] sm:$0xf]
  %v44 = vld [vmem:[%s4 + $0x44] sm:$0xf]
  %v45 = vld [vmem:[%s4 + $0x48] sm:$0xf]
  %v46 = vld [vmem:[%s4 + $0x4c] sm:$0xf]
  %v47 = vld [vmem:[%s4 + $0x50] sm:$0xf]
  %v48 = vld [vmem:[%s4 + $0x54] sm:$0xf]
  %v49 = vld [vmem:[%s4 + $0x58] sm:$0xf]
  %v50 = vld [vmem:[%s4 + $0x5c] sm:$0xf]
  %v51 = vld [vmem:[%s4 + $0x60] sm:$0xf]
  %v52 = vld [vmem:[%s4 + $0x64] sm:$0xf]
  %v53 = vld [vmem:[%s4 + $0x68] sm:$0xf]
  %v54 = vld [vmem:[%s4 + $0x6c] sm:$0xf]
  %v55 = vld [vmem:[%s4 + $0x70] sm:$0xf]
  %v56 = vld [vmem:[%s4 + $0x74] sm:$0xf]
  %v57 = vld [vmem:[%s4 + $0x78] sm:$0xf]
  %v58 = vld [vmem:[%s4 + $0x7c] sm:$0xf]
  %v59 = vld [vmem:[%s0] sm:$0xff]
  %v60 = vld [vmem:[%s0 + $0x8] sm:$0xff]
  %v61 = vld [vmem:[%s0 + $0x10] sm:$0xff]
  %v62 = vld [vmem:[%s0 + $0x18] sm:$0xff]
  %v63 = vld [vmem:[%s0 + $0x20] sm:$0xff]
  %v64 = vld [vmem:[%s0 + $0x28] sm:$0xff]
  %v65 = vld [vmem:[%s0 + $0x30] sm:$0xff]
  %v66 = vld [vmem:[%s0 + $0x38] sm:$0xff]
  %v67 = vld [vmem:[%s0 + $0x40] sm:$0xff]
  %v77 = vunpack.c.l.b16 %v59
  %v78 = vunpack.c.h.b16 %v59
  %v79 = vunpack.c.l.b16 %v60
  %v80 = vunpack.c.h.b16 %v60
  %v81 = vunpack.c.l.b16 %v61
  %v82 = vunpack.c.h.b16 %v61
  %v83 = vunpack.c.l.b16 %v62
  %v84 = vunpack.c.h.b16 %v62
  %v85 = vunpack.c.l.b16 %v63
  %v86 = vunpack.c.h.b16 %v63
  %v87 = vunpack.c.l.b16 %v64
  %v88 = vunpack.c.h.b16 %v64
  %v89 = vunpack.c.l.b16 %v65
  %v90 = vunpack.c.h.b16 %v65
  %v91 = vunpack.c.l.b16 %v66
  %v92 = vunpack.c.h.b16 %v66
  %v93 = vunpack.c.l.b16 %v67
  %v94 = vunpack.c.h.b16 %v67
  %v95 = vpack.c.b16 %v79, %v77
  %v96 = vpack.c.b16 %v80, %v78
  %v97 = vpack.c.b16 %v83, %v81
  %v98 = vpack.c.b16 %v84, %v82
  %v99 = vpack.c.b16 %v87, %v85
  %v100 = vpack.c.b16 %v88, %v86
  %v101 = vpack.c.b16 %v91, %v89
  %v102 = vpack.c.b16 %v92, %v90
  %v103 = vpack.c.b16 %v93, %v93
  %v104 = vpack.c.b16 %v94, %v94
  %v147 = vunpack.c.l.b16 %v27
  %v148 = vunpack.c.l.b16 %v28
  %v149 = vunpack.c.l.b16 %v29
  %v150 = vunpack.c.l.b16 %v30
  %v151 = vunpack.c.l.b16 %v31
  %v152 = vunpack.c.l.b16 %v32
  %v153 = vunpack.c.l.b16 %v33
  %v154 = vunpack.c.l.b16 %v34
  %v155 = vunpack.c.l.b16 %v35
  %v156 = vunpack.c.l.b16 %v36
  %v157 = vunpack.c.l.b16 %v37
  %v158 = vunpack.c.l.b16 %v38
  %v159 = vunpack.c.l.b16 %v39
  %v160 = vunpack.c.l.b16 %v40
  %v161 = vunpack.c.l.b16 %v41
  %v162 = vunpack.c.l.b16 %v42
  %v163 = vunpack.c.l.b16 %v43
  %v164 = vunpack.c.l.b16 %v44
  %v165 = vunpack.c.l.b16 %v45
  %v166 = vunpack.c.l.b16 %v46
  %v167 = vunpack.c.l.b16 %v47
  %v168 = vunpack.c.l.b16 %v48
  %v169 = vunpack.c.l.b16 %v49
  %v170 = vunpack.c.l.b16 %v50
  %v171 = vunpack.c.l.b16 %v51
  %v172 = vunpack.c.l.b16 %v52
  %v173 = vunpack.c.l.b16 %v53
  %v174 = vunpack.c.l.b16 %v54
  %v175 = vunpack.c.l.b16 %v55
  %v176 = vunpack.c.l.b16 %v56
  %v177 = vunpack.c.l.b16 %v57
  %v178 = vunpack.c.l.b16 %v58
  %v179 = vpack.c.b16 %v148, %v147
  %v180 = vpack.c.b16 %v150, %v149
  %v181 = vpack.c.b16 %v152, %v151
  %v182 = vpack.c.b16 %v154, %v153
  %v183 = vpack.c.b16 %v156, %v155
  %v184 = vpack.c.b16 %v158, %v157
  %v185 = vpack.c.b16 %v160, %v159
  %v186 = vpack.c.b16 %v162, %v161
  %v187 = vpack.c.b16 %v164, %v163
  %v188 = vpack.c.b16 %v166, %v165
  %v189 = vpack.c.b16 %v168, %v167
  %v190 = vpack.c.b16 %v170, %v169
  %v191 = vpack.c.b16 %v172, %v171
  %v192 = vpack.c.b16 %v174, %v173
  %v193 = vpack.c.b16 %v176, %v175
  %v194 = vpack.c.b16 %v178, %v177
  %211 = vmatprep.subr.bf16.mxu0 0
  %212 = vmatpush1.bf16.msra.mxu0 %v179
  %213 = vmatprep.subr.bf16.mxu0 0
  %214 = vmatpush1.bf16.msra.mxu0 %v180
  %215 = vmatprep.subr.bf16.mxu0 0
  %216 = vmatpush1.bf16.msra.mxu0 %v181
  %217 = vmatprep.subr.bf16.mxu0 0
  %218 = vmatpush1.bf16.msra.mxu0 %v182
  %219 = vmatprep.subr.bf16.mxu0 0
  %220 = vmatpush1.bf16.msra.mxu0 %v183
  %221 = vmatprep.subr.bf16.mxu0 0
  %222 = vmatpush1.bf16.msra.mxu0 %v184
  %223 = vmatprep.subr.bf16.mxu0 0
  %224 = vmatpush1.bf16.msra.mxu0 %v185
  %225 = vmatprep.subr.bf16.mxu0 0
  %226 = vmatpush1.bf16.msra.mxu0 %v186
  %227 = vmatprep.subr.bf16.mxu0 0
  %228 = vmatpush1.bf16.msra.mxu0 %v187
  %229 = vmatprep.subr.bf16.mxu0 0
  %230 = vmatpush1.bf16.msra.mxu0 %v188
  %231 = vmatprep.subr.bf16.mxu0 0
  %232 = vmatpush1.bf16.msra.mxu0 %v189
  %233 = vmatprep.subr.bf16.mxu0 0
  %234 = vmatpush1.bf16.msra.mxu0 %v190
  %235 = vmatprep.subr.bf16.mxu0 0
  %236 = vmatpush1.bf16.msra.mxu0 %v191
  %237 = vmatprep.subr.bf16.mxu0 0
  %238 = vmatpush1.bf16.msra.mxu0 %v192
  %239 = vmatprep.subr.bf16.mxu0 0
  %240 = vmatpush1.bf16.msra.mxu0 %v193
  %241 = vmatprep.subr.bf16.mxu0 0
  %242 = vmatpush1.bf16.msra.mxu0 %v194
  %243 = vmatprep.mubr.bf16.mxu0 %v96
  %244 = vmatmul.mubr.bf16.gmra.mrb[0].mxu0 %v95
  %v245 = vpop.f32.mrb[0].mxu0
  %v246 = vadd.f32 0.0, %v245
  %v247 = vpop.f32.mrb[0].mxu0
  %v248 = vpop.f32.mrb[0].mxu0
  %v249 = vadd.f32 0.0, %v248
  %v250 = vpop.f32.mrb[0].mxu0
  %251 = vmatprep.mubr.bf16.mxu0 %v98
  %252 = vmatmul.mubr.bf16.gmra.mrb[0].mxu0 %v97
  %v253 = vpop.f32.mrb[0].mxu0
  %v254 = vadd.f32 0.0, %v253
  %v255 = vpop.f32.mrb[0].mxu0
  %v256 = vpop.f32.mrb[0].mxu0
  %v257 = vadd.f32 0.0, %v256
  %v258 = vpop.f32.mrb[0].mxu0
  %259 = vmatprep.mubr.bf16.mxu0 %v100
  %260 = vmatmul.mubr.bf16.gmra.mrb[0].mxu0 %v99
  %v261 = vpop.f32.mrb[0].mxu0
  %v262 = vadd.f32 0.0, %v261
  %v263 = vpop.f32.mrb[0].mxu0
  %v264 = vpop.f32.mrb[0].mxu0
  %v265 = vadd.f32 0.0, %v264
  %v266 = vpop.f32.mrb[0].mxu0
  %267 = vmatprep.mubr.bf16.mxu0 %v102
  %268 = vmatmul.mubr.bf16.gmra.mrb[0].mxu0 %v101
  %v269 = vpop.f32.mrb[0].mxu0
  %v270 = vadd.f32 0.0, %v269
  %v271 = vpop.f32.mrb[0].mxu0
  %v272 = vpop.f32.mrb[0].mxu0
  %v273 = vadd.f32 0.0, %v272
  %v274 = vpop.f32.mrb[0].mxu0
  %275 = vmatprep.mubr.bf16.mxu0 %v104
  %276 = vmatmul.mubr.bf16.gmra.mrb[0].mxu0 %v103
  %v277 = vpop.f32.mrb[0].mxu0
  %v278 = vadd.f32 0.0, %v277
  %v279 = vpop.f32.mrb[0].mxu0
  %v280 = vpop.f32.mrb[0].mxu0
  %v281 = vpop.f32.mrb[0].mxu0
  %282 = vdwg.mxu0
  %v283 = vld [vmem:[%s1] sm:$0xff]
  %v284 = vld [vmem:[%s1 + $0x8] sm:$0xff]
  %v285 = vld [vmem:[%s1 + $0x10] sm:$0xff]
  %v286 = vld [vmem:[%s1 + $0x18] sm:$0xff]
  %v287 = vld [vmem:[%s1 + $0x20] sm:$0xff]
  %v288 = vld [vmem:[%s1 + $0x28] sm:$0xff]
  %v289 = vld [vmem:[%s1 + $0x30] sm:$0xff]
  %v290 = vld [vmem:[%s1 + $0x38] sm:$0xff]
  %v291 = vld [vmem:[%s1 + $0x40] sm:$0xff]
  %v301 = vunpack.c.l.b16 %v283
  %v302 = vunpack.c.h.b16 %v283
  %v303 = vunpack.c.l.b16 %v284
  %v304 = vunpack.c.h.b16 %v284
  %v305 = vunpack.c.l.b16 %v285
  %v306 = vunpack.c.h.b16 %v285
  %v307 = vunpack.c.l.b16 %v286
  %v308 = vunpack.c.h.b16 %v286
  %v309 = vunpack.c.l.b16 %v287
  %v310 = vunpack.c.h.b16 %v287
  %v311 = vunpack.c.l.b16 %v288
  %v312 = vunpack.c.h.b16 %v288
  %v313 = vunpack.c.l.b16 %v289
  %v314 = vunpack.c.h.b16 %v289
  %v315 = vunpack.c.l.b16 %v290
  %v316 = vunpack.c.h.b16 %v290
  %v317 = vunpack.c.l.b16 %v291
  %v318 = vunpack.c.h.b16 %v291
  %v319 = vpack.c.b16 %v303, %v301
  %v320 = vpack.c.b16 %v304, %v302
  %v321 = vpack.c.b16 %v307, %v305
  %v322 = vpack.c.b16 %v308, %v306
  %v323 = vpack.c.b16 %v311, %v309
  %v324 = vpack.c.b16 %v312, %v310
  %v325 = vpack.c.b16 %v315, %v313
  %v326 = vpack.c.b16 %v316, %v314
  %v327 = vpack.c.b16 %v317, %v317
  %v328 = vpack.c.b16 %v318, %v318
  %339 = vmatprep.subr.bf16.mxu0 0
  %340 = vmatpush1.bf16.msra.mxu0 %v179
  %341 = vmatprep.subr.bf16.mxu0 0
  %342 = vmatpush1.bf16.msra.mxu0 %v180
  %343 = vmatprep.subr.bf16.mxu0 0
  %344 = vmatpush1.bf16.msra.mxu0 %v181
  %345 = vmatprep.subr.bf16.mxu0 0
  %346 = vmatpush1.bf16.msra.mxu0 %v182
  %347 = vmatprep.subr.bf16.mxu0 0
  %348 = vmatpush1.bf16.msra.mxu0 %v183
  %349 = vmatprep.subr.bf16.mxu0 0
  %350 = vmatpush1.bf16.msra.mxu0 %v184
  %351 = vmatprep.subr.bf16.mxu0 0
  %352 = vmatpush1.bf16.msra.mxu0 %v185
  %353 = vmatprep.subr.bf16.mxu0 0
  %354 = vmatpush1.bf16.msra.mxu0 %v186
  %355 = vmatprep.subr.bf16.mxu0 0
  %356 = vmatpush1.bf16.msra.mxu0 %v187
  %357 = vmatprep.subr.bf16.mxu0 0
  %358 = vmatpush1.bf16.msra.mxu0 %v188
  %359 = vmatprep.subr.bf16.mxu0 0
  %360 = vmatpush1.bf16.msra.mxu0 %v189
  %361 = vmatprep.subr.bf16.mxu0 0
  %362 = vmatpush1.bf16.msra.mxu0 %v190
  %363 = vmatprep.subr.bf16.mxu0 0
  %364 = vmatpush1.bf16.msra.mxu0 %v191
  %365 = vmatprep.subr.bf16.mxu0 0
  %366 = vmatpush1.bf16.msra.mxu0 %v192
  %367 = vmatprep.subr.bf16.mxu0 0
  %368 = vmatpush1.bf16.msra.mxu0 %v193
  %369 = vmatprep.subr.bf16.mxu0 0
  %370 = vmatpush1.bf16.msra.mxu0 %v194
  %371 = vmatprep.mubr.bf16.mxu0 %v320
  %372 = vmatmul.mubr.bf16.gmra.mrb[0].mxu0 %v319
  %v373 = vpop.f32.mrb[0].mxu0
  %v374 = vadd.f32 0.0, %v373
  %v375 = vpop.f32.mrb[0].mxu0
  %v376 = vpop.f32.mrb[0].mxu0
  %v377 = vadd.f32 0.0, %v376
  %v378 = vpop.f32.mrb[0].mxu0
  %379 = vmatprep.mubr.bf16.mxu0 %v322
  %380 = vmatmul.mubr.bf16.gmra.mrb[0].mxu0 %v321
  %v381 = vpop.f32.mrb[0].mxu0
  %v382 = vadd.f32 0.0, %v381
  %v383 = vpop.f32.mrb[0].mxu0
  %v384 = vpop.f32.mrb[0].mxu0
  %v385 = vadd.f32 0.0, %v384
  %v386 = vpop.f32.mrb[0].mxu0
  %387 = vmatprep.mubr.bf16.mxu0 %v324
  %388 = vmatmul.mubr.bf16.gmra.mrb[0].mxu0 %v323
  %v389 = vpop.f32.mrb[0].mxu0
  %v390 = vadd.f32 0.0, %v389
  %v391 = vpop.f32.mrb[0].mxu0
  %v392 = vpop.f32.mrb[0].mxu0
  %v393 = vadd.f32 0.0, %v392
  %v394 = vpop.f32.mrb[0].mxu0
  %395 = vmatprep.mubr.bf16.mxu0 %v326
  %396 = vmatmul.mubr.bf16.gmra.mrb[0].mxu0 %v325
  %v397 = vpop.f32.mrb[0].mxu0
  %v398 = vadd.f32 0.0, %v397
  %v399 = vpop.f32.mrb[0].mxu0
  %v400 = vpop.f32.mrb[0].mxu0
  %v401 = vadd.f32 0.0, %v400
  %v402 = vpop.f32.mrb[0].mxu0
  %403 = vmatprep.mubr.bf16.mxu0 %v328
  %404 = vmatmul.mubr.bf16.gmra.mrb[0].mxu0 %v327
  %v405 = vpop.f32.mrb[0].mxu0
  %v406 = vadd.f32 0.0, %v405
  %v407 = vpop.f32.mrb[0].mxu0
  %v408 = vpop.f32.mrb[0].mxu0
  %v409 = vpop.f32.mrb[0].mxu0
  %410 = vdwg.mxu0
  %v411 = vld [vmem:[%s2] sm:$0xff]
  %v412 = vld [vmem:[%s2 + $0x8] sm:$0xff]
  %v413 = vld [vmem:[%s2 + $0x10] sm:$0xff]
  %v414 = vld [vmem:[%s2 + $0x18] sm:$0xff]
  %v415 = vld [vmem:[%s2 + $0x20] sm:$0xff]
  %v416 = vld [vmem:[%s2 + $0x28] sm:$0xff]
  %v417 = vld [vmem:[%s2 + $0x30] sm:$0xff]
  %v418 = vld [vmem:[%s2 + $0x38] sm:$0xff]
  %v419 = vld [vmem:[%s2 + $0x40] sm:$0xff]
  %v429 = vunpack.c.l.b16 %v411
  %v430 = vunpack.c.h.b16 %v411
  %v431 = vunpack.c.l.b16 %v412
  %v432 = vunpack.c.h.b16 %v412
  %v433 = vunpack.c.l.b16 %v413
  %v434 = vunpack.c.h.b16 %v413
  %v435 = vunpack.c.l.b16 %v414
  %v436 = vunpack.c.h.b16 %v414
  %v437 = vunpack.c.l.b16 %v415
  %v438 = vunpack.c.h.b16 %v415
  %v439 = vunpack.c.l.b16 %v416
  %v440 = vunpack.c.h.b16 %v416
  %v441 = vunpack.c.l.b16 %v417
  %v442 = vunpack.c.h.b16 %v417
  %v443 = vunpack.c.l.b16 %v418
  %v444 = vunpack.c.h.b16 %v418
  %v445 = vunpack.c.l.b16 %v419
  %v446 = vunpack.c.h.b16 %v419
  %v447 = vpack.c.b16 %v431, %v429
  %v448 = vpack.c.b16 %v432, %v430
  %v449 = vpack.c.b16 %v435, %v433
  %v450 = vpack.c.b16 %v436, %v434
  %v451 = vpack.c.b16 %v439, %v437
  %v452 = vpack.c.b16 %v440, %v438
  %v453 = vpack.c.b16 %v443, %v441
  %v454 = vpack.c.b16 %v444, %v442
  %v455 = vpack.c.b16 %v445, %v445
  %v456 = vpack.c.b16 %v446, %v446
  %467 = vmatprep.subr.bf16.mxu0 0
  %468 = vmatpush1.bf16.msra.mxu0 %v179
  %469 = vmatprep.subr.bf16.mxu0 0
  %470 = vmatpush1.bf16.msra.mxu0 %v180
  %471 = vmatprep.subr.bf16.mxu0 0
  %472 = vmatpush1.bf16.msra.mxu0 %v181
  %473 = vmatprep.subr.bf16.mxu0 0
  %474 = vmatpush1.bf16.msra.mxu0 %v182
  %475 = vmatprep.subr.bf16.mxu0 0
  %476 = vmatpush1.bf16.msra.mxu0 %v183
  %477 = vmatprep.subr.bf16.mxu0 0
  %478 = vmatpush1.bf16.msra.mxu0 %v184
  %479 = vmatprep.subr.bf16.mxu0 0
  %480 = vmatpush1.bf16.msra.mxu0 %v185
  %481 = vmatprep.subr.bf16.mxu0 0
  %482 = vmatpush1.bf16.msra.mxu0 %v186
  %483 = vmatprep.subr.bf16.mxu0 0
  %484 = vmatpush1.bf16.msra.mxu0 %v187
  %485 = vmatprep.subr.bf16.mxu0 0
  %486 = vmatpush1.bf16.msra.mxu0 %v188
  %487 = vmatprep.subr.bf16.mxu0 0
  %488 = vmatpush1.bf16.msra.mxu0 %v189
  %489 = vmatprep.subr.bf16.mxu0 0
  %490 = vmatpush1.bf16.msra.mxu0 %v190
  %491 = vmatprep.subr.bf16.mxu0 0
  %492 = vmatpush1.bf16.msra.mxu0 %v191
  %493 = vmatprep.subr.bf16.mxu0 0
  %494 = vmatpush1.bf16.msra.mxu0 %v192
  %495 = vmatprep.subr.bf16.mxu0 0
  %496 = vmatpush1.bf16.msra.mxu0 %v193
  %497 = vmatprep.subr.bf16.mxu0 0
  %498 = vmatpush1.bf16.msra.mxu0 %v194
  %499 = vmatprep.mubr.bf16.mxu0 %v448
  %500 = vmatmul.mubr.bf16.gmra.mrb[0].mxu0 %v447
  %v501 = vpop.f32.mrb[0].mxu0
  %v502 = vadd.f32 0.0, %v501
  %v503 = vpop.f32.mrb[0].mxu0
  %v504 = vpop.f32.mrb[0].mxu0
  %v505 = vadd.f32 0.0, %v504
  %v506 = vpop.f32.mrb[0].mxu0
  %507 = vmatprep.mubr.bf16.mxu0 %v450
  %508 = vmatmul.mubr.bf16.gmra.mrb[0].mxu0 %v449
  %v509 = vpop.f32.mrb[0].mxu0
  %v510 = vadd.f32 0.0, %v509
  %v511 = vpop.f32.mrb[0].mxu0
  %v512 = vpop.f32.mrb[0].mxu0
  %v513 = vadd.f32 0.0, %v512
  %v514 = vpop.f32.mrb[0].mxu0
  %515 = vmatprep.mubr.bf16.mxu0 %v452
  %516 = vmatmul.mubr.bf16.gmra.mrb[0].mxu0 %v451
  %v517 = vpop.f32.mrb[0].mxu0
  %v518 = vadd.f32 0.0, %v517
  %v519 = vpop.f32.mrb[0].mxu0
  %v520 = vpop.f32.mrb[0].mxu0
  %v521 = vadd.f32 0.0, %v520
  %v522 = vpop.f32.mrb[0].mxu0
  %523 = vmatprep.mubr.bf16.mxu0 %v454
  %524 = vmatmul.mubr.bf16.gmra.mrb[0].mxu0 %v453
  %v525 = vpop.f32.mrb[0].mxu0
  %v526 = vadd.f32 0.0, %v525
  %v527 = vpop.f32.mrb[0].mxu0
  %v528 = vpop.f32.mrb[0].mxu0
  %v529 = vadd.f32 0.0, %v528
  %v530 = vpop.f32.mrb[0].mxu0
  %531 = vmatprep.mubr.bf16.mxu0 %v456
  %532 = vmatmul.mubr.bf16.gmra.mrb[0].mxu0 %v455
  %v533 = vpop.f32.mrb[0].mxu0
  %v534 = vadd.f32 0.0, %v533
  %v535 = vpop.f32.mrb[0].mxu0
  %v536 = vpop.f32.mrb[0].mxu0
  %v537 = vpop.f32.mrb[0].mxu0
  %538 = vdwg.mxu0
  %v539 = vld [vmem:[%s3] sm:$0xff]
  %v540 = vld [vmem:[%s3 + $0x8] sm:$0xff]
  %v541 = vld [vmem:[%s3 + $0x10] sm:$0xff]
  %v542 = vld [vmem:[%s3 + $0x18] sm:$0xff]
  %v543 = vld [vmem:[%s3 + $0x20] sm:$0xff]
  %v544 = vld [vmem:[%s3 + $0x28] sm:$0xff]
  %v545 = vld [vmem:[%s3 + $0x30] sm:$0xff]
  %v546 = vld [vmem:[%s3 + $0x38] sm:$0xff]
  %v547 = vld [vmem:[%s3 + $0x40] sm:$0xff]
  %v557 = vunpack.c.l.b16 %v539
  %v558 = vunpack.c.h.b16 %v539
  %v559 = vunpack.c.l.b16 %v540
  %v560 = vunpack.c.h.b16 %v540
  %v561 = vunpack.c.l.b16 %v541
  %v562 = vunpack.c.h.b16 %v541
  %v563 = vunpack.c.l.b16 %v542
  %v564 = vunpack.c.h.b16 %v542
  %v565 = vunpack.c.l.b16 %v543
  %v566 = vunpack.c.h.b16 %v543
  %v567 = vunpack.c.l.b16 %v544
  %v568 = vunpack.c.h.b16 %v544
  %v569 = vunpack.c.l.b16 %v545
  %v570 = vunpack.c.h.b16 %v545
  %v571 = vunpack.c.l.b16 %v546
  %v572 = vunpack.c.h.b16 %v546
  %v573 = vunpack.c.l.b16 %v547
  %v574 = vunpack.c.h.b16 %v547
  %v575 = vpack.c.b16 %v559, %v557
  %v576 = vpack.c.b16 %v560, %v558
  %v577 = vpack.c.b16 %v563, %v561
  %v578 = vpack.c.b16 %v564, %v562
  %v579 = vpack.c.b16 %v567, %v565
  %v580 = vpack.c.b16 %v568, %v566
  %v581 = vpack.c.b16 %v571, %v569
  %v582 = vpack.c.b16 %v572, %v570
  %v583 = vpack.c.b16 %v573, %v573
  %v584 = vpack.c.b16 %v574, %v574
  %595 = vmatprep.subr.bf16.mxu0 0
  %596 = vmatpush1.bf16.msra.mxu0 %v179
  %597 = vmatprep.subr.bf16.mxu0 0
  %598 = vmatpush1.bf16.msra.mxu0 %v180
  %599 = vmatprep.subr.bf16.mxu0 0
  %600 = vmatpush1.bf16.msra.mxu0 %v181
  %601 = vmatprep.subr.bf16.mxu0 0
  %602 = vmatpush1.bf16.msra.mxu0 %v182
  %603 = vmatprep.subr.bf16.mxu0 0
  %604 = vmatpush1.bf16.msra.mxu0 %v183
  %605 = vmatprep.subr.bf16.mxu0 0
  %606 = vmatpush1.bf16.msra.mxu0 %v184
  %607 = vmatprep.subr.bf16.mxu0 0
  %608 = vmatpush1.bf16.msra.mxu0 %v185
  %609 = vmatprep.subr.bf16.mxu0 0
  %610 = vmatpush1.bf16.msra.mxu0 %v186
  %611 = vmatprep.subr.bf16.mxu0 0
  %612 = vmatpush1.bf16.msra.mxu0 %v187
  %613 = vmatprep.subr.bf16.mxu0 0
  %614 = vmatpush1.bf16.msra.mxu0 %v188
  %615 = vmatprep.subr.bf16.mxu0 0
  %616 = vmatpush1.bf16.msra.mxu0 %v189
  %617 = vmatprep.subr.bf16.mxu0 0
  %618 = vmatpush1.bf16.msra.mxu0 %v190
  %619 = vmatprep.subr.bf16.mxu0 0
  %620 = vmatpush1.bf16.msra.mxu0 %v191
  %621 = vmatprep.subr.bf16.mxu0 0
  %622 = vmatpush1.bf16.msra.mxu0 %v192
  %623 = vmatprep.subr.bf16.mxu0 0
  %624 = vmatpush1.bf16.msra.mxu0 %v193
  %625 = vmatprep.subr.bf16.mxu0 0
  %626 = vmatpush1.bf16.msra.mxu0 %v194
  %627 = vmatprep.mubr.bf16.mxu0 %v576
  %628 = vmatmul.mubr.bf16.gmra.mrb[0].mxu0 %v575
  %v629 = vpop.f32.mrb[0].mxu0
  %v630 = vadd.f32 0.0, %v629
  %v631 = vpop.f32.mrb[0].mxu0
  %v632 = vpop.f32.mrb[0].mxu0
  %v633 = vadd.f32 0.0, %v632
  %v634 = vpop.f32.mrb[0].mxu0
  %635 = vmatprep.mubr.bf16.mxu0 %v578
  %636 = vmatmul.mubr.bf16.gmra.mrb[0].mxu0 %v577
  %v637 = vpop.f32.mrb[0].mxu0
  %v638 = vadd.f32 0.0, %v637
  %v639 = vpop.f32.mrb[0].mxu0
  %v640 = vpop.f32.mrb[0].mxu0
  %v641 = vadd.f32 0.0, %v640
  %v642 = vpop.f32.mrb[0].mxu0
  %643 = vmatprep.mubr.bf16.mxu0 %v580
  %644 = vmatmul.mubr.bf16.gmra.mrb[0].mxu0 %v579
  %v645 = vpop.f32.mrb[0].mxu0
  %v646 = vadd.f32 0.0, %v645
  %v647 = vpop.f32.mrb[0].mxu0
  %v648 = vpop.f32.mrb[0].mxu0
  %v649 = vadd.f32 0.0, %v648
  %v650 = vpop.f32.mrb[0].mxu0
  %651 = vmatprep.mubr.bf16.mxu0 %v582
  %652 = vmatmul.mubr.bf16.gmra.mrb[0].mxu0 %v581
  %v653 = vpop.f32.mrb[0].mxu0
  %v654 = vadd.f32 0.0, %v653
  %v655 = vpop.f32.mrb[0].mxu0
  %v656 = vpop.f32.mrb[0].mxu0
  %v657 = vadd.f32 0.0, %v656
  %v658 = vpop.f32.mrb[0].mxu0
  %659 = vmatprep.mubr.bf16.mxu0 %v584
  %660 = vmatmul.mubr.bf16.gmra.mrb[0].mxu0 %v583
  %v661 = vpop.f32.mrb[0].mxu0
  %v662 = vadd.f32 0.0, %v661
  %v663 = vpop.f32.mrb[0].mxu0
  %v664 = vpop.f32.mrb[0].mxu0
  %v665 = vpop.f32.mrb[0].mxu0
  %666 = vdwg.mxu0
  %v667 = vld [vmem:[%s5] sm:$0x1]
  %v668 = vld [vmem:[%s6] sm:$0x1]
  %vm669 = vcmask 654336
  %v670 = vsel %vm669, %v246, 0.0
  %v671 = vsel %vm669, %v249, 0.0
  %v672 = vadd.f32 %v670, %v671
  %v673 = vsel %vm669, %v254, 0.0
  %v674 = vadd.f32 %v672, %v673
  %v675 = vsel %vm669, %v257, 0.0
  %v676 = vadd.f32 %v674, %v675
  %v677 = vsel %vm669, %v262, 0.0
  %v678 = vadd.f32 %v676, %v677
  %v679 = vsel %vm669, %v265, 0.0
  %v680 = vadd.f32 %v678, %v679
  %v681 = vsel %vm669, %v270, 0.0
  %v682 = vadd.f32 %v680, %v681
  %v683 = vsel %vm669, %v273, 0.0
  %v684 = vadd.f32 %v682, %v683
  %v685 = vsel %vm669, %v278, 0.0
  %v686 = vadd.f32 %v684, %v685
  %v687 = vrot.slane %v686, 4
  %v688 = vadd.f32 %v686, %v687
  %v689 = vrot.slane %v688, 2
  %v690 = vadd.f32 %v688, %v689
  %v691 = vrot.slane %v690, 1
  %v692 = vadd.f32 %v690, %v691
  %v693 = vmul.f32 %v246, %v246
  %v694 = vmul.f32 %v249, %v249
  %v695 = vmul.f32 %v254, %v254
  %v696 = vmul.f32 %v257, %v257
  %v697 = vmul.f32 %v262, %v262
  %v698 = vmul.f32 %v265, %v265
  %v699 = vmul.f32 %v270, %v270
  %v700 = vmul.f32 %v273, %v273
  %v701 = vmul.f32 %v278, %v278
  %v702 = vsel %vm669, %v693, 0.0
  %v703 = vsel %vm669, %v694, 0.0
  %v704 = vadd.f32 %v702, %v703
  %v705 = vsel %vm669, %v695, 0.0
  %v706 = vadd.f32 %v704, %v705
  %v707 = vsel %vm669, %v696, 0.0
  %v708 = vadd.f32 %v706, %v707
  %v709 = vsel %vm669, %v697, 0.0
  %v710 = vadd.f32 %v708, %v709
  %v711 = vsel %vm669, %v698, 0.0
  %v712 = vadd.f32 %v710, %v711
  %v713 = vsel %vm669, %v699, 0.0
  %v714 = vadd.f32 %v712, %v713
  %v715 = vsel %vm669, %v700, 0.0
  %v716 = vadd.f32 %v714, %v715
  %v717 = vsel %vm669, %v701, 0.0
  %v718 = vadd.f32 %v716, %v717
  %v719 = vrot.slane %v718, 4
  %v720 = vadd.f32 %v718, %v719
  %v721 = vrot.slane %v720, 2
  %v722 = vadd.f32 %v720, %v721
  %v723 = vrot.slane %v722, 1
  %v724 = vadd.f32 %v722, %v723
  %v725 = vsel %vm669, %v374, 0.0
  %v726 = vsel %vm669, %v377, 0.0
  %v727 = vadd.f32 %v725, %v726
  %v728 = vsel %vm669, %v382, 0.0
  %v729 = vadd.f32 %v727, %v728
  %v730 = vsel %vm669, %v385, 0.0
  %v731 = vadd.f32 %v729, %v730
  %v732 = vsel %vm669, %v390, 0.0
  %v733 = vadd.f32 %v731, %v732
  %v734 = vsel %vm669, %v393, 0.0
  %v735 = vadd.f32 %v733, %v734
  %v736 = vsel %vm669, %v398, 0.0
  %v737 = vadd.f32 %v735, %v736
  %v738 = vsel %vm669, %v401, 0.0
  %v739 = vadd.f32 %v737, %v738
  %v740 = vsel %vm669, %v406, 0.0
  %v741 = vadd.f32 %v739, %v740
  %v742 = vrot.slane %v741, 4
  %v743 = vadd.f32 %v741, %v742
  %v744 = vrot.slane %v743, 2
  %v745 = vadd.f32 %v743, %v744
  %v746 = vrot.slane %v745, 1
  %v747 = vadd.f32 %v745, %v746
  %v748 = vadd.f32 %v692, %v747
  %v749 = vmul.f32 %v374, %v374
  %v750 = vmul.f32 %v377, %v377
  %v751 = vmul.f32 %v382, %v382
  %v752 = vmul.f32 %v385, %v385
  %v753 = vmul.f32 %v390, %v390
  %v754 = vmul.f32 %v393, %v393
  %v755 = vmul.f32 %v398, %v398
  %v756 = vmul.f32 %v401, %v401
  %v757 = vmul.f32 %v406, %v406
  %v758 = vsel %vm669, %v749, 0.0
  %v759 = vsel %vm669, %v750, 0.0
  %v760 = vadd.f32 %v758, %v759
  %v761 = vsel %vm669, %v751, 0.0
  %v762 = vadd.f32 %v760, %v761
  %v763 = vsel %vm669, %v752, 0.0
  %v764 = vadd.f32 %v762, %v763
  %v765 = vsel %vm669, %v753, 0.0
  %v766 = vadd.f32 %v764, %v765
  %v767 = vsel %vm669, %v754, 0.0
  %v768 = vadd.f32 %v766, %v767
  %v769 = vsel %vm669, %v755, 0.0
  %v770 = vadd.f32 %v768, %v769
  %v771 = vsel %vm669, %v756, 0.0
  %v772 = vadd.f32 %v770, %v771
  %v773 = vsel %vm669, %v757, 0.0
  %v774 = vadd.f32 %v772, %v773
  %v775 = vrot.slane %v774, 4
  %v776 = vadd.f32 %v774, %v775
  %v777 = vrot.slane %v776, 2
  %v778 = vadd.f32 %v776, %v777
  %v779 = vrot.slane %v778, 1
  %v780 = vadd.f32 %v778, %v779
  %v781 = vadd.f32 %v724, %v780
  %v782 = vsel %vm669, %v502, 0.0
  %v783 = vsel %vm669, %v505, 0.0
  %v784 = vadd.f32 %v782, %v783
  %v785 = vsel %vm669, %v510, 0.0
  %v786 = vadd.f32 %v784, %v785
  %v787 = vsel %vm669, %v513, 0.0
  %v788 = vadd.f32 %v786, %v787
  %v789 = vsel %vm669, %v518, 0.0
  %v790 = vadd.f32 %v788, %v789
  %v791 = vsel %vm669, %v521, 0.0
  %v792 = vadd.f32 %v790, %v791
  %v793 = vsel %vm669, %v526, 0.0
  %v794 = vadd.f32 %v792, %v793
  %v795 = vsel %vm669, %v529, 0.0
  %v796 = vadd.f32 %v794, %v795
  %v797 = vsel %vm669, %v534, 0.0
  %v798 = vadd.f32 %v796, %v797
  %v799 = vrot.slane %v798, 4
  %v800 = vadd.f32 %v798, %v799
  %v801 = vrot.slane %v800, 2
  %v802 = vadd.f32 %v800, %v801
  %v803 = vrot.slane %v802, 1
  %v804 = vadd.f32 %v802, %v803
  %v805 = vadd.f32 %v748, %v804
  %v806 = vmul.f32 %v502, %v502
  %v807 = vmul.f32 %v505, %v505
  %v808 = vmul.f32 %v510, %v510
  %v809 = vmul.f32 %v513, %v513
  %v810 = vmul.f32 %v518, %v518
  %v811 = vmul.f32 %v521, %v521
  %v812 = vmul.f32 %v526, %v526
  %v813 = vmul.f32 %v529, %v529
  %v814 = vmul.f32 %v534, %v534
  %v815 = vsel %vm669, %v806, 0.0
  %v816 = vsel %vm669, %v807, 0.0
  %v817 = vadd.f32 %v815, %v816
  %v818 = vsel %vm669, %v808, 0.0
  %v819 = vadd.f32 %v817, %v818
  %v820 = vsel %vm669, %v809, 0.0
  %v821 = vadd.f32 %v819, %v820
  %v822 = vsel %vm669, %v810, 0.0
  %v823 = vadd.f32 %v821, %v822
  %v824 = vsel %vm669, %v811, 0.0
  %v825 = vadd.f32 %v823, %v824
  %v826 = vsel %vm669, %v812, 0.0
  %v827 = vadd.f32 %v825, %v826
  %v828 = vsel %vm669, %v813, 0.0
  %v829 = vadd.f32 %v827, %v828
  %v830 = vsel %vm669, %v814, 0.0
  %v831 = vadd.f32 %v829, %v830
  %v832 = vrot.slane %v831, 4
  %v833 = vadd.f32 %v831, %v832
  %v834 = vrot.slane %v833, 2
  %v835 = vadd.f32 %v833, %v834
  %v836 = vrot.slane %v835, 1
  %v837 = vadd.f32 %v835, %v836
  %v838 = vadd.f32 %v781, %v837
  %v839 = vsel %vm669, %v630, 0.0
  %v840 = vsel %vm669, %v633, 0.0
  %v841 = vadd.f32 %v839, %v840
  %v842 = vsel %vm669, %v638, 0.0
  %v843 = vadd.f32 %v841, %v842
  %v844 = vsel %vm669, %v641, 0.0
  %v845 = vadd.f32 %v843, %v844
  %v846 = vsel %vm669, %v646, 0.0
  %v847 = vadd.f32 %v845, %v846
  %v848 = vsel %vm669, %v649, 0.0
  %v849 = vadd.f32 %v847, %v848
  %v850 = vsel %vm669, %v654, 0.0
  %v851 = vadd.f32 %v849, %v850
  %v852 = vsel %vm669, %v657, 0.0
  %v853 = vadd.f32 %v851, %v852
  %v854 = vsel %vm669, %v662, 0.0
  %v855 = vadd.f32 %v853, %v854
  %v856 = vrot.slane %v855, 4
  %v857 = vadd.f32 %v855, %v856
  %v858 = vrot.slane %v857, 2
  %v859 = vadd.f32 %v857, %v858
  %v860 = vrot.slane %v859, 1
  %v861 = vadd.f32 %v859, %v860
  %v862 = vadd.f32 %v805, %v861
  %v863 = vmul.f32 %v630, %v630
  %v864 = vmul.f32 %v633, %v633
  %v865 = vmul.f32 %v638, %v638
  %v866 = vmul.f32 %v641, %v641
  %v867 = vmul.f32 %v646, %v646
  %v868 = vmul.f32 %v649, %v649
  %v869 = vmul.f32 %v654, %v654
  %v870 = vmul.f32 %v657, %v657
  %v871 = vmul.f32 %v662, %v662
  %v872 = vsel %vm669, %v863, 0.0
  %v873 = vsel %vm669, %v864, 0.0
  %v874 = vadd.f32 %v872, %v873
  %v875 = vsel %vm669, %v865, 0.0
  %v876 = vadd.f32 %v874, %v875
  %v877 = vsel %vm669, %v866, 0.0
  %v878 = vadd.f32 %v876, %v877
  %v879 = vsel %vm669, %v867, 0.0
  %v880 = vadd.f32 %v878, %v879
  %v881 = vsel %vm669, %v868, 0.0
  %v882 = vadd.f32 %v880, %v881
  %v883 = vsel %vm669, %v869, 0.0
  %v884 = vadd.f32 %v882, %v883
  %v885 = vsel %vm669, %v870, 0.0
  %v886 = vadd.f32 %v884, %v885
  %v887 = vsel %vm669, %v871, 0.0
  %v888 = vadd.f32 %v886, %v887
  %v889 = vrot.slane %v888, 4
  %v890 = vadd.f32 %v888, %v889
  %v891 = vrot.slane %v890, 2
  %v892 = vadd.f32 %v890, %v891
  %v893 = vrot.slane %v892, 1
  %v894 = vadd.f32 %v892, %v893
  %v895 = vadd.f32 %v838, %v894
  %v896 = vmul.f32 %v862, 0.0034722222
  %v897 = vmul.f32 %v895, 0.0034722222
  %v898 = vmul.f32 %v896, %v896
  %v899 = vsub.f32 %v897, %v898
  %v900 = vmax.f32 %v899, 0.0
  %v901 = vadd.f32 %v900, 1e-05
  %v902 = vrsqrt.pop %v901
  %v903 = vmul.f32 %v667, %v902
  %v904 = vmul.f32 %v896, %v903
  %v905 = vsub.f32 %v668, %v904
  %v906 = vmax.f32 %v246, %v374
  %v907 = vmax.f32 %v249, %v377
  %v908 = vmax.f32 %v254, %v382
  %v909 = vmax.f32 %v257, %v385
  %v910 = vmax.f32 %v262, %v390
  %v911 = vmax.f32 %v265, %v393
  %v912 = vmax.f32 %v270, %v398
  %v913 = vmax.f32 %v273, %v401
  %v914 = vmax.f32 %v278, %v406
  %v915 = vmax.f32 %v502, %v630
  %v916 = vmax.f32 %v505, %v633
  %v917 = vmax.f32 %v510, %v638
  %v918 = vmax.f32 %v513, %v641
  %v919 = vmax.f32 %v518, %v646
  %v920 = vmax.f32 %v521, %v649
  %v921 = vmax.f32 %v526, %v654
  %v922 = vmax.f32 %v529, %v657
  %v923 = vmax.f32 %v534, %v662
  %v924 = vmax.f32 %v906, %v915
  %v925 = vmax.f32 %v907, %v916
  %v926 = vmax.f32 %v908, %v917
  %v927 = vmax.f32 %v909, %v918
  %v928 = vmax.f32 %v910, %v919
  %v929 = vmax.f32 %v911, %v920
  %v930 = vmax.f32 %v912, %v921
  %v931 = vmax.f32 %v913, %v922
  %v932 = vmax.f32 %v914, %v923
  %v933 = vmin.f32 %v246, %v374
  %v934 = vmin.f32 %v249, %v377
  %v935 = vmin.f32 %v254, %v382
  %v936 = vmin.f32 %v257, %v385
  %v937 = vmin.f32 %v262, %v390
  %v938 = vmin.f32 %v265, %v393
  %v939 = vmin.f32 %v270, %v398
  %v940 = vmin.f32 %v273, %v401
  %v941 = vmin.f32 %v278, %v406
  %v942 = vmin.f32 %v502, %v630
  %v943 = vmin.f32 %v505, %v633
  %v944 = vmin.f32 %v510, %v638
  %v945 = vmin.f32 %v513, %v641
  %v946 = vmin.f32 %v518, %v646
  %v947 = vmin.f32 %v521, %v649
  %v948 = vmin.f32 %v526, %v654
  %v949 = vmin.f32 %v529, %v657
  %v950 = vmin.f32 %v534, %v662
  %v951 = vmin.f32 %v933, %v942
  %v952 = vmin.f32 %v934, %v943
  %v953 = vmin.f32 %v935, %v944
  %v954 = vmin.f32 %v936, %v945
  %v955 = vmin.f32 %v937, %v946
  %v956 = vmin.f32 %v938, %v947
  %v957 = vmin.f32 %v939, %v948
  %v958 = vmin.f32 %v940, %v949
  %v959 = vmin.f32 %v941, %v950
  %vm960 = vcmp.ge.f32.partialorder %v903, 0.0
  %v961 = vsel %vm960, 1, 0
  %v962 = vlaneseq
  %v963 = vshrl.u32 %v962, 7
  %v964 = vsub.s32 0, %v963
  %v965 = vrot.slane %v961, %v964
  %vm966 = vcmp.eq.s32.totalorder %v965, 1
  %v967 = vsel %vm966, %v924, %v951
  %v968 = vsel %vm966, %v925, %v952
  %v969 = vsel %vm966, %v926, %v953
  %v970 = vsel %vm966, %v927, %v954
  %v971 = vsel %vm966, %v928, %v955
  %v972 = vsel %vm966, %v929, %v956
  %v973 = vsel %vm966, %v930, %v957
  %v974 = vsel %vm966, %v931, %v958
  %v975 = vsel %vm966, %v932, %v959
  %v977 = vlaneseq
  %v978 = vshrl.u32 %v977, 7
  %v979 = vsub.s32 0, %v978
  %v980 = vrot.slane %v903, %v979
  %v982 = vmul.f32 %v980, %v967
  %v983 = vmul.f32 %v980, %v968
  %v984 = vmul.f32 %v980, %v969
  %v985 = vmul.f32 %v980, %v970
  %v986 = vmul.f32 %v980, %v971
  %v987 = vmul.f32 %v980, %v972
  %v988 = vmul.f32 %v980, %v973
  %v989 = vmul.f32 %v980, %v974
  %v990 = vmul.f32 %v980, %v975
  %v992 = vlaneseq
  %v993 = vshrl.u32 %v992, 7
  %v994 = vsub.s32 0, %v993
  %v995 = vrot.slane %v905, %v994
  %v997 = vadd.f32 %v982, %v995
  %v998 = vadd.f32 %v983, %v995
  %v999 = vadd.f32 %v984, %v995
  %v1000 = vadd.f32 %v985, %v995
  %v1001 = vadd.f32 %v986, %v995
  %v1002 = vadd.f32 %v987, %v995
  %v1003 = vadd.f32 %v988, %v995
  %v1004 = vadd.f32 %v989, %v995
  %v1005 = vadd.f32 %v990, %v995
  %v1006 = vmax.f32 %v997, 0.0
  %v1007 = vmax.f32 %v998, 0.0
  %v1008 = vmax.f32 %v999, 0.0
  %v1009 = vmax.f32 %v1000, 0.0
  %v1010 = vmax.f32 %v1001, 0.0
  %v1011 = vmax.f32 %v1002, 0.0
  %v1012 = vmax.f32 %v1003, 0.0
  %v1013 = vmax.f32 %v1004, 0.0
  %v1014 = vmax.f32 %v1005, 0.0
  %v1015 = vpack.c.bf16 %v1007, %v1006
  %v1016 = vpack.c.bf16 %v1009, %v1008
  %v1017 = vpack.c.bf16 %v1011, %v1010
  %v1018 = vpack.c.bf16 %v1013, %v1012
  %v1019 = vpack.c.bf16 %v1014, %v1014
  %v1025 = vunpack.c.l.b16 %v1015
  %v1026 = vunpack.c.h.b16 %v1015
  %v1027 = vunpack.c.l.b16 %v1016
  %v1028 = vunpack.c.h.b16 %v1016
  %v1029 = vunpack.c.l.b16 %v1017
  %v1030 = vunpack.c.h.b16 %v1017
  %v1031 = vunpack.c.l.b16 %v1018
  %v1032 = vunpack.c.h.b16 %v1018
  %v1033 = vunpack.c.l.b16 %v1019
  %v1034 = vpack.c.b16 %v1025, %v1025
  %v1035 = vpack.c.b16 %v1026, %v1026
  %v1036 = vpack.c.b16 %v1027, %v1027
  %v1037 = vpack.c.b16 %v1028, %v1028
  %v1038 = vpack.c.b16 %v1029, %v1029
  %v1039 = vpack.c.b16 %v1030, %v1030
  %v1040 = vpack.c.b16 %v1031, %v1031
  %v1041 = vpack.c.b16 %v1032, %v1032
  %v1042 = vpack.c.b16 %v1033, %v1033
  %vm1052 = vcmask 650240
  %1053 = vst.msk [vmem:[%s7] sm:$0xf] %vm1052, %v1034
  %1054 = vst.msk [vmem:[%s7 + $0x4] sm:$0xf] %vm1052, %v1035
  %1055 = vst.msk [vmem:[%s7 + $0x8] sm:$0xf] %vm1052, %v1036
  %1056 = vst.msk [vmem:[%s7 + $0xc] sm:$0xf] %vm1052, %v1037
  %1057 = vst.msk [vmem:[%s7 + $0x10] sm:$0xf] %vm1052, %v1038
  %1058 = vst.msk [vmem:[%s7 + $0x14] sm:$0xf] %vm1052, %v1039
  %1059 = vst.msk [vmem:[%s7 + $0x18] sm:$0xf] %vm1052, %v1040
  %1060 = vst.msk [vmem:[%s7 + $0x1c] sm:$0xf] %vm1052, %v1041
  %1061 = vst.msk [vmem:[%s7 + $0x20] sm:$0xf] %vm1052, %v1042
  // Predicated region
  $region30: #{forward.4} parent=0 // pred_check
    _
  $region31: #{forward.4} parent=0 // pred_check_branch
    %1063 = sbr.rel (0) target = $region33
  $region32: #{forward.4} parent=0 // pred_region
    _
  $region33: #{forward.4} parent=0 // pred_fallthru
    _
  // Predicated region
  $region34: #{forward.4} parent=0 // pred_check
    _
  $region35: #{forward.4} parent=0 // pred_check_branch
    %1065 = sbr.rel (0) target = $region37
  $region36: #{forward.4} parent=0 // pred_region
    _
  $region37: #{forward.4} parent=0 // pred_fallthru
    _

// kernel: forward.5
$region0: #{forward.5}
  #allocation0 [shape = 'u32[]', space=smem, size = 0x4, offset = 0x4, fixed_abs, tag = 'smem constant byte address 0x4 - core index']
  #allocation1 [shape = 'u32[144,128]{1,0:T(1,128)}', space=vmem, size = 0x12000, scoped, tag = 'internal scratch']
  %s0 = inlined_call_operand.vmem [shape: bf16[8,720], index: 0, kind: input, shape index: {}]
  %s1 = inlined_call_operand.vmem [shape: bf16[8,720], index: 1, kind: input, shape index: {}]
  %s2 = inlined_call_operand.vmem [shape: bf16[8,720], index: 2, kind: input, shape index: {}]
  %s3 = inlined_call_operand.vmem [shape: bf16[8,720], index: 3, kind: input, shape index: {}]
  %s4 = inlined_call_operand.vmem [shape: bf16[720,384], index: 4, kind: input, shape index: {}]
  %s5 = inlined_call_operand.vmem [shape: f32[1,384], index: 5, kind: input, shape index: {}]
  %s6 = inlined_call_operand.vmem [shape: f32[1,384], index: 6, kind: input, shape index: {}]
  %s7 = inlined_call_operand.vmem [shape: bf16[1536,400], index: 7, kind: input, shape index: {}]
  %s8 = inlined_call_operand.vmem [shape: f32[1,400], index: 8, kind: input, shape index: {}]
  %s9 = inlined_call_operand.vmem [shape: f32[1,400], index: 9, kind: input, shape index: {}]
  %s10 = inlined_call_operand.vmem [shape: bf16[400,128], index: 10, kind: input, shape index: {}]
  %s11 = inlined_call_operand.vmem [shape: f32[1,128], index: 11, kind: input, shape index: {}]
  %s12 = inlined_call_operand.vmem [shape: bf16[128,128], index: 12, kind: input, shape index: {}]
  %s13 = inlined_call_operand.vmem [shape: f32[1,128], index: 13, kind: input, shape index: {}]
  %s14 = inlined_call_operand.vmem [shape: bf16[128,128], index: 14, kind: input, shape index: {}]
  %s15 = inlined_call_operand.vmem [shape: f32[1,128], index: 15, kind: input, shape index: {}]
  %s16 = inlined_call_operand.hbm [shape: f32[2,128], index: 16, kind: output, shape index: {}]
  %s17 = sld [smem:[#allocation0]]
  $region74: #{forward.5} parent=0
    _
  %s19 = ssub.s32 1, %s17
  %s20 = scalar_select 0, %s19, %s17
  $region1: #{forward.5} parent=0
    #allocation2 [shape = 'u8[1024]{0}', space=vmem, size = 0x400, scoped, tag = 'output window, operand 0, single buffered']
    #allocation3 [shape = 's32[1]{0}', space=sflag, size = 0x4, scoped, tag = 'scoped memory for forward.5']
    %21 = vsyncpa [#allocation3], 0
    // Predicated region
    $region2: #{forward.5} parent=1 // pred_check
      _
    $region3: #{forward.5} parent=1 // pred_check_branch
      %23 = sbr.rel (0) target = $region5
    $region4: #{forward.5} parent=1 // pred_region
      _
    $region5: #{forward.5} parent=1 // pred_fallthru
      _
    // Predicated region
    $region6: #{forward.5} parent=1 // pred_check
      _
    $region7: #{forward.5} parent=1 // pred_check_branch
      %25 = sbr.rel (0) target = $region9
    $region8: #{forward.5} parent=1 // pred_region
      _
    $region9: #{forward.5} parent=1 // pred_fallthru
      _
    // Predicated region
    $region10: #{forward.5} parent=1 // pred_check
      _
    $region11: #{forward.5} parent=1 // pred_check_branch
      %27 = sbr.rel (0) target = $region13
    $region12: #{forward.5} parent=1 // pred_region
      _
    $region13: #{forward.5} parent=1 // pred_fallthru
      _
    // Predicated region
    $region14: #{forward.5} parent=1 // pred_check
      _
    $region15: #{forward.5} parent=1 // pred_check_branch
      %29 = sbr.rel (0) target = $region17
    $region16: #{forward.5} parent=1 // pred_region
      _
    $region17: #{forward.5} parent=1 // pred_fallthru
      _
    // Predicated region
    $region18: #{forward.5} parent=1 // pred_check
      _
    $region19: #{forward.5} parent=1 // pred_check_branch
      %31 = sbr.rel (0) target = $region21
    $region20: #{forward.5} parent=1 // pred_region
      _
    $region21: #{forward.5} parent=1 // pred_fallthru
      _
    // Predicated region
    $region22: #{forward.5} parent=1 // pred_check
      _
    $region23: #{forward.5} parent=1 // pred_check_branch
      %33 = sbr.rel (0) target = $region25
    $region24: #{forward.5} parent=1 // pred_region
      _
    $region25: #{forward.5} parent=1 // pred_fallthru
      _
    // Predicated region
    $region26: #{forward.5} parent=1 // pred_check
      _
    $region27: #{forward.5} parent=1 // pred_check_branch
      %35 = sbr.rel (0) target = $region29
    $region28: #{forward.5} parent=1 // pred_region
      _
    $region29: #{forward.5} parent=1 // pred_fallthru
      _
    // Predicated region
    $region30: #{forward.5} parent=1 // pred_check
      _
    $region31: #{forward.5} parent=1 // pred_check_branch
      %37 = sbr.rel (0) target = $region33
    $region32: #{forward.5} parent=1 // pred_region
      _
    $region33: #{forward.5} parent=1 // pred_fallthru
      _
    // Predicated region
    $region34: #{forward.5} parent=1 // pred_check
      _
    $region35: #{forward.5} parent=1 // pred_check_branch
      %39 = sbr.rel (0) target = $region37
    $region36: #{forward.5} parent=1 // pred_region
      _
    $region37: #{forward.5} parent=1 // pred_fallthru
      _
    // Predicated region
    $region38: #{forward.5} parent=1 // pred_check
      _
    $region39: #{forward.5} parent=1 // pred_check_branch
      %41 = sbr.rel (0) target = $region41
    $region40: #{forward.5} parent=1 // pred_region
      _
    $region41: #{forward.5} parent=1 // pred_fallthru
      _
    // Predicated region
    $region42: #{forward.5} parent=1 // pred_check
      _
    $region43: #{forward.5} parent=1 // pred_check_branch
      %43 = sbr.rel (0) target = $region45
    $region44: #{forward.5} parent=1 // pred_region
      _
    $region45: #{forward.5} parent=1 // pred_fallthru
      _
    // Predicated region
    $region46: #{forward.5} parent=1 // pred_check
      _
    $region47: #{forward.5} parent=1 // pred_check_branch
      %45 = sbr.rel (0) target = $region49
    $region48: #{forward.5} parent=1 // pred_region
      _
    $region49: #{forward.5} parent=1 // pred_fallthru
      _
    // Predicated region
    $region50: #{forward.5} parent=1 // pred_check
      _
    $region51: #{forward.5} parent=1 // pred_check_branch
      %47 = sbr.rel (0) target = $region53
    $region52: #{forward.5} parent=1 // pred_region
      _
    $region53: #{forward.5} parent=1 // pred_fallthru
      _
    // Predicated region
    $region54: #{forward.5} parent=1 // pred_check
      _
    $region55: #{forward.5} parent=1 // pred_check_branch
      %49 = sbr.rel (0) target = $region57
    $region56: #{forward.5} parent=1 // pred_region
      _
    $region57: #{forward.5} parent=1 // pred_fallthru
      _
    // Predicated region
    $region58: #{forward.5} parent=1 // pred_check
      _
    $region59: #{forward.5} parent=1 // pred_check_branch
      %51 = sbr.rel (0) target = $region61
    $region60: #{forward.5} parent=1 // pred_region
      _
    $region61: #{forward.5} parent=1 // pred_fallthru
      _
    // Predicated region
    $region62: #{forward.5} parent=1 // pred_check
      _
    $region63: #{forward.5} parent=1 // pred_check_branch
      %53 = sbr.rel (0) target = $region65
    $region64: #{forward.5} parent=1 // pred_region
      _
    $region65: #{forward.5} parent=1 // pred_fallthru
      _
    %v55 = vld [vmem:[%s4] sm:$0xff]
    %v56 = vld [vmem:[%s4 + $0x8] sm:$0xf]
    %v57 = vld [vmem:[%s4 + $0xc] sm:$0xff]
    %v58 = vld [vmem:[%s4 + $0x14] sm:$0xf]
    %v59 = vld [vmem:[%s4 + $0x18] sm:$0xff]
    %v60 = vld [vmem:[%s4 + $0x20] sm:$0xf]
    %v61 = vld [vmem:[%s4 + $0x24] sm:$0xff]
    %v62 = vld [vmem:[%s4 + $0x2c] sm:$0xf]
    %v63 = vld [vmem:[%s4 + $0x30] sm:$0xff]
    %v64 = vld [vmem:[%s4 + $0x38] sm:$0xf]
    %v65 = vld [vmem:[%s4 + $0x3c] sm:$0xff]
    %v66 = vld [vmem:[%s4 + $0x44] sm:$0xf]
    %v67 = vld [vmem:[%s4 + $0x48] sm:$0xff]
    %v68 = vld [vmem:[%s4 + $0x50] sm:$0xf]
    %v69 = vld [vmem:[%s4 + $0x54] sm:$0xff]
    %v70 = vld [vmem:[%s4 + $0x5c] sm:$0xf]
    %v71 = vld [vmem:[%s4 + $0x60] sm:$0xff]
    %v72 = vld [vmem:[%s4 + $0x68] sm:$0xf]
    %v73 = vld [vmem:[%s4 + $0x6c] sm:$0xff]
    %v74 = vld [vmem:[%s4 + $0x74] sm:$0xf]
    %v75 = vld [vmem:[%s4 + $0x78] sm:$0xff]
    %v76 = vld [vmem:[%s4 + $0x80] sm:$0xf]
    %v77 = vld [vmem:[%s4 + $0x84] sm:$0xff]
    %v78 = vld [vmem:[%s4 + $0x8c] sm:$0xf]
    %v79 = vld [vmem:[%s4 + $0x90] sm:$0xff]
    %v80 = vld [vmem:[%s4 + $0x98] sm:$0xf]
    %v81 = vld [vmem:[%s4 + $0x9c] sm:$0xff]
    %v82 = vld [vmem:[%s4 + $0xa4] sm:$0xf]
    %v83 = vld [vmem:[%s4 + $0xa8] sm:$0xff]
    %v84 = vld [vmem:[%s4 + $0xb0] sm:$0xf]
    %v85 = vld [vmem:[%s4 + $0xb4] sm:$0xff]
    %v86 = vld [vmem:[%s4 + $0xbc] sm:$0xf]
    %v87 = vld [vmem:[%s4 + $0xc0] sm:$0xff]
    %v88 = vld [vmem:[%s4 + $0xc8] sm:$0xf]
    %v89 = vld [vmem:[%s4 + $0xcc] sm:$0xff]
    %v90 = vld [vmem:[%s4 + $0xd4] sm:$0xf]
    %v91 = vld [vmem:[%s4 + $0xd8] sm:$0xff]
    %v92 = vld [vmem:[%s4 + $0xe0] sm:$0xf]
    %v93 = vld [vmem:[%s4 + $0xe4] sm:$0xff]
    %v94 = vld [vmem:[%s4 + $0xec] sm:$0xf]
    %v95 = vld [vmem:[%s4 + $0xf0] sm:$0xff]
    %v96 = vld [vmem:[%s4 + $0xf8] sm:$0xf]
    %v97 = vld [vmem:[%s4 + $0xfc] sm:$0xff]
    %v98 = vld [vmem:[%s4 + $0x104] sm:$0xf]
    %v99 = vld [vmem:[%s4 + $0x108] sm:$0xff]
    %v100 = vld [vmem:[%s4 + $0x110] sm:$0xf]
    %v101 = vld [vmem:[%s4 + $0x114] sm:$0xff]
    %v102 = vld [vmem:[%s4 + $0x11c] sm:$0xf]
    %v103 = vld [vmem:[%s4 + $0x120] sm:$0xff]
    %v104 = vld [vmem:[%s4 + $0x128] sm:$0xf]
    %v105 = vld [vmem:[%s4 + $0x12c] sm:$0xff]
    %v106 = vld [vmem:[%s4 + $0x134] sm:$0xf]
    %v107 = vld [vmem:[%s4 + $0x138] sm:$0xff]
    %v108 = vld [vmem:[%s4 + $0x140] sm:$0xf]
    %v109 = vld [vmem:[%s4 + $0x144] sm:$0xff]
    %v110 = vld [vmem:[%s4 + $0x14c] sm:$0xf]
    %v111 = vld [vmem:[%s4 + $0x150] sm:$0xff]
    %v112 = vld [vmem:[%s4 + $0x158] sm:$0xf]
    %v113 = vld [vmem:[%s4 + $0x15c] sm:$0xff]
    %v114 = vld [vmem:[%s4 + $0x164] sm:$0xf]
    %v115 = vld [vmem:[%s4 + $0x168] sm:$0xff]
    %v116 = vld [vmem:[%s4 + $0x170] sm:$0xf]
    %v117 = vld [vmem:[%s4 + $0x174] sm:$0xff]
    %v118 = vld [vmem:[%s4 + $0x17c] sm:$0xf]
    %v119 = vld [vmem:[%s4 + $0x180] sm:$0xff]
    %v120 = vld [vmem:[%s4 + $0x188] sm:$0xf]
    %v121 = vld [vmem:[%s4 + $0x18c] sm:$0xff]
    %v122 = vld [vmem:[%s4 + $0x194] sm:$0xf]
    %v123 = vld [vmem:[%s4 + $0x198] sm:$0xff]
    %v124 = vld [vmem:[%s4 + $0x1a0] sm:$0xf]
    %v125 = vld [vmem:[%s4 + $0x1a4] sm:$0xff]
    %v126 = vld [vmem:[%s4 + $0x1ac] sm:$0xf]
    %v127 = vld [vmem:[%s4 + $0x1b0] sm:$0xff]
    %v128 = vld [vmem:[%s4 + $0x1b8] sm:$0xf]
    %v129 = vld [vmem:[%s4 + $0x1bc] sm:$0xff]
    %v130 = vld [vmem:[%s4 + $0x1c4] sm:$0xf]
    %v131 = vld [vmem:[%s4 + $0x1c8] sm:$0xff]
    %v132 = vld [vmem:[%s4 + $0x1d0] sm:$0xf]
    %v133 = vld [vmem:[%s4 + $0x1d4] sm:$0xff]
    %v134 = vld [vmem:[%s4 + $0x1dc] sm:$0xf]
    %v135 = vld [vmem:[%s4 + $0x1e0] sm:$0xff]
    %v136 = vld [vmem:[%s4 + $0x1e8] sm:$0xf]
    %v137 = vld [vmem:[%s4 + $0x1ec] sm:$0xff]
    %v138 = vld [vmem:[%s4 + $0x1f4] sm:$0xf]
    %v139 = vld [vmem:[%s4 + $0x1f8] sm:$0xff]
    %v140 = vld [vmem:[%s4 + $0x200] sm:$0xf]
    %v141 = vld [vmem:[%s4 + $0x204] sm:$0xff]
    %v142 = vld [vmem:[%s4 + $0x20c] sm:$0xf]
    %v143 = vld [vmem:[%s4 + $0x210] sm:$0xff]
    %v144 = vld [vmem:[%s4 + $0x218] sm:$0xf]
    %v145 = vld [vmem:[%s4 + $0x21c] sm:$0xff]
    %v146 = vld [vmem:[%s4 + $0x224] sm:$0xf]
    %v147 = vld [vmem:[%s4 + $0x228] sm:$0xff]
    %v148 = vld [vmem:[%s4 + $0x230] sm:$0xf]
    %v149 = vld [vmem:[%s4 + $0x234] sm:$0xff]
    %v150 = vld [vmem:[%s4 + $0x23c] sm:$0xf]
    %v151 = vld [vmem:[%s4 + $0x240] sm:$0xff]
    %v152 = vld [vmem:[%s4 + $0x248] sm:$0xf]
    %v153 = vld [vmem:[%s4 + $0x24c] sm:$0xff]
    %v154 = vld [vmem:[%s4 + $0x254] sm:$0xf]
    %v155 = vld [vmem:[%s4 + $0x258] sm:$0xff]
    %v156 = vld [vmem:[%s4 + $0x260] sm:$0xf]
    %v157 = vld [vmem:[%s4 + $0x264] sm:$0xff]
    %v158 = vld [vmem:[%s4 + $0x26c] sm:$0xf]
    %v159 = vld [vmem:[%s4 + $0x270] sm:$0xff]
    %v160 = vld [vmem:[%s4 + $0x278] sm:$0xf]
    %v161 = vld [vmem:[%s4 + $0x27c] sm:$0xff]
    %v162 = vld [vmem:[%s4 + $0x284] sm:$0xf]
    %v163 = vld [vmem:[%s4 + $0x288] sm:$0xff]
    %v164 = vld [vmem:[%s4 + $0x290] sm:$0xf]
    %v165 = vld [vmem:[%s4 + $0x294] sm:$0xff]
    %v166 = vld [vmem:[%s4 + $0x29c] sm:$0xf]
    %v167 = vld [vmem:[%s4 + $0x2a0] sm:$0xff]
    %v168 = vld [vmem:[%s4 + $0x2a8] sm:$0xf]
    %v169 = vld [vmem:[%s4 + $0x2ac] sm:$0xff]
    %v170 = vld [vmem:[%s4 + $0x2b4] sm:$0xf]
    %v171 = vld [vmem:[%s4 + $0x2b8] sm:$0xff]
    %v172 = vld [vmem:[%s4 + $0x2c0] sm:$0xf]
    %v173 = vld [vmem:[%s4 + $0x2c4] sm:$0xff]
    %v174 = vld [vmem:[%s4 + $0x2cc] sm:$0xf]
    %v175 = vld [vmem:[%s4 + $0x2d0] sm:$0xff]
    %v176 = vld [vmem:[%s4 + $0x2d8] sm:$0xf]
    %v177 = vld [vmem:[%s4 + $0x2dc] sm:$0xff]
    %v178 = vld [vmem:[%s4 + $0x2e4] sm:$0xf]
    %v179 = vld [vmem:[%s4 + $0x2e8] sm:$0xff]
    %v180 = vld [vmem:[%s4 + $0x2f0] sm:$0xf]
    %v181 = vld [vmem:[%s4 + $0x2f4] sm:$0xff]
    %v182 = vld [vmem:[%s4 + $0x2fc] sm:$0xf]
    %v183 = vld [vmem:[%s4 + $0x300] sm:$0xff]
    %v184 = vld [vmem:[%s4 + $0x308] sm:$0xf]
    %v185 = vld [vmem:[%s4 + $0x30c] sm:$0xff]
    %v186 = vld [vmem:[%s4 + $0x314] sm:$0xf]
    %v187 = vld [vmem:[%s4 + $0x318] sm:$0xff]
    %v188 = vld [vmem:[%s4 + $0x320] sm:$0xf]
    %v189 = vld [vmem:[%s4 + $0x324] sm:$0xff]
    %v190 = vld [vmem:[%s4 + $0x32c] sm:$0xf]
    %v191 = vld [vmem:[%s4 + $0x330] sm:$0xff]
    %v192 = vld [vmem:[%s4 + $0x338] sm:$0xf]
    %v193 = vld [vmem:[%s4 + $0x33c] sm:$0xff]
    %v194 = vld [vmem:[%s4 + $0x344] sm:$0xf]
    %v195 = vld [vmem:[%s4 + $0x348] sm:$0xff]
    %v196 = vld [vmem:[%s4 + $0x350] sm:$0xf]
    %v197 = vld [vmem:[%s4 + $0x354] sm:$0xff]
    %v198 = vld [vmem:[%s4 + $0x35c] sm:$0xf]
    %v199 = vld [vmem:[%s4 + $0x360] sm:$0xff]
    %v200 = vld [vmem:[%s4 + $0x368] sm:$0xf]
    %v201 = vld [vmem:[%s4 + $0x36c] sm:$0xff]
    %v202 = vld [vmem:[%s4 + $0x374] sm:$0xf]
    %v203 = vld [vmem:[%s4 + $0x378] sm:$0xff]
    %v204 = vld [vmem:[%s4 + $0x380] sm:$0xf]
    %v205 = vld [vmem:[%s4 + $0x384] sm:$0xff]
    %v206 = vld [vmem:[%s4 + $0x38c] sm:$0xf]
    %v207 = vld [vmem:[%s4 + $0x390] sm:$0xff]
    %v208 = vld [vmem:[%s4 + $0x398] sm:$0xf]
    %v209 = vld [vmem:[%s4 + $0x39c] sm:$0xff]
    %v210 = vld [vmem:[%s4 + $0x3a4] sm:$0xf]
    %v211 = vld [vmem:[%s4 + $0x3a8] sm:$0xff]
    %v212 = vld [vmem:[%s4 + $0x3b0] sm:$0xf]
    %v213 = vld [vmem:[%s4 + $0x3b4] sm:$0xff]
    %v214 = vld [vmem:[%s4 + $0x3bc] sm:$0xf]
    %v215 = vld [vmem:[%s4 + $0x3c0] sm:$0xff]
    %v216 = vld [vmem:[%s4 + $0x3c8] sm:$0xf]
    %v217 = vld [vmem:[%s4 + $0x3cc] sm:$0xff]
    %v218 = vld [vmem:[%s4 + $0x3d4] sm:$0xf]
    %v219 = vld [vmem:[%s4 + $0x3d8] sm:$0xff]
    %v220 = vld [vmem:[%s4 + $0x3e0] sm:$0xf]
    %v221 = vld [vmem:[%s4 + $0x3e4] sm:$0xff]
    %v222 = vld [vmem:[%s4 + $0x3ec] sm:$0xf]
    %v223 = vld [vmem:[%s4 + $0x3f0] sm:$0xff]
    %v224 = vld [vmem:[%s4 + $0x3f8] sm:$0xf]
    %v225 = vld [vmem:[%s4 + $0x3fc] sm:$0xff]
    %v226 = vld [vmem:[%s4 + $0x404] sm:$0xf]
    %v227 = vld [vmem:[%s4 + $0x408] sm:$0xff]
    %v228 = vld [vmem:[%s4 + $0x410] sm:$0xf]
    %v229 = vld [vmem:[%s4 + $0x414] sm:$0xff]
    %v230 = vld [vmem:[%s4 + $0x41c] sm:$0xf]
    %v231 = vld [vmem:[%s4 + $0x420] sm:$0xff]
    %v232 = vld [vmem:[%s4 + $0x428] sm:$0xf]
    %v233 = vld [vmem:[%s4 + $0x42c] sm:$0xff]
    %v234 = vld [vmem:[%s4 + $0x434] sm:$0xf]
    %v235 = vld [vmem:[%s0] sm:$0xff]
    %v236 = vld [vmem:[%s0 + $0x8] sm:$0xff]
    %v237 = vld [vmem:[%s0 + $0x10] sm:$0xff]
    %v241 = vunpack.c.l.b16 %v235
    %v242 = vunpack.c.h.b16 %v235
    %v243 = vunpack.c.l.b16 %v236
    %v244 = vunpack.c.h.b16 %v236
    %v245 = vunpack.c.l.b16 %v237
    %v246 = vunpack.c.h.b16 %v237
    %v247 = vpack.c.b16 %v241, %v241
    %v248 = vpack.c.b16 %v242, %v242
    %v249 = vpack.c.b16 %v243, %v243
    %v250 = vpack.c.b16 %v244, %v244
    %v251 = vpack.c.b16 %v245, %v245
    %v252 = vpack.c.b16 %v246, %v246
    %v438 = vunpack.c.l.b16 %v55
    %v439 = vunpack.c.h.b16 %v55
    %v440 = vunpack.c.l.b16 %v56
    %v441 = vunpack.c.l.b16 %v57
    %v442 = vunpack.c.h.b16 %v57
    %v443 = vunpack.c.l.b16 %v58
    %v444 = vunpack.c.l.b16 %v59
    %v445 = vunpack.c.h.b16 %v59
    %v446 = vunpack.c.l.b16 %v60
    %v447 = vunpack.c.l.b16 %v61
    %v448 = vunpack.c.h.b16 %v61
    %v449 = vunpack.c.l.b16 %v62
    %v450 = vunpack.c.l.b16 %v63
    %v451 = vunpack.c.h.b16 %v63
    %v452 = vunpack.c.l.b16 %v64
    %v453 = vunpack.c.l.b16 %v65
    %v454 = vunpack.c.h.b16 %v65
    %v455 = vunpack.c.l.b16 %v66
    %v456 = vunpack.c.l.b16 %v67
    %v457 = vunpack.c.h.b16 %v67
    %v458 = vunpack.c.l.b16 %v68
    %v459 = vunpack.c.l.b16 %v69
    %v460 = vunpack.c.h.b16 %v69
    %v461 = vunpack.c.l.b16 %v70
    %v462 = vunpack.c.l.b16 %v71
    %v463 = vunpack.c.h.b16 %v71
    %v464 = vunpack.c.l.b16 %v72
    %v465 = vunpack.c.l.b16 %v73
    %v466 = vunpack.c.h.b16 %v73
    %v467 = vunpack.c.l.b16 %v74
    %v468 = vunpack.c.l.b16 %v75
    %v469 = vunpack.c.h.b16 %v75
    %v470 = vunpack.c.l.b16 %v76
    %v471 = vunpack.c.l.b16 %v77
    %v472 = vunpack.c.h.b16 %v77
    %v473 = vunpack.c.l.b16 %v78
    %v474 = vunpack.c.l.b16 %v79
    %v475 = vunpack.c.h.b16 %v79
    %v476 = vunpack.c.l.b16 %v80
    %v477 = vunpack.c.l.b16 %v81
    %v478 = vunpack.c.h.b16 %v81
    %v479 = vunpack.c.l.b16 %v82
    %v480 = vunpack.c.l.b16 %v83
    %v481 = vunpack.c.h.b16 %v83
    %v482 = vunpack.c.l.b16 %v84
    %v483 = vunpack.c.l.b16 %v85
    %v484 = vunpack.c.h.b16 %v85
    %v485 = vunpack.c.l.b16 %v86
    %v486 = vunpack.c.l.b16 %v87
    %v487 = vunpack.c.h.b16 %v87
    %v488 = vunpack.c.l.b16 %v88
    %v489 = vunpack.c.l.b16 %v89
    %v490 = vunpack.c.h.b16 %v89
    %v491 = vunpack.c.l.b16 %v90
    %v492 = vunpack.c.l.b16 %v91
    %v493 = vunpack.c.h.b16 %v91
    %v494 = vunpack.c.l.b16 %v92
    %v495 = vunpack.c.l.b16 %v93
    %v496 = vunpack.c.h.b16 %v93
    %v497 = vunpack.c.l.b16 %v94
    %v498 = vunpack.c.l.b16 %v95
    %v499 = vunpack.c.h.b16 %v95
    %v500 = vunpack.c.l.b16 %v96
    %v501 = vunpack.c.l.b16 %v97
    %v502 = vunpack.c.h.b16 %v97
    %v503 = vunpack.c.l.b16 %v98
    %v504 = vunpack.c.l.b16 %v99
    %v505 = vunpack.c.h.b16 %v99
    %v506 = vunpack.c.l.b16 %v100
    %v507 = vunpack.c.l.b16 %v101
    %v508 = vunpack.c.h.b16 %v101
    %v509 = vunpack.c.l.b16 %v102
    %v510 = vunpack.c.l.b16 %v103
    %v511 = vunpack.c.h.b16 %v103
    %v512 = vunpack.c.l.b16 %v104
    %v513 = vunpack.c.l.b16 %v105
    %v514 = vunpack.c.h.b16 %v105
    %v515 = vunpack.c.l.b16 %v106
    %v516 = vunpack.c.l.b16 %v107
    %v517 = vunpack.c.h.b16 %v107
    %v518 = vunpack.c.l.b16 %v108
    %v519 = vunpack.c.l.b16 %v109
    %v520 = vunpack.c.h.b16 %v109
    %v521 = vunpack.c.l.b16 %v110
    %v522 = vunpack.c.l.b16 %v111
    %v523 = vunpack.c.h.b16 %v111
    %v524 = vunpack.c.l.b16 %v112
    %v525 = vunpack.c.l.b16 %v113
    %v526 = vunpack.c.h.b16 %v113
    %v527 = vunpack.c.l.b16 %v114
    %v528 = vunpack.c.l.b16 %v115
    %v529 = vunpack.c.h.b16 %v115
    %v530 = vunpack.c.l.b16 %v116
    %v531 = vunpack.c.l.b16 %v117
    %v532 = vunpack.c.h.b16 %v117
    %v533 = vunpack.c.l.b16 %v118
    %v534 = vunpack.c.l.b16 %v119
    %v535 = vunpack.c.h.b16 %v119
    %v536 = vunpack.c.l.b16 %v120
    %v537 = vunpack.c.l.b16 %v121
    %v538 = vunpack.c.h.b16 %v121
    %v539 = vunpack.c.l.b16 %v122
    %v540 = vunpack.c.l.b16 %v123
    %v541 = vunpack.c.h.b16 %v123
    %v542 = vunpack.c.l.b16 %v124
    %v543 = vunpack.c.l.b16 %v125
    %v544 = vunpack.c.h.b16 %v125
    %v545 = vunpack.c.l.b16 %v126
    %v546 = vunpack.c.l.b16 %v127
    %v547 = vunpack.c.h.b16 %v127
    %v548 = vunpack.c.l.b16 %v128
    %v549 = vunpack.c.l.b16 %v129
    %v550 = vunpack.c.h.b16 %v129
    %v551 = vunpack.c.l.b16 %v130
    %v552 = vunpack.c.l.b16 %v131
    %v553 = vunpack.c.h.b16 %v131
    %v554 = vunpack.c.l.b16 %v132
    %v555 = vunpack.c.l.b16 %v133
    %v556 = vunpack.c.h.b16 %v133
    %v557 = vunpack.c.l.b16 %v134
    %v558 = vunpack.c.l.b16 %v135
    %v559 = vunpack.c.h.b16 %v135
    %v560 = vunpack.c.l.b16 %v136
    %v561 = vunpack.c.l.b16 %v137
    %v562 = vunpack.c.h.b16 %v137
    %v563 = vunpack.c.l.b16 %v138
    %v564 = vunpack.c.l.b16 %v139
    %v565 = vunpack.c.h.b16 %v139
    %v566 = vunpack.c.l.b16 %v140
    %v567 = vunpack.c.l.b16 %v141
    %v568 = vunpack.c.h.b16 %v141
    %v569 = vunpack.c.l.b16 %v142
    %v570 = vunpack.c.l.b16 %v143
    %v571 = vunpack.c.h.b16 %v143
    %v572 = vunpack.c.l.b16 %v144
    %v573 = vunpack.c.l.b16 %v145
    %v574 = vunpack.c.h.b16 %v145
    %v575 = vunpack.c.l.b16 %v146
    %v576 = vunpack.c.l.b16 %v147
    %v577 = vunpack.c.h.b16 %v147
    %v578 = vunpack.c.l.b16 %v148
    %v579 = vunpack.c.l.b16 %v149
    %v580 = vunpack.c.h.b16 %v149
    %v581 = vunpack.c.l.b16 %v150
    %v582 = vunpack.c.l.b16 %v151
    %v583 = vunpack.c.h.b16 %v151
    %v584 = vunpack.c.l.b16 %v152
    %v585 = vunpack.c.l.b16 %v153
    %v586 = vunpack.c.h.b16 %v153
    %v587 = vunpack.c.l.b16 %v154
    %v588 = vunpack.c.l.b16 %v155
    %v589 = vunpack.c.h.b16 %v155
    %v590 = vunpack.c.l.b16 %v156
    %v591 = vunpack.c.l.b16 %v157
    %v592 = vunpack.c.h.b16 %v157
    %v593 = vunpack.c.l.b16 %v158
    %v594 = vunpack.c.l.b16 %v159
    %v595 = vunpack.c.h.b16 %v159
    %v596 = vunpack.c.l.b16 %v160
    %v597 = vunpack.c.l.b16 %v161
    %v598 = vunpack.c.h.b16 %v161
    %v599 = vunpack.c.l.b16 %v162
    %v600 = vunpack.c.l.b16 %v163
    %v601 = vunpack.c.h.b16 %v163
    %v602 = vunpack.c.l.b16 %v164
    %v603 = vunpack.c.l.b16 %v165
    %v604 = vunpack.c.h.b16 %v165
    %v605 = vunpack.c.l.b16 %v166
    %v606 = vunpack.c.l.b16 %v167
    %v607 = vunpack.c.h.b16 %v167
    %v608 = vunpack.c.l.b16 %v168
    %v609 = vunpack.c.l.b16 %v169
    %v610 = vunpack.c.h.b16 %v169
    %v611 = vunpack.c.l.b16 %v170
    %v612 = vunpack.c.l.b16 %v171
    %v613 = vunpack.c.h.b16 %v171
    %v614 = vunpack.c.l.b16 %v172
    %v615 = vunpack.c.l.b16 %v173
    %v616 = vunpack.c.h.b16 %v173
    %v617 = vunpack.c.l.b16 %v174
    %v618 = vunpack.c.l.b16 %v175
    %v619 = vunpack.c.h.b16 %v175
    %v620 = vunpack.c.l.b16 %v176
    %v621 = vunpack.c.l.b16 %v177
    %v622 = vunpack.c.h.b16 %v177
    %v623 = vunpack.c.l.b16 %v178
    %v624 = vunpack.c.l.b16 %v179
    %v625 = vunpack.c.h.b16 %v179
    %v626 = vunpack.c.l.b16 %v180
    %v627 = vunpack.c.l.b16 %v181
    %v628 = vunpack.c.h.b16 %v181
    %v629 = vunpack.c.l.b16 %v182
    %v630 = vunpack.c.l.b16 %v183
    %v631 = vunpack.c.h.b16 %v183
    %v632 = vunpack.c.l.b16 %v184
    %v633 = vunpack.c.l.b16 %v185
    %v634 = vunpack.c.h.b16 %v185
    %v635 = vunpack.c.l.b16 %v186
    %v636 = vunpack.c.l.b16 %v187
    %v637 = vunpack.c.h.b16 %v187
    %v638 = vunpack.c.l.b16 %v188
    %v639 = vunpack.c.l.b16 %v189
    %v640 = vunpack.c.h.b16 %v189
    %v641 = vunpack.c.l.b16 %v190
    %v642 = vunpack.c.l.b16 %v191
    %v643 = vunpack.c.h.b16 %v191
    %v644 = vunpack.c.l.b16 %v192
    %v645 = vunpack.c.l.b16 %v193
    %v646 = vunpack.c.h.b16 %v193
    %v647 = vunpack.c.l.b16 %v194
    %v648 = vunpack.c.l.b16 %v195
    %v649 = vunpack.c.h.b16 %v195
    %v650 = vunpack.c.l.b16 %v196
    %v651 = vunpack.c.l.b16 %v197
    %v652 = vunpack.c.h.b16 %v197
    %v653 = vunpack.c.l.b16 %v198
    %v654 = vunpack.c.l.b16 %v199
    %v655 = vunpack.c.h.b16 %v199
    %v656 = vunpack.c.l.b16 %v200
    %v657 = vunpack.c.l.b16 %v201
    %v658 = vunpack.c.h.b16 %v201
    %v659 = vunpack.c.l.b16 %v202
    %v660 = vunpack.c.l.b16 %v203
    %v661 = vunpack.c.h.b16 %v203
    %v662 = vunpack.c.l.b16 %v204
    %v663 = vunpack.c.l.b16 %v205
    %v664 = vunpack.c.h.b16 %v205
    %v665 = vunpack.c.l.b16 %v206
    %v666 = vunpack.c.l.b16 %v207
    %v667 = vunpack.c.h.b16 %v207
    %v668 = vunpack.c.l.b16 %v208
    %v669 = vunpack.c.l.b16 %v209
    %v670 = vunpack.c.h.b16 %v209
    %v671 = vunpack.c.l.b16 %v210
    %v672 = vunpack.c.l.b16 %v211
    %v673 = vunpack.c.h.b16 %v211
    %v674 = vunpack.c.l.b16 %v212
    %v675 = vunpack.c.l.b16 %v213
    %v676 = vunpack.c.h.b16 %v213
    %v677 = vunpack.c.l.b16 %v214
    %v678 = vunpack.c.l.b16 %v215
    %v679 = vunpack.c.h.b16 %v215
    %v680 = vunpack.c.l.b16 %v216
    %v681 = vunpack.c.l.b16 %v217
    %v682 = vunpack.c.h.b16 %v217
    %v683 = vunpack.c.l.b16 %v218
    %v684 = vunpack.c.l.b16 %v219
    %v685 = vunpack.c.h.b16 %v219
    %v686 = vunpack.c.l.b16 %v220
    %v687 = vunpack.c.l.b16 %v221
    %v688 = vunpack.c.h.b16 %v221
    %v689 = vunpack.c.l.b16 %v222
    %v690 = vunpack.c.l.b16 %v223
    %v691 = vunpack.c.h.b16 %v223
    %v692 = vunpack.c.l.b16 %v224
    %v693 = vunpack.c.l.b16 %v225
    %v694 = vunpack.c.h.b16 %v225
    %v695 = vunpack.c.l.b16 %v226
    %v696 = vunpack.c.l.b16 %v227
    %v697 = vunpack.c.h.b16 %v227
    %v698 = vunpack.c.l.b16 %v228
    %v699 = vunpack.c.l.b16 %v229
    %v700 = vunpack.c.h.b16 %v229
    %v701 = vunpack.c.l.b16 %v230
    %v702 = vunpack.c.l.b16 %v231
    %v703 = vunpack.c.h.b16 %v231
    %v704 = vunpack.c.l.b16 %v232
    %v705 = vunpack.c.l.b16 %v233
    %v706 = vunpack.c.h.b16 %v233
    %v707 = vunpack.c.l.b16 %v234
    %v708 = vpack.c.b16 %v441, %v438
    %v709 = vpack.c.b16 %v442, %v439
    %v710 = vpack.c.b16 %v443, %v440
    %v711 = vpack.c.b16 %v447, %v444
    %v712 = vpack.c.b16 %v448, %v445
    %v713 = vpack.c.b16 %v449, %v446
    %v714 = vpack.c.b16 %v453, %v450
    %v715 = vpack.c.b16 %v454, %v451
    %v716 = vpack.c.b16 %v455, %v452
    %v717 = vpack.c.b16 %v459, %v456
    %v718 = vpack.c.b16 %v460, %v457
    %v719 = vpack.c.b16 %v461, %v458
    %v720 = vpack.c.b16 %v465, %v462
    %v721 = vpack.c.b16 %v466, %v463
    %v722 = vpack.c.b16 %v467, %v464
    %v723 = vpack.c.b16 %v471, %v468
    %v724 = vpack.c.b16 %v472, %v469
    %v725 = vpack.c.b16 %v473, %v470
    %v726 = vpack.c.b16 %v477, %v474
    %v727 = vpack.c.b16 %v478, %v475
    %v728 = vpack.c.b16 %v479, %v476
    %v729 = vpack.c.b16 %v483, %v480
    %v730 = vpack.c.b16 %v484, %v481
    %v731 = vpack.c.b16 %v485, %v482
    %v732 = vpack.c.b16 %v489, %v486
    %v733 = vpack.c.b16 %v490, %v487
    %v734 = vpack.c.b16 %v491, %v488
    %v735 = vpack.c.b16 %v495, %v492
    %v736 = vpack.c.b16 %v496, %v493
    %v737 = vpack.c.b16 %v497, %v494
    %v738 = vpack.c.b16 %v501, %v498
    %v739 = vpack.c.b16 %v502, %v499
    %v740 = vpack.c.b16 %v503, %v500
    %v741 = vpack.c.b16 %v507, %v504
    %v742 = vpack.c.b16 %v508, %v505
    %v743 = vpack.c.b16 %v509, %v506
    %v744 = vpack.c.b16 %v513, %v510
    %v745 = vpack.c.b16 %v514, %v511
    %v746 = vpack.c.b16 %v515, %v512
    %v747 = vpack.c.b16 %v519, %v516
    %v748 = vpack.c.b16 %v520, %v517
    %v749 = vpack.c.b16 %v521, %v518
    %v750 = vpack.c.b16 %v525, %v522
    %v751 = vpack.c.b16 %v526, %v523
    %v752 = vpack.c.b16 %v527, %v524
    %v753 = vpack.c.b16 %v531, %v528
    %v754 = vpack.c.b16 %v532, %v529
    %v755 = vpack.c.b16 %v533, %v530
    %v756 = vpack.c.b16 %v537, %v534
    %v757 = vpack.c.b16 %v538, %v535
    %v758 = vpack.c.b16 %v539, %v536
    %v759 = vpack.c.b16 %v543, %v540
    %v760 = vpack.c.b16 %v544, %v541
    %v761 = vpack.c.b16 %v545, %v542
    %v762 = vpack.c.b16 %v549, %v546
    %v763 = vpack.c.b16 %v550, %v547
    %v764 = vpack.c.b16 %v551, %v548
    %v765 = vpack.c.b16 %v555, %v552
    %v766 = vpack.c.b16 %v556, %v553
    %v767 = vpack.c.b16 %v557, %v554
    %v768 = vpack.c.b16 %v561, %v558
    %v769 = vpack.c.b16 %v562, %v559
    %v770 = vpack.c.b16 %v563, %v560
    %v771 = vpack.c.b16 %v567, %v564
    %v772 = vpack.c.b16 %v568, %v565
    %v773 = vpack.c.b16 %v569, %v566
    %v774 = vpack.c.b16 %v573, %v570
    %v775 = vpack.c.b16 %v574, %v571
    %v776 = vpack.c.b16 %v575, %v572
    %v777 = vpack.c.b16 %v579, %v576
    %v778 = vpack.c.b16 %v580, %v577
    %v779 = vpack.c.b16 %v581, %v578
    %v780 = vpack.c.b16 %v585, %v582
    %v781 = vpack.c.b16 %v586, %v583
    %v782 = vpack.c.b16 %v587, %v584
    %v783 = vpack.c.b16 %v591, %v588
    %v784 = vpack.c.b16 %v592, %v589
    %v785 = vpack.c.b16 %v593, %v590
    %v786 = vpack.c.b16 %v597, %v594
    %v787 = vpack.c.b16 %v598, %v595
    %v788 = vpack.c.b16 %v599, %v596
    %v789 = vpack.c.b16 %v603, %v600
    %v790 = vpack.c.b16 %v604, %v601
    %v791 = vpack.c.b16 %v605, %v602
    %v792 = vpack.c.b16 %v609, %v606
    %v793 = vpack.c.b16 %v610, %v607
    %v794 = vpack.c.b16 %v611, %v608
    %v795 = vpack.c.b16 %v615, %v612
    %v796 = vpack.c.b16 %v616, %v613
    %v797 = vpack.c.b16 %v617, %v614
    %v798 = vpack.c.b16 %v621, %v618
    %v799 = vpack.c.b16 %v622, %v619
    %v800 = vpack.c.b16 %v623, %v620
    %v801 = vpack.c.b16 %v627, %v624
    %v802 = vpack.c.b16 %v628, %v625
    %v803 = vpack.c.b16 %v629, %v626
    %v804 = vpack.c.b16 %v633, %v630
    %v805 = vpack.c.b16 %v634, %v631
    %v806 = vpack.c.b16 %v635, %v632
    %v807 = vpack.c.b16 %v639, %v636
    %v808 = vpack.c.b16 %v640, %v637
    %v809 = vpack.c.b16 %v641, %v638
    %v810 = vpack.c.b16 %v645, %v642
    %v811 = vpack.c.b16 %v646, %v643
    %v812 = vpack.c.b16 %v647, %v644
    %v813 = vpack.c.b16 %v651, %v648
    %v814 = vpack.c.b16 %v652, %v649
    %v815 = vpack.c.b16 %v653, %v650
    %v816 = vpack.c.b16 %v657, %v654
    %v817 = vpack.c.b16 %v658, %v655
    %v818 = vpack.c.b16 %v659, %v656
    %v819 = vpack.c.b16 %v663, %v660
    %v820 = vpack.c.b16 %v664, %v661
    %v821 = vpack.c.b16 %v665, %v662
    %v822 = vpack.c.b16 %v669, %v666
    %v823 = vpack.c.b16 %v670, %v667
    %v824 = vpack.c.b16 %v671, %v668
    %v825 = vpack.c.b16 %v675, %v672
    %v826 = vpack.c.b16 %v676, %v673
    %v827 = vpack.c.b16 %v677, %v674
    %v828 = vpack.c.b16 %v681, %v678
    %v829 = vpack.c.b16 %v682, %v679
    %v830 = vpack.c.b16 %v683, %v680
    %v831 = vpack.c.b16 %v687, %v684
    %v832 = vpack.c.b16 %v688, %v685
    %v833 = vpack.c.b16 %v689, %v686
    %v834 = vpack.c.b16 %v693, %v690
    %v835 = vpack.c.b16 %v694, %v691
    %v836 = vpack.c.b16 %v695, %v692
    %v837 = vpack.c.b16 %v699, %v696
    %v838 = vpack.c.b16 %v700, %v697
    %v839 = vpack.c.b16 %v701, %v698
    %v840 = vpack.c.b16 %v705, %v702
    %v841 = vpack.c.b16 %v706, %v703
    %v842 = vpack.c.b16 %v707, %v704
    %vm978 = vcmask 654336
    %v980 = vsel %vm978, %v252, 0
    %982 = vmatprep.subr.bf16.mxu0 %v709
    %983 = vmatpush1.bf16.msra.mxu0 %v708
    %984 = vmatprep.subr.bf16.mxu0 %v712
    %985 = vmatpush1.bf16.msra.mxu0 %v711
    %986 = vmatprep.subr.bf16.mxu0 %v715
    %987 = vmatpush1.bf16.msra.mxu0 %v714
    %988 = vmatprep.subr.bf16.mxu0 %v718
    %989 = vmatpush1.bf16.msra.mxu0 %v717
    %990 = vmatprep.subr.bf16.mxu0 %v721
    %991 = vmatpush1.bf16.msra.mxu0 %v720
    %992 = vmatprep.subr.bf16.mxu0 %v724
    %993 = vmatpush1.bf16.msra.mxu0 %v723
    %994 = vmatprep.subr.bf16.mxu0 %v727
    %995 = vmatpush1.bf16.msra.mxu0 %v726
    %996 = vmatprep.subr.bf16.mxu0 %v730
    %997 = vmatpush1.bf16.msra.mxu0 %v729
    %998 = vmatprep.subr.bf16.mxu0 %v733
    %999 = vmatpush1.bf16.msra.mxu0 %v732
    %1000 = vmatprep.subr.bf16.mxu0 %v736
    %1001 = vmatpush1.bf16.msra.mxu0 %v735
    %1002 = vmatprep.subr.bf16.mxu0 %v739
    %1003 = vmatpush1.bf16.msra.mxu0 %v738
    %1004 = vmatprep.subr.bf16.mxu0 %v742
    %1005 = vmatpush1.bf16.msra.mxu0 %v741
    %1006 = vmatprep.subr.bf16.mxu0 %v745
    %1007 = vmatpush1.bf16.msra.mxu0 %v744
    %1008 = vmatprep.subr.bf16.mxu0 %v748
    %1009 = vmatpush1.bf16.msra.mxu0 %v747
    %1010 = vmatprep.subr.bf16.mxu0 %v751
    %1011 = vmatpush1.bf16.msra.mxu0 %v750
    %1012 = vmatprep.subr.bf16.mxu0 %v754
    %1013 = vmatpush1.bf16.msra.mxu0 %v753
    %1014 = vmatprep.mubr.bf16.mxu0 %v248
    %1015 = vmatmul.mubr.bf16.gmra.mrb[0].mxu0 %v247
    %v1016 = vpop.f32.mrb[0].mxu0
    %v1017 = vadd.f32 0.0, %v1016
    %v1018 = vpop.f32.mrb[0].mxu0
    %v1019 = vadd.f32 0.0, %v1018
    %v1020 = vpop.f32.mrb[0].mxu0
    %v1021 = vpop.f32.mrb[0].mxu0
    %1022 = vdwg.mxu0
    %1023 = vmatprep.subr.bf16.mxu0 %v757
    %1024 = vmatpush1.bf16.msra.mxu0 %v756
    %1025 = vmatprep.subr.bf16.mxu0 %v760
    %1026 = vmatpush1.bf16.msra.mxu0 %v759
    %1027 = vmatprep.subr.bf16.mxu0 %v763
    %1028 = vmatpush1.bf16.msra.mxu0 %v762
    %1029 = vmatprep.subr.bf16.mxu0 %v766
    %1030 = vmatpush1.bf16.msra.mxu0 %v765
    %1031 = vmatprep.subr.bf16.mxu0 %v769
    %1032 = vmatpush1.bf16.msra.mxu0 %v768
    %1033 = vmatprep.subr.bf16.mxu0 %v772
    %1034 = vmatpush1.bf16.msra.mxu0 %v771
    %1035 = vmatprep.subr.bf16.mxu0 %v775
    %1036 = vmatpush1.bf16.msra.mxu0 %v774
    %1037 = vmatprep.subr.bf16.mxu0 %v778
    %1038 = vmatpush1.bf16.msra.mxu0 %v777
    %1039 = vmatprep.subr.bf16.mxu0 %v781
    %1040 = vmatpush1.bf16.msra.mxu0 %v780
    %1041 = vmatprep.subr.bf16.mxu0 %v784
    %1042 = vmatpush1.bf16.msra.mxu0 %v783
    %1043 = vmatprep.subr.bf16.mxu0 %v787
    %1044 = vmatpush1.bf16.msra.mxu0 %v786
    %1045 = vmatprep.subr.bf16.mxu0 %v790
    %1046 = vmatpush1.bf16.msra.mxu0 %v789
    %1047 = vmatprep.subr.bf16.mxu0 %v793
    %1048 = vmatpush1.bf16.msra.mxu0 %v792
    %1049 = vmatprep.subr.bf16.mxu0 %v796
    %1050 = vmatpush1.bf16.msra.mxu0 %v795
    %1051 = vmatprep.subr.bf16.mxu0 %v799
    %1052 = vmatpush1.bf16.msra.mxu0 %v798
    %1053 = vmatprep.subr.bf16.mxu0 %v802
    %1054 = vmatpush1.bf16.msra.mxu0 %v801
    %1055 = vmatprep.mubr.bf16.mxu0 %v250
    %1056 = vmatmul.mubr.bf16.gmra.mrb[0].mxu0 %v249
    %v1057 = vpop.f32.mrb[0].mxu0
    %v1058 = vadd.f32 %v1017, %v1057
    %v1059 = vpop.f32.mrb[0].mxu0
    %v1060 = vadd.f32 %v1019, %v1059
    %v1061 = vpop.f32.mrb[0].mxu0
    %v1062 = vpop.f32.mrb[0].mxu0
    %1063 = vdwg.mxu0
    %1064 = vmatprep.subr.bf16.mxu0 %v805
    %1065 = vmatpush1.bf16.msra.mxu0 %v804
    %1066 = vmatprep.subr.bf16.mxu0 %v808
    %1067 = vmatpush1.bf16.msra.mxu0 %v807
    %1068 = vmatprep.subr.bf16.mxu0 %v811
    %1069 = vmatpush1.bf16.msra.mxu0 %v810
    %1070 = vmatprep.subr.bf16.mxu0 %v814
    %1071 = vmatpush1.bf16.msra.mxu0 %v813
    %1072 = vmatprep.subr.bf16.mxu0 %v817
    %1073 = vmatpush1.bf16.msra.mxu0 %v816
    %1074 = vmatprep.subr.bf16.mxu0 %v820
    %1075 = vmatpush1.bf16.msra.mxu0 %v819
    %1076 = vmatprep.subr.bf16.mxu0 %v823
    %1077 = vmatpush1.bf16.msra.mxu0 %v822
    %1078 = vmatprep.subr.bf16.mxu0 %v826
    %1079 = vmatpush1.bf16.msra.mxu0 %v825
    %1080 = vmatprep.subr.bf16.mxu0 %v829
    %1081 = vmatpush1.bf16.msra.mxu0 %v828
    %1082 = vmatprep.subr.bf16.mxu0 %v832
    %1083 = vmatpush1.bf16.msra.mxu0 %v831
    %1084 = vmatprep.subr.bf16.mxu0 %v835
    %1085 = vmatpush1.bf16.msra.mxu0 %v834
    %1086 = vmatprep.subr.bf16.mxu0 %v838
    %1087 = vmatpush1.bf16.msra.mxu0 %v837
    %1088 = vmatprep.subr.bf16.mxu0 %v841
    %1089 = vmatpush1.bf16.msra.mxu0 %v840
    %1090 = vmatprep.subr.bf16.mxu0 0
    %1091 = vmatpush1.bf16.msra.mxu0 0
    %1092 = vmatprep.subr.bf16.mxu0 0
    %1093 = vmatpush1.bf16.msra.mxu0 0
    %1094 = vmatprep.subr.bf16.mxu0 0
    %1095 = vmatpush1.bf16.msra.mxu0 0
    %1096 = vmatprep.mubr.bf16.mxu0 %v980
    %1097 = vmatmul.mubr.bf16.gmra.mrb[0].mxu0 %v251
    %v1098 = vpop.f32.mrb[0].mxu0
    %v1099 = vadd.f32 %v1058, %v1098
    %v1100 = vpop.f32.mrb[0].mxu0
    %v1101 = vadd.f32 %v1060, %v1100
    %v1102 = vpop.f32.mrb[0].mxu0
    %v1103 = vpop.f32.mrb[0].mxu0
    %1104 = vdwg.mxu0
    %1105 = vmatprep.subr.bf16.mxu0 0
    %1106 = vmatpush1.bf16.msra.mxu0 %v710
    %1107 = vmatprep.subr.bf16.mxu0 0
    %1108 = vmatpush1.bf16.msra.mxu0 %v713
    %1109 = vmatprep.subr.bf16.mxu0 0
    %1110 = vmatpush1.bf16.msra.mxu0 %v716
    %1111 = vmatprep.subr.bf16.mxu0 0
    %1112 = vmatpush1.bf16.msra.mxu0 %v719
    %1113 = vmatprep.subr.bf16.mxu0 0
    %1114 = vmatpush1.bf16.msra.mxu0 %v722
    %1115 = vmatprep.subr.bf16.mxu0 0
    %1116 = vmatpush1.bf16.msra.mxu0 %v725
    %1117 = vmatprep.subr.bf16.mxu0 0
    %1118 = vmatpush1.bf16.msra.mxu0 %v728
    %1119 = vmatprep.subr.bf16.mxu0 0
    %1120 = vmatpush1.bf16.msra.mxu0 %v731
    %1121 = vmatprep.subr.bf16.mxu0 0
    %1122 = vmatpush1.bf16.msra.mxu0 %v734
    %1123 = vmatprep.subr.bf16.mxu0 0
    %1124 = vmatpush1.bf16.msra.mxu0 %v737
    %1125 = vmatprep.subr.bf16.mxu0 0
    %1126 = vmatpush1.bf16.msra.mxu0 %v740
    %1127 = vmatprep.subr.bf16.mxu0 0
    %1128 = vmatpush1.bf16.msra.mxu0 %v743
    %1129 = vmatprep.subr.bf16.mxu0 0
    %1130 = vmatpush1.bf16.msra.mxu0 %v746
    %1131 = vmatprep.subr.bf16.mxu0 0
    %1132 = vmatpush1.bf16.msra.mxu0 %v749
    %1133 = vmatprep.subr.bf16.mxu0 0
    %1134 = vmatpush1.bf16.msra.mxu0 %v752
    %1135 = vmatprep.subr.bf16.mxu0 0
    %1136 = vmatpush1.bf16.msra.mxu0 %v755
    %1137 = vmatprep.mubr.bf16.mxu0 %v248
    %1138 = vmatmul.mubr.bf16.gmra.mrb[0].mxu0 %v247
    %v1139 = vpop.f32.mrb[0].mxu0
    %v1140 = vadd.f32 0.0, %v1139
    %v1141 = vpop.f32.mrb[0].mxu0
    %v1142 = vpop.f32.mrb[0].mxu0
    %v1143 = vpop.f32.mrb[0].mxu0
    %1144 = vdwg.mxu0
    %1145 = vmatprep.subr.bf16.mxu0 0
    %1146 = vmatpush1.bf16.msra.mxu0 %v758
    %1147 = vmatprep.subr.bf16.mxu0 0
    %1148 = vmatpush1.bf16.msra.mxu0 %v761
    %1149 = vmatprep.subr.bf16.mxu0 0
    %1150 = vmatpush1.bf16.msra.mxu0 %v764
    %1151 = vmatprep.subr.bf16.mxu0 0
    %1152 = vmatpush1.bf16.msra.mxu0 %v767
    %1153 = vmatprep.subr.bf16.mxu0 0
    %1154 = vmatpush1.bf16.msra.mxu0 %v770
    %1155 = vmatprep.subr.bf16.mxu0 0
    %1156 = vmatpush1.bf16.msra.mxu0 %v773
    %1157 = vmatprep.subr.bf16.mxu0 0
    %1158 = vmatpush1.bf16.msra.mxu0 %v776
    %1159 = vmatprep.subr.bf16.mxu0 0
    %1160 = vmatpush1.bf16.msra.mxu0 %v779
    %1161 = vmatprep.subr.bf16.mxu0 0
    %1162 = vmatpush1.bf16.msra.mxu0 %v782
    %1163 = vmatprep.subr.bf16.mxu0 0
    %1164 = vmatpush1.bf16.msra.mxu0 %v785
    %1165 = vmatprep.subr.bf16.mxu0 0
    %1166 = vmatpush1.bf16.msra.mxu0 %v788
    %1167 = vmatprep.subr.bf16.mxu0 0
    %1168 = vmatpush1.bf16.msra.mxu0 %v791
    %1169 = vmatprep.subr.bf16.mxu0 0
    %1170 = vmatpush1.bf16.msra.mxu0 %v794
    %1171 = vmatprep.subr.bf16.mxu0 0
    %1172 = vmatpush1.bf16.msra.mxu0 %v797
    %1173 = vmatprep.subr.bf16.mxu0 0
    %1174 = vmatpush1.bf16.msra.mxu0 %v800
    %1175 = vmatprep.subr.bf16.mxu0 0
    %1176 = vmatpush1.bf16.msra.mxu0 %v803
    %1177 = vmatprep.mubr.bf16.mxu0 %v250
    %1178 = vmatmul.mubr.bf16.gmra.mrb[0].mxu0 %v249
    %v1179 = vpop.f32.mrb[0].mxu0
    %v1180 = vadd.f32 %v1140, %v1179
    %v1181 = vpop.f32.mrb[0].mxu0
    %v1182 = vpop.f32.mrb[0].mxu0
    %v1183 = vpop.f32.mrb[0].mxu0
    %1184 = vdwg.mxu0
    %1185 = vmatprep.subr.bf16.mxu0 0
    %1186 = vmatpush1.bf16.msra.mxu0 %v806
    %1187 = vmatprep.subr.bf16.mxu0 0
    %1188 = vmatpush1.bf16.msra.mxu0 %v809
    %1189 = vmatprep.subr.bf16.mxu0 0
    %1190 = vmatpush1.bf16.msra.mxu0 %v812
    %1191 = vmatprep.subr.bf16.mxu0 0
    %1192 = vmatpush1.bf16.msra.mxu0 %v815
    %1193 = vmatprep.subr.bf16.mxu0 0
    %1194 = vmatpush1.bf16.msra.mxu0 %v818
    %1195 = vmatprep.subr.bf16.mxu0 0
    %1196 = vmatpush1.bf16.msra.mxu0 %v821
    %1197 = vmatprep.subr.bf16.mxu0 0
    %1198 = vmatpush1.bf16.msra.mxu0 %v824
    %1199 = vmatprep.subr.bf16.mxu0 0
    %1200 = vmatpush1.bf16.msra.mxu0 %v827
    %1201 = vmatprep.subr.bf16.mxu0 0
    %1202 = vmatpush1.bf16.msra.mxu0 %v830
    %1203 = vmatprep.subr.bf16.mxu0 0
    %1204 = vmatpush1.bf16.msra.mxu0 %v833
    %1205 = vmatprep.subr.bf16.mxu0 0
    %1206 = vmatpush1.bf16.msra.mxu0 %v836
    %1207 = vmatprep.subr.bf16.mxu0 0
    %1208 = vmatpush1.bf16.msra.mxu0 %v839
    %1209 = vmatprep.subr.bf16.mxu0 0
    %1210 = vmatpush1.bf16.msra.mxu0 %v842
    %1211 = vmatprep.subr.bf16.mxu0 0
    %1212 = vmatpush1.bf16.msra.mxu0 0
    %1213 = vmatprep.subr.bf16.mxu0 0
    %1214 = vmatpush1.bf16.msra.mxu0 0
    %1215 = vmatprep.subr.bf16.mxu0 0
    %1216 = vmatpush1.bf16.msra.mxu0 0
    %1217 = vmatprep.mubr.bf16.mxu0 %v980
    %1218 = vmatmul.mubr.bf16.gmra.mrb[0].mxu0 %v251
    %v1219 = vpop.f32.mrb[0].mxu0
    %v1220 = vadd.f32 %v1180, %v1219
    %v1221 = vpop.f32.mrb[0].mxu0
    %v1222 = vpop.f32.mrb[0].mxu0
    %v1223 = vpop.f32.mrb[0].mxu0
    %1224 = vdwg.mxu0
    %v1225 = vld [vmem:[%s1] sm:$0xff]
    %v1226 = vld [vmem:[%s1 + $0x8] sm:$0xff]
    %v1227 = vld [vmem:[%s1 + $0x10] sm:$0xff]
    %v1231 = vunpack.c.l.b16 %v1225
    %v1232 = vunpack.c.h.b16 %v1225
    %v1233 = vunpack.c.l.b16 %v1226
    %v1234 = vunpack.c.h.b16 %v1226
    %v1235 = vunpack.c.l.b16 %v1227
    %v1236 = vunpack.c.h.b16 %v1227
    %v1237 = vpack.c.b16 %v1231, %v1231
    %v1238 = vpack.c.b16 %v1232, %v1232
    %v1239 = vpack.c.b16 %v1233, %v1233
    %v1240 = vpack.c.b16 %v1234, %v1234
    %v1241 = vpack.c.b16 %v1235, %v1235
    %v1242 = vpack.c.b16 %v1236, %v1236
    %v1249 = vsel %vm978, %v1242, 0
    %1251 = vmatprep.subr.bf16.mxu0 %v709
    %1252 = vmatpush1.bf16.msra.mxu0 %v708
    %1253 = vmatprep.subr.bf16.mxu0 %v712
    %1254 = vmatpush1.bf16.msra.mxu0 %v711
    %1255 = vmatprep.subr.bf16.mxu0 %v715
    %1256 = vmatpush1.bf16.msra.mxu0 %v714
    %1257 = vmatprep.subr.bf16.mxu0 %v718
    %1258 = vmatpush1.bf16.msra.mxu0 %v717
    %1259 = vmatprep.subr.bf16.mxu0 %v721
    %1260 = vmatpush1.bf16.msra.mxu0 %v720
    %1261 = vmatprep.subr.bf16.mxu0 %v724
    %1262 = vmatpush1.bf16.msra.mxu0 %v723
    %1263 = vmatprep.subr.bf16.mxu0 %v727
    %1264 = vmatpush1.bf16.msra.mxu0 %v726
    %1265 = vmatprep.subr.bf16.mxu0 %v730
    %1266 = vmatpush1.bf16.msra.mxu0 %v729
    %1267 = vmatprep.subr.bf16.mxu0 %v733
    %1268 = vmatpush1.bf16.msra.mxu0 %v732
    %1269 = vmatprep.subr.bf16.mxu0 %v736
    %1270 = vmatpush1.bf16.msra.mxu0 %v735
    %1271 = vmatprep.subr.bf16.mxu0 %v739
    %1272 = vmatpush1.bf16.msra.mxu0 %v738
    %1273 = vmatprep.subr.bf16.mxu0 %v742
    %1274 = vmatpush1.bf16.msra.mxu0 %v741
    %1275 = vmatprep.subr.bf16.mxu0 %v745
    %1276 = vmatpush1.bf16.msra.mxu0 %v744
    %1277 = vmatprep.subr.bf16.mxu0 %v748
    %1278 = vmatpush1.bf16.msra.mxu0 %v747
    %1279 = vmatprep.subr.bf16.mxu0 %v751
    %1280 = vmatpush1.bf16.msra.mxu0 %v750
    %1281 = vmatprep.subr.bf16.mxu0 %v754
    %1282 = vmatpush1.bf16.msra.mxu0 %v753
    %1283 = vmatprep.mubr.bf16.mxu0 %v1238
    %1284 = vmatmul.mubr.bf16.gmra.mrb[0].mxu0 %v1237
    %v1285 = vpop.f32.mrb[0].mxu0
    %v1286 = vadd.f32 0.0, %v1285
    %v1287 = vpop.f32.mrb[0].mxu0
    %v1288 = vadd.f32 0.0, %v1287
    %v1289 = vpop.f32.mrb[0].mxu0
    %v1290 = vpop.f32.mrb[0].mxu0
    %1291 = vdwg.mxu0
    %1292 = vmatprep.subr.bf16.mxu0 %v757
    %1293 = vmatpush1.bf16.msra.mxu0 %v756
    %1294 = vmatprep.subr.bf16.mxu0 %v760
    %1295 = vmatpush1.bf16.msra.mxu0 %v759
    %1296 = vmatprep.subr.bf16.mxu0 %v763
    %1297 = vmatpush1.bf16.msra.mxu0 %v762
    %1298 = vmatprep.subr.bf16.mxu0 %v766
    %1299 = vmatpush1.bf16.msra.mxu0 %v765
    %1300 = vmatprep.subr.bf16.mxu0 %v769
    %1301 = vmatpush1.bf16.msra.mxu0 %v768
    %1302 = vmatprep.subr.bf16.mxu0 %v772
    %1303 = vmatpush1.bf16.msra.mxu0 %v771
    %1304 = vmatprep.subr.bf16.mxu0 %v775
    %1305 = vmatpush1.bf16.msra.mxu0 %v774
    %1306 = vmatprep.subr.bf16.mxu0 %v778
    %1307 = vmatpush1.bf16.msra.mxu0 %v777
    %1308 = vmatprep.subr.bf16.mxu0 %v781
    %1309 = vmatpush1.bf16.msra.mxu0 %v780
    %1310 = vmatprep.subr.bf16.mxu0 %v784
    %1311 = vmatpush1.bf16.msra.mxu0 %v783
    %1312 = vmatprep.subr.bf16.mxu0 %v787
    %1313 = vmatpush1.bf16.msra.mxu0 %v786
    %1314 = vmatprep.subr.bf16.mxu0 %v790
    %1315 = vmatpush1.bf16.msra.mxu0 %v789
    %1316 = vmatprep.subr.bf16.mxu0 %v793
    %1317 = vmatpush1.bf16.msra.mxu0 %v792
    %1318 = vmatprep.subr.bf16.mxu0 %v796
    %1319 = vmatpush1.bf16.msra.mxu0 %v795
    %1320 = vmatprep.subr.bf16.mxu0 %v799
    %1321 = vmatpush1.bf16.msra.mxu0 %v798
    %1322 = vmatprep.subr.bf16.mxu0 %v802
    %1323 = vmatpush1.bf16.msra.mxu0 %v801
    %1324 = vmatprep.mubr.bf16.mxu0 %v1240
    %1325 = vmatmul.mubr.bf16.gmra.mrb[0].mxu0 %v1239
    %v1326 = vpop.f32.mrb[0].mxu0
    %v1327 = vadd.f32 %v1286, %v1326
    %v1328 = vpop.f32.mrb[0].mxu0
    %v1329 = vadd.f32 %v1288, %v1328
    %v1330 = vpop.f32.mrb[0].mxu0
    %v1331 = vpop.f32.mrb[0].mxu0
    %1332 = vdwg.mxu0
    %1333 = vmatprep.subr.bf16.mxu0 %v805
    %1334 = vmatpush1.bf16.msra.mxu0 %v804
    %1335 = vmatprep.subr.bf16.mxu0 %v808
    %1336 = vmatpush1.bf16.msra.mxu0 %v807
    %1337 = vmatprep.subr.bf16.mxu0 %v811
    %1338 = vmatpush1.bf16.msra.mxu0 %v810
    %1339 = vmatprep.subr.bf16.mxu0 %v814
    %1340 = vmatpush1.bf16.msra.mxu0 %v813
    %1341 = vmatprep.subr.bf16.mxu0 %v817
    %1342 = vmatpush1.bf16.msra.mxu0 %v816
    %1343 = vmatprep.subr.bf16.mxu0 %v820
    %1344 = vmatpush1.bf16.msra.mxu0 %v819
    %1345 = vmatprep.subr.bf16.mxu0 %v823
    %1346 = vmatpush1.bf16.msra.mxu0 %v822
    %1347 = vmatprep.subr.bf16.mxu0 %v826
    %1348 = vmatpush1.bf16.msra.mxu0 %v825
    %1349 = vmatprep.subr.bf16.mxu0 %v829
    %1350 = vmatpush1.bf16.msra.mxu0 %v828
    %1351 = vmatprep.subr.bf16.mxu0 %v832
    %1352 = vmatpush1.bf16.msra.mxu0 %v831
    %1353 = vmatprep.subr.bf16.mxu0 %v835
    %1354 = vmatpush1.bf16.msra.mxu0 %v834
    %1355 = vmatprep.subr.bf16.mxu0 %v838
    %1356 = vmatpush1.bf16.msra.mxu0 %v837
    %1357 = vmatprep.subr.bf16.mxu0 %v841
    %1358 = vmatpush1.bf16.msra.mxu0 %v840
    %1359 = vmatprep.subr.bf16.mxu0 0
    %1360 = vmatpush1.bf16.msra.mxu0 0
    %1361 = vmatprep.subr.bf16.mxu0 0
    %1362 = vmatpush1.bf16.msra.mxu0 0
    %1363 = vmatprep.subr.bf16.mxu0 0
    %1364 = vmatpush1.bf16.msra.mxu0 0
    %1365 = vmatprep.mubr.bf16.mxu0 %v1249
    %1366 = vmatmul.mubr.bf16.gmra.mrb[0].mxu0 %v1241
    %v1367 = vpop.f32.mrb[0].mxu0
    %v1368 = vadd.f32 %v1327, %v1367
    %v1369 = vpop.f32.mrb[0].mxu0
    %v1370 = vadd.f32 %v1329, %v1369
    %v1371 = vpop.f32.mrb[0].mxu0
    %v1372 = vpop.f32.mrb[0].mxu0
    %1373 = vdwg.mxu0
    %1374 = vmatprep.subr.bf16.mxu0 0
    %1375 = vmatpush1.bf16.msra.mxu0 %v710
    %1376 = vmatprep.subr.bf16.mxu0 0
    %1377 = vmatpush1.bf16.msra.mxu0 %v713
    %1378 = vmatprep.subr.bf16.mxu0 0
    %1379 = vmatpush1.bf16.msra.mxu0 %v716
    %1380 = vmatprep.subr.bf16.mxu0 0
    %1381 = vmatpush1.bf16.msra.mxu0 %v719
    %1382 = vmatprep.subr.bf16.mxu0 0
    %1383 = vmatpush1.bf16.msra.mxu0 %v722
    %1384 = vmatprep.subr.bf16.mxu0 0
    %1385 = vmatpush1.bf16.msra.mxu0 %v725
    %1386 = vmatprep.subr.bf16.mxu0 0
    %1387 = vmatpush1.bf16.msra.mxu0 %v728
    %1388 = vmatprep.subr.bf16.mxu0 0
    %1389 = vmatpush1.bf16.msra.mxu0 %v731
    %1390 = vmatprep.subr.bf16.mxu0 0
    %1391 = vmatpush1.bf16.msra.mxu0 %v734
    %1392 = vmatprep.subr.bf16.mxu0 0
    %1393 = vmatpush1.bf16.msra.mxu0 %v737
    %1394 = vmatprep.subr.bf16.mxu0 0
    %1395 = vmatpush1.bf16.msra.mxu0 %v740
    %1396 = vmatprep.subr.bf16.mxu0 0
    %1397 = vmatpush1.bf16.msra.mxu0 %v743
    %1398 = vmatprep.subr.bf16.mxu0 0
    %1399 = vmatpush1.bf16.msra.mxu0 %v746
    %1400 = vmatprep.subr.bf16.mxu0 0
    %1401 = vmatpush1.bf16.msra.mxu0 %v749
    %1402 = vmatprep.subr.bf16.mxu0 0
    %1403 = vmatpush1.bf16.msra.mxu0 %v752
    %1404 = vmatprep.subr.bf16.mxu0 0
    %1405 = vmatpush1.bf16.msra.mxu0 %v755
    %1406 = vmatprep.mubr.bf16.mxu0 %v1238
    %1407 = vmatmul.mubr.bf16.gmra.mrb[0].mxu0 %v1237
    %v1408 = vpop.f32.mrb[0].mxu0
    %v1409 = vadd.f32 0.0, %v1408
    %v1410 = vpop.f32.mrb[0].mxu0
    %v1411 = vpop.f32.mrb[0].mxu0
    %v1412 = vpop.f32.mrb[0].mxu0
    %1413 = vdwg.mxu0
    %1414 = vmatprep.subr.bf16.mxu0 0
    %1415 = vmatpush1.bf16.msra.mxu0 %v758
    %1416 = vmatprep.subr.bf16.mxu0 0
    %1417 = vmatpush1.bf16.msra.mxu0 %v761
    %1418 = vmatprep.subr.bf16.mxu0 0
    %1419 = vmatpush1.bf16.msra.mxu0 %v764
    %1420 = vmatprep.subr.bf16.mxu0 0
    %1421 = vmatpush1.bf16.msra.mxu0 %v767
    %1422 = vmatprep.subr.bf16.mxu0 0
    %1423 = vmatpush1.bf16.msra.mxu0 %v770
    %1424 = vmatprep.subr.bf16.mxu0 0
    %1425 = vmatpush1.bf16.msra.mxu0 %v773
    %1426 = vmatprep.subr.bf16.mxu0 0
    %1427 = vmatpush1.bf16.msra.mxu0 %v776
    %1428 = vmatprep.subr.bf16.mxu0 0
    %1429 = vmatpush1.bf16.msra.mxu0 %v779
    %1430 = vmatprep.subr.bf16.mxu0 0
    %1431 = vmatpush1.bf16.msra.mxu0 %v782
    %1432 = vmatprep.subr.bf16.mxu0 0
    %1433 = vmatpush1.bf16.msra.mxu0 %v785
    %1434 = vmatprep.subr.bf16.mxu0 0
    %1435 = vmatpush1.bf16.msra.mxu0 %v788
    %1436 = vmatprep.subr.bf16.mxu0 0
    %1437 = vmatpush1.bf16.msra.mxu0 %v791
    %1438 = vmatprep.subr.bf16.mxu0 0
    %1439 = vmatpush1.bf16.msra.mxu0 %v794
    %1440 = vmatprep.subr.bf16.mxu0 0
    %1441 = vmatpush1.bf16.msra.mxu0 %v797
    %1442 = vmatprep.subr.bf16.mxu0 0
    %1443 = vmatpush1.bf16.msra.mxu0 %v800
    %1444 = vmatprep.subr.bf16.mxu0 0
    %1445 = vmatpush1.bf16.msra.mxu0 %v803
    %1446 = vmatprep.mubr.bf16.mxu0 %v1240
    %1447 = vmatmul.mubr.bf16.gmra.mrb[0].mxu0 %v1239
    %v1448 = vpop.f32.mrb[0].mxu0
    %v1449 = vadd.f32 %v1409, %v1448
    %v1450 = vpop.f32.mrb[0].mxu0
    %v1451 = vpop.f32.mrb[0].mxu0
    %v1452 = vpop.f32.mrb[0].mxu0
    %1453 = vdwg.mxu0
    %1454 = vmatprep.subr.bf16.mxu0 0
    %1455 = vmatpush1.bf16.msra.mxu0 %v806
    %1456 = vmatprep.subr.bf16.mxu0 0
    %1457 = vmatpush1.bf16.msra.mxu0 %v809
    %1458 = vmatprep.subr.bf16.mxu0 0
    %1459 = vmatpush1.bf16.msra.mxu0 %v812
    %1460 = vmatprep.subr.bf16.mxu0 0
    %1461 = vmatpush1.bf16.msra.mxu0 %v815
    %1462 = vmatprep.subr.bf16.mxu0 0
    %1463 = vmatpush1.bf16.msra.mxu0 %v818
    %1464 = vmatprep.subr.bf16.mxu0 0
    %1465 = vmatpush1.bf16.msra.mxu0 %v821
    %1466 = vmatprep.subr.bf16.mxu0 0
    %1467 = vmatpush1.bf16.msra.mxu0 %v824
    %1468 = vmatprep.subr.bf16.mxu0 0
    %1469 = vmatpush1.bf16.msra.mxu0 %v827
    %1470 = vmatprep.subr.bf16.mxu0 0
    %1471 = vmatpush1.bf16.msra.mxu0 %v830
    %1472 = vmatprep.subr.bf16.mxu0 0
    %1473 = vmatpush1.bf16.msra.mxu0 %v833
    %1474 = vmatprep.subr.bf16.mxu0 0
    %1475 = vmatpush1.bf16.msra.mxu0 %v836
    %1476 = vmatprep.subr.bf16.mxu0 0
    %1477 = vmatpush1.bf16.msra.mxu0 %v839
    %1478 = vmatprep.subr.bf16.mxu0 0
    %1479 = vmatpush1.bf16.msra.mxu0 %v842
    %1480 = vmatprep.subr.bf16.mxu0 0
    %1481 = vmatpush1.bf16.msra.mxu0 0
    %1482 = vmatprep.subr.bf16.mxu0 0
    %1483 = vmatpush1.bf16.msra.mxu0 0
    %1484 = vmatprep.subr.bf16.mxu0 0
    %1485 = vmatpush1.bf16.msra.mxu0 0
    %1486 = vmatprep.mubr.bf16.mxu0 %v1249
    %1487 = vmatmul.mubr.bf16.gmra.mrb[0].mxu0 %v1241
    %v1488 = vpop.f32.mrb[0].mxu0
    %v1489 = vadd.f32 %v1449, %v1488
    %v1490 = vpop.f32.mrb[0].mxu0
    %v1491 = vpop.f32.mrb[0].mxu0
    %v1492 = vpop.f32.mrb[0].mxu0
    %1493 = vdwg.mxu0
    %v1494 = vld [vmem:[%s2] sm:$0xff]
    %v1495 = vld [vmem:[%s2 + $0x8] sm:$0xff]
    %v1496 = vld [vmem:[%s2 + $0x10] sm:$0xff]
    %v1500 = vunpack.c.l.b16 %v1494
    %v1501 = vunpack.c.h.b16 %v1494
    %v1502 = vunpack.c.l.b16 %v1495
    %v1503 = vunpack.c.h.b16 %v1495
    %v1504 = vunpack.c.l.b16 %v1496
    %v1505 = vunpack.c.h.b16 %v1496
    %v1506 = vpack.c.b16 %v1500, %v1500
    %v1507 = vpack.c.b16 %v1501, %v1501
    %v1508 = vpack.c.b16 %v1502, %v1502
    %v1509 = vpack.c.b16 %v1503, %v1503
    %v1510 = vpack.c.b16 %v1504, %v1504
    %v1511 = vpack.c.b16 %v1505, %v1505
    %v1518 = vsel %vm978, %v1511, 0
    %1520 = vmatprep.subr.bf16.mxu0 %v709
    %1521 = vmatpush1.bf16.msra.mxu0 %v708
    %1522 = vmatprep.subr.bf16.mxu0 %v712
    %1523 = vmatpush1.bf16.msra.mxu0 %v711
    %1524 = vmatprep.subr.bf16.mxu0 %v715
    %1525 = vmatpush1.bf16.msra.mxu0 %v714
    %1526 = vmatprep.subr.bf16.mxu0 %v718
    %1527 = vmatpush1.bf16.msra.mxu0 %v717
    %1528 = vmatprep.subr.bf16.mxu0 %v721
    %1529 = vmatpush1.bf16.msra.mxu0 %v720
    %1530 = vmatprep.subr.bf16.mxu0 %v724
    %1531 = vmatpush1.bf16.msra.mxu0 %v723
    %1532 = vmatprep.subr.bf16.mxu0 %v727
    %1533 = vmatpush1.bf16.msra.mxu0 %v726
    %1534 = vmatprep.subr.bf16.mxu0 %v730
    %1535 = vmatpush1.bf16.msra.mxu0 %v729
    %1536 = vmatprep.subr.bf16.mxu0 %v733
    %1537 = vmatpush1.bf16.msra.mxu0 %v732
    %1538 = vmatprep.subr.bf16.mxu0 %v736
    %1539 = vmatpush1.bf16.msra.mxu0 %v735
    %1540 = vmatprep.subr.bf16.mxu0 %v739
    %1541 = vmatpush1.bf16.msra.mxu0 %v738
    %1542 = vmatprep.subr.bf16.mxu0 %v742
    %1543 = vmatpush1.bf16.msra.mxu0 %v741
    %1544 = vmatprep.subr.bf16.mxu0 %v745
    %1545 = vmatpush1.bf16.msra.mxu0 %v744
    %1546 = vmatprep.subr.bf16.mxu0 %v748
    %1547 = vmatpush1.bf16.msra.mxu0 %v747
    %1548 = vmatprep.subr.bf16.mxu0 %v751
    %1549 = vmatpush1.bf16.msra.mxu0 %v750
    %1550 = vmatprep.subr.bf16.mxu0 %v754
    %1551 = vmatpush1.bf16.msra.mxu0 %v753
    %1552 = vmatprep.mubr.bf16.mxu0 %v1507
    %1553 = vmatmul.mubr.bf16.gmra.mrb[0].mxu0 %v1506
    %v1554 = vpop.f32.mrb[0].mxu0
    %v1555 = vadd.f32 0.0, %v1554
    %v1556 = vpop.f32.mrb[0].mxu0
    %v1557 = vadd.f32 0.0, %v1556
    %v1558 = vpop.f32.mrb[0].mxu0
    %v1559 = vpop.f32.mrb[0].mxu0
    %1560 = vdwg.mxu0
    %1561 = vmatprep.subr.bf16.mxu0 %v757
    %1562 = vmatpush1.bf16.msra.mxu0 %v756
    %1563 = vmatprep.subr.bf16.mxu0 %v760
    %1564 = vmatpush1.bf16.msra.mxu0 %v759
    %1565 = vmatprep.subr.bf16.mxu0 %v763
    %1566 = vmatpush1.bf16.msra.mxu0 %v762
    %1567 = vmatprep.subr.bf16.mxu0 %v766
    %1568 = vmatpush1.bf16.msra.mxu0 %v765
    %1569 = vmatprep.subr.bf16.mxu0 %v769
    %1570 = vmatpush1.bf16.msra.mxu0 %v768
    %1571 = vmatprep.subr.bf16.mxu0 %v772
    %1572 = vmatpush1.bf16.msra.mxu0 %v771
    %1573 = vmatprep.subr.bf16.mxu0 %v775
    %1574 = vmatpush1.bf16.msra.mxu0 %v774
    %1575 = vmatprep.subr.bf16.mxu0 %v778
    %1576 = vmatpush1.bf16.msra.mxu0 %v777
    %1577 = vmatprep.subr.bf16.mxu0 %v781
    %1578 = vmatpush1.bf16.msra.mxu0 %v780
    %1579 = vmatprep.subr.bf16.mxu0 %v784
    %1580 = vmatpush1.bf16.msra.mxu0 %v783
    %1581 = vmatprep.subr.bf16.mxu0 %v787
    %1582 = vmatpush1.bf16.msra.mxu0 %v786
    %1583 = vmatprep.subr.bf16.mxu0 %v790
    %1584 = vmatpush1.bf16.msra.mxu0 %v789
    %1585 = vmatprep.subr.bf16.mxu0 %v793
    %1586 = vmatpush1.bf16.msra.mxu0 %v792
    %1587 = vmatprep.subr.bf16.mxu0 %v796
    %1588 = vmatpush1.bf16.msra.mxu0 %v795
    %1589 = vmatprep.subr.bf16.mxu0 %v799
    %1590 = vmatpush1.bf16.msra.mxu0 %v798
    %1591 = vmatprep.subr.bf16.mxu0 %v802
    %1592 = vmatpush1.bf16.msra.mxu0 %v801
    %1593 = vmatprep.mubr.bf16.mxu0 %v1509
    %1594 = vmatmul.mubr.bf16.gmra.mrb[0].mxu0 %v1508
    %v1595 = vpop.f32.mrb[0].mxu0
    %v1596 = vadd.f32 %v1555, %v1595
    %v1597 = vpop.f32.mrb[0].mxu0
    %v1598 = vadd.f32 %v1557, %v1597
    %v1599 = vpop.f32.mrb[0].mxu0
    %v1600 = vpop.f32.mrb[0].mxu0
    %1601 = vdwg.mxu0
    %1602 = vmatprep.subr.bf16.mxu0 %v805
    %1603 = vmatpush1.bf16.msra.mxu0 %v804
    %1604 = vmatprep.subr.bf16.mxu0 %v808
    %1605 = vmatpush1.bf16.msra.mxu0 %v807
    %1606 = vmatprep.subr.bf16.mxu0 %v811
    %1607 = vmatpush1.bf16.msra.mxu0 %v810
    %1608 = vmatprep.subr.bf16.mxu0 %v814
    %1609 = vmatpush1.bf16.msra.mxu0 %v813
    %1610 = vmatprep.subr.bf16.mxu0 %v817
    %1611 = vmatpush1.bf16.msra.mxu0 %v816
    %1612 = vmatprep.subr.bf16.mxu0 %v820
    %1613 = vmatpush1.bf16.msra.mxu0 %v819
    %1614 = vmatprep.subr.bf16.mxu0 %v823
    %1615 = vmatpush1.bf16.msra.mxu0 %v822
    %1616 = vmatprep.subr.bf16.mxu0 %v826
    %1617 = vmatpush1.bf16.msra.mxu0 %v825
    %1618 = vmatprep.subr.bf16.mxu0 %v829
    %1619 = vmatpush1.bf16.msra.mxu0 %v828
    %1620 = vmatprep.subr.bf16.mxu0 %v832
    %1621 = vmatpush1.bf16.msra.mxu0 %v831
    %1622 = vmatprep.subr.bf16.mxu0 %v835
    %1623 = vmatpush1.bf16.msra.mxu0 %v834
    %1624 = vmatprep.subr.bf16.mxu0 %v838
    %1625 = vmatpush1.bf16.msra.mxu0 %v837
    %1626 = vmatprep.subr.bf16.mxu0 %v841
    %1627 = vmatpush1.bf16.msra.mxu0 %v840
    %1628 = vmatprep.subr.bf16.mxu0 0
    %1629 = vmatpush1.bf16.msra.mxu0 0
    %1630 = vmatprep.subr.bf16.mxu0 0
    %1631 = vmatpush1.bf16.msra.mxu0 0
    %1632 = vmatprep.subr.bf16.mxu0 0
    %1633 = vmatpush1.bf16.msra.mxu0 0
    %1634 = vmatprep.mubr.bf16.mxu0 %v1518
    %1635 = vmatmul.mubr.bf16.gmra.mrb[0].mxu0 %v1510
    %v1636 = vpop.f32.mrb[0].mxu0
    %v1637 = vadd.f32 %v1596, %v1636
    %v1638 = vpop.f32.mrb[0].mxu0
    %v1639 = vadd.f32 %v1598, %v1638
    %v1640 = vpop.f32.mrb[0].mxu0
    %v1641 = vpop.f32.mrb[0].mxu0
    %1642 = vdwg.mxu0
    %1643 = vmatprep.subr.bf16.mxu0 0
    %1644 = vmatpush1.bf16.msra.mxu0 %v710
    %1645 = vmatprep.subr.bf16.mxu0 0
    %1646 = vmatpush1.bf16.msra.mxu0 %v713
    %1647 = vmatprep.subr.bf16.mxu0 0
    %1648 = vmatpush1.bf16.msra.mxu0 %v716
    %1649 = vmatprep.subr.bf16.mxu0 0
    %1650 = vmatpush1.bf16.msra.mxu0 %v719
    %1651 = vmatprep.subr.bf16.mxu0 0
    %1652 = vmatpush1.bf16.msra.mxu0 %v722
    %1653 = vmatprep.subr.bf16.mxu0 0
    %1654 = vmatpush1.bf16.msra.mxu0 %v725
    %1655 = vmatprep.subr.bf16.mxu0 0
    %1656 = vmatpush1.bf16.msra.mxu0 %v728
    %1657 = vmatprep.subr.bf16.mxu0 0
    %1658 = vmatpush1.bf16.msra.mxu0 %v731
    %1659 = vmatprep.subr.bf16.mxu0 0
    %1660 = vmatpush1.bf16.msra.mxu0 %v734
    %1661 = vmatprep.subr.bf16.mxu0 0
    %1662 = vmatpush1.bf16.msra.mxu0 %v737
    %1663 = vmatprep.subr.bf16.mxu0 0
    %1664 = vmatpush1.bf16.msra.mxu0 %v740
    %1665 = vmatprep.subr.bf16.mxu0 0
    %1666 = vmatpush1.bf16.msra.mxu0 %v743
    %1667 = vmatprep.subr.bf16.mxu0 0
    %1668 = vmatpush1.bf16.msra.mxu0 %v746
    %1669 = vmatprep.subr.bf16.mxu0 0
    %1670 = vmatpush1.bf16.msra.mxu0 %v749
    %1671 = vmatprep.subr.bf16.mxu0 0
    %1672 = vmatpush1.bf16.msra.mxu0 %v752
    %1673 = vmatprep.subr.bf16.mxu0 0
    %1674 = vmatpush1.bf16.msra.mxu0 %v755
    %1675 = vmatprep.mubr.bf16.mxu0 %v1507
    %1676 = vmatmul.mubr.bf16.gmra.mrb[0].mxu0 %v1506
    %v1677 = vpop.f32.mrb[0].mxu0
    %v1678 = vadd.f32 0.0, %v1677
    %v1679 = vpop.f32.mrb[0].mxu0
    %v1680 = vpop.f32.mrb[0].mxu0
    %v1681 = vpop.f32.mrb[0].mxu0
    %1682 = vdwg.mxu0
    %1683 = vmatprep.subr.bf16.mxu0 0
    %1684 = vmatpush1.bf16.msra.mxu0 %v758
    %1685 = vmatprep.subr.bf16.mxu0 0
    %1686 = vmatpush1.bf16.msra.mxu0 %v761
    %1687 = vmatprep.subr.bf16.mxu0 0
    %1688 = vmatpush1.bf16.msra.mxu0 %v764
    %1689 = vmatprep.subr.bf16.mxu0 0
    %1690 = vmatpush1.bf16.msra.mxu0 %v767
    %1691 = vmatprep.subr.bf16.mxu0 0
    %1692 = vmatpush1.bf16.msra.mxu0 %v770
    %1693 = vmatprep.subr.bf16.mxu0 0
    %1694 = vmatpush1.bf16.msra.mxu0 %v773
    %1695 = vmatprep.subr.bf16.mxu0 0
    %1696 = vmatpush1.bf16.msra.mxu0 %v776
    %1697 = vmatprep.subr.bf16.mxu0 0
    %1698 = vmatpush1.bf16.msra.mxu0 %v779
    %1699 = vmatprep.subr.bf16.mxu0 0
    %1700 = vmatpush1.bf16.msra.mxu0 %v782
    %1701 = vmatprep.subr.bf16.mxu0 0
    %1702 = vmatpush1.bf16.msra.mxu0 %v785
    %1703 = vmatprep.subr.bf16.mxu0 0
    %1704 = vmatpush1.bf16.msra.mxu0 %v788
    %1705 = vmatprep.subr.bf16.mxu0 0
    %1706 = vmatpush1.bf16.msra.mxu0 %v791
    %1707 = vmatprep.subr.bf16.mxu0 0
    %1708 = vmatpush1.bf16.msra.mxu0 %v794
    %1709 = vmatprep.subr.bf16.mxu0 0
    %1710 = vmatpush1.bf16.msra.mxu0 %v797
    %1711 = vmatprep.subr.bf16.mxu0 0
    %1712 = vmatpush1.bf16.msra.mxu0 %v800
    %1713 = vmatprep.subr.bf16.mxu0 0
    %1714 = vmatpush1.bf16.msra.mxu0 %v803
    %1715 = vmatprep.mubr.bf16.mxu0 %v1509
    %1716 = vmatmul.mubr.bf16.gmra.mrb[0].mxu0 %v1508
    %v1717 = vpop.f32.mrb[0].mxu0
    %v1718 = vadd.f32 %v1678, %v1717
    %v1719 = vpop.f32.mrb[0].mxu0
    %v1720 = vpop.f32.mrb[0].mxu0
    %v1721 = vpop.f32.mrb[0].mxu0
    %1722 = vdwg.mxu0
    %1723 = vmatprep.subr.bf16.mxu0 0
    %1724 = vmatpush1.bf16.msra.mxu0 %v806
    %1725 = vmatprep.subr.bf16.mxu0 0
    %1726 = vmatpush1.bf16.msra.mxu0 %v809
    %1727 = vmatprep.subr.bf16.mxu0 0
    %1728 = vmatpush1.bf16.msra.mxu0 %v812
    %1729 = vmatprep.subr.bf16.mxu0 0
    %1730 = vmatpush1.bf16.msra.mxu0 %v815
    %1731 = vmatprep.subr.bf16.mxu0 0
    %1732 = vmatpush1.bf16.msra.mxu0 %v818
    %1733 = vmatprep.subr.bf16.mxu0 0
    %1734 = vmatpush1.bf16.msra.mxu0 %v821
    %1735 = vmatprep.subr.bf16.mxu0 0
    %1736 = vmatpush1.bf16.msra.mxu0 %v824
    %1737 = vmatprep.subr.bf16.mxu0 0
    %1738 = vmatpush1.bf16.msra.mxu0 %v827
    %1739 = vmatprep.subr.bf16.mxu0 0
    %1740 = vmatpush1.bf16.msra.mxu0 %v830
    %1741 = vmatprep.subr.bf16.mxu0 0
    %1742 = vmatpush1.bf16.msra.mxu0 %v833
    %1743 = vmatprep.subr.bf16.mxu0 0
    %1744 = vmatpush1.bf16.msra.mxu0 %v836
    %1745 = vmatprep.subr.bf16.mxu0 0
    %1746 = vmatpush1.bf16.msra.mxu0 %v839
    %1747 = vmatprep.subr.bf16.mxu0 0
    %1748 = vmatpush1.bf16.msra.mxu0 %v842
    %1749 = vmatprep.subr.bf16.mxu0 0
    %1750 = vmatpush1.bf16.msra.mxu0 0
    %1751 = vmatprep.subr.bf16.mxu0 0
    %1752 = vmatpush1.bf16.msra.mxu0 0
    %1753 = vmatprep.subr.bf16.mxu0 0
    %1754 = vmatpush1.bf16.msra.mxu0 0
    %1755 = vmatprep.mubr.bf16.mxu0 %v1518
    %1756 = vmatmul.mubr.bf16.gmra.mrb[0].mxu0 %v1510
    %v1757 = vpop.f32.mrb[0].mxu0
    %v1758 = vadd.f32 %v1718, %v1757
    %v1759 = vpop.f32.mrb[0].mxu0
    %v1760 = vpop.f32.mrb[0].mxu0
    %v1761 = vpop.f32.mrb[0].mxu0
    %1762 = vdwg.mxu0
    %v1763 = vld [vmem:[%s3] sm:$0xff]
    %v1764 = vld [vmem:[%s3 + $0x8] sm:$0xff]
    %v1765 = vld [vmem:[%s3 + $0x10] sm:$0xff]
    %v1769 = vunpack.c.l.b16 %v1763
    %v1770 = vunpack.c.h.b16 %v1763
    %v1771 = vunpack.c.l.b16 %v1764
    %v1772 = vunpack.c.h.b16 %v1764
    %v1773 = vunpack.c.l.b16 %v1765
    %v1774 = vunpack.c.h.b16 %v1765
    %v1775 = vpack.c.b16 %v1769, %v1769
    %v1776 = vpack.c.b16 %v1770, %v1770
    %v1777 = vpack.c.b16 %v1771, %v1771
    %v1778 = vpack.c.b16 %v1772, %v1772
    %v1779 = vpack.c.b16 %v1773, %v1773
    %v1780 = vpack.c.b16 %v1774, %v1774
    %v1787 = vsel %vm978, %v1780, 0
    %1789 = vmatprep.subr.bf16.mxu0 %v709
    %1790 = vmatpush1.bf16.msra.mxu0 %v708
    %1791 = vmatprep.subr.bf16.mxu0 %v712
    %1792 = vmatpush1.bf16.msra.mxu0 %v711
    %1793 = vmatprep.subr.bf16.mxu0 %v715
    %1794 = vmatpush1.bf16.msra.mxu0 %v714
    %1795 = vmatprep.subr.bf16.mxu0 %v718
    %1796 = vmatpush1.bf16.msra.mxu0 %v717
    %1797 = vmatprep.subr.bf16.mxu0 %v721
    %1798 = vmatpush1.bf16.msra.mxu0 %v720
    %1799 = vmatprep.subr.bf16.mxu0 %v724
    %1800 = vmatpush1.bf16.msra.mxu0 %v723
    %1801 = vmatprep.subr.bf16.mxu0 %v727
    %1802 = vmatpush1.bf16.msra.mxu0 %v726
    %1803 = vmatprep.subr.bf16.mxu0 %v730
    %1804 = vmatpush1.bf16.msra.mxu0 %v729
    %1805 = vmatprep.subr.bf16.mxu0 %v733
    %1806 = vmatpush1.bf16.msra.mxu0 %v732
    %1807 = vmatprep.subr.bf16.mxu0 %v736
    %1808 = vmatpush1.bf16.msra.mxu0 %v735
    %1809 = vmatprep.subr.bf16.mxu0 %v739
    %1810 = vmatpush1.bf16.msra.mxu0 %v738
    %1811 = vmatprep.subr.bf16.mxu0 %v742
    %1812 = vmatpush1.bf16.msra.mxu0 %v741
    %1813 = vmatprep.subr.bf16.mxu0 %v745
    %1814 = vmatpush1.bf16.msra.mxu0 %v744
    %1815 = vmatprep.subr.bf16.mxu0 %v748
    %1816 = vmatpush1.bf16.msra.mxu0 %v747
    %1817 = vmatprep.subr.bf16.mxu0 %v751
    %1818 = vmatpush1.bf16.msra.mxu0 %v750
    %1819 = vmatprep.subr.bf16.mxu0 %v754
    %1820 = vmatpush1.bf16.msra.mxu0 %v753
    %1821 = vmatprep.mubr.bf16.mxu0 %v1776
    %1822 = vmatmul.mubr.bf16.gmra.mrb[0].mxu0 %v1775
    %v1823 = vpop.f32.mrb[0].mxu0
    %v1824 = vadd.f32 0.0, %v1823
    %v1825 = vpop.f32.mrb[0].mxu0
    %v1826 = vadd.f32 0.0, %v1825
    %v1827 = vpop.f32.mrb[0].mxu0
    %v1828 = vpop.f32.mrb[0].mxu0
    %1829 = vdwg.mxu0
    %1830 = vmatprep.subr.bf16.mxu0 %v757
    %1831 = vmatpush1.bf16.msra.mxu0 %v756
    %1832 = vmatprep.subr.bf16.mxu0 %v760
    %1833 = vmatpush1.bf16.msra.mxu0 %v759
    %1834 = vmatprep.subr.bf16.mxu0 %v763
    %1835 = vmatpush1.bf16.msra.mxu0 %v762
    %1836 = vmatprep.subr.bf16.mxu0 %v766
    %1837 = vmatpush1.bf16.msra.mxu0 %v765
    %1838 = vmatprep.subr.bf16.mxu0 %v769
    %1839 = vmatpush1.bf16.msra.mxu0 %v768
    %1840 = vmatprep.subr.bf16.mxu0 %v772
    %1841 = vmatpush1.bf16.msra.mxu0 %v771
    %1842 = vmatprep.subr.bf16.mxu0 %v775
    %1843 = vmatpush1.bf16.msra.mxu0 %v774
    %1844 = vmatprep.subr.bf16.mxu0 %v778
    %1845 = vmatpush1.bf16.msra.mxu0 %v777
    %1846 = vmatprep.subr.bf16.mxu0 %v781
    %1847 = vmatpush1.bf16.msra.mxu0 %v780
    %1848 = vmatprep.subr.bf16.mxu0 %v784
    %1849 = vmatpush1.bf16.msra.mxu0 %v783
    %1850 = vmatprep.subr.bf16.mxu0 %v787
    %1851 = vmatpush1.bf16.msra.mxu0 %v786
    %1852 = vmatprep.subr.bf16.mxu0 %v790
    %1853 = vmatpush1.bf16.msra.mxu0 %v789
    %1854 = vmatprep.subr.bf16.mxu0 %v793
    %1855 = vmatpush1.bf16.msra.mxu0 %v792
    %1856 = vmatprep.subr.bf16.mxu0 %v796
    %1857 = vmatpush1.bf16.msra.mxu0 %v795
    %1858 = vmatprep.subr.bf16.mxu0 %v799
    %1859 = vmatpush1.bf16.msra.mxu0 %v798
    %1860 = vmatprep.subr.bf16.mxu0 %v802
    %1861 = vmatpush1.bf16.msra.mxu0 %v801
    %1862 = vmatprep.mubr.bf16.mxu0 %v1778
    %1863 = vmatmul.mubr.bf16.gmra.mrb[0].mxu0 %v1777
    %v1864 = vpop.f32.mrb[0].mxu0
    %v1865 = vadd.f32 %v1824, %v1864
    %v1866 = vpop.f32.mrb[0].mxu0
    %v1867 = vadd.f32 %v1826, %v1866
    %v1868 = vpop.f32.mrb[0].mxu0
    %v1869 = vpop.f32.mrb[0].mxu0
    %1870 = vdwg.mxu0
    %1871 = vmatprep.subr.bf16.mxu0 %v805
    %1872 = vmatpush1.bf16.msra.mxu0 %v804
    %1873 = vmatprep.subr.bf16.mxu0 %v808
    %1874 = vmatpush1.bf16.msra.mxu0 %v807
    %1875 = vmatprep.subr.bf16.mxu0 %v811
    %1876 = vmatpush1.bf16.msra.mxu0 %v810
    %1877 = vmatprep.subr.bf16.mxu0 %v814
    %1878 = vmatpush1.bf16.msra.mxu0 %v813
    %1879 = vmatprep.subr.bf16.mxu0 %v817
    %1880 = vmatpush1.bf16.msra.mxu0 %v816
    %1881 = vmatprep.subr.bf16.mxu0 %v820
    %1882 = vmatpush1.bf16.msra.mxu0 %v819
    %1883 = vmatprep.subr.bf16.mxu0 %v823
    %1884 = vmatpush1.bf16.msra.mxu0 %v822
    %1885 = vmatprep.subr.bf16.mxu0 %v826
    %1886 = vmatpush1.bf16.msra.mxu0 %v825
    %1887 = vmatprep.subr.bf16.mxu0 %v829
    %1888 = vmatpush1.bf16.msra.mxu0 %v828
    %1889 = vmatprep.subr.bf16.mxu0 %v832
    %1890 = vmatpush1.bf16.msra.mxu0 %v831
    %1891 = vmatprep.subr.bf16.mxu0 %v835
    %1892 = vmatpush1.bf16.msra.mxu0 %v834
    %1893 = vmatprep.subr.bf16.mxu0 %v838
    %1894 = vmatpush1.bf16.msra.mxu0 %v837
    %1895 = vmatprep.subr.bf16.mxu0 %v841
    %1896 = vmatpush1.bf16.msra.mxu0 %v840
    %1897 = vmatprep.subr.bf16.mxu0 0
    %1898 = vmatpush1.bf16.msra.mxu0 0
    %1899 = vmatprep.subr.bf16.mxu0 0
    %1900 = vmatpush1.bf16.msra.mxu0 0
    %1901 = vmatprep.subr.bf16.mxu0 0
    %1902 = vmatpush1.bf16.msra.mxu0 0
    %1903 = vmatprep.mubr.bf16.mxu0 %v1787
    %1904 = vmatmul.mubr.bf16.gmra.mrb[0].mxu0 %v1779
    %v1905 = vpop.f32.mrb[0].mxu0
    %v1906 = vadd.f32 %v1865, %v1905
    %v1907 = vpop.f32.mrb[0].mxu0
    %v1908 = vadd.f32 %v1867, %v1907
    %v1909 = vpop.f32.mrb[0].mxu0
    %v1910 = vpop.f32.mrb[0].mxu0
    %1911 = vdwg.mxu0
    %1912 = vmatprep.subr.bf16.mxu0 0
    %1913 = vmatpush1.bf16.msra.mxu0 %v710
    %1914 = vmatprep.subr.bf16.mxu0 0
    %1915 = vmatpush1.bf16.msra.mxu0 %v713
    %1916 = vmatprep.subr.bf16.mxu0 0
    %1917 = vmatpush1.bf16.msra.mxu0 %v716
    %1918 = vmatprep.subr.bf16.mxu0 0
    %1919 = vmatpush1.bf16.msra.mxu0 %v719
    %1920 = vmatprep.subr.bf16.mxu0 0
    %1921 = vmatpush1.bf16.msra.mxu0 %v722
    %1922 = vmatprep.subr.bf16.mxu0 0
    %1923 = vmatpush1.bf16.msra.mxu0 %v725
    %1924 = vmatprep.subr.bf16.mxu0 0
    %1925 = vmatpush1.bf16.msra.mxu0 %v728
    %1926 = vmatprep.subr.bf16.mxu0 0
    %1927 = vmatpush1.bf16.msra.mxu0 %v731
    %1928 = vmatprep.subr.bf16.mxu0 0
    %1929 = vmatpush1.bf16.msra.mxu0 %v734
    %1930 = vmatprep.subr.bf16.mxu0 0
    %1931 = vmatpush1.bf16.msra.mxu0 %v737
    %1932 = vmatprep.subr.bf16.mxu0 0
    %1933 = vmatpush1.bf16.msra.mxu0 %v740
    %1934 = vmatprep.subr.bf16.mxu0 0
    %1935 = vmatpush1.bf16.msra.mxu0 %v743
    %1936 = vmatprep.subr.bf16.mxu0 0
    %1937 = vmatpush1.bf16.msra.mxu0 %v746
    %1938 = vmatprep.subr.bf16.mxu0 0
    %1939 = vmatpush1.bf16.msra.mxu0 %v749
    %1940 = vmatprep.subr.bf16.mxu0 0
    %1941 = vmatpush1.bf16.msra.mxu0 %v752
    %1942 = vmatprep.subr.bf16.mxu0 0
    %1943 = vmatpush1.bf16.msra.mxu0 %v755
    %1944 = vmatprep.mubr.bf16.mxu0 %v1776
    %1945 = vmatmul.mubr.bf16.gmra.mrb[0].mxu0 %v1775
    %v1946 = vpop.f32.mrb[0].mxu0
    %v1947 = vadd.f32 0.0, %v1946
    %v1948 = vpop.f32.mrb[0].mxu0
    %v1949 = vpop.f32.mrb[0].mxu0
    %v1950 = vpop.f32.mrb[0].mxu0
    %1951 = vdwg.mxu0
    %1952 = vmatprep.subr.bf16.mxu0 0
    %1953 = vmatpush1.bf16.msra.mxu0 %v758
    %1954 = vmatprep.subr.bf16.mxu0 0
    %1955 = vmatpush1.bf16.msra.mxu0 %v761
    %1956 = vmatprep.subr.bf16.mxu0 0
    %1957 = vmatpush1.bf16.msra.mxu0 %v764
    %1958 = vmatprep.subr.bf16.mxu0 0
    %1959 = vmatpush1.bf16.msra.mxu0 %v767
    %1960 = vmatprep.subr.bf16.mxu0 0
    %1961 = vmatpush1.bf16.msra.mxu0 %v770
    %1962 = vmatprep.subr.bf16.mxu0 0
    %1963 = vmatpush1.bf16.msra.mxu0 %v773
    %1964 = vmatprep.subr.bf16.mxu0 0
    %1965 = vmatpush1.bf16.msra.mxu0 %v776
    %1966 = vmatprep.subr.bf16.mxu0 0
    %1967 = vmatpush1.bf16.msra.mxu0 %v779
    %1968 = vmatprep.subr.bf16.mxu0 0
    %1969 = vmatpush1.bf16.msra.mxu0 %v782
    %1970 = vmatprep.subr.bf16.mxu0 0
    %1971 = vmatpush1.bf16.msra.mxu0 %v785
    %1972 = vmatprep.subr.bf16.mxu0 0
    %1973 = vmatpush1.bf16.msra.mxu0 %v788
    %1974 = vmatprep.subr.bf16.mxu0 0
    %1975 = vmatpush1.bf16.msra.mxu0 %v791
    %1976 = vmatprep.subr.bf16.mxu0 0
    %1977 = vmatpush1.bf16.msra.mxu0 %v794
    %1978 = vmatprep.subr.bf16.mxu0 0
    %1979 = vmatpush1.bf16.msra.mxu0 %v797
    %1980 = vmatprep.subr.bf16.mxu0 0
    %1981 = vmatpush1.bf16.msra.mxu0 %v800
    %1982 = vmatprep.subr.bf16.mxu0 0
    %1983 = vmatpush1.bf16.msra.mxu0 %v803
    %1984 = vmatprep.mubr.bf16.mxu0 %v1778
    %1985 = vmatmul.mubr.bf16.gmra.mrb[0].mxu0 %v1777
    %v1986 = vpop.f32.mrb[0].mxu0
    %v1987 = vadd.f32 %v1947, %v1986
    %v1988 = vpop.f32.mrb[0].mxu0
    %v1989 = vpop.f32.mrb[0].mxu0
    %v1990 = vpop.f32.mrb[0].mxu0
    %1991 = vdwg.mxu0
    %1992 = vmatprep.subr.bf16.mxu0 0
    %1993 = vmatpush1.bf16.msra.mxu0 %v806
    %1994 = vmatprep.subr.bf16.mxu0 0
    %1995 = vmatpush1.bf16.msra.mxu0 %v809
    %1996 = vmatprep.subr.bf16.mxu0 0
    %1997 = vmatpush1.bf16.msra.mxu0 %v812
    %1998 = vmatprep.subr.bf16.mxu0 0
    %1999 = vmatpush1.bf16.msra.mxu0 %v815
    %2000 = vmatprep.subr.bf16.mxu0 0
    %2001 = vmatpush1.bf16.msra.mxu0 %v818
    %2002 = vmatprep.subr.bf16.mxu0 0
    %2003 = vmatpush1.bf16.msra.mxu0 %v821
    %2004 = vmatprep.subr.bf16.mxu0 0
    %2005 = vmatpush1.bf16.msra.mxu0 %v824
    %2006 = vmatprep.subr.bf16.mxu0 0
    %2007 = vmatpush1.bf16.msra.mxu0 %v827
    %2008 = vmatprep.subr.bf16.mxu0 0
    %2009 = vmatpush1.bf16.msra.mxu0 %v830
    %2010 = vmatprep.subr.bf16.mxu0 0
    %2011 = vmatpush1.bf16.msra.mxu0 %v833
    %2012 = vmatprep.subr.bf16.mxu0 0
    %2013 = vmatpush1.bf16.msra.mxu0 %v836
    %2014 = vmatprep.subr.bf16.mxu0 0
    %2015 = vmatpush1.bf16.msra.mxu0 %v839
    %2016 = vmatprep.subr.bf16.mxu0 0
    %2017 = vmatpush1.bf16.msra.mxu0 %v842
    %2018 = vmatprep.subr.bf16.mxu0 0
    %2019 = vmatpush1.bf16.msra.mxu0 0
    %2020 = vmatprep.subr.bf16.mxu0 0
    %2021 = vmatpush1.bf16.msra.mxu0 0
    %2022 = vmatprep.subr.bf16.mxu0 0
    %2023 = vmatpush1.bf16.msra.mxu0 0
    %2024 = vmatprep.mubr.bf16.mxu0 %v1787
    %2025 = vmatmul.mubr.bf16.gmra.mrb[0].mxu0 %v1779
    %v2026 = vpop.f32.mrb[0].mxu0
    %v2027 = vadd.f32 %v1987, %v2026
    %v2028 = vpop.f32.mrb[0].mxu0
    %v2029 = vpop.f32.mrb[0].mxu0
    %v2030 = vpop.f32.mrb[0].mxu0
    %2031 = vdwg.mxu0
    %v2032 = vld [vmem:[%s5] sm:$0x7]
    %v2033 = vld [vmem:[%s6] sm:$0x7]
    %v2034 = vrot.slane %v1099, 4
    %v2035 = vadd.f32 %v1099, %v2034
    %v2036 = vrot.slane %v2035, 2
    %v2037 = vadd.f32 %v2035, %v2036
    %v2038 = vrot.slane %v2037, 1
    %v2039 = vadd.f32 %v2037, %v2038
    %v2040 = vrot.slane %v1101, 4
    %v2041 = vadd.f32 %v1101, %v2040
    %v2042 = vrot.slane %v2041, 2
    %v2043 = vadd.f32 %v2041, %v2042
    %v2044 = vrot.slane %v2043, 1
    %v2045 = vadd.f32 %v2043, %v2044
    %v2046 = vrot.slane %v1220, 4
    %v2047 = vadd.f32 %v1220, %v2046
    %v2048 = vrot.slane %v2047, 2
    %v2049 = vadd.f32 %v2047, %v2048
    %v2050 = vrot.slane %v2049, 1
    %v2051 = vadd.f32 %v2049, %v2050
    %v2052 = vmul.f32 %v1099, %v1099
    %v2053 = vmul.f32 %v1101, %v1101
    %v2054 = vmul.f32 %v1220, %v1220
    %v2055 = vrot.slane %v2052, 4
    %v2056 = vadd.f32 %v2052, %v2055
    %v2057 = vrot.slane %v2056, 2
    %v2058 = vadd.f32 %v2056, %v2057
    %v2059 = vrot.slane %v2058, 1
    %v2060 = vadd.f32 %v2058, %v2059
    %v2061 = vrot.slane %v2053, 4
    %v2062 = vadd.f32 %v2053, %v2061
    %v2063 = vrot.slane %v2062, 2
    %v2064 = vadd.f32 %v2062, %v2063
    %v2065 = vrot.slane %v2064, 1
    %v2066 = vadd.f32 %v2064, %v2065
    %v2067 = vrot.slane %v2054, 4
    %v2068 = vadd.f32 %v2054, %v2067
    %v2069 = vrot.slane %v2068, 2
    %v2070 = vadd.f32 %v2068, %v2069
    %v2071 = vrot.slane %v2070, 1
    %v2072 = vadd.f32 %v2070, %v2071
    %v2073 = vrot.slane %v1368, 4
    %v2074 = vadd.f32 %v1368, %v2073
    %v2075 = vrot.slane %v2074, 2
    %v2076 = vadd.f32 %v2074, %v2075
    %v2077 = vrot.slane %v2076, 1
    %v2078 = vadd.f32 %v2076, %v2077
    %v2079 = vrot.slane %v1370, 4
    %v2080 = vadd.f32 %v1370, %v2079
    %v2081 = vrot.slane %v2080, 2
    %v2082 = vadd.f32 %v2080, %v2081
    %v2083 = vrot.slane %v2082, 1
    %v2084 = vadd.f32 %v2082, %v2083
    %v2085 = vrot.slane %v1489, 4
    %v2086 = vadd.f32 %v1489, %v2085
    %v2087 = vrot.slane %v2086, 2
    %v2088 = vadd.f32 %v2086, %v2087
    %v2089 = vrot.slane %v2088, 1
    %v2090 = vadd.f32 %v2088, %v2089
    %v2091 = vadd.f32 %v2039, %v2078
    %v2092 = vadd.f32 %v2045, %v2084
    %v2093 = vadd.f32 %v2051, %v2090
    %v2094 = vmul.f32 %v1368, %v1368
    %v2095 = vmul.f32 %v1370, %v1370
    %v2096 = vmul.f32 %v1489, %v1489
    %v2097 = vrot.slane %v2094, 4
    %v2098 = vadd.f32 %v2094, %v2097
    %v2099 = vrot.slane %v2098, 2
    %v2100 = vadd.f32 %v2098, %v2099
    %v2101 = vrot.slane %v2100, 1
    %v2102 = vadd.f32 %v2100, %v2101
    %v2103 = vrot.slane %v2095, 4
    %v2104 = vadd.f32 %v2095, %v2103
    %v2105 = vrot.slane %v2104, 2
    %v2106 = vadd.f32 %v2104, %v2105
    %v2107 = vrot.slane %v2106, 1
    %v2108 = vadd.f32 %v2106, %v2107
    %v2109 = vrot.slane %v2096, 4
    %v2110 = vadd.f32 %v2096, %v2109
    %v2111 = vrot.slane %v2110, 2
    %v2112 = vadd.f32 %v2110, %v2111
    %v2113 = vrot.slane %v2112, 1
    %v2114 = vadd.f32 %v2112, %v2113
    %v2115 = vadd.f32 %v2060, %v2102
    %v2116 = vadd.f32 %v2066, %v2108
    %v2117 = vadd.f32 %v2072, %v2114
    %v2118 = vrot.slane %v1637, 4
    %v2119 = vadd.f32 %v1637, %v2118
    %v2120 = vrot.slane %v2119, 2
    %v2121 = vadd.f32 %v2119, %v2120
    %v2122 = vrot.slane %v2121, 1
    %v2123 = vadd.f32 %v2121, %v2122
    %v2124 = vrot.slane %v1639, 4
    %v2125 = vadd.f32 %v1639, %v2124
    %v2126 = vrot.slane %v2125, 2
    %v2127 = vadd.f32 %v2125, %v2126
    %v2128 = vrot.slane %v2127, 1
    %v2129 = vadd.f32 %v2127, %v2128
    %v2130 = vrot.slane %v1758, 4
    %v2131 = vadd.f32 %v1758, %v2130
    %v2132 = vrot.slane %v2131, 2
    %v2133 = vadd.f32 %v2131, %v2132
    %v2134 = vrot.slane %v2133, 1
    %v2135 = vadd.f32 %v2133, %v2134
    %v2136 = vadd.f32 %v2091, %v2123
    %v2137 = vadd.f32 %v2092, %v2129
    %v2138 = vadd.f32 %v2093, %v2135
    %v2139 = vmul.f32 %v1637, %v1637
    %v2140 = vmul.f32 %v1639, %v1639
    %v2141 = vmul.f32 %v1758, %v1758
    %v2142 = vrot.slane %v2139, 4
    %v2143 = vadd.f32 %v2139, %v2142
    %v2144 = vrot.slane %v2143, 2
    %v2145 = vadd.f32 %v2143, %v2144
    %v2146 = vrot.slane %v2145, 1
    %v2147 = vadd.f32 %v2145, %v2146
    %v2148 = vrot.slane %v2140, 4
    %v2149 = vadd.f32 %v2140, %v2148
    %v2150 = vrot.slane %v2149, 2
    %v2151 = vadd.f32 %v2149, %v2150
    %v2152 = vrot.slane %v2151, 1
    %v2153 = vadd.f32 %v2151, %v2152
    %v2154 = vrot.slane %v2141, 4
    %v2155 = vadd.f32 %v2141, %v2154
    %v2156 = vrot.slane %v2155, 2
    %v2157 = vadd.f32 %v2155, %v2156
    %v2158 = vrot.slane %v2157, 1
    %v2159 = vadd.f32 %v2157, %v2158
    %v2160 = vadd.f32 %v2115, %v2147
    %v2161 = vadd.f32 %v2116, %v2153
    %v2162 = vadd.f32 %v2117, %v2159
    %v2163 = vrot.slane %v1906, 4
    %v2164 = vadd.f32 %v1906, %v2163
    %v2165 = vrot.slane %v2164, 2
    %v2166 = vadd.f32 %v2164, %v2165
    %v2167 = vrot.slane %v2166, 1
    %v2168 = vadd.f32 %v2166, %v2167
    %v2169 = vrot.slane %v1908, 4
    %v2170 = vadd.f32 %v1908, %v2169
    %v2171 = vrot.slane %v2170, 2
    %v2172 = vadd.f32 %v2170, %v2171
    %v2173 = vrot.slane %v2172, 1
    %v2174 = vadd.f32 %v2172, %v2173
    %v2175 = vrot.slane %v2027, 4
    %v2176 = vadd.f32 %v2027, %v2175
    %v2177 = vrot.slane %v2176, 2
    %v2178 = vadd.f32 %v2176, %v2177
    %v2179 = vrot.slane %v2178, 1
    %v2180 = vadd.f32 %v2178, %v2179
    %v2181 = vadd.f32 %v2136, %v2168
    %v2182 = vadd.f32 %v2137, %v2174
    %v2183 = vadd.f32 %v2138, %v2180
    %v2184 = vmul.f32 %v1906, %v1906
    %v2185 = vmul.f32 %v1908, %v1908
    %v2186 = vmul.f32 %v2027, %v2027
    %v2187 = vrot.slane %v2184, 4
    %v2188 = vadd.f32 %v2184, %v2187
    %v2189 = vrot.slane %v2188, 2
    %v2190 = vadd.f32 %v2188, %v2189
    %v2191 = vrot.slane %v2190, 1
    %v2192 = vadd.f32 %v2190, %v2191
    %v2193 = vrot.slane %v2185, 4
    %v2194 = vadd.f32 %v2185, %v2193
    %v2195 = vrot.slane %v2194, 2
    %v2196 = vadd.f32 %v2194, %v2195
    %v2197 = vrot.slane %v2196, 1
    %v2198 = vadd.f32 %v2196, %v2197
    %v2199 = vrot.slane %v2186, 4
    %v2200 = vadd.f32 %v2186, %v2199
    %v2201 = vrot.slane %v2200, 2
    %v2202 = vadd.f32 %v2200, %v2201
    %v2203 = vrot.slane %v2202, 1
    %v2204 = vadd.f32 %v2202, %v2203
    %v2205 = vadd.f32 %v2160, %v2192
    %v2206 = vadd.f32 %v2161, %v2198
    %v2207 = vadd.f32 %v2162, %v2204
    %v2208 = vmul.f32 %v2181, 0.03125
    %v2209 = vmul.f32 %v2182, 0.03125
    %v2210 = vmul.f32 %v2183, 0.03125
    %v2211 = vmul.f32 %v2205, 0.03125
    %v2212 = vmul.f32 %v2206, 0.03125
    %v2213 = vmul.f32 %v2207, 0.03125
    %v2214 = vmul.f32 %v2208, %v2208
    %v2215 = vmul.f32 %v2209, %v2209
    %v2216 = vmul.f32 %v2210, %v2210
    %v2217 = vsub.f32 %v2211, %v2214
    %v2218 = vsub.f32 %v2212, %v2215
    %v2219 = vsub.f32 %v2213, %v2216
    %v2220 = vmax.f32 %v2217, 0.0
    %v2221 = vmax.f32 %v2218, 0.0
    %v2222 = vmax.f32 %v2219, 0.0
    %v2223 = vadd.f32 %v2220, 1e-05
    %v2224 = vadd.f32 %v2221, 1e-05
    %v2225 = vadd.f32 %v2222, 1e-05
    %v2226 = vrsqrt.pop %v2223
    %v2227 = vrsqrt.pop %v2224
    %v2228 = vrsqrt.pop %v2225
    %v2232 = vcombine.low %v2226, %v2227
    %v2234 = vunpack.c.l.s4 1966171168
    %v2235 = vunpack.c.0.s8 %v2234
    %v2236 = vlaneseq
    %v2237 = vshrl.u32 %v2236, 7
    %v2238 = vsub.s32 %v2235, %v2237
    %v2239 = vrot.slane %v2232, %v2238
    %v2241 = vunpack.c.l.s4 1966171168
    %v2242 = vunpack.c.0.s8 %v2241
    %v2243 = vlaneseq
    %v2244 = vshrl.u32 %v2243, 7
    %v2245 = vsub.s32 %v2242, %v2244
    %v2246 = vrot.slane %v2228, %v2245
    %v2247 = vcombine.low %v2239, %v2246
    %v2249 = vunpack.c.l.s4 1966171168
    %v2250 = vunpack.c.0.s8 %v2249
    %v2251 = vlaneseq
    %v2252 = vshrl.u32 %v2251, 7
    %v2253 = vsub.s32 %v2250, %v2252
    %v2254 = vrot.slane %v2247, %v2253
    %v2256 = vmul.f32 %v2032, %v2254
    %v2258 = vlaneseq
    %v2259 = vshrl.u32 %v2258, 7
    %v2260 = vsub.s32 0, %v2259
    %v2261 = vrot.slane %v2256, %v2260
    %v2262 = vlaneseq
    %v2263 = vshrl.u32 %v2262, 7
    %v2264 = vsub.s32 1, %v2263
    %v2265 = vrot.slane %v2256, %v2264
    %v2266 = vlaneseq
    %v2267 = vshrl.u32 %v2266, 7
    %v2268 = vsub.s32 2, %v2267
    %v2269 = vrot.slane %v2256, %v2268
    %v2273 = vmul.f32 %v2208, %v2261
    %v2274 = vmul.f32 %v2209, %v2265
    %v2275 = vmul.f32 %v2210, %v2269
    %v2279 = vcombine.low %v2273, %v2274
    %v2281 = vunpack.c.l.s4 1966171168
    %v2282 = vunpack.c.0.s8 %v2281
    %v2283 = vlaneseq
    %v2284 = vshrl.u32 %v2283, 7
    %v2285 = vsub.s32 %v2282, %v2284
    %v2286 = vrot.slane %v2279, %v2285
    %v2288 = vunpack.c.l.s4 1966171168
    %v2289 = vunpack.c.0.s8 %v2288
    %v2290 = vlaneseq
    %v2291 = vshrl.u32 %v2290, 7
    %v2292 = vsub.s32 %v2289, %v2291
    %v2293 = vrot.slane %v2275, %v2292
    %v2294 = vcombine.low %v2286, %v2293
    %v2296 = vunpack.c.l.s4 1966171168
    %v2297 = vunpack.c.0.s8 %v2296
    %v2298 = vlaneseq
    %v2299 = vshrl.u32 %v2298, 7
    %v2300 = vsub.s32 %v2297, %v2299
    %v2301 = vrot.slane %v2294, %v2300
    %v2303 = vsub.f32 %v2033, %v2301
    %v2304 = vmax.f32 %v1099, %v1368
    %v2305 = vmax.f32 %v1101, %v1370
    %v2306 = vmax.f32 %v1220, %v1489
    %v2307 = vmax.f32 %v1637, %v1906
    %v2308 = vmax.f32 %v1639, %v1908
    %v2309 = vmax.f32 %v1758, %v2027
    %v2310 = vmax.f32 %v2304, %v2307
    %v2311 = vmax.f32 %v2305, %v2308
    %v2312 = vmax.f32 %v2306, %v2309
    %v2313 = vmin.f32 %v1099, %v1368
    %v2314 = vmin.f32 %v1101, %v1370
    %v2315 = vmin.f32 %v1220, %v1489
    %v2316 = vmin.f32 %v1637, %v1906
    %v2317 = vmin.f32 %v1639, %v1908
    %v2318 = vmin.f32 %v1758, %v2027
    %v2319 = vmin.f32 %v2313, %v2316
    %v2320 = vmin.f32 %v2314, %v2317
    %v2321 = vmin.f32 %v2315, %v2318
    %vm2322 = vcmp.ge.f32.partialorder %v2256, 0.0
    %v2323 = vsel %vm2322, 1, 0
    %v2324 = vlaneseq
    %v2325 = vshrl.u32 %v2324, 7
    %v2326 = vsub.s32 0, %v2325
    %v2327 = vrot.slane %v2323, %v2326
    %v2328 = vlaneseq
    %v2329 = vshrl.u32 %v2328, 7
    %v2330 = vsub.s32 1, %v2329
    %v2331 = vrot.slane %v2323, %v2330
    %v2332 = vlaneseq
    %v2333 = vshrl.u32 %v2332, 7
    %v2334 = vsub.s32 2, %v2333
    %v2335 = vrot.slane %v2323, %v2334
    %vm2336 = vcmp.eq.s32.totalorder %v2327, 1
    %vm2337 = vcmp.eq.s32.totalorder %v2331, 1
    %vm2338 = vcmp.eq.s32.totalorder %v2335, 1
    %v2339 = vsel %vm2336, %v2310, %v2319
    %v2340 = vsel %vm2337, %v2311, %v2320
    %v2341 = vsel %vm2338, %v2312, %v2321
    %v2342 = vmul.f32 %v2261, %v2339
    %v2343 = vmul.f32 %v2265, %v2340
    %v2344 = vmul.f32 %v2269, %v2341
    %v2346 = vlaneseq
    %v2347 = vshrl.u32 %v2346, 7
    %v2348 = vsub.s32 0, %v2347
    %v2349 = vrot.slane %v2303, %v2348
    %v2350 = vlaneseq
    %v2351 = vshrl.u32 %v2350, 7
    %v2352 = vsub.s32 1, %v2351
    %v2353 = vrot.slane %v2303, %v2352
    %v2354 = vlaneseq
    %v2355 = vshrl.u32 %v2354, 7
    %v2356 = vsub.s32 2, %v2355
    %v2357 = vrot.slane %v2303, %v2356
    %v2361 = vadd.f32 %v2342, %v2349
    %v2362 = vadd.f32 %v2343, %v2353
    %v2363 = vadd.f32 %v2344, %v2357
    %v2364 = vmax.f32 %v2361, 0.0
    %v2365 = vmax.f32 %v2362, 0.0
    %v2366 = vmax.f32 %v2363, 0.0
    %v2367 = vpack.c.bf16 %v2364, %v2364
    %v2368 = vpack.c.bf16 %v2365, %v2365
    %v2369 = vpack.c.bf16 %v2366, %v2366
    %v2370 = vld [vmem:[%s7] sm:$0xff]
    %v2371 = vld [vmem:[%s7 + $0x8] sm:$0xff]
    %v2372 = vld [vmem:[%s7 + $0x10] sm:$0xff]
    %v2373 = vld [vmem:[%s7 + $0x18] sm:$0xff]
    %v2374 = vld [vmem:[%s7 + $0x20] sm:$0xff]
    %v2375 = vld [vmem:[%s7 + $0x28] sm:$0xff]
    %v2376 = vld [vmem:[%s7 + $0x30] sm:$0xff]
    %v2377 = vld [vmem:[%s7 + $0x38] sm:$0xff]
    %v2378 = vld [vmem:[%s7 + $0x40] sm:$0xff]
    %v2379 = vld [vmem:[%s7 + $0x48] sm:$0xff]
    %v2380 = vld [vmem:[%s7 + $0x50] sm:$0xff]
    %v2381 = vld [vmem:[%s7 + $0x58] sm:$0xff]
    %v2382 = vld [vmem:[%s7 + $0x60] sm:$0xff]
    %v2383 = vld [vmem:[%s7 + $0x68] sm:$0xff]
    %v2384 = vld [vmem:[%s7 + $0x70] sm:$0xff]
    %v2385 = vld [vmem:[%s7 + $0x78] sm:$0xff]
    %v2386 = vld [vmem:[%s7 + $0x80] sm:$0xff]
    %v2387 = vld [vmem:[%s7 + $0x88] sm:$0xff]
    %v2388 = vld [vmem:[%s7 + $0x90] sm:$0xff]
    %v2389 = vld [vmem:[%s7 + $0x98] sm:$0xff]
    %v2390 = vld [vmem:[%s7 + $0xa0] sm:$0xff]
    %v2391 = vld [vmem:[%s7 + $0xa8] sm:$0xff]
    %v2392 = vld [vmem:[%s7 + $0xb0] sm:$0xff]
    %v2393 = vld [vmem:[%s7 + $0xb8] sm:$0xff]
    %v2394 = vld [vmem:[%s7 + $0xc0] sm:$0xff]
    %v2395 = vld [vmem:[%s7 + $0xc8] sm:$0xff]
    %v2396 = vld [vmem:[%s7 + $0xd0] sm:$0xff]
    %v2397 = vld [vmem:[%s7 + $0xd8] sm:$0xff]
    %v2398 = vld [vmem:[%s7 + $0xe0] sm:$0xff]
    %v2399 = vld [vmem:[%s7 + $0xe8] sm:$0xff]
    %v2400 = vld [vmem:[%s7 + $0xf0] sm:$0xff]
    %v2401 = vld [vmem:[%s7 + $0xf8] sm:$0xff]
    %v2402 = vld [vmem:[%s7 + $0x100] sm:$0xff]
    %v2403 = vld [vmem:[%s7 + $0x108] sm:$0xff]
    %v2404 = vld [vmem:[%s7 + $0x110] sm:$0xff]
    %v2405 = vld [vmem:[%s7 + $0x118] sm:$0xff]
    %v2406 = vld [vmem:[%s7 + $0x120] sm:$0xff]
    %v2407 = vld [vmem:[%s7 + $0x128] sm:$0xff]
    %v2408 = vld [vmem:[%s7 + $0x130] sm:$0xff]
    %v2409 = vld [vmem:[%s7 + $0x138] sm:$0xff]
    %v2410 = vld [vmem:[%s7 + $0x140] sm:$0xff]
    %v2411 = vld [vmem:[%s7 + $0x148] sm:$0xff]
    %v2412 = vld [vmem:[%s7 + $0x150] sm:$0xff]
    %v2413 = vld [vmem:[%s7 + $0x158] sm:$0xff]
    %v2414 = vld [vmem:[%s7 + $0x160] sm:$0xff]
    %v2415 = vld [vmem:[%s7 + $0x168] sm:$0xff]
    %v2416 = vld [vmem:[%s7 + $0x170] sm:$0xff]
    %v2417 = vld [vmem:[%s7 + $0x178] sm:$0xff]
    %v2418 = vld [vmem:[%s7 + $0x180] sm:$0xff]
    %v2419 = vld [vmem:[%s7 + $0x188] sm:$0xff]
    %v2420 = vld [vmem:[%s7 + $0x190] sm:$0xff]
    %v2421 = vld [vmem:[%s7 + $0x198] sm:$0xff]
    %v2422 = vld [vmem:[%s7 + $0x1a0] sm:$0xff]
    %v2423 = vld [vmem:[%s7 + $0x1a8] sm:$0xff]
    %v2424 = vld [vmem:[%s7 + $0x1b0] sm:$0xff]
    %v2425 = vld [vmem:[%s7 + $0x1b8] sm:$0xff]
    %v2426 = vld [vmem:[%s7 + $0x1c0] sm:$0xff]
    %v2427 = vld [vmem:[%s7 + $0x1c8] sm:$0xff]
    %v2428 = vld [vmem:[%s7 + $0x1d0] sm:$0xff]
    %v2429 = vld [vmem:[%s7 + $0x1d8] sm:$0xff]
    %v2430 = vld [vmem:[%s7 + $0x1e0] sm:$0xff]
    %v2431 = vld [vmem:[%s7 + $0x1e8] sm:$0xff]
    %v2432 = vld [vmem:[%s7 + $0x1f0] sm:$0xff]
    %v2433 = vld [vmem:[%s7 + $0x1f8] sm:$0xff]
    %v2434 = vld [vmem:[%s7 + $0x200] sm:$0xff]
    %v2435 = vld [vmem:[%s7 + $0x208] sm:$0xff]
    %v2436 = vld [vmem:[%s7 + $0x210] sm:$0xff]
    %v2437 = vld [vmem:[%s7 + $0x218] sm:$0xff]
    %v2438 = vld [vmem:[%s7 + $0x220] sm:$0xff]
    %v2439 = vld [vmem:[%s7 + $0x228] sm:$0xff]
    %v2440 = vld [vmem:[%s7 + $0x230] sm:$0xff]
    %v2441 = vld [vmem:[%s7 + $0x238] sm:$0xff]
    %v2442 = vld [vmem:[%s7 + $0x240] sm:$0xff]
    %v2443 = vld [vmem:[%s7 + $0x248] sm:$0xff]
    %v2444 = vld [vmem:[%s7 + $0x250] sm:$0xff]
    %v2445 = vld [vmem:[%s7 + $0x258] sm:$0xff]
    %v2446 = vld [vmem:[%s7 + $0x260] sm:$0xff]
    %v2447 = vld [vmem:[%s7 + $0x268] sm:$0xff]
    %v2448 = vld [vmem:[%s7 + $0x270] sm:$0xff]
    %v2449 = vld [vmem:[%s7 + $0x278] sm:$0xff]
    %v2450 = vld [vmem:[%s7 + $0x280] sm:$0xff]
    %v2451 = vld [vmem:[%s7 + $0x288] sm:$0xff]
    %v2452 = vld [vmem:[%s7 + $0x290] sm:$0xff]
    %v2453 = vld [vmem:[%s7 + $0x298] sm:$0xff]
    %v2454 = vld [vmem:[%s7 + $0x2a0] sm:$0xff]
    %v2455 = vld [vmem:[%s7 + $0x2a8] sm:$0xff]
    %v2456 = vld [vmem:[%s7 + $0x2b0] sm:$0xff]
    %v2457 = vld [vmem:[%s7 + $0x2b8] sm:$0xff]
    %v2458 = vld [vmem:[%s7 + $0x2c0] sm:$0xff]
    %v2459 = vld [vmem:[%s7 + $0x2c8] sm:$0xff]
    %v2460 = vld [vmem:[%s7 + $0x2d0] sm:$0xff]
    %v2461 = vld [vmem:[%s7 + $0x2d8] sm:$0xff]
    %v2462 = vld [vmem:[%s7 + $0x2e0] sm:$0xff]
    %v2463 = vld [vmem:[%s7 + $0x2e8] sm:$0xff]
    %v2464 = vld [vmem:[%s7 + $0x2f0] sm:$0xff]
    %v2465 = vld [vmem:[%s7 + $0x2f8] sm:$0xff]
    %v2466 = vld [vmem:[%s7 + $0x300] sm:$0xff]
    %v2467 = vld [vmem:[%s7 + $0x308] sm:$0xff]
    %v2468 = vld [vmem:[%s7 + $0x310] sm:$0xff]
    %v2469 = vld [vmem:[%s7 + $0x318] sm:$0xff]
    %v2470 = vld [vmem:[%s7 + $0x320] sm:$0xff]
    %v2471 = vld [vmem:[%s7 + $0x328] sm:$0xff]
    %v2472 = vld [vmem:[%s7 + $0x330] sm:$0xff]
    %v2473 = vld [vmem:[%s7 + $0x338] sm:$0xff]
    %v2474 = vld [vmem:[%s7 + $0x340] sm:$0xff]
    %v2475 = vld [vmem:[%s7 + $0x348] sm:$0xff]
    %v2476 = vld [vmem:[%s7 + $0x350] sm:$0xff]
    %v2477 = vld [vmem:[%s7 + $0x358] sm:$0xff]
    %v2478 = vld [vmem:[%s7 + $0x360] sm:$0xff]
    %v2479 = vld [vmem:[%s7 + $0x368] sm:$0xff]
    %v2480 = vld [vmem:[%s7 + $0x370] sm:$0xff]
    %v2481 = vld [vmem:[%s7 + $0x378] sm:$0xff]
    %v2482 = vld [vmem:[%s7 + $0x380] sm:$0xff]
    %v2483 = vld [vmem:[%s7 + $0x388] sm:$0xff]
    %v2484 = vld [vmem:[%s7 + $0x390] sm:$0xff]
    %v2485 = vld [vmem:[%s7 + $0x398] sm:$0xff]
    %v2486 = vld [vmem:[%s7 + $0x3a0] sm:$0xff]
    %v2487 = vld [vmem:[%s7 + $0x3a8] sm:$0xff]
    %v2488 = vld [vmem:[%s7 + $0x3b0] sm:$0xff]
    %v2489 = vld [vmem:[%s7 + $0x3b8] sm:$0xff]
    %v2490 = vld [vmem:[%s7 + $0x3c0] sm:$0xff]
    %v2491 = vld [vmem:[%s7 + $0x3c8] sm:$0xff]
    %v2492 = vld [vmem:[%s7 + $0x3d0] sm:$0xff]
    %v2493 = vld [vmem:[%s7 + $0x3d8] sm:$0xff]
    %v2494 = vld [vmem:[%s7 + $0x3e0] sm:$0xff]
    %v2495 = vld [vmem:[%s7 + $0x3e8] sm:$0xff]
    %v2496 = vld [vmem:[%s7 + $0x3f0] sm:$0xff]
    %v2497 = vld [vmem:[%s7 + $0x3f8] sm:$0xff]
    %v2498 = vld [vmem:[%s7 + $0x400] sm:$0xff]
    %v2499 = vld [vmem:[%s7 + $0x408] sm:$0xff]
    %v2500 = vld [vmem:[%s7 + $0x410] sm:$0xff]
    %v2501 = vld [vmem:[%s7 + $0x418] sm:$0xff]
    %v2502 = vld [vmem:[%s7 + $0x420] sm:$0xff]
    %v2503 = vld [vmem:[%s7 + $0x428] sm:$0xff]
    %v2504 = vld [vmem:[%s7 + $0x430] sm:$0xff]
    %v2505 = vld [vmem:[%s7 + $0x438] sm:$0xff]
    %v2506 = vld [vmem:[%s7 + $0x440] sm:$0xff]
    %v2507 = vld [vmem:[%s7 + $0x448] sm:$0xff]
    %v2508 = vld [vmem:[%s7 + $0x450] sm:$0xff]
    %v2509 = vld [vmem:[%s7 + $0x458] sm:$0xff]
    %v2510 = vld [vmem:[%s7 + $0x460] sm:$0xff]
    %v2511 = vld [vmem:[%s7 + $0x468] sm:$0xff]
    %v2512 = vld [vmem:[%s7 + $0x470] sm:$0xff]
    %v2513 = vld [vmem:[%s7 + $0x478] sm:$0xff]
    %v2514 = vld [vmem:[%s7 + $0x480] sm:$0xff]
    %v2515 = vld [vmem:[%s7 + $0x488] sm:$0xff]
    %v2516 = vld [vmem:[%s7 + $0x490] sm:$0xff]
    %v2517 = vld [vmem:[%s7 + $0x498] sm:$0xff]
    %v2518 = vld [vmem:[%s7 + $0x4a0] sm:$0xff]
    %v2519 = vld [vmem:[%s7 + $0x4a8] sm:$0xff]
    %v2520 = vld [vmem:[%s7 + $0x4b0] sm:$0xff]
    %v2521 = vld [vmem:[%s7 + $0x4b8] sm:$0xff]
    %v2522 = vld [vmem:[%s7 + $0x4c0] sm:$0xff]
    %v2523 = vld [vmem:[%s7 + $0x4c8] sm:$0xff]
    %v2524 = vld [vmem:[%s7 + $0x4d0] sm:$0xff]
    %v2525 = vld [vmem:[%s7 + $0x4d8] sm:$0xff]
    %v2526 = vld [vmem:[%s7 + $0x4e0] sm:$0xff]
    %v2527 = vld [vmem:[%s7 + $0x4e8] sm:$0xff]
    %v2528 = vld [vmem:[%s7 + $0x4f0] sm:$0xff]
    %v2529 = vld [vmem:[%s7 + $0x4f8] sm:$0xff]
    %v2530 = vld [vmem:[%s7 + $0x500] sm:$0xff]
    %v2531 = vld [vmem:[%s7 + $0x508] sm:$0xff]
    %v2532 = vld [vmem:[%s7 + $0x510] sm:$0xff]
    %v2533 = vld [vmem:[%s7 + $0x518] sm:$0xff]
    %v2534 = vld [vmem:[%s7 + $0x520] sm:$0xff]
    %v2535 = vld [vmem:[%s7 + $0x528] sm:$0xff]
    %v2536 = vld [vmem:[%s7 + $0x530] sm:$0xff]
    %v2537 = vld [vmem:[%s7 + $0x538] sm:$0xff]
    %v2538 = vld [vmem:[%s7 + $0x540] sm:$0xff]
    %v2539 = vld [vmem:[%s7 + $0x548] sm:$0xff]
    %v2540 = vld [vmem:[%s7 + $0x550] sm:$0xff]
    %v2541 = vld [vmem:[%s7 + $0x558] sm:$0xff]
    %v2542 = vld [vmem:[%s7 + $0x560] sm:$0xff]
    %v2543 = vld [vmem:[%s7 + $0x568] sm:$0xff]
    %v2544 = vld [vmem:[%s7 + $0x570] sm:$0xff]
    %v2545 = vld [vmem:[%s7 + $0x578] sm:$0xff]
    %v2546 = vld [vmem:[%s7 + $0x580] sm:$0xff]
    %v2547 = vld [vmem:[%s7 + $0x588] sm:$0xff]
    %v2548 = vld [vmem:[%s7 + $0x590] sm:$0xff]
    %v2549 = vld [vmem:[%s7 + $0x598] sm:$0xff]
    %v2550 = vld [vmem:[%s7 + $0x5a0] sm:$0xff]
    %v2551 = vld [vmem:[%s7 + $0x5a8] sm:$0xff]
    %v2552 = vld [vmem:[%s7 + $0x5b0] sm:$0xff]
    %v2553 = vld [vmem:[%s7 + $0x5b8] sm:$0xff]
    %v2554 = vld [vmem:[%s7 + $0x5c0] sm:$0xff]
    %v2555 = vld [vmem:[%s7 + $0x5c8] sm:$0xff]
    %v2556 = vld [vmem:[%s7 + $0x5d0] sm:$0xff]
    %v2557 = vld [vmem:[%s7 + $0x5d8] sm:$0xff]
    %v2558 = vld [vmem:[%s7 + $0x5e0] sm:$0xff]
    %v2559 = vld [vmem:[%s7 + $0x5e8] sm:$0xff]
    %v2560 = vld [vmem:[%s7 + $0x5f0] sm:$0xff]
    %v2561 = vld [vmem:[%s7 + $0x5f8] sm:$0xff]
    %v2565 = vrot.slane %v2367, 1
    %v2566 = vrot.slane %v2368, 1
    %v2567 = vrot.slane %v2369, 1
    %v2667 = vunpack.c.l.b16 %v2466
    %v2668 = vunpack.c.h.b16 %v2466
    %v2669 = vunpack.c.l.b16 %v2467
    %v2670 = vunpack.c.h.b16 %v2467
    %v2671 = vunpack.c.l.b16 %v2468
    %v2672 = vunpack.c.h.b16 %v2468
    %v2673 = vunpack.c.l.b16 %v2469
    %v2674 = vunpack.c.h.b16 %v2469
    %v2675 = vunpack.c.l.b16 %v2470
    %v2676 = vunpack.c.h.b16 %v2470
    %v2677 = vunpack.c.l.b16 %v2471
    %v2678 = vunpack.c.h.b16 %v2471
    %v2679 = vunpack.c.l.b16 %v2472
    %v2680 = vunpack.c.h.b16 %v2472
    %v2681 = vunpack.c.l.b16 %v2473
    %v2682 = vunpack.c.h.b16 %v2473
    %v2683 = vunpack.c.l.b16 %v2474
    %v2684 = vunpack.c.h.b16 %v2474
    %v2685 = vunpack.c.l.b16 %v2475
    %v2686 = vunpack.c.h.b16 %v2475
    %v2687 = vunpack.c.l.b16 %v2476
    %v2688 = vunpack.c.h.b16 %v2476
    %v2689 = vunpack.c.l.b16 %v2477
    %v2690 = vunpack.c.h.b16 %v2477
    %v2691 = vunpack.c.l.b16 %v2478
    %v2692 = vunpack.c.h.b16 %v2478
    %v2693 = vunpack.c.l.b16 %v2479
    %v2694 = vunpack.c.h.b16 %v2479
    %v2695 = vunpack.c.l.b16 %v2480
    %v2696 = vunpack.c.h.b16 %v2480
    %v2697 = vunpack.c.l.b16 %v2481
    %v2698 = vunpack.c.h.b16 %v2481
    %v2699 = vunpack.c.l.b16 %v2482
    %v2700 = vunpack.c.h.b16 %v2482
    %v2701 = vunpack.c.l.b16 %v2483
    %v2702 = vunpack.c.h.b16 %v2483
    %v2703 = vunpack.c.l.b16 %v2484
    %v2704 = vunpack.c.h.b16 %v2484
    %v2705 = vunpack.c.l.b16 %v2485
    %v2706 = vunpack.c.h.b16 %v2485
    %v2707 = vunpack.c.l.b16 %v2486
    %v2708 = vunpack.c.h.b16 %v2486
    %v2709 = vunpack.c.l.b16 %v2487
    %v2710 = vunpack.c.h.b16 %v2487
    %v2711 = vunpack.c.l.b16 %v2488
    %v2712 = vunpack.c.h.b16 %v2488
    %v2713 = vunpack.c.l.b16 %v2489
    %v2714 = vunpack.c.h.b16 %v2489
    %v2715 = vunpack.c.l.b16 %v2490
    %v2716 = vunpack.c.h.b16 %v2490
    %v2717 = vunpack.c.l.b16 %v2491
    %v2718 = vunpack.c.h.b16 %v2491
    %v2719 = vunpack.c.l.b16 %v2492
    %v2720 = vunpack.c.h.b16 %v2492
    %v2721 = vunpack.c.l.b16 %v2493
    %v2722 = vunpack.c.h.b16 %v2493
    %v2723 = vunpack.c.l.b16 %v2494
    %v2724 = vunpack.c.h.b16 %v2494
    %v2725 = vunpack.c.l.b16 %v2495
    %v2726 = vunpack.c.h.b16 %v2495
    %v2727 = vunpack.c.l.b16 %v2496
    %v2728 = vunpack.c.h.b16 %v2496
    %v2729 = vunpack.c.l.b16 %v2497
    %v2730 = vunpack.c.h.b16 %v2497
    %v2731 = vunpack.c.l.b16 %v2498
    %v2732 = vunpack.c.h.b16 %v2498
    %v2733 = vunpack.c.l.b16 %v2499
    %v2734 = vunpack.c.h.b16 %v2499
    %v2735 = vunpack.c.l.b16 %v2500
    %v2736 = vunpack.c.h.b16 %v2500
    %v2737 = vunpack.c.l.b16 %v2501
    %v2738 = vunpack.c.h.b16 %v2501
    %v2739 = vunpack.c.l.b16 %v2502
    %v2740 = vunpack.c.h.b16 %v2502
    %v2741 = vunpack.c.l.b16 %v2503
    %v2742 = vunpack.c.h.b16 %v2503
    %v2743 = vunpack.c.l.b16 %v2504
    %v2744 = vunpack.c.h.b16 %v2504
    %v2745 = vunpack.c.l.b16 %v2505
    %v2746 = vunpack.c.h.b16 %v2505
    %v2747 = vunpack.c.l.b16 %v2506
    %v2748 = vunpack.c.h.b16 %v2506
    %v2749 = vunpack.c.l.b16 %v2507
    %v2750 = vunpack.c.h.b16 %v2507
    %v2751 = vunpack.c.l.b16 %v2508
    %v2752 = vunpack.c.h.b16 %v2508
    %v2753 = vunpack.c.l.b16 %v2509
    %v2754 = vunpack.c.h.b16 %v2509
    %v2755 = vunpack.c.l.b16 %v2510
    %v2756 = vunpack.c.h.b16 %v2510
    %v2757 = vunpack.c.l.b16 %v2511
    %v2758 = vunpack.c.h.b16 %v2511
    %v2759 = vunpack.c.l.b16 %v2512
    %v2760 = vunpack.c.h.b16 %v2512
    %v2761 = vunpack.c.l.b16 %v2513
    %v2762 = vunpack.c.h.b16 %v2513
    %v2763 = vunpack.c.l.b16 %v2514
    %v2764 = vunpack.c.h.b16 %v2514
    %v2765 = vunpack.c.l.b16 %v2515
    %v2766 = vunpack.c.h.b16 %v2515
    %v2767 = vunpack.c.l.b16 %v2516
    %v2768 = vunpack.c.h.b16 %v2516
    %v2769 = vunpack.c.l.b16 %v2517
    %v2770 = vunpack.c.h.b16 %v2517
    %v2771 = vunpack.c.l.b16 %v2518
    %v2772 = vunpack.c.h.b16 %v2518
    %v2773 = vunpack.c.l.b16 %v2519
    %v2774 = vunpack.c.h.b16 %v2519
    %v2775 = vunpack.c.l.b16 %v2520
    %v2776 = vunpack.c.h.b16 %v2520
    %v2777 = vunpack.c.l.b16 %v2521
    %v2778 = vunpack.c.h.b16 %v2521
    %v2779 = vunpack.c.l.b16 %v2522
    %v2780 = vunpack.c.h.b16 %v2522
    %v2781 = vunpack.c.l.b16 %v2523
    %v2782 = vunpack.c.h.b16 %v2523
    %v2783 = vunpack.c.l.b16 %v2524
    %v2784 = vunpack.c.h.b16 %v2524
    %v2785 = vunpack.c.l.b16 %v2525
    %v2786 = vunpack.c.h.b16 %v2525
    %v2787 = vunpack.c.l.b16 %v2526
    %v2788 = vunpack.c.h.b16 %v2526
    %v2789 = vunpack.c.l.b16 %v2527
    %v2790 = vunpack.c.h.b16 %v2527
    %v2791 = vunpack.c.l.b16 %v2528
    %v2792 = vunpack.c.h.b16 %v2528
    %v2793 = vunpack.c.l.b16 %v2529
    %v2794 = vunpack.c.h.b16 %v2529
    %v2795 = vunpack.c.l.b16 %v2530
    %v2796 = vunpack.c.h.b16 %v2530
    %v2797 = vunpack.c.l.b16 %v2531
    %v2798 = vunpack.c.h.b16 %v2531
    %v2799 = vunpack.c.l.b16 %v2532
    %v2800 = vunpack.c.h.b16 %v2532
    %v2801 = vunpack.c.l.b16 %v2533
    %v2802 = vunpack.c.h.b16 %v2533
    %v2803 = vunpack.c.l.b16 %v2534
    %v2804 = vunpack.c.h.b16 %v2534
    %v2805 = vunpack.c.l.b16 %v2535
    %v2806 = vunpack.c.h.b16 %v2535
    %v2807 = vunpack.c.l.b16 %v2536
    %v2808 = vunpack.c.h.b16 %v2536
    %v2809 = vunpack.c.l.b16 %v2537
    %v2810 = vunpack.c.h.b16 %v2537
    %v2811 = vunpack.c.l.b16 %v2538
    %v2812 = vunpack.c.h.b16 %v2538
    %v2813 = vunpack.c.l.b16 %v2539
    %v2814 = vunpack.c.h.b16 %v2539
    %v2815 = vunpack.c.l.b16 %v2540
    %v2816 = vunpack.c.h.b16 %v2540
    %v2817 = vunpack.c.l.b16 %v2541
    %v2818 = vunpack.c.h.b16 %v2541
    %v2819 = vunpack.c.l.b16 %v2542
    %v2820 = vunpack.c.h.b16 %v2542
    %v2821 = vunpack.c.l.b16 %v2543
    %v2822 = vunpack.c.h.b16 %v2543
    %v2823 = vunpack.c.l.b16 %v2544
    %v2824 = vunpack.c.h.b16 %v2544
    %v2825 = vunpack.c.l.b16 %v2545
    %v2826 = vunpack.c.h.b16 %v2545
    %v2827 = vunpack.c.l.b16 %v2546
    %v2828 = vunpack.c.h.b16 %v2546
    %v2829 = vunpack.c.l.b16 %v2547
    %v2830 = vunpack.c.h.b16 %v2547
    %v2831 = vunpack.c.l.b16 %v2548
    %v2832 = vunpack.c.h.b16 %v2548
    %v2833 = vunpack.c.l.b16 %v2549
    %v2834 = vunpack.c.h.b16 %v2549
    %v2835 = vunpack.c.l.b16 %v2550
    %v2836 = vunpack.c.h.b16 %v2550
    %v2837 = vunpack.c.l.b16 %v2551
    %v2838 = vunpack.c.h.b16 %v2551
    %v2839 = vunpack.c.l.b16 %v2552
    %v2840 = vunpack.c.h.b16 %v2552
    %v2841 = vunpack.c.l.b16 %v2553
    %v2842 = vunpack.c.h.b16 %v2553
    %v2843 = vunpack.c.l.b16 %v2554
    %v2844 = vunpack.c.h.b16 %v2554
    %v2845 = vunpack.c.l.b16 %v2555
    %v2846 = vunpack.c.h.b16 %v2555
    %v2847 = vunpack.c.l.b16 %v2556
    %v2848 = vunpack.c.h.b16 %v2556
    %v2849 = vunpack.c.l.b16 %v2557
    %v2850 = vunpack.c.h.b16 %v2557
    %v2851 = vunpack.c.l.b16 %v2558
    %v2852 = vunpack.c.h.b16 %v2558
    %v2853 = vunpack.c.l.b16 %v2559
    %v2854 = vunpack.c.h.b16 %v2559
    %v2855 = vunpack.c.l.b16 %v2560
    %v2856 = vunpack.c.h.b16 %v2560
    %v2857 = vunpack.c.l.b16 %v2561
    %v2858 = vunpack.c.h.b16 %v2561
    %v2859 = vpack.c.b16 %v2671, %v2667
    %v2860 = vpack.c.b16 %v2672, %v2668
    %v2861 = vpack.c.b16 %v2673, %v2669
    %v2862 = vpack.c.b16 %v2674, %v2670
    %v2863 = vpack.c.b16 %v2679, %v2675
    %v2864 = vpack.c.b16 %v2680, %v2676
    %v2865 = vpack.c.b16 %v2681, %v2677
    %v2866 = vpack.c.b16 %v2682, %v2678
    %v2867 = vpack.c.b16 %v2687, %v2683
    %v2868 = vpack.c.b16 %v2688, %v2684
    %v2869 = vpack.c.b16 %v2689, %v2685
    %v2870 = vpack.c.b16 %v2690, %v2686
    %v2871 = vpack.c.b16 %v2695, %v2691
    %v2872 = vpack.c.b16 %v2696, %v2692
    %v2873 = vpack.c.b16 %v2697, %v2693
    %v2874 = vpack.c.b16 %v2698, %v2694
    %v2875 = vpack.c.b16 %v2703, %v2699
    %v2876 = vpack.c.b16 %v2704, %v2700
    %v2877 = vpack.c.b16 %v2705, %v2701
    %v2878 = vpack.c.b16 %v2706, %v2702
    %v2879 = vpack.c.b16 %v2711, %v2707
    %v2880 = vpack.c.b16 %v2712, %v2708
    %v2881 = vpack.c.b16 %v2713, %v2709
    %v2882 = vpack.c.b16 %v2714, %v2710
    %v2883 = vpack.c.b16 %v2719, %v2715
    %v2884 = vpack.c.b16 %v2720, %v2716
    %v2885 = vpack.c.b16 %v2721, %v2717
    %v2886 = vpack.c.b16 %v2722, %v2718
    %v2887 = vpack.c.b16 %v2727, %v2723
    %v2888 = vpack.c.b16 %v2728, %v2724
    %v2889 = vpack.c.b16 %v2729, %v2725
    %v2890 = vpack.c.b16 %v2730, %v2726
    %v2891 = vpack.c.b16 %v2735, %v2731
    %v2892 = vpack.c.b16 %v2736, %v2732
    %v2893 = vpack.c.b16 %v2737, %v2733
    %v2894 = vpack.c.b16 %v2738, %v2734
    %v2895 = vpack.c.b16 %v2743, %v2739
    %v2896 = vpack.c.b16 %v2744, %v2740
    %v2897 = vpack.c.b16 %v2745, %v2741
    %v2898 = vpack.c.b16 %v2746, %v2742
    %v2899 = vpack.c.b16 %v2751, %v2747
    %v2900 = vpack.c.b16 %v2752, %v2748
    %v2901 = vpack.c.b16 %v2753, %v2749
    %v2902 = vpack.c.b16 %v2754, %v2750
    %v2903 = vpack.c.b16 %v2759, %v2755
    %v2904 = vpack.c.b16 %v2760, %v2756
    %v2905 = vpack.c.b16 %v2761, %v2757
    %v2906 = vpack.c.b16 %v2762, %v2758
    %v2907 = vpack.c.b16 %v2767, %v2763
    %v2908 = vpack.c.b16 %v2768, %v2764
    %v2909 = vpack.c.b16 %v2769, %v2765
    %v2910 = vpack.c.b16 %v2770, %v2766
    %v2911 = vpack.c.b16 %v2775, %v2771
    %v2912 = vpack.c.b16 %v2776, %v2772
    %v2913 = vpack.c.b16 %v2777, %v2773
    %v2914 = vpack.c.b16 %v2778, %v2774
    %v2915 = vpack.c.b16 %v2783, %v2779
    %v2916 = vpack.c.b16 %v2784, %v2780
    %v2917 = vpack.c.b16 %v2785, %v2781
    %v2918 = vpack.c.b16 %v2786, %v2782
    %v2919 = vpack.c.b16 %v2791, %v2787
    %v2920 = vpack.c.b16 %v2792, %v2788
    %v2921 = vpack.c.b16 %v2793, %v2789
    %v2922 = vpack.c.b16 %v2794, %v2790
    %v2923 = vpack.c.b16 %v2799, %v2795
    %v2924 = vpack.c.b16 %v2800, %v2796
    %v2925 = vpack.c.b16 %v2801, %v2797
    %v2926 = vpack.c.b16 %v2802, %v2798
    %v2927 = vpack.c.b16 %v2807, %v2803
    %v2928 = vpack.c.b16 %v2808, %v2804
    %v2929 = vpack.c.b16 %v2809, %v2805
    %v2930 = vpack.c.b16 %v2810, %v2806
    %v2931 = vpack.c.b16 %v2815, %v2811
    %v2932 = vpack.c.b16 %v2816, %v2812
    %v2933 = vpack.c.b16 %v2817, %v2813
    %v2934 = vpack.c.b16 %v2818, %v2814
    %v2935 = vpack.c.b16 %v2823, %v2819
    %v2936 = vpack.c.b16 %v2824, %v2820
    %v2937 = vpack.c.b16 %v2825, %v2821
    %v2938 = vpack.c.b16 %v2826, %v2822
    %v2939 = vpack.c.b16 %v2831, %v2827
    %v2940 = vpack.c.b16 %v2832, %v2828
    %v2941 = vpack.c.b16 %v2833, %v2829
    %v2942 = vpack.c.b16 %v2834, %v2830
    %v2943 = vpack.c.b16 %v2839, %v2835
    %v2944 = vpack.c.b16 %v2840, %v2836
    %v2945 = vpack.c.b16 %v2841, %v2837
    %v2946 = vpack.c.b16 %v2842, %v2838
    %v2947 = vpack.c.b16 %v2847, %v2843
    %v2948 = vpack.c.b16 %v2848, %v2844
    %v2949 = vpack.c.b16 %v2849, %v2845
    %v2950 = vpack.c.b16 %v2850, %v2846
    %v2951 = vpack.c.b16 %v2855, %v2851
    %v2952 = vpack.c.b16 %v2856, %v2852
    %v2953 = vpack.c.b16 %v2857, %v2853
    %v2954 = vpack.c.b16 %v2858, %v2854
    %3051 = vmatprep.subr.bf16.mxu0 %v2860
    %3052 = vmatpush1.bf16.msra.mxu0 %v2859
    %3053 = vmatprep.subr.bf16.mxu0 %v2864
    %3054 = vmatpush1.bf16.msra.mxu0 %v2863
    %3055 = vmatprep.subr.bf16.mxu0 %v2868
    %3056 = vmatpush1.bf16.msra.mxu0 %v2867
    %3057 = vmatprep.subr.bf16.mxu0 %v2872
    %3058 = vmatpush1.bf16.msra.mxu0 %v2871
    %3059 = vmatprep.subr.bf16.mxu0 %v2876
    %3060 = vmatpush1.bf16.msra.mxu0 %v2875
    %3061 = vmatprep.subr.bf16.mxu0 %v2880
    %3062 = vmatpush1.bf16.msra.mxu0 %v2879
    %3063 = vmatprep.subr.bf16.mxu0 %v2884
    %3064 = vmatpush1.bf16.msra.mxu0 %v2883
    %3065 = vmatprep.subr.bf16.mxu0 %v2888
    %3066 = vmatpush1.bf16.msra.mxu0 %v2887
    %3067 = vmatprep.subr.bf16.mxu0 %v2892
    %3068 = vmatpush1.bf16.msra.mxu0 %v2891
    %3069 = vmatprep.subr.bf16.mxu0 %v2896
    %3070 = vmatpush1.bf16.msra.mxu0 %v2895
    %3071 = vmatprep.subr.bf16.mxu0 %v2900
    %3072 = vmatpush1.bf16.msra.mxu0 %v2899
    %3073 = vmatprep.subr.bf16.mxu0 %v2904
    %3074 = vmatpush1.bf16.msra.mxu0 %v2903
    %3075 = vmatprep.subr.bf16.mxu0 %v2908
    %3076 = vmatpush1.bf16.msra.mxu0 %v2907
    %3077 = vmatprep.subr.bf16.mxu0 %v2912
    %3078 = vmatpush1.bf16.msra.mxu0 %v2911
    %3079 = vmatprep.subr.bf16.mxu0 %v2916
    %3080 = vmatpush1.bf16.msra.mxu0 %v2915
    %3081 = vmatprep.subr.bf16.mxu0 %v2920
    %3082 = vmatpush1.bf16.msra.mxu0 %v2919
    %3083 = vmatprep.mubr.bf16.mxu0 %v2566
    %3084 = vmatmul.mubr.bf16.gmra.mrb[0].mxu0 %v2565
    %v3085 = vpop.f32.mrb[0].mxu0
    %v3086 = vadd.f32 0.0, %v3085
    %v3087 = vpop.f32.mrb[0].mxu0
    %v3088 = vadd.f32 0.0, %v3087
    %v3089 = vpop.f32.mrb[0].mxu0
    %v3090 = vpop.f32.mrb[0].mxu0
    %3091 = vdwg.mxu0
    %3092 = vmatprep.subr.bf16.mxu0 %v2924
    %3093 = vmatpush1.bf16.msra.mxu0 %v2923
    %3094 = vmatprep.subr.bf16.mxu0 %v2928
    %3095 = vmatpush1.bf16.msra.mxu0 %v2927
    %3096 = vmatprep.subr.bf16.mxu0 %v2932
    %3097 = vmatpush1.bf16.msra.mxu0 %v2931
    %3098 = vmatprep.subr.bf16.mxu0 %v2936
    %3099 = vmatpush1.bf16.msra.mxu0 %v2935
    %3100 = vmatprep.subr.bf16.mxu0 %v2940
    %3101 = vmatpush1.bf16.msra.mxu0 %v2939
    %3102 = vmatprep.subr.bf16.mxu0 %v2944
    %3103 = vmatpush1.bf16.msra.mxu0 %v2943
    %3104 = vmatprep.subr.bf16.mxu0 %v2948
    %3105 = vmatpush1.bf16.msra.mxu0 %v2947
    %3106 = vmatprep.subr.bf16.mxu0 %v2952
    %3107 = vmatpush1.bf16.msra.mxu0 %v2951
    %3108 = vmatprep.subr.bf16.mxu0 0
    %3109 = vmatpush1.bf16.msra.mxu0 0
    %3110 = vmatprep.subr.bf16.mxu0 0
    %3111 = vmatpush1.bf16.msra.mxu0 0
    %3112 = vmatprep.subr.bf16.mxu0 0
    %3113 = vmatpush1.bf16.msra.mxu0 0
    %3114 = vmatprep.subr.bf16.mxu0 0
    %3115 = vmatpush1.bf16.msra.mxu0 0
    %3116 = vmatprep.subr.bf16.mxu0 0
    %3117 = vmatpush1.bf16.msra.mxu0 0
    %3118 = vmatprep.subr.bf16.mxu0 0
    %3119 = vmatpush1.bf16.msra.mxu0 0
    %3120 = vmatprep.subr.bf16.mxu0 0
    %3121 = vmatpush1.bf16.msra.mxu0 0
    %3122 = vmatprep.subr.bf16.mxu0 0
    %3123 = vmatpush1.bf16.msra.mxu0 0
    %3124 = vmatprep.mubr.bf16.mxu0 0
    %3125 = vmatmul.mubr.bf16.gmra.mrb[0].mxu0 %v2567
    %v3126 = vpop.f32.mrb[0].mxu0
    %v3127 = vadd.f32 %v3086, %v3126
    %v3128 = vpop.f32.mrb[0].mxu0
    %v3129 = vadd.f32 %v3088, %v3128
    %v3130 = vpop.f32.mrb[0].mxu0
    %v3131 = vpop.f32.mrb[0].mxu0
    %3132 = vdwg.mxu0
    %3133 = vmatprep.subr.bf16.mxu0 %v2862
    %3134 = vmatpush1.bf16.msra.mxu0 %v2861
    %3135 = vmatprep.subr.bf16.mxu0 %v2866
    %3136 = vmatpush1.bf16.msra.mxu0 %v2865
    %3137 = vmatprep.subr.bf16.mxu0 %v2870
    %3138 = vmatpush1.bf16.msra.mxu0 %v2869
    %3139 = vmatprep.subr.bf16.mxu0 %v2874
    %3140 = vmatpush1.bf16.msra.mxu0 %v2873
    %3141 = vmatprep.subr.bf16.mxu0 %v2878
    %3142 = vmatpush1.bf16.msra.mxu0 %v2877
    %3143 = vmatprep.subr.bf16.mxu0 %v2882
    %3144 = vmatpush1.bf16.msra.mxu0 %v2881
    %3145 = vmatprep.subr.bf16.mxu0 %v2886
    %3146 = vmatpush1.bf16.msra.mxu0 %v2885
    %3147 = vmatprep.subr.bf16.mxu0 %v2890
    %3148 = vmatpush1.bf16.msra.mxu0 %v2889
    %3149 = vmatprep.subr.bf16.mxu0 %v2894
    %3150 = vmatpush1.bf16.msra.mxu0 %v2893
    %3151 = vmatprep.subr.bf16.mxu0 %v2898
    %3152 = vmatpush1.bf16.msra.mxu0 %v2897
    %3153 = vmatprep.subr.bf16.mxu0 %v2902
    %3154 = vmatpush1.bf16.msra.mxu0 %v2901
    %3155 = vmatprep.subr.bf16.mxu0 %v2906
    %3156 = vmatpush1.bf16.msra.mxu0 %v2905
    %3157 = vmatprep.subr.bf16.mxu0 %v2910
    %3158 = vmatpush1.bf16.msra.mxu0 %v2909
    %3159 = vmatprep.subr.bf16.mxu0 %v2914
    %3160 = vmatpush1.bf16.msra.mxu0 %v2913
    %3161 = vmatprep.subr.bf16.mxu0 %v2918
    %3162 = vmatpush1.bf16.msra.mxu0 %v2917
    %3163 = vmatprep.subr.bf16.mxu0 %v2922
    %3164 = vmatpush1.bf16.msra.mxu0 %v2921
    %3165 = vmatprep.mubr.bf16.mxu0 %v2566
    %3166 = vmatmul.mubr.bf16.gmra.mrb[0].mxu0 %v2565
    %v3167 = vpop.f32.mrb[0].mxu0
    %v3168 = vadd.f32 0.0, %v3167
    %v3169 = vpop.f32.mrb[0].mxu0
    %v3170 = vadd.f32 0.0, %v3169
    %v3171 = vpop.f32.mrb[0].mxu0
    %v3172 = vpop.f32.mrb[0].mxu0
    %3173 = vdwg.mxu0
    %3174 = vmatprep.subr.bf16.mxu0 %v2926
    %3175 = vmatpush1.bf16.msra.mxu0 %v2925
    %3176 = vmatprep.subr.bf16.mxu0 %v2930
    %3177 = vmatpush1.bf16.msra.mxu0 %v2929
    %3178 = vmatprep.subr.bf16.mxu0 %v2934
    %3179 = vmatpush1.bf16.msra.mxu0 %v2933
    %3180 = vmatprep.subr.bf16.mxu0 %v2938
    %3181 = vmatpush1.bf16.msra.mxu0 %v2937
    %3182 = vmatprep.subr.bf16.mxu0 %v2942
    %3183 = vmatpush1.bf16.msra.mxu0 %v2941
    %3184 = vmatprep.subr.bf16.mxu0 %v2946
    %3185 = vmatpush1.bf16.msra.mxu0 %v2945
    %3186 = vmatprep.subr.bf16.mxu0 %v2950
    %3187 = vmatpush1.bf16.msra.mxu0 %v2949
    %3188 = vmatprep.subr.bf16.mxu0 %v2954
    %3189 = vmatpush1.bf16.msra.mxu0 %v2953
    %3190 = vmatprep.subr.bf16.mxu0 0
    %3191 = vmatpush1.bf16.msra.mxu0 0
    %3192 = vmatprep.subr.bf16.mxu0 0
    %3193 = vmatpush1.bf16.msra.mxu0 0
    %3194 = vmatprep.subr.bf16.mxu0 0
    %3195 = vmatpush1.bf16.msra.mxu0 0
    %3196 = vmatprep.subr.bf16.mxu0 0
    %3197 = vmatpush1.bf16.msra.mxu0 0
    %3198 = vmatprep.subr.bf16.mxu0 0
    %3199 = vmatpush1.bf16.msra.mxu0 0
    %3200 = vmatprep.subr.bf16.mxu0 0
    %3201 = vmatpush1.bf16.msra.mxu0 0
    %3202 = vmatprep.subr.bf16.mxu0 0
    %3203 = vmatpush1.bf16.msra.mxu0 0
    %3204 = vmatprep.subr.bf16.mxu0 0
    %3205 = vmatpush1.bf16.msra.mxu0 0
    %3206 = vmatprep.mubr.bf16.mxu0 0
    %3207 = vmatmul.mubr.bf16.gmra.mrb[0].mxu0 %v2567
    %v3208 = vpop.f32.mrb[0].mxu0
    %v3209 = vadd.f32 %v3168, %v3208
    %v3210 = vpop.f32.mrb[0].mxu0
    %v3211 = vadd.f32 %v3170, %v3210
    %v3212 = vpop.f32.mrb[0].mxu0
    %v3213 = vpop.f32.mrb[0].mxu0
    %3214 = vdwg.mxu0
    %v3311 = vunpack.c.l.b16 %v2370
    %v3312 = vunpack.c.h.b16 %v2370
    %v3313 = vunpack.c.l.b16 %v2371
    %v3314 = vunpack.c.h.b16 %v2371
    %v3315 = vunpack.c.l.b16 %v2372
    %v3316 = vunpack.c.h.b16 %v2372
    %v3317 = vunpack.c.l.b16 %v2373
    %v3318 = vunpack.c.h.b16 %v2373
    %v3319 = vunpack.c.l.b16 %v2374
    %v3320 = vunpack.c.h.b16 %v2374
    %v3321 = vunpack.c.l.b16 %v2375
    %v3322 = vunpack.c.h.b16 %v2375
    %v3323 = vunpack.c.l.b16 %v2376
    %v3324 = vunpack.c.h.b16 %v2376
    %v3325 = vunpack.c.l.b16 %v2377
    %v3326 = vunpack.c.h.b16 %v2377
    %v3327 = vunpack.c.l.b16 %v2378
    %v3328 = vunpack.c.h.b16 %v2378
    %v3329 = vunpack.c.l.b16 %v2379
    %v3330 = vunpack.c.h.b16 %v2379
    %v3331 = vunpack.c.l.b16 %v2380
    %v3332 = vunpack.c.h.b16 %v2380
    %v3333 = vunpack.c.l.b16 %v2381
    %v3334 = vunpack.c.h.b16 %v2381
    %v3335 = vunpack.c.l.b16 %v2382
    %v3336 = vunpack.c.h.b16 %v2382
    %v3337 = vunpack.c.l.b16 %v2383
    %v3338 = vunpack.c.h.b16 %v2383
    %v3339 = vunpack.c.l.b16 %v2384
    %v3340 = vunpack.c.h.b16 %v2384
    %v3341 = vunpack.c.l.b16 %v2385
    %v3342 = vunpack.c.h.b16 %v2385
    %v3343 = vunpack.c.l.b16 %v2386
    %v3344 = vunpack.c.h.b16 %v2386
    %v3345 = vunpack.c.l.b16 %v2387
    %v3346 = vunpack.c.h.b16 %v2387
    %v3347 = vunpack.c.l.b16 %v2388
    %v3348 = vunpack.c.h.b16 %v2388
    %v3349 = vunpack.c.l.b16 %v2389
    %v3350 = vunpack.c.h.b16 %v2389
    %v3351 = vunpack.c.l.b16 %v2390
    %v3352 = vunpack.c.h.b16 %v2390
    %v3353 = vunpack.c.l.b16 %v2391
    %v3354 = vunpack.c.h.b16 %v2391
    %v3355 = vunpack.c.l.b16 %v2392
    %v3356 = vunpack.c.h.b16 %v2392
    %v3357 = vunpack.c.l.b16 %v2393
    %v3358 = vunpack.c.h.b16 %v2393
    %v3359 = vunpack.c.l.b16 %v2394
    %v3360 = vunpack.c.h.b16 %v2394
    %v3361 = vunpack.c.l.b16 %v2395
    %v3362 = vunpack.c.h.b16 %v2395
    %v3363 = vunpack.c.l.b16 %v2396
    %v3364 = vunpack.c.h.b16 %v2396
    %v3365 = vunpack.c.l.b16 %v2397
    %v3366 = vunpack.c.h.b16 %v2397
    %v3367 = vunpack.c.l.b16 %v2398
    %v3368 = vunpack.c.h.b16 %v2398
    %v3369 = vunpack.c.l.b16 %v2399
    %v3370 = vunpack.c.h.b16 %v2399
    %v3371 = vunpack.c.l.b16 %v2400
    %v3372 = vunpack.c.h.b16 %v2400
    %v3373 = vunpack.c.l.b16 %v2401
    %v3374 = vunpack.c.h.b16 %v2401
    %v3375 = vunpack.c.l.b16 %v2402
    %v3376 = vunpack.c.h.b16 %v2402
    %v3377 = vunpack.c.l.b16 %v2403
    %v3378 = vunpack.c.h.b16 %v2403
    %v3379 = vunpack.c.l.b16 %v2404
    %v3380 = vunpack.c.h.b16 %v2404
    %v3381 = vunpack.c.l.b16 %v2405
    %v3382 = vunpack.c.h.b16 %v2405
    %v3383 = vunpack.c.l.b16 %v2406
    %v3384 = vunpack.c.h.b16 %v2406
    %v3385 = vunpack.c.l.b16 %v2407
    %v3386 = vunpack.c.h.b16 %v2407
    %v3387 = vunpack.c.l.b16 %v2408
    %v3388 = vunpack.c.h.b16 %v2408
    %v3389 = vunpack.c.l.b16 %v2409
    %v3390 = vunpack.c.h.b16 %v2409
    %v3391 = vunpack.c.l.b16 %v2410
    %v3392 = vunpack.c.h.b16 %v2410
    %v3393 = vunpack.c.l.b16 %v2411
    %v3394 = vunpack.c.h.b16 %v2411
    %v3395 = vunpack.c.l.b16 %v2412
    %v3396 = vunpack.c.h.b16 %v2412
    %v3397 = vunpack.c.l.b16 %v2413
    %v3398 = vunpack.c.h.b16 %v2413
    %v3399 = vunpack.c.l.b16 %v2414
    %v3400 = vunpack.c.h.b16 %v2414
    %v3401 = vunpack.c.l.b16 %v2415
    %v3402 = vunpack.c.h.b16 %v2415
    %v3403 = vunpack.c.l.b16 %v2416
    %v3404 = vunpack.c.h.b16 %v2416
    %v3405 = vunpack.c.l.b16 %v2417
    %v3406 = vunpack.c.h.b16 %v2417
    %v3407 = vunpack.c.l.b16 %v2418
    %v3408 = vunpack.c.h.b16 %v2418
    %v3409 = vunpack.c.l.b16 %v2419
    %v3410 = vunpack.c.h.b16 %v2419
    %v3411 = vunpack.c.l.b16 %v2420
    %v3412 = vunpack.c.h.b16 %v2420
    %v3413 = vunpack.c.l.b16 %v2421
    %v3414 = vunpack.c.h.b16 %v2421
    %v3415 = vunpack.c.l.b16 %v2422
    %v3416 = vunpack.c.h.b16 %v2422
    %v3417 = vunpack.c.l.b16 %v2423
    %v3418 = vunpack.c.h.b16 %v2423
    %v3419 = vunpack.c.l.b16 %v2424
    %v3420 = vunpack.c.h.b16 %v2424
    %v3421 = vunpack.c.l.b16 %v2425
    %v3422 = vunpack.c.h.b16 %v2425
    %v3423 = vunpack.c.l.b16 %v2426
    %v3424 = vunpack.c.h.b16 %v2426
    %v3425 = vunpack.c.l.b16 %v2427
    %v3426 = vunpack.c.h.b16 %v2427
    %v3427 = vunpack.c.l.b16 %v2428
    %v3428 = vunpack.c.h.b16 %v2428
    %v3429 = vunpack.c.l.b16 %v2429
    %v3430 = vunpack.c.h.b16 %v2429
    %v3431 = vunpack.c.l.b16 %v2430
    %v3432 = vunpack.c.h.b16 %v2430
    %v3433 = vunpack.c.l.b16 %v2431
    %v3434 = vunpack.c.h.b16 %v2431
    %v3435 = vunpack.c.l.b16 %v2432
    %v3436 = vunpack.c.h.b16 %v2432
    %v3437 = vunpack.c.l.b16 %v2433
    %v3438 = vunpack.c.h.b16 %v2433
    %v3439 = vunpack.c.l.b16 %v2434
    %v3440 = vunpack.c.h.b16 %v2434
    %v3441 = vunpack.c.l.b16 %v2435
    %v3442 = vunpack.c.h.b16 %v2435
    %v3443 = vunpack.c.l.b16 %v2436
    %v3444 = vunpack.c.h.b16 %v2436
    %v3445 = vunpack.c.l.b16 %v2437
    %v3446 = vunpack.c.h.b16 %v2437
    %v3447 = vunpack.c.l.b16 %v2438
    %v3448 = vunpack.c.h.b16 %v2438
    %v3449 = vunpack.c.l.b16 %v2439
    %v3450 = vunpack.c.h.b16 %v2439
    %v3451 = vunpack.c.l.b16 %v2440
    %v3452 = vunpack.c.h.b16 %v2440
    %v3453 = vunpack.c.l.b16 %v2441
    %v3454 = vunpack.c.h.b16 %v2441
    %v3455 = vunpack.c.l.b16 %v2442
    %v3456 = vunpack.c.h.b16 %v2442
    %v3457 = vunpack.c.l.b16 %v2443
    %v3458 = vunpack.c.h.b16 %v2443
    %v3459 = vunpack.c.l.b16 %v2444
    %v3460 = vunpack.c.h.b16 %v2444
    %v3461 = vunpack.c.l.b16 %v2445
    %v3462 = vunpack.c.h.b16 %v2445
    %v3463 = vunpack.c.l.b16 %v2446
    %v3464 = vunpack.c.h.b16 %v2446
    %v3465 = vunpack.c.l.b16 %v2447
    %v3466 = vunpack.c.h.b16 %v2447
    %v3467 = vunpack.c.l.b16 %v2448
    %v3468 = vunpack.c.h.b16 %v2448
    %v3469 = vunpack.c.l.b16 %v2449
    %v3470 = vunpack.c.h.b16 %v2449
    %v3471 = vunpack.c.l.b16 %v2450
    %v3472 = vunpack.c.h.b16 %v2450
    %v3473 = vunpack.c.l.b16 %v2451
    %v3474 = vunpack.c.h.b16 %v2451
    %v3475 = vunpack.c.l.b16 %v2452
    %v3476 = vunpack.c.h.b16 %v2452
    %v3477 = vunpack.c.l.b16 %v2453
    %v3478 = vunpack.c.h.b16 %v2453
    %v3479 = vunpack.c.l.b16 %v2454
    %v3480 = vunpack.c.h.b16 %v2454
    %v3481 = vunpack.c.l.b16 %v2455
    %v3482 = vunpack.c.h.b16 %v2455
    %v3483 = vunpack.c.l.b16 %v2456
    %v3484 = vunpack.c.h.b16 %v2456
    %v3485 = vunpack.c.l.b16 %v2457
    %v3486 = vunpack.c.h.b16 %v2457
    %v3487 = vunpack.c.l.b16 %v2458
    %v3488 = vunpack.c.h.b16 %v2458
    %v3489 = vunpack.c.l.b16 %v2459
    %v3490 = vunpack.c.h.b16 %v2459
    %v3491 = vunpack.c.l.b16 %v2460
    %v3492 = vunpack.c.h.b16 %v2460
    %v3493 = vunpack.c.l.b16 %v2461
    %v3494 = vunpack.c.h.b16 %v2461
    %v3495 = vunpack.c.l.b16 %v2462
    %v3496 = vunpack.c.h.b16 %v2462
    %v3497 = vunpack.c.l.b16 %v2463
    %v3498 = vunpack.c.h.b16 %v2463
    %v3499 = vunpack.c.l.b16 %v2464
    %v3500 = vunpack.c.h.b16 %v2464
    %v3501 = vunpack.c.l.b16 %v2465
    %v3502 = vunpack.c.h.b16 %v2465
    %v3503 = vpack.c.b16 %v3315, %v3311
    %v3504 = vpack.c.b16 %v3316, %v3312
    %v3505 = vpack.c.b16 %v3317, %v3313
    %v3506 = vpack.c.b16 %v3318, %v3314
    %v3507 = vpack.c.b16 %v3323, %v3319
    %v3508 = vpack.c.b16 %v3324, %v3320
    %v3509 = vpack.c.b16 %v3325, %v3321
    %v3510 = vpack.c.b16 %v3326, %v3322
    %v3511 = vpack.c.b16 %v3331, %v3327
    %v3512 = vpack.c.b16 %v3332, %v3328
    %v3513 = vpack.c.b16 %v3333, %v3329
    %v3514 = vpack.c.b16 %v3334, %v3330
    %v3515 = vpack.c.b16 %v3339, %v3335
    %v3516 = vpack.c.b16 %v3340, %v3336
    %v3517 = vpack.c.b16 %v3341, %v3337
    %v3518 = vpack.c.b16 %v3342, %v3338
    %v3519 = vpack.c.b16 %v3347, %v3343
    %v3520 = vpack.c.b16 %v3348, %v3344
    %v3521 = vpack.c.b16 %v3349, %v3345
    %v3522 = vpack.c.b16 %v3350, %v3346
    %v3523 = vpack.c.b16 %v3355, %v3351
    %v3524 = vpack.c.b16 %v3356, %v3352
    %v3525 = vpack.c.b16 %v3357, %v3353
    %v3526 = vpack.c.b16 %v3358, %v3354
    %v3527 = vpack.c.b16 %v3363, %v3359
    %v3528 = vpack.c.b16 %v3364, %v3360
    %v3529 = vpack.c.b16 %v3365, %v3361
    %v3530 = vpack.c.b16 %v3366, %v3362
    %v3531 = vpack.c.b16 %v3371, %v3367
    %v3532 = vpack.c.b16 %v3372, %v3368
    %v3533 = vpack.c.b16 %v3373, %v3369
    %v3534 = vpack.c.b16 %v3374, %v3370
    %v3535 = vpack.c.b16 %v3379, %v3375
    %v3536 = vpack.c.b16 %v3380, %v3376
    %v3537 = vpack.c.b16 %v3381, %v3377
    %v3538 = vpack.c.b16 %v3382, %v3378
    %v3539 = vpack.c.b16 %v3387, %v3383
    %v3540 = vpack.c.b16 %v3388, %v3384
    %v3541 = vpack.c.b16 %v3389, %v3385
    %v3542 = vpack.c.b16 %v3390, %v3386
    %v3543 = vpack.c.b16 %v3395, %v3391
    %v3544 = vpack.c.b16 %v3396, %v3392
    %v3545 = vpack.c.b16 %v3397, %v3393
    %v3546 = vpack.c.b16 %v3398, %v3394
    %v3547 = vpack.c.b16 %v3403, %v3399
    %v3548 = vpack.c.b16 %v3404, %v3400
    %v3549 = vpack.c.b16 %v3405, %v3401
    %v3550 = vpack.c.b16 %v3406, %v3402
    %v3551 = vpack.c.b16 %v3411, %v3407
    %v3552 = vpack.c.b16 %v3412, %v3408
    %v3553 = vpack.c.b16 %v3413, %v3409
    %v3554 = vpack.c.b16 %v3414, %v3410
    %v3555 = vpack.c.b16 %v3419, %v3415
    %v3556 = vpack.c.b16 %v3420, %v3416
    %v3557 = vpack.c.b16 %v3421, %v3417
    %v3558 = vpack.c.b16 %v3422, %v3418
    %v3559 = vpack.c.b16 %v3427, %v3423
    %v3560 = vpack.c.b16 %v3428, %v3424
    %v3561 = vpack.c.b16 %v3429, %v3425
    %v3562 = vpack.c.b16 %v3430, %v3426
    %v3563 = vpack.c.b16 %v3435, %v3431
    %v3564 = vpack.c.b16 %v3436, %v3432
    %v3565 = vpack.c.b16 %v3437, %v3433
    %v3566 = vpack.c.b16 %v3438, %v3434
    %v3567 = vpack.c.b16 %v3443, %v3439
    %v3568 = vpack.c.b16 %v3444, %v3440
    %v3569 = vpack.c.b16 %v3445, %v3441
    %v3570 = vpack.c.b16 %v3446, %v3442
    %v3571 = vpack.c.b16 %v3451, %v3447
    %v3572 = vpack.c.b16 %v3452, %v3448
    %v3573 = vpack.c.b16 %v3453, %v3449
    %v3574 = vpack.c.b16 %v3454, %v3450
    %v3575 = vpack.c.b16 %v3459, %v3455
    %v3576 = vpack.c.b16 %v3460, %v3456
    %v3577 = vpack.c.b16 %v3461, %v3457
    %v3578 = vpack.c.b16 %v3462, %v3458
    %v3579 = vpack.c.b16 %v3467, %v3463
    %v3580 = vpack.c.b16 %v3468, %v3464
    %v3581 = vpack.c.b16 %v3469, %v3465
    %v3582 = vpack.c.b16 %v3470, %v3466
    %v3583 = vpack.c.b16 %v3475, %v3471
    %v3584 = vpack.c.b16 %v3476, %v3472
    %v3585 = vpack.c.b16 %v3477, %v3473
    %v3586 = vpack.c.b16 %v3478, %v3474
    %v3587 = vpack.c.b16 %v3483, %v3479
    %v3588 = vpack.c.b16 %v3484, %v3480
    %v3589 = vpack.c.b16 %v3485, %v3481
    %v3590 = vpack.c.b16 %v3486, %v3482
    %v3591 = vpack.c.b16 %v3491, %v3487
    %v3592 = vpack.c.b16 %v3492, %v3488
    %v3593 = vpack.c.b16 %v3493, %v3489
    %v3594 = vpack.c.b16 %v3494, %v3490
    %v3595 = vpack.c.b16 %v3499, %v3495
    %v3596 = vpack.c.b16 %v3500, %v3496
    %v3597 = vpack.c.b16 %v3501, %v3497
    %v3598 = vpack.c.b16 %v3502, %v3498
    %3695 = vmatprep.subr.bf16.mxu0 %v3504
    %3696 = vmatpush1.bf16.msra.mxu0 %v3503
    %3697 = vmatprep.subr.bf16.mxu0 %v3508
    %3698 = vmatpush1.bf16.msra.mxu0 %v3507
    %3699 = vmatprep.subr.bf16.mxu0 %v3512
    %3700 = vmatpush1.bf16.msra.mxu0 %v3511
    %3701 = vmatprep.subr.bf16.mxu0 %v3516
    %3702 = vmatpush1.bf16.msra.mxu0 %v3515
    %3703 = vmatprep.subr.bf16.mxu0 %v3520
    %3704 = vmatpush1.bf16.msra.mxu0 %v3519
    %3705 = vmatprep.subr.bf16.mxu0 %v3524
    %3706 = vmatpush1.bf16.msra.mxu0 %v3523
    %3707 = vmatprep.subr.bf16.mxu0 %v3528
    %3708 = vmatpush1.bf16.msra.mxu0 %v3527
    %3709 = vmatprep.subr.bf16.mxu0 %v3532
    %3710 = vmatpush1.bf16.msra.mxu0 %v3531
    %3711 = vmatprep.subr.bf16.mxu0 %v3536
    %3712 = vmatpush1.bf16.msra.mxu0 %v3535
    %3713 = vmatprep.subr.bf16.mxu0 %v3540
    %3714 = vmatpush1.bf16.msra.mxu0 %v3539
    %3715 = vmatprep.subr.bf16.mxu0 %v3544
    %3716 = vmatpush1.bf16.msra.mxu0 %v3543
    %3717 = vmatprep.subr.bf16.mxu0 %v3548
    %3718 = vmatpush1.bf16.msra.mxu0 %v3547
    %3719 = vmatprep.subr.bf16.mxu0 %v3552
    %3720 = vmatpush1.bf16.msra.mxu0 %v3551
    %3721 = vmatprep.subr.bf16.mxu0 %v3556
    %3722 = vmatpush1.bf16.msra.mxu0 %v3555
    %3723 = vmatprep.subr.bf16.mxu0 %v3560
    %3724 = vmatpush1.bf16.msra.mxu0 %v3559
    %3725 = vmatprep.subr.bf16.mxu0 %v3564
    %3726 = vmatpush1.bf16.msra.mxu0 %v3563
    %3727 = vmatprep.mubr.bf16.mxu0 %v2368
    %3728 = vmatmul.mubr.bf16.gmra.mrb[0].mxu0 %v2367
    %v3729 = vpop.f32.mrb[0].mxu0
    %v3730 = vadd.f32 %v3127, %v3729
    %v3731 = vpop.f32.mrb[0].mxu0
    %v3732 = vadd.f32 %v3129, %v3731
    %v3733 = vpop.f32.mrb[0].mxu0
    %v3734 = vpop.f32.mrb[0].mxu0
    %3735 = vdwg.mxu0
    %3736 = vmatprep.subr.bf16.mxu0 %v3568
    %3737 = vmatpush1.bf16.msra.mxu0 %v3567
    %3738 = vmatprep.subr.bf16.mxu0 %v3572
    %3739 = vmatpush1.bf16.msra.mxu0 %v3571
    %3740 = vmatprep.subr.bf16.mxu0 %v3576
    %3741 = vmatpush1.bf16.msra.mxu0 %v3575
    %3742 = vmatprep.subr.bf16.mxu0 %v3580
    %3743 = vmatpush1.bf16.msra.mxu0 %v3579
    %3744 = vmatprep.subr.bf16.mxu0 %v3584
    %3745 = vmatpush1.bf16.msra.mxu0 %v3583
    %3746 = vmatprep.subr.bf16.mxu0 %v3588
    %3747 = vmatpush1.bf16.msra.mxu0 %v3587
    %3748 = vmatprep.subr.bf16.mxu0 %v3592
    %3749 = vmatpush1.bf16.msra.mxu0 %v3591
    %3750 = vmatprep.subr.bf16.mxu0 %v3596
    %3751 = vmatpush1.bf16.msra.mxu0 %v3595
    %3752 = vmatprep.subr.bf16.mxu0 0
    %3753 = vmatpush1.bf16.msra.mxu0 0
    %3754 = vmatprep.subr.bf16.mxu0 0
    %3755 = vmatpush1.bf16.msra.mxu0 0
    %3756 = vmatprep.subr.bf16.mxu0 0
    %3757 = vmatpush1.bf16.msra.mxu0 0
    %3758 = vmatprep.subr.bf16.mxu0 0
    %3759 = vmatpush1.bf16.msra.mxu0 0
    %3760 = vmatprep.subr.bf16.mxu0 0
    %3761 = vmatpush1.bf16.msra.mxu0 0
    %3762 = vmatprep.subr.bf16.mxu0 0
    %3763 = vmatpush1.bf16.msra.mxu0 0
    %3764 = vmatprep.subr.bf16.mxu0 0
    %3765 = vmatpush1.bf16.msra.mxu0 0
    %3766 = vmatprep.subr.bf16.mxu0 0
    %3767 = vmatpush1.bf16.msra.mxu0 0
    %3768 = vmatprep.mubr.bf16.mxu0 0
    %3769 = vmatmul.mubr.bf16.gmra.mrb[0].mxu0 %v2369
    %v3770 = vpop.f32.mrb[0].mxu0
    %v3771 = vadd.f32 %v3730, %v3770
    %v3772 = vpop.f32.mrb[0].mxu0
    %v3773 = vadd.f32 %v3732, %v3772
    %v3774 = vpop.f32.mrb[0].mxu0
    %v3775 = vpop.f32.mrb[0].mxu0
    %3776 = vdwg.mxu0
    %3777 = vmatprep.subr.bf16.mxu0 %v3506
    %3778 = vmatpush1.bf16.msra.mxu0 %v3505
    %3779 = vmatprep.subr.bf16.mxu0 %v3510
    %3780 = vmatpush1.bf16.msra.mxu0 %v3509
    %3781 = vmatprep.subr.bf16.mxu0 %v3514
    %3782 = vmatpush1.bf16.msra.mxu0 %v3513
    %3783 = vmatprep.subr.bf16.mxu0 %v3518
    %3784 = vmatpush1.bf16.msra.mxu0 %v3517
    %3785 = vmatprep.subr.bf16.mxu0 %v3522
    %3786 = vmatpush1.bf16.msra.mxu0 %v3521
    %3787 = vmatprep.subr.bf16.mxu0 %v3526
    %3788 = vmatpush1.bf16.msra.mxu0 %v3525
    %3789 = vmatprep.subr.bf16.mxu0 %v3530
    %3790 = vmatpush1.bf16.msra.mxu0 %v3529
    %3791 = vmatprep.subr.bf16.mxu0 %v3534
    %3792 = vmatpush1.bf16.msra.mxu0 %v3533
    %3793 = vmatprep.subr.bf16.mxu0 %v3538
    %3794 = vmatpush1.bf16.msra.mxu0 %v3537
    %3795 = vmatprep.subr.bf16.mxu0 %v3542
    %3796 = vmatpush1.bf16.msra.mxu0 %v3541
    %3797 = vmatprep.subr.bf16.mxu0 %v3546
    %3798 = vmatpush1.bf16.msra.mxu0 %v3545
    %3799 = vmatprep.subr.bf16.mxu0 %v3550
    %3800 = vmatpush1.bf16.msra.mxu0 %v3549
    %3801 = vmatprep.subr.bf16.mxu0 %v3554
    %3802 = vmatpush1.bf16.msra.mxu0 %v3553
    %3803 = vmatprep.subr.bf16.mxu0 %v3558
    %3804 = vmatpush1.bf16.msra.mxu0 %v3557
    %3805 = vmatprep.subr.bf16.mxu0 %v3562
    %3806 = vmatpush1.bf16.msra.mxu0 %v3561
    %3807 = vmatprep.subr.bf16.mxu0 %v3566
    %3808 = vmatpush1.bf16.msra.mxu0 %v3565
    %3809 = vmatprep.mubr.bf16.mxu0 %v2368
    %3810 = vmatmul.mubr.bf16.gmra.mrb[0].mxu0 %v2367
    %v3811 = vpop.f32.mrb[0].mxu0
    %v3812 = vadd.f32 %v3209, %v3811
    %v3813 = vpop.f32.mrb[0].mxu0
    %v3814 = vadd.f32 %v3211, %v3813
    %v3815 = vpop.f32.mrb[0].mxu0
    %v3816 = vpop.f32.mrb[0].mxu0
    %3817 = vdwg.mxu0
    %3818 = vmatprep.subr.bf16.mxu0 %v3570
    %3819 = vmatpush1.bf16.msra.mxu0 %v3569
    %3820 = vmatprep.subr.bf16.mxu0 %v3574
    %3821 = vmatpush1.bf16.msra.mxu0 %v3573
    %3822 = vmatprep.subr.bf16.mxu0 %v3578
    %3823 = vmatpush1.bf16.msra.mxu0 %v3577
    %3824 = vmatprep.subr.bf16.mxu0 %v3582
    %3825 = vmatpush1.bf16.msra.mxu0 %v3581
    %3826 = vmatprep.subr.bf16.mxu0 %v3586
    %3827 = vmatpush1.bf16.msra.mxu0 %v3585
    %3828 = vmatprep.subr.bf16.mxu0 %v3590
    %3829 = vmatpush1.bf16.msra.mxu0 %v3589
    %3830 = vmatprep.subr.bf16.mxu0 %v3594
    %3831 = vmatpush1.bf16.msra.mxu0 %v3593
    %3832 = vmatprep.subr.bf16.mxu0 %v3598
    %3833 = vmatpush1.bf16.msra.mxu0 %v3597
    %3834 = vmatprep.subr.bf16.mxu0 0
    %3835 = vmatpush1.bf16.msra.mxu0 0
    %3836 = vmatprep.subr.bf16.mxu0 0
    %3837 = vmatpush1.bf16.msra.mxu0 0
    %3838 = vmatprep.subr.bf16.mxu0 0
    %3839 = vmatpush1.bf16.msra.mxu0 0
    %3840 = vmatprep.subr.bf16.mxu0 0
    %3841 = vmatpush1.bf16.msra.mxu0 0
    %3842 = vmatprep.subr.bf16.mxu0 0
    %3843 = vmatpush1.bf16.msra.mxu0 0
    %3844 = vmatprep.subr.bf16.mxu0 0
    %3845 = vmatpush1.bf16.msra.mxu0 0
    %3846 = vmatprep.subr.bf16.mxu0 0
    %3847 = vmatpush1.bf16.msra.mxu0 0
    %3848 = vmatprep.subr.bf16.mxu0 0
    %3849 = vmatpush1.bf16.msra.mxu0 0
    %3850 = vmatprep.mubr.bf16.mxu0 0
    %3851 = vmatmul.mubr.bf16.gmra.mrb[0].mxu0 %v2369
    %v3852 = vpop.f32.mrb[0].mxu0
    %v3853 = vadd.f32 %v3812, %v3852
    %v3854 = vpop.f32.mrb[0].mxu0
    %v3855 = vadd.f32 %v3814, %v3854
    %v3856 = vpop.f32.mrb[0].mxu0
    %v3857 = vpop.f32.mrb[0].mxu0
    %3858 = vdwg.mxu0
    %v3859 = vld [vmem:[%s7 + $0x600] sm:$0xff]
    %v3860 = vld [vmem:[%s7 + $0x608] sm:$0xff]
    %v3861 = vld [vmem:[%s7 + $0x610] sm:$0xff]
    %v3862 = vld [vmem:[%s7 + $0x618] sm:$0xff]
    %v3863 = vld [vmem:[%s7 + $0x620] sm:$0xff]
    %v3864 = vld [vmem:[%s7 + $0x628] sm:$0xff]
    %v3865 = vld [vmem:[%s7 + $0x630] sm:$0xff]
    %v3866 = vld [vmem:[%s7 + $0x638] sm:$0xff]
    %v3867 = vld [vmem:[%s7 + $0x640] sm:$0xff]
    %v3868 = vld [vmem:[%s7 + $0x648] sm:$0xff]
    %v3869 = vld [vmem:[%s7 + $0x650] sm:$0xff]
    %v3870 = vld [vmem:[%s7 + $0x658] sm:$0xff]
    %v3871 = vld [vmem:[%s7 + $0x660] sm:$0xff]
    %v3872 = vld [vmem:[%s7 + $0x668] sm:$0xff]
    %v3873 = vld [vmem:[%s7 + $0x670] sm:$0xff]
    %v3874 = vld [vmem:[%s7 + $0x678] sm:$0xff]
    %v3875 = vld [vmem:[%s7 + $0x680] sm:$0xff]
    %v3876 = vld [vmem:[%s7 + $0x688] sm:$0xff]
    %v3877 = vld [vmem:[%s7 + $0x690] sm:$0xff]
    %v3878 = vld [vmem:[%s7 + $0x698] sm:$0xff]
    %v3879 = vld [vmem:[%s7 + $0x6a0] sm:$0xff]
    %v3880 = vld [vmem:[%s7 + $0x6a8] sm:$0xff]
    %v3881 = vld [vmem:[%s7 + $0x6b0] sm:$0xff]
    %v3882 = vld [vmem:[%s7 + $0x6b8] sm:$0xff]
    %v3883 = vld [vmem:[%s7 + $0x6c0] sm:$0xff]
    %v3884 = vld [vmem:[%s7 + $0x6c8] sm:$0xff]
    %v3885 = vld [vmem:[%s7 + $0x6d0] sm:$0xff]
    %v3886 = vld [vmem:[%s7 + $0x6d8] sm:$0xff]
    %v3887 = vld [vmem:[%s7 + $0x6e0] sm:$0xff]
    %v3888 = vld [vmem:[%s7 + $0x6e8] sm:$0xff]
    %v3889 = vld [vmem:[%s7 + $0x6f0] sm:$0xff]
    %v3890 = vld [vmem:[%s7 + $0x6f8] sm:$0xff]
    %v3891 = vld [vmem:[%s7 + $0x700] sm:$0xff]
    %v3892 = vld [vmem:[%s7 + $0x708] sm:$0xff]
    %v3893 = vld [vmem:[%s7 + $0x710] sm:$0xff]
    %v3894 = vld [vmem:[%s7 + $0x718] sm:$0xff]
    %v3895 = vld [vmem:[%s7 + $0x720] sm:$0xff]
    %v3896 = vld [vmem:[%s7 + $0x728] sm:$0xff]
    %v3897 = vld [vmem:[%s7 + $0x730] sm:$0xff]
    %v3898 = vld [vmem:[%s7 + $0x738] sm:$0xff]
    %v3899 = vld [vmem:[%s7 + $0x740] sm:$0xff]
    %v3900 = vld [vmem:[%s7 + $0x748] sm:$0xff]
    %v3901 = vld [vmem:[%s7 + $0x750] sm:$0xff]
    %v3902 = vld [vmem:[%s7 + $0x758] sm:$0xff]
    %v3903 = vld [vmem:[%s7 + $0x760] sm:$0xff]
    %v3904 = vld [vmem:[%s7 + $0x768] sm:$0xff]
    %v3905 = vld [vmem:[%s7 + $0x770] sm:$0xff]
    %v3906 = vld [vmem:[%s7 + $0x778] sm:$0xff]
    %v3907 = vld [vmem:[%s7 + $0x780] sm:$0xff]
    %v3908 = vld [vmem:[%s7 + $0x788] sm:$0xff]
    %v3909 = vld [vmem:[%s7 + $0x790] sm:$0xff]
    %v3910 = vld [vmem:[%s7 + $0x798] sm:$0xff]
    %v3911 = vld [vmem:[%s7 + $0x7a0] sm:$0xff]
    %v3912 = vld [vmem:[%s7 + $0x7a8] sm:$0xff]
    %v3913 = vld [vmem:[%s7 + $0x7b0] sm:$0xff]
    %v3914 = vld [vmem:[%s7 + $0x7b8] sm:$0xff]
    %v3915 = vld [vmem:[%s7 + $0x7c0] sm:$0xff]
    %v3916 = vld [vmem:[%s7 + $0x7c8] sm:$0xff]
    %v3917 = vld [vmem:[%s7 + $0x7d0] sm:$0xff]
    %v3918 = vld [vmem:[%s7 + $0x7d8] sm:$0xff]
    %v3919 = vld [vmem:[%s7 + $0x7e0] sm:$0xff]
    %v3920 = vld [vmem:[%s7 + $0x7e8] sm:$0xff]
    %v3921 = vld [vmem:[%s7 + $0x7f0] sm:$0xff]
    %v3922 = vld [vmem:[%s7 + $0x7f8] sm:$0xff]
    %v3923 = vld [vmem:[%s7 + $0x800] sm:$0xff]
    %v3924 = vld [vmem:[%s7 + $0x808] sm:$0xff]
    %v3925 = vld [vmem:[%s7 + $0x810] sm:$0xff]
    %v3926 = vld [vmem:[%s7 + $0x818] sm:$0xff]
    %v3927 = vld [vmem:[%s7 + $0x820] sm:$0xff]
    %v3928 = vld [vmem:[%s7 + $0x828] sm:$0xff]
    %v3929 = vld [vmem:[%s7 + $0x830] sm:$0xff]
    %v3930 = vld [vmem:[%s7 + $0x838] sm:$0xff]
    %v3931 = vld [vmem:[%s7 + $0x840] sm:$0xff]
    %v3932 = vld [vmem:[%s7 + $0x848] sm:$0xff]
    %v3933 = vld [vmem:[%s7 + $0x850] sm:$0xff]
    %v3934 = vld [vmem:[%s7 + $0x858] sm:$0xff]
    %v3935 = vld [vmem:[%s7 + $0x860] sm:$0xff]
    %v3936 = vld [vmem:[%s7 + $0x868] sm:$0xff]
    %v3937 = vld [vmem:[%s7 + $0x870] sm:$0xff]
    %v3938 = vld [vmem:[%s7 + $0x878] sm:$0xff]
    %v3939 = vld [vmem:[%s7 + $0x880] sm:$0xff]
    %v3940 = vld [vmem:[%s7 + $0x888] sm:$0xff]
    %v3941 = vld [vmem:[%s7 + $0x890] sm:$0xff]
    %v3942 = vld [vmem:[%s7 + $0x898] sm:$0xff]
    %v3943 = vld [vmem:[%s7 + $0x8a0] sm:$0xff]
    %v3944 = vld [vmem:[%s7 + $0x8a8] sm:$0xff]
    %v3945 = vld [vmem:[%s7 + $0x8b0] sm:$0xff]
    %v3946 = vld [vmem:[%s7 + $0x8b8] sm:$0xff]
    %v3947 = vld [vmem:[%s7 + $0x8c0] sm:$0xff]
    %v3948 = vld [vmem:[%s7 + $0x8c8] sm:$0xff]
    %v3949 = vld [vmem:[%s7 + $0x8d0] sm:$0xff]
    %v3950 = vld [vmem:[%s7 + $0x8d8] sm:$0xff]
    %v3951 = vld [vmem:[%s7 + $0x8e0] sm:$0xff]
    %v3952 = vld [vmem:[%s7 + $0x8e8] sm:$0xff]
    %v3953 = vld [vmem:[%s7 + $0x8f0] sm:$0xff]
    %v3954 = vld [vmem:[%s7 + $0x8f8] sm:$0xff]
    %v3955 = vrot.slane %v2367, 2
    %v3956 = vrot.slane %v2368, 2
    %v3957 = vrot.slane %v2369, 2
    %v4057 = vunpack.c.l.b16 %v3859
    %v4058 = vunpack.c.h.b16 %v3859
    %v4059 = vunpack.c.l.b16 %v3860
    %v4060 = vunpack.c.h.b16 %v3860
    %v4061 = vunpack.c.l.b16 %v3861
    %v4062 = vunpack.c.h.b16 %v3861
    %v4063 = vunpack.c.l.b16 %v3862
    %v4064 = vunpack.c.h.b16 %v3862
    %v4065 = vunpack.c.l.b16 %v3863
    %v4066 = vunpack.c.h.b16 %v3863
    %v4067 = vunpack.c.l.b16 %v3864
    %v4068 = vunpack.c.h.b16 %v3864
    %v4069 = vunpack.c.l.b16 %v3865
    %v4070 = vunpack.c.h.b16 %v3865
    %v4071 = vunpack.c.l.b16 %v3866
    %v4072 = vunpack.c.h.b16 %v3866
    %v4073 = vunpack.c.l.b16 %v3867
    %v4074 = vunpack.c.h.b16 %v3867
    %v4075 = vunpack.c.l.b16 %v3868
    %v4076 = vunpack.c.h.b16 %v3868
    %v4077 = vunpack.c.l.b16 %v3869
    %v4078 = vunpack.c.h.b16 %v3869
    %v4079 = vunpack.c.l.b16 %v3870
    %v4080 = vunpack.c.h.b16 %v3870
    %v4081 = vunpack.c.l.b16 %v3871
    %v4082 = vunpack.c.h.b16 %v3871
    %v4083 = vunpack.c.l.b16 %v3872
    %v4084 = vunpack.c.h.b16 %v3872
    %v4085 = vunpack.c.l.b16 %v3873
    %v4086 = vunpack.c.h.b16 %v3873
    %v4087 = vunpack.c.l.b16 %v3874
    %v4088 = vunpack.c.h.b16 %v3874
    %v4089 = vunpack.c.l.b16 %v3875
    %v4090 = vunpack.c.h.b16 %v3875
    %v4091 = vunpack.c.l.b16 %v3876
    %v4092 = vunpack.c.h.b16 %v3876
    %v4093 = vunpack.c.l.b16 %v3877
    %v4094 = vunpack.c.h.b16 %v3877
    %v4095 = vunpack.c.l.b16 %v3878
    %v4096 = vunpack.c.h.b16 %v3878
    %v4097 = vunpack.c.l.b16 %v3879
    %v4098 = vunpack.c.h.b16 %v3879
    %v4099 = vunpack.c.l.b16 %v3880
    %v4100 = vunpack.c.h.b16 %v3880
    %v4101 = vunpack.c.l.b16 %v3881
    %v4102 = vunpack.c.h.b16 %v3881
    %v4103 = vunpack.c.l.b16 %v3882
    %v4104 = vunpack.c.h.b16 %v3882
    %v4105 = vunpack.c.l.b16 %v3883
    %v4106 = vunpack.c.h.b16 %v3883
    %v4107 = vunpack.c.l.b16 %v3884
    %v4108 = vunpack.c.h.b16 %v3884
    %v4109 = vunpack.c.l.b16 %v3885
    %v4110 = vunpack.c.h.b16 %v3885
    %v4111 = vunpack.c.l.b16 %v3886
    %v4112 = vunpack.c.h.b16 %v3886
    %v4113 = vunpack.c.l.b16 %v3887
    %v4114 = vunpack.c.h.b16 %v3887
    %v4115 = vunpack.c.l.b16 %v3888
    %v4116 = vunpack.c.h.b16 %v3888
    %v4117 = vunpack.c.l.b16 %v3889
    %v4118 = vunpack.c.h.b16 %v3889
    %v4119 = vunpack.c.l.b16 %v3890
    %v4120 = vunpack.c.h.b16 %v3890
    %v4121 = vunpack.c.l.b16 %v3891
    %v4122 = vunpack.c.h.b16 %v3891
    %v4123 = vunpack.c.l.b16 %v3892
    %v4124 = vunpack.c.h.b16 %v3892
    %v4125 = vunpack.c.l.b16 %v3893
    %v4126 = vunpack.c.h.b16 %v3893
    %v4127 = vunpack.c.l.b16 %v3894
    %v4128 = vunpack.c.h.b16 %v3894
    %v4129 = vunpack.c.l.b16 %v3895
    %v4130 = vunpack.c.h.b16 %v3895
    %v4131 = vunpack.c.l.b16 %v3896
    %v4132 = vunpack.c.h.b16 %v3896
    %v4133 = vunpack.c.l.b16 %v3897
    %v4134 = vunpack.c.h.b16 %v3897
    %v4135 = vunpack.c.l.b16 %v3898
    %v4136 = vunpack.c.h.b16 %v3898
    %v4137 = vunpack.c.l.b16 %v3899
    %v4138 = vunpack.c.h.b16 %v3899
    %v4139 = vunpack.c.l.b16 %v3900
    %v4140 = vunpack.c.h.b16 %v3900
    %v4141 = vunpack.c.l.b16 %v3901
    %v4142 = vunpack.c.h.b16 %v3901
    %v4143 = vunpack.c.l.b16 %v3902
    %v4144 = vunpack.c.h.b16 %v3902
    %v4145 = vunpack.c.l.b16 %v3903
    %v4146 = vunpack.c.h.b16 %v3903
    %v4147 = vunpack.c.l.b16 %v3904
    %v4148 = vunpack.c.h.b16 %v3904
    %v4149 = vunpack.c.l.b16 %v3905
    %v4150 = vunpack.c.h.b16 %v3905
    %v4151 = vunpack.c.l.b16 %v3906
    %v4152 = vunpack.c.h.b16 %v3906
    %v4153 = vunpack.c.l.b16 %v3907
    %v4154 = vunpack.c.h.b16 %v3907
    %v4155 = vunpack.c.l.b16 %v3908
    %v4156 = vunpack.c.h.b16 %v3908
    %v4157 = vunpack.c.l.b16 %v3909
    %v4158 = vunpack.c.h.b16 %v3909
    %v4159 = vunpack.c.l.b16 %v3910
    %v4160 = vunpack.c.h.b16 %v3910
    %v4161 = vunpack.c.l.b16 %v3911
    %v4162 = vunpack.c.h.b16 %v3911
    %v4163 = vunpack.c.l.b16 %v3912
    %v4164 = vunpack.c.h.b16 %v3912
    %v4165 = vunpack.c.l.b16 %v3913
    %v4166 = vunpack.c.h.b16 %v3913
    %v4167 = vunpack.c.l.b16 %v3914
    %v4168 = vunpack.c.h.b16 %v3914
    %v4169 = vunpack.c.l.b16 %v3915
    %v4170 = vunpack.c.h.b16 %v3915
    %v4171 = vunpack.c.l.b16 %v3916
    %v4172 = vunpack.c.h.b16 %v3916
    %v4173 = vunpack.c.l.b16 %v3917
    %v4174 = vunpack.c.h.b16 %v3917
    %v4175 = vunpack.c.l.b16 %v3918
    %v4176 = vunpack.c.h.b16 %v3918
    %v4177 = vunpack.c.l.b16 %v3919
    %v4178 = vunpack.c.h.b16 %v3919
    %v4179 = vunpack.c.l.b16 %v3920
    %v4180 = vunpack.c.h.b16 %v3920
    %v4181 = vunpack.c.l.b16 %v3921
    %v4182 = vunpack.c.h.b16 %v3921
    %v4183 = vunpack.c.l.b16 %v3922
    %v4184 = vunpack.c.h.b16 %v3922
    %v4185 = vunpack.c.l.b16 %v3923
    %v4186 = vunpack.c.h.b16 %v3923
    %v4187 = vunpack.c.l.b16 %v3924
    %v4188 = vunpack.c.h.b16 %v3924
    %v4189 = vunpack.c.l.b16 %v3925
    %v4190 = vunpack.c.h.b16 %v3925
    %v4191 = vunpack.c.l.b16 %v3926
    %v4192 = vunpack.c.h.b16 %v3926
    %v4193 = vunpack.c.l.b16 %v3927
    %v4194 = vunpack.c.h.b16 %v3927
    %v4195 = vunpack.c.l.b16 %v3928
    %v4196 = vunpack.c.h.b16 %v3928
    %v4197 = vunpack.c.l.b16 %v3929
    %v4198 = vunpack.c.h.b16 %v3929
    %v4199 = vunpack.c.l.b16 %v3930
    %v4200 = vunpack.c.h.b16 %v3930
    %v4201 = vunpack.c.l.b16 %v3931
    %v4202 = vunpack.c.h.b16 %v3931
    %v4203 = vunpack.c.l.b16 %v3932
    %v4204 = vunpack.c.h.b16 %v3932
    %v4205 = vunpack.c.l.b16 %v3933
    %v4206 = vunpack.c.h.b16 %v3933
    %v4207 = vunpack.c.l.b16 %v3934
    %v4208 = vunpack.c.h.b16 %v3934
    %v4209 = vunpack.c.l.b16 %v3935
    %v4210 = vunpack.c.h.b16 %v3935
    %v4211 = vunpack.c.l.b16 %v3936
    %v4212 = vunpack.c.h.b16 %v3936
    %v4213 = vunpack.c.l.b16 %v3937
    %v4214 = vunpack.c.h.b16 %v3937
    %v4215 = vunpack.c.l.b16 %v3938
    %v4216 = vunpack.c.h.b16 %v3938
    %v4217 = vunpack.c.l.b16 %v3939
    %v4218 = vunpack.c.h.b16 %v3939
    %v4219 = vunpack.c.l.b16 %v3940
    %v4220 = vunpack.c.h.b16 %v3940
    %v4221 = vunpack.c.l.b16 %v3941
    %v4222 = vunpack.c.h.b16 %v3941
    %v4223 = vunpack.c.l.b16 %v3942
    %v4224 = vunpack.c.h.b16 %v3942
    %v4225 = vunpack.c.l.b16 %v3943
    %v4226 = vunpack.c.h.b16 %v3943
    %v4227 = vunpack.c.l.b16 %v3944
    %v4228 = vunpack.c.h.b16 %v3944
    %v4229 = vunpack.c.l.b16 %v3945
    %v4230 = vunpack.c.h.b16 %v3945
    %v4231 = vunpack.c.l.b16 %v3946
    %v4232 = vunpack.c.h.b16 %v3946
    %v4233 = vunpack.c.l.b16 %v3947
    %v4234 = vunpack.c.h.b16 %v3947
    %v4235 = vunpack.c.l.b16 %v3948
    %v4236 = vunpack.c.h.b16 %v3948
    %v4237 = vunpack.c.l.b16 %v3949
    %v4238 = vunpack.c.h.b16 %v3949
    %v4239 = vunpack.c.l.b16 %v3950
    %v4240 = vunpack.c.h.b16 %v3950
    %v4241 = vunpack.c.l.b16 %v3951
    %v4242 = vunpack.c.h.b16 %v3951
    %v4243 = vunpack.c.l.b16 %v3952
    %v4244 = vunpack.c.h.b16 %v3952
    %v4245 = vunpack.c.l.b16 %v3953
    %v4246 = vunpack.c.h.b16 %v3953
    %v4247 = vunpack.c.l.b16 %v3954
    %v4248 = vunpack.c.h.b16 %v3954
    %v4249 = vpack.c.b16 %v4061, %v4057
    %v4250 = vpack.c.b16 %v4062, %v4058
    %v4251 = vpack.c.b16 %v4063, %v4059
    %v4252 = vpack.c.b16 %v4064, %v4060
    %v4253 = vpack.c.b16 %v4069, %v4065
    %v4254 = vpack.c.b16 %v4070, %v4066
    %v4255 = vpack.c.b16 %v4071, %v4067
    %v4256 = vpack.c.b16 %v4072, %v4068
    %v4257 = vpack.c.b16 %v4077, %v4073
    %v4258 = vpack.c.b16 %v4078, %v4074
    %v4259 = vpack.c.b16 %v4079, %v4075
    %v4260 = vpack.c.b16 %v4080, %v4076
    %v4261 = vpack.c.b16 %v4085, %v4081
    %v4262 = vpack.c.b16 %v4086, %v4082
    %v4263 = vpack.c.b16 %v4087, %v4083
    %v4264 = vpack.c.b16 %v4088, %v4084
    %v4265 = vpack.c.b16 %v4093, %v4089
    %v4266 = vpack.c.b16 %v4094, %v4090
    %v4267 = vpack.c.b16 %v4095, %v4091
    %v4268 = vpack.c.b16 %v4096, %v4092
    %v4269 = vpack.c.b16 %v4101, %v4097
    %v4270 = vpack.c.b16 %v4102, %v4098
    %v4271 = vpack.c.b16 %v4103, %v4099
    %v4272 = vpack.c.b16 %v4104, %v4100
    %v4273 = vpack.c.b16 %v4109, %v4105
    %v4274 = vpack.c.b16 %v4110, %v4106
    %v4275 = vpack.c.b16 %v4111, %v4107
    %v4276 = vpack.c.b16 %v4112, %v4108
    %v4277 = vpack.c.b16 %v4117, %v4113
    %v4278 = vpack.c.b16 %v4118, %v4114
    %v4279 = vpack.c.b16 %v4119, %v4115
    %v4280 = vpack.c.b16 %v4120, %v4116
    %v4281 = vpack.c.b16 %v4125, %v4121
    %v4282 = vpack.c.b16 %v4126, %v4122
    %v4283 = vpack.c.b16 %v4127, %v4123
    %v4284 = vpack.c.b16 %v4128, %v4124
    %v4285 = vpack.c.b16 %v4133, %v4129
    %v4286 = vpack.c.b16 %v4134, %v4130
    %v4287 = vpack.c.b16 %v4135, %v4131
    %v4288 = vpack.c.b16 %v4136, %v4132
    %v4289 = vpack.c.b16 %v4141, %v4137
    %v4290 = vpack.c.b16 %v4142, %v4138
    %v4291 = vpack.c.b16 %v4143, %v4139
    %v4292 = vpack.c.b16 %v4144, %v4140
    %v4293 = vpack.c.b16 %v4149, %v4145
    %v4294 = vpack.c.b16 %v4150, %v4146
    %v4295 = vpack.c.b16 %v4151, %v4147
    %v4296 = vpack.c.b16 %v4152, %v4148
    %v4297 = vpack.c.b16 %v4157, %v4153
    %v4298 = vpack.c.b16 %v4158, %v4154
    %v4299 = vpack.c.b16 %v4159, %v4155
    %v4300 = vpack.c.b16 %v4160, %v4156
    %v4301 = vpack.c.b16 %v4165, %v4161
    %v4302 = vpack.c.b16 %v4166, %v4162
    %v4303 = vpack.c.b16 %v4167, %v4163
    %v4304 = vpack.c.b16 %v4168, %v4164
    %v4305 = vpack.c.b16 %v4173, %v4169
    %v4306 = vpack.c.b16 %v4174, %v4170
    %v4307 = vpack.c.b16 %v4175, %v4171
    %v4308 = vpack.c.b16 %v4176, %v4172
    %v4309 = vpack.c.b16 %v4181, %v4177
    %v4310 = vpack.c.b16 %v4182, %v4178
    %v4311 = vpack.c.b16 %v4183, %v4179
    %v4312 = vpack.c.b16 %v4184, %v4180
    %v4313 = vpack.c.b16 %v4189, %v4185
    %v4314 = vpack.c.b16 %v4190, %v4186
    %v4315 = vpack.c.b16 %v4191, %v4187
    %v4316 = vpack.c.b16 %v4192, %v4188
    %v4317 = vpack.c.b16 %v4197, %v4193
    %v4318 = vpack.c.b16 %v4198, %v4194
    %v4319 = vpack.c.b16 %v4199, %v4195
    %v4320 = vpack.c.b16 %v4200, %v4196
    %v4321 = vpack.c.b16 %v4205, %v4201
    %v4322 = vpack.c.b16 %v4206, %v4202
    %v4323 = vpack.c.b16 %v4207, %v4203
    %v4324 = vpack.c.b16 %v4208, %v4204
    %v4325 = vpack.c.b16 %v4213, %v4209
    %v4326 = vpack.c.b16 %v4214, %v4210
    %v4327 = vpack.c.b16 %v4215, %v4211
    %v4328 = vpack.c.b16 %v4216, %v4212
    %v4329 = vpack.c.b16 %v4221, %v4217
    %v4330 = vpack.c.b16 %v4222, %v4218
    %v4331 = vpack.c.b16 %v4223, %v4219
    %v4332 = vpack.c.b16 %v4224, %v4220
    %v4333 = vpack.c.b16 %v4229, %v4225
    %v4334 = vpack.c.b16 %v4230, %v4226
    %v4335 = vpack.c.b16 %v4231, %v4227
    %v4336 = vpack.c.b16 %v4232, %v4228
    %v4337 = vpack.c.b16 %v4237, %v4233
    %v4338 = vpack.c.b16 %v4238, %v4234
    %v4339 = vpack.c.b16 %v4239, %v4235
    %v4340 = vpack.c.b16 %v4240, %v4236
    %v4341 = vpack.c.b16 %v4245, %v4241
    %v4342 = vpack.c.b16 %v4246, %v4242
    %v4343 = vpack.c.b16 %v4247, %v4243
    %v4344 = vpack.c.b16 %v4248, %v4244
    %4441 = vmatprep.subr.bf16.mxu0 %v4250
    %4442 = vmatpush1.bf16.msra.mxu0 %v4249
    %4443 = vmatprep.subr.bf16.mxu0 %v4254
    %4444 = vmatpush1.bf16.msra.mxu0 %v4253
    %4445 = vmatprep.subr.bf16.mxu0 %v4258
    %4446 = vmatpush1.bf16.msra.mxu0 %v4257
    %4447 = vmatprep.subr.bf16.mxu0 %v4262
    %4448 = vmatpush1.bf16.msra.mxu0 %v4261
    %4449 = vmatprep.subr.bf16.mxu0 %v4266
    %4450 = vmatpush1.bf16.msra.mxu0 %v4265
    %4451 = vmatprep.subr.bf16.mxu0 %v4270
    %4452 = vmatpush1.bf16.msra.mxu0 %v4269
    %4453 = vmatprep.subr.bf16.mxu0 %v4274
    %4454 = vmatpush1.bf16.msra.mxu0 %v4273
    %4455 = vmatprep.subr.bf16.mxu0 %v4278
    %4456 = vmatpush1.bf16.msra.mxu0 %v4277
    %4457 = vmatprep.subr.bf16.mxu0 %v4282
    %4458 = vmatpush1.bf16.msra.mxu0 %v4281
    %4459 = vmatprep.subr.bf16.mxu0 %v4286
    %4460 = vmatpush1.bf16.msra.mxu0 %v4285
    %4461 = vmatprep.subr.bf16.mxu0 %v4290
    %4462 = vmatpush1.bf16.msra.mxu0 %v4289
    %4463 = vmatprep.subr.bf16.mxu0 %v4294
    %4464 = vmatpush1.bf16.msra.mxu0 %v4293
    %4465 = vmatprep.subr.bf16.mxu0 %v4298
    %4466 = vmatpush1.bf16.msra.mxu0 %v4297
    %4467 = vmatprep.subr.bf16.mxu0 %v4302
    %4468 = vmatpush1.bf16.msra.mxu0 %v4301
    %4469 = vmatprep.subr.bf16.mxu0 %v4306
    %4470 = vmatpush1.bf16.msra.mxu0 %v4305
    %4471 = vmatprep.subr.bf16.mxu0 %v4310
    %4472 = vmatpush1.bf16.msra.mxu0 %v4309
    %4473 = vmatprep.mubr.bf16.mxu0 %v3956
    %4474 = vmatmul.mubr.bf16.gmra.mrb[0].mxu0 %v3955
    %v4475 = vpop.f32.mrb[0].mxu0
    %v4476 = vadd.f32 0.0, %v4475
    %v4477 = vpop.f32.mrb[0].mxu0
    %v4478 = vadd.f32 0.0, %v4477
    %v4479 = vpop.f32.mrb[0].mxu0
    %v4480 = vpop.f32.mrb[0].mxu0
    %4481 = vdwg.mxu0
    %4482 = vmatprep.subr.bf16.mxu0 %v4314
    %4483 = vmatpush1.bf16.msra.mxu0 %v4313
    %4484 = vmatprep.subr.bf16.mxu0 %v4318
    %4485 = vmatpush1.bf16.msra.mxu0 %v4317
    %4486 = vmatprep.subr.bf16.mxu0 %v4322
    %4487 = vmatpush1.bf16.msra.mxu0 %v4321
    %4488 = vmatprep.subr.bf16.mxu0 %v4326
    %4489 = vmatpush1.bf16.msra.mxu0 %v4325
    %4490 = vmatprep.subr.bf16.mxu0 %v4330
    %4491 = vmatpush1.bf16.msra.mxu0 %v4329
    %4492 = vmatprep.subr.bf16.mxu0 %v4334
    %4493 = vmatpush1.bf16.msra.mxu0 %v4333
    %4494 = vmatprep.subr.bf16.mxu0 %v4338
    %4495 = vmatpush1.bf16.msra.mxu0 %v4337
    %4496 = vmatprep.subr.bf16.mxu0 %v4342
    %4497 = vmatpush1.bf16.msra.mxu0 %v4341
    %4498 = vmatprep.subr.bf16.mxu0 0
    %4499 = vmatpush1.bf16.msra.mxu0 0
    %4500 = vmatprep.subr.bf16.mxu0 0
    %4501 = vmatpush1.bf16.msra.mxu0 0
    %4502 = vmatprep.subr.bf16.mxu0 0
    %4503 = vmatpush1.bf16.msra.mxu0 0
    %4504 = vmatprep.subr.bf16.mxu0 0
    %4505 = vmatpush1.bf16.msra.mxu0 0
    %4506 = vmatprep.subr.bf16.mxu0 0
    %4507 = vmatpush1.bf16.msra.mxu0 0
    %4508 = vmatprep.subr.bf16.mxu0 0
    %4509 = vmatpush1.bf16.msra.mxu0 0
    %4510 = vmatprep.subr.bf16.mxu0 0
    %4511 = vmatpush1.bf16.msra.mxu0 0
    %4512 = vmatprep.subr.bf16.mxu0 0
    %4513 = vmatpush1.bf16.msra.mxu0 0
    %4514 = vmatprep.mubr.bf16.mxu0 0
    %4515 = vmatmul.mubr.bf16.gmra.mrb[0].mxu0 %v3957
    %v4516 = vpop.f32.mrb[0].mxu0
    %v4517 = vadd.f32 %v4476, %v4516
    %v4518 = vpop.f32.mrb[0].mxu0
    %v4519 = vadd.f32 %v4478, %v4518
    %v4520 = vpop.f32.mrb[0].mxu0
    %v4521 = vpop.f32.mrb[0].mxu0
    %4522 = vdwg.mxu0
    %4523 = vmatprep.subr.bf16.mxu0 %v4252
    %4524 = vmatpush1.bf16.msra.mxu0 %v4251
    %4525 = vmatprep.subr.bf16.mxu0 %v4256
    %4526 = vmatpush1.bf16.msra.mxu0 %v4255
    %4527 = vmatprep.subr.bf16.mxu0 %v4260
    %4528 = vmatpush1.bf16.msra.mxu0 %v4259
    %4529 = vmatprep.subr.bf16.mxu0 %v4264
    %4530 = vmatpush1.bf16.msra.mxu0 %v4263
    %4531 = vmatprep.subr.bf16.mxu0 %v4268
    %4532 = vmatpush1.bf16.msra.mxu0 %v4267
    %4533 = vmatprep.subr.bf16.mxu0 %v4272
    %4534 = vmatpush1.bf16.msra.mxu0 %v4271
    %4535 = vmatprep.subr.bf16.mxu0 %v4276
    %4536 = vmatpush1.bf16.msra.mxu0 %v4275
    %4537 = vmatprep.subr.bf16.mxu0 %v4280
    %4538 = vmatpush1.bf16.msra.mxu0 %v4279
    %4539 = vmatprep.subr.bf16.mxu0 %v4284
    %4540 = vmatpush1.bf16.msra.mxu0 %v4283
    %4541 = vmatprep.subr.bf16.mxu0 %v4288
    %4542 = vmatpush1.bf16.msra.mxu0 %v4287
    %4543 = vmatprep.subr.bf16.mxu0 %v4292
    %4544 = vmatpush1.bf16.msra.mxu0 %v4291
    %4545 = vmatprep.subr.bf16.mxu0 %v4296
    %4546 = vmatpush1.bf16.msra.mxu0 %v4295
    %4547 = vmatprep.subr.bf16.mxu0 %v4300
    %4548 = vmatpush1.bf16.msra.mxu0 %v4299
    %4549 = vmatprep.subr.bf16.mxu0 %v4304
    %4550 = vmatpush1.bf16.msra.mxu0 %v4303
    %4551 = vmatprep.subr.bf16.mxu0 %v4308
    %4552 = vmatpush1.bf16.msra.mxu0 %v4307
    %4553 = vmatprep.subr.bf16.mxu0 %v4312
    %4554 = vmatpush1.bf16.msra.mxu0 %v4311
    %4555 = vmatprep.mubr.bf16.mxu0 %v3956
    %4556 = vmatmul.mubr.bf16.gmra.mrb[0].mxu0 %v3955
    %v4557 = vpop.f32.mrb[0].mxu0
    %v4558 = vadd.f32 0.0, %v4557
    %v4559 = vpop.f32.mrb[0].mxu0
    %v4560 = vadd.f32 0.0, %v4559
    %v4561 = vpop.f32.mrb[0].mxu0
    %v4562 = vpop.f32.mrb[0].mxu0
    %4563 = vdwg.mxu0
    %4564 = vmatprep.subr.bf16.mxu0 %v4316
    %4565 = vmatpush1.bf16.msra.mxu0 %v4315
    %4566 = vmatprep.subr.bf16.mxu0 %v4320
    %4567 = vmatpush1.bf16.msra.mxu0 %v4319
    %4568 = vmatprep.subr.bf16.mxu0 %v4324
    %4569 = vmatpush1.bf16.msra.mxu0 %v4323
    %4570 = vmatprep.subr.bf16.mxu0 %v4328
    %4571 = vmatpush1.bf16.msra.mxu0 %v4327
    %4572 = vmatprep.subr.bf16.mxu0 %v4332
    %4573 = vmatpush1.bf16.msra.mxu0 %v4331
    %4574 = vmatprep.subr.bf16.mxu0 %v4336
    %4575 = vmatpush1.bf16.msra.mxu0 %v4335
    %4576 = vmatprep.subr.bf16.mxu0 %v4340
    %4577 = vmatpush1.bf16.msra.mxu0 %v4339
    %4578 = vmatprep.subr.bf16.mxu0 %v4344
    %4579 = vmatpush1.bf16.msra.mxu0 %v4343
    %4580 = vmatprep.subr.bf16.mxu0 0
    %4581 = vmatpush1.bf16.msra.mxu0 0
    %4582 = vmatprep.subr.bf16.mxu0 0
    %4583 = vmatpush1.bf16.msra.mxu0 0
    %4584 = vmatprep.subr.bf16.mxu0 0
    %4585 = vmatpush1.bf16.msra.mxu0 0
    %4586 = vmatprep.subr.bf16.mxu0 0
    %4587 = vmatpush1.bf16.msra.mxu0 0
    %4588 = vmatprep.subr.bf16.mxu0 0
    %4589 = vmatpush1.bf16.msra.mxu0 0
    %4590 = vmatprep.subr.bf16.mxu0 0
    %4591 = vmatpush1.bf16.msra.mxu0 0
    %4592 = vmatprep.subr.bf16.mxu0 0
    %4593 = vmatpush1.bf16.msra.mxu0 0
    %4594 = vmatprep.subr.bf16.mxu0 0
    %4595 = vmatpush1.bf16.msra.mxu0 0
    %4596 = vmatprep.mubr.bf16.mxu0 0
    %4597 = vmatmul.mubr.bf16.gmra.mrb[0].mxu0 %v3957
    %v4598 = vpop.f32.mrb[0].mxu0
    %v4599 = vadd.f32 %v4558, %v4598
    %v4600 = vpop.f32.mrb[0].mxu0
    %v4601 = vadd.f32 %v4560, %v4600
    %v4602 = vpop.f32.mrb[0].mxu0
    %v4603 = vpop.f32.mrb[0].mxu0
    %4604 = vdwg.mxu0
    %v4605 = vadd.f32 %v3771, %v4517
    %v4606 = vadd.f32 %v3773, %v4519
    %v4607 = vadd.f32 %v3853, %v4599
    %v4608 = vadd.f32 %v3855, %v4601
    %v4609 = vld [vmem:[%s7 + $0x900] sm:$0xff]
    %v4610 = vld [vmem:[%s7 + $0x908] sm:$0xff]
    %v4611 = vld [vmem:[%s7 + $0x910] sm:$0xff]
    %v4612 = vld [vmem:[%s7 + $0x918] sm:$0xff]
    %v4613 = vld [vmem:[%s7 + $0x920] sm:$0xff]
    %v4614 = vld [vmem:[%s7 + $0x928] sm:$0xff]
    %v4615 = vld [vmem:[%s7 + $0x930] sm:$0xff]
    %v4616 = vld [vmem:[%s7 + $0x938] sm:$0xff]
    %v4617 = vld [vmem:[%s7 + $0x940] sm:$0xff]
    %v4618 = vld [vmem:[%s7 + $0x948] sm:$0xff]
    %v4619 = vld [vmem:[%s7 + $0x950] sm:$0xff]
    %v4620 = vld [vmem:[%s7 + $0x958] sm:$0xff]
    %v4621 = vld [vmem:[%s7 + $0x960] sm:$0xff]
    %v4622 = vld [vmem:[%s7 + $0x968] sm:$0xff]
    %v4623 = vld [vmem:[%s7 + $0x970] sm:$0xff]
    %v4624 = vld [vmem:[%s7 + $0x978] sm:$0xff]
    %v4625 = vld [vmem:[%s7 + $0x980] sm:$0xff]
    %v4626 = vld [vmem:[%s7 + $0x988] sm:$0xff]
    %v4627 = vld [vmem:[%s7 + $0x990] sm:$0xff]
    %v4628 = vld [vmem:[%s7 + $0x998] sm:$0xff]
    %v4629 = vld [vmem:[%s7 + $0x9a0] sm:$0xff]
    %v4630 = vld [vmem:[%s7 + $0x9a8] sm:$0xff]
    %v4631 = vld [vmem:[%s7 + $0x9b0] sm:$0xff]
    %v4632 = vld [vmem:[%s7 + $0x9b8] sm:$0xff]
    %v4633 = vld [vmem:[%s7 + $0x9c0] sm:$0xff]
    %v4634 = vld [vmem:[%s7 + $0x9c8] sm:$0xff]
    %v4635 = vld [vmem:[%s7 + $0x9d0] sm:$0xff]
    %v4636 = vld [vmem:[%s7 + $0x9d8] sm:$0xff]
    %v4637 = vld [vmem:[%s7 + $0x9e0] sm:$0xff]
    %v4638 = vld [vmem:[%s7 + $0x9e8] sm:$0xff]
    %v4639 = vld [vmem:[%s7 + $0x9f0] sm:$0xff]
    %v4640 = vld [vmem:[%s7 + $0x9f8] sm:$0xff]
    %v4641 = vld [vmem:[%s7 + $0xa00] sm:$0xff]
    %v4642 = vld [vmem:[%s7 + $0xa08] sm:$0xff]
    %v4643 = vld [vmem:[%s7 + $0xa10] sm:$0xff]
    %v4644 = vld [vmem:[%s7 + $0xa18] sm:$0xff]
    %v4645 = vld [vmem:[%s7 + $0xa20] sm:$0xff]
    %v4646 = vld [vmem:[%s7 + $0xa28] sm:$0xff]
    %v4647 = vld [vmem:[%s7 + $0xa30] sm:$0xff]
    %v4648 = vld [vmem:[%s7 + $0xa38] sm:$0xff]
    %v4649 = vld [vmem:[%s7 + $0xa40] sm:$0xff]
    %v4650 = vld [vmem:[%s7 + $0xa48] sm:$0xff]
    %v4651 = vld [vmem:[%s7 + $0xa50] sm:$0xff]
    %v4652 = vld [vmem:[%s7 + $0xa58] sm:$0xff]
    %v4653 = vld [vmem:[%s7 + $0xa60] sm:$0xff]
    %v4654 = vld [vmem:[%s7 + $0xa68] sm:$0xff]
    %v4655 = vld [vmem:[%s7 + $0xa70] sm:$0xff]
    %v4656 = vld [vmem:[%s7 + $0xa78] sm:$0xff]
    %v4657 = vld [vmem:[%s7 + $0xa80] sm:$0xff]
    %v4658 = vld [vmem:[%s7 + $0xa88] sm:$0xff]
    %v4659 = vld [vmem:[%s7 + $0xa90] sm:$0xff]
    %v4660 = vld [vmem:[%s7 + $0xa98] sm:$0xff]
    %v4661 = vld [vmem:[%s7 + $0xaa0] sm:$0xff]
    %v4662 = vld [vmem:[%s7 + $0xaa8] sm:$0xff]
    %v4663 = vld [vmem:[%s7 + $0xab0] sm:$0xff]
    %v4664 = vld [vmem:[%s7 + $0xab8] sm:$0xff]
    %v4665 = vld [vmem:[%s7 + $0xac0] sm:$0xff]
    %v4666 = vld [vmem:[%s7 + $0xac8] sm:$0xff]
    %v4667 = vld [vmem:[%s7 + $0xad0] sm:$0xff]
    %v4668 = vld [vmem:[%s7 + $0xad8] sm:$0xff]
    %v4669 = vld [vmem:[%s7 + $0xae0] sm:$0xff]
    %v4670 = vld [vmem:[%s7 + $0xae8] sm:$0xff]
    %v4671 = vld [vmem:[%s7 + $0xaf0] sm:$0xff]
    %v4672 = vld [vmem:[%s7 + $0xaf8] sm:$0xff]
    %v4673 = vld [vmem:[%s7 + $0xb00] sm:$0xff]
    %v4674 = vld [vmem:[%s7 + $0xb08] sm:$0xff]
    %v4675 = vld [vmem:[%s7 + $0xb10] sm:$0xff]
    %v4676 = vld [vmem:[%s7 + $0xb18] sm:$0xff]
    %v4677 = vld [vmem:[%s7 + $0xb20] sm:$0xff]
    %v4678 = vld [vmem:[%s7 + $0xb28] sm:$0xff]
    %v4679 = vld [vmem:[%s7 + $0xb30] sm:$0xff]
    %v4680 = vld [vmem:[%s7 + $0xb38] sm:$0xff]
    %v4681 = vld [vmem:[%s7 + $0xb40] sm:$0xff]
    %v4682 = vld [vmem:[%s7 + $0xb48] sm:$0xff]
    %v4683 = vld [vmem:[%s7 + $0xb50] sm:$0xff]
    %v4684 = vld [vmem:[%s7 + $0xb58] sm:$0xff]
    %v4685 = vld [vmem:[%s7 + $0xb60] sm:$0xff]
    %v4686 = vld [vmem:[%s7 + $0xb68] sm:$0xff]
    %v4687 = vld [vmem:[%s7 + $0xb70] sm:$0xff]
    %v4688 = vld [vmem:[%s7 + $0xb78] sm:$0xff]
    %v4689 = vld [vmem:[%s7 + $0xb80] sm:$0xff]
    %v4690 = vld [vmem:[%s7 + $0xb88] sm:$0xff]
    %v4691 = vld [vmem:[%s7 + $0xb90] sm:$0xff]
    %v4692 = vld [vmem:[%s7 + $0xb98] sm:$0xff]
    %v4693 = vld [vmem:[%s7 + $0xba0] sm:$0xff]
    %v4694 = vld [vmem:[%s7 + $0xba8] sm:$0xff]
    %v4695 = vld [vmem:[%s7 + $0xbb0] sm:$0xff]
    %v4696 = vld [vmem:[%s7 + $0xbb8] sm:$0xff]
    %v4697 = vld [vmem:[%s7 + $0xbc0] sm:$0xff]
    %v4698 = vld [vmem:[%s7 + $0xbc8] sm:$0xff]
    %v4699 = vld [vmem:[%s7 + $0xbd0] sm:$0xff]
    %v4700 = vld [vmem:[%s7 + $0xbd8] sm:$0xff]
    %v4701 = vld [vmem:[%s7 + $0xbe0] sm:$0xff]
    %v4702 = vld [vmem:[%s7 + $0xbe8] sm:$0xff]
    %v4703 = vld [vmem:[%s7 + $0xbf0] sm:$0xff]
    %v4704 = vld [vmem:[%s7 + $0xbf8] sm:$0xff]
    %v4705 = vrot.slane %v2367, 3
    %v4706 = vrot.slane %v2368, 3
    %v4707 = vrot.slane %v2369, 3
    %v4807 = vunpack.c.l.b16 %v4609
    %v4808 = vunpack.c.h.b16 %v4609
    %v4809 = vunpack.c.l.b16 %v4610
    %v4810 = vunpack.c.h.b16 %v4610
    %v4811 = vunpack.c.l.b16 %v4611
    %v4812 = vunpack.c.h.b16 %v4611
    %v4813 = vunpack.c.l.b16 %v4612
    %v4814 = vunpack.c.h.b16 %v4612
    %v4815 = vunpack.c.l.b16 %v4613
    %v4816 = vunpack.c.h.b16 %v4613
    %v4817 = vunpack.c.l.b16 %v4614
    %v4818 = vunpack.c.h.b16 %v4614
    %v4819 = vunpack.c.l.b16 %v4615
    %v4820 = vunpack.c.h.b16 %v4615
    %v4821 = vunpack.c.l.b16 %v4616
    %v4822 = vunpack.c.h.b16 %v4616
    %v4823 = vunpack.c.l.b16 %v4617
    %v4824 = vunpack.c.h.b16 %v4617
    %v4825 = vunpack.c.l.b16 %v4618
    %v4826 = vunpack.c.h.b16 %v4618
    %v4827 = vunpack.c.l.b16 %v4619
    %v4828 = vunpack.c.h.b16 %v4619
    %v4829 = vunpack.c.l.b16 %v4620
    %v4830 = vunpack.c.h.b16 %v4620
    %v4831 = vunpack.c.l.b16 %v4621
    %v4832 = vunpack.c.h.b16 %v4621
    %v4833 = vunpack.c.l.b16 %v4622
    %v4834 = vunpack.c.h.b16 %v4622
    %v4835 = vunpack.c.l.b16 %v4623
    %v4836 = vunpack.c.h.b16 %v4623
    %v4837 = vunpack.c.l.b16 %v4624
    %v4838 = vunpack.c.h.b16 %v4624
    %v4839 = vunpack.c.l.b16 %v4625
    %v4840 = vunpack.c.h.b16 %v4625
    %v4841 = vunpack.c.l.b16 %v4626
    %v4842 = vunpack.c.h.b16 %v4626
    %v4843 = vunpack.c.l.b16 %v4627
    %v4844 = vunpack.c.h.b16 %v4627
    %v4845 = vunpack.c.l.b16 %v4628
    %v4846 = vunpack.c.h.b16 %v4628
    %v4847 = vunpack.c.l.b16 %v4629
    %v4848 = vunpack.c.h.b16 %v4629
    %v4849 = vunpack.c.l.b16 %v4630
    %v4850 = vunpack.c.h.b16 %v4630
    %v4851 = vunpack.c.l.b16 %v4631
    %v4852 = vunpack.c.h.b16 %v4631
    %v4853 = vunpack.c.l.b16 %v4632
    %v4854 = vunpack.c.h.b16 %v4632
    %v4855 = vunpack.c.l.b16 %v4633
    %v4856 = vunpack.c.h.b16 %v4633
    %v4857 = vunpack.c.l.b16 %v4634
    %v4858 = vunpack.c.h.b16 %v4634
    %v4859 = vunpack.c.l.b16 %v4635
    %v4860 = vunpack.c.h.b16 %v4635
    %v4861 = vunpack.c.l.b16 %v4636
    %v4862 = vunpack.c.h.b16 %v4636
    %v4863 = vunpack.c.l.b16 %v4637
    %v4864 = vunpack.c.h.b16 %v4637
    %v4865 = vunpack.c.l.b16 %v4638
    %v4866 = vunpack.c.h.b16 %v4638
    %v4867 = vunpack.c.l.b16 %v4639
    %v4868 = vunpack.c.h.b16 %v4639
    %v4869 = vunpack.c.l.b16 %v4640
    %v4870 = vunpack.c.h.b16 %v4640
    %v4871 = vunpack.c.l.b16 %v4641
    %v4872 = vunpack.c.h.b16 %v4641
    %v4873 = vunpack.c.l.b16 %v4642
    %v4874 = vunpack.c.h.b16 %v4642
    %v4875 = vunpack.c.l.b16 %v4643
    %v4876 = vunpack.c.h.b16 %v4643
    %v4877 = vunpack.c.l.b16 %v4644
    %v4878 = vunpack.c.h.b16 %v4644
    %v4879 = vunpack.c.l.b16 %v4645
    %v4880 = vunpack.c.h.b16 %v4645
    %v4881 = vunpack.c.l.b16 %v4646
    %v4882 = vunpack.c.h.b16 %v4646
    %v4883 = vunpack.c.l.b16 %v4647
    %v4884 = vunpack.c.h.b16 %v4647
    %v4885 = vunpack.c.l.b16 %v4648
    %v4886 = vunpack.c.h.b16 %v4648
    %v4887 = vunpack.c.l.b16 %v4649
    %v4888 = vunpack.c.h.b16 %v4649
    %v4889 = vunpack.c.l.b16 %v4650
    %v4890 = vunpack.c.h.b16 %v4650
    %v4891 = vunpack.c.l.b16 %v4651
    %v4892 = vunpack.c.h.b16 %v4651
    %v4893 = vunpack.c.l.b16 %v4652
    %v4894 = vunpack.c.h.b16 %v4652
    %v4895 = vunpack.c.l.b16 %v4653
    %v4896 = vunpack.c.h.b16 %v4653
    %v4897 = vunpack.c.l.b16 %v4654
    %v4898 = vunpack.c.h.b16 %v4654
    %v4899 = vunpack.c.l.b16 %v4655
    %v4900 = vunpack.c.h.b16 %v4655
    %v4901 = vunpack.c.l.b16 %v4656
    %v4902 = vunpack.c.h.b16 %v4656
    %v4903 = vunpack.c.l.b16 %v4657
    %v4904 = vunpack.c.h.b16 %v4657
    %v4905 = vunpack.c.l.b16 %v4658
    %v4906 = vunpack.c.h.b16 %v4658
    %v4907 = vunpack.c.l.b16 %v4659
    %v4908 = vunpack.c.h.b16 %v4659
    %v4909 = vunpack.c.l.b16 %v4660
    %v4910 = vunpack.c.h.b16 %v4660
    %v4911 = vunpack.c.l.b16 %v4661
    %v4912 = vunpack.c.h.b16 %v4661
    %v4913 = vunpack.c.l.b16 %v4662
    %v4914 = vunpack.c.h.b16 %v4662
    %v4915 = vunpack.c.l.b16 %v4663
    %v4916 = vunpack.c.h.b16 %v4663
    %v4917 = vunpack.c.l.b16 %v4664
    %v4918 = vunpack.c.h.b16 %v4664
    %v4919 = vunpack.c.l.b16 %v4665
    %v4920 = vunpack.c.h.b16 %v4665
    %v4921 = vunpack.c.l.b16 %v4666
    %v4922 = vunpack.c.h.b16 %v4666
    %v4923 = vunpack.c.l.b16 %v4667
    %v4924 = vunpack.c.h.b16 %v4667
    %v4925 = vunpack.c.l.b16 %v4668
    %v4926 = vunpack.c.h.b16 %v4668
    %v4927 = vunpack.c.l.b16 %v4669
    %v4928 = vunpack.c.h.b16 %v4669
    %v4929 = vunpack.c.l.b16 %v4670
    %v4930 = vunpack.c.h.b16 %v4670
    %v4931 = vunpack.c.l.b16 %v4671
    %v4932 = vunpack.c.h.b16 %v4671
    %v4933 = vunpack.c.l.b16 %v4672
    %v4934 = vunpack.c.h.b16 %v4672
    %v4935 = vunpack.c.l.b16 %v4673
    %v4936 = vunpack.c.h.b16 %v4673
    %v4937 = vunpack.c.l.b16 %v4674
    %v4938 = vunpack.c.h.b16 %v4674
    %v4939 = vunpack.c.l.b16 %v4675
    %v4940 = vunpack.c.h.b16 %v4675
    %v4941 = vunpack.c.l.b16 %v4676
    %v4942 = vunpack.c.h.b16 %v4676
    %v4943 = vunpack.c.l.b16 %v4677
    %v4944 = vunpack.c.h.b16 %v4677
    %v4945 = vunpack.c.l.b16 %v4678
    %v4946 = vunpack.c.h.b16 %v4678
    %v4947 = vunpack.c.l.b16 %v4679
    %v4948 = vunpack.c.h.b16 %v4679
    %v4949 = vunpack.c.l.b16 %v4680
    %v4950 = vunpack.c.h.b16 %v4680
    %v4951 = vunpack.c.l.b16 %v4681
    %v4952 = vunpack.c.h.b16 %v4681
    %v4953 = vunpack.c.l.b16 %v4682
    %v4954 = vunpack.c.h.b16 %v4682
    %v4955 = vunpack.c.l.b16 %v4683
    %v4956 = vunpack.c.h.b16 %v4683
    %v4957 = vunpack.c.l.b16 %v4684
    %v4958 = vunpack.c.h.b16 %v4684
    %v4959 = vunpack.c.l.b16 %v4685
    %v4960 = vunpack.c.h.b16 %v4685
    %v4961 = vunpack.c.l.b16 %v4686
    %v4962 = vunpack.c.h.b16 %v4686
    %v4963 = vunpack.c.l.b16 %v4687
    %v4964 = vunpack.c.h.b16 %v4687
    %v4965 = vunpack.c.l.b16 %v4688
    %v4966 = vunpack.c.h.b16 %v4688
    %v4967 = vunpack.c.l.b16 %v4689
    %v4968 = vunpack.c.h.b16 %v4689
    %v4969 = vunpack.c.l.b16 %v4690
    %v4970 = vunpack.c.h.b16 %v4690
    %v4971 = vunpack.c.l.b16 %v4691
    %v4972 = vunpack.c.h.b16 %v4691
    %v4973 = vunpack.c.l.b16 %v4692
    %v4974 = vunpack.c.h.b16 %v4692
    %v4975 = vunpack.c.l.b16 %v4693
    %v4976 = vunpack.c.h.b16 %v4693
    %v4977 = vunpack.c.l.b16 %v4694
    %v4978 = vunpack.c.h.b16 %v4694
    %v4979 = vunpack.c.l.b16 %v4695
    %v4980 = vunpack.c.h.b16 %v4695
    %v4981 = vunpack.c.l.b16 %v4696
    %v4982 = vunpack.c.h.b16 %v4696
    %v4983 = vunpack.c.l.b16 %v4697
    %v4984 = vunpack.c.h.b16 %v4697
    %v4985 = vunpack.c.l.b16 %v4698
    %v4986 = vunpack.c.h.b16 %v4698
    %v4987 = vunpack.c.l.b16 %v4699
    %v4988 = vunpack.c.h.b16 %v4699
    %v4989 = vunpack.c.l.b16 %v4700
    %v4990 = vunpack.c.h.b16 %v4700
    %v4991 = vunpack.c.l.b16 %v4701
    %v4992 = vunpack.c.h.b16 %v4701
    %v4993 = vunpack.c.l.b16 %v4702
    %v4994 = vunpack.c.h.b16 %v4702
    %v4995 = vunpack.c.l.b16 %v4703
    %v4996 = vunpack.c.h.b16 %v4703
    %v4997 = vunpack.c.l.b16 %v4704
    %v4998 = vunpack.c.h.b16 %v4704
    %v4999 = vpack.c.b16 %v4811, %v4807
    %v5000 = vpack.c.b16 %v4812, %v4808
    %v5001 = vpack.c.b16 %v4813, %v4809
    %v5002 = vpack.c.b16 %v4814, %v4810
    %v5003 = vpack.c.b16 %v4819, %v4815
    %v5004 = vpack.c.b16 %v4820, %v4816
    %v5005 = vpack.c.b16 %v4821, %v4817
    %v5006 = vpack.c.b16 %v4822, %v4818
    %v5007 = vpack.c.b16 %v4827, %v4823
    %v5008 = vpack.c.b16 %v4828, %v4824
    %v5009 = vpack.c.b16 %v4829, %v4825
    %v5010 = vpack.c.b16 %v4830, %v4826
    %v5011 = vpack.c.b16 %v4835, %v4831
    %v5012 = vpack.c.b16 %v4836, %v4832
    %v5013 = vpack.c.b16 %v4837, %v4833
    %v5014 = vpack.c.b16 %v4838, %v4834
    %v5015 = vpack.c.b16 %v4843, %v4839
    %v5016 = vpack.c.b16 %v4844, %v4840
    %v5017 = vpack.c.b16 %v4845, %v4841
    %v5018 = vpack.c.b16 %v4846, %v4842
    %v5019 = vpack.c.b16 %v4851, %v4847
    %v5020 = vpack.c.b16 %v4852, %v4848
    %v5021 = vpack.c.b16 %v4853, %v4849
    %v5022 = vpack.c.b16 %v4854, %v4850
    %v5023 = vpack.c.b16 %v4859, %v4855
    %v5024 = vpack.c.b16 %v4860, %v4856
    %v5025 = vpack.c.b16 %v4861, %v4857
    %v5026 = vpack.c.b16 %v4862, %v4858
    %v5027 = vpack.c.b16 %v4867, %v4863
    %v5028 = vpack.c.b16 %v4868, %v4864
    %v5029 = vpack.c.b16 %v4869, %v4865
    %v5030 = vpack.c.b16 %v4870, %v4866
    %v5031 = vpack.c.b16 %v4875, %v4871
    %v5032 = vpack.c.b16 %v4876, %v4872
    %v5033 = vpack.c.b16 %v4877, %v4873
    %v5034 = vpack.c.b16 %v4878, %v4874
    %v5035 = vpack.c.b16 %v4883, %v4879
    %v5036 = vpack.c.b16 %v4884, %v4880
    %v5037 = vpack.c.b16 %v4885, %v4881
    %v5038 = vpack.c.b16 %v4886, %v4882
    %v5039 = vpack.c.b16 %v4891, %v4887
    %v5040 = vpack.c.b16 %v4892, %v4888
    %v5041 = vpack.c.b16 %v4893, %v4889
    %v5042 = vpack.c.b16 %v4894, %v4890
    %v5043 = vpack.c.b16 %v4899, %v4895
    %v5044 = vpack.c.b16 %v4900, %v4896
    %v5045 = vpack.c.b16 %v4901, %v4897
    %v5046 = vpack.c.b16 %v4902, %v4898
    %v5047 = vpack.c.b16 %v4907, %v4903
    %v5048 = vpack.c.b16 %v4908, %v4904
    %v5049 = vpack.c.b16 %v4909, %v4905
    %v5050 = vpack.c.b16 %v4910, %v4906
    %v5051 = vpack.c.b16 %v4915, %v4911
    %v5052 = vpack.c.b16 %v4916, %v4912
    %v5053 = vpack.c.b16 %v4917, %v4913
    %v5054 = vpack.c.b16 %v4918, %v4914
    %v5055 = vpack.c.b16 %v4923, %v4919
    %v5056 = vpack.c.b16 %v4924, %v4920
    %v5057 = vpack.c.b16 %v4925, %v4921
    %v5058 = vpack.c.b16 %v4926, %v4922
    %v5059 = vpack.c.b16 %v4931, %v4927
    %v5060 = vpack.c.b16 %v4932, %v4928
    %v5061 = vpack.c.b16 %v4933, %v4929
    %v5062 = vpack.c.b16 %v4934, %v4930
    %v5063 = vpack.c.b16 %v4939, %v4935
    %v5064 = vpack.c.b16 %v4940, %v4936
    %v5065 = vpack.c.b16 %v4941, %v4937
    %v5066 = vpack.c.b16 %v4942, %v4938
    %v5067 = vpack.c.b16 %v4947, %v4943
    %v5068 = vpack.c.b16 %v4948, %v4944
    %v5069 = vpack.c.b16 %v4949, %v4945
    %v5070 = vpack.c.b16 %v4950, %v4946
    %v5071 = vpack.c.b16 %v4955, %v4951
    %v5072 = vpack.c.b16 %v4956, %v4952
    %v5073 = vpack.c.b16 %v4957, %v4953
    %v5074 = vpack.c.b16 %v4958, %v4954
    %v5075 = vpack.c.b16 %v4963, %v4959
    %v5076 = vpack.c.b16 %v4964, %v4960
    %v5077 = vpack.c.b16 %v4965, %v4961
    %v5078 = vpack.c.b16 %v4966, %v4962
    %v5079 = vpack.c.b16 %v4971, %v4967
    %v5080 = vpack.c.b16 %v4972, %v4968
    %v5081 = vpack.c.b16 %v4973, %v4969
    %v5082 = vpack.c.b16 %v4974, %v4970
    %v5083 = vpack.c.b16 %v4979, %v4975
    %v5084 = vpack.c.b16 %v4980, %v4976
    %v5085 = vpack.c.b16 %v4981, %v4977
    %v5086 = vpack.c.b16 %v4982, %v4978
    %v5087 = vpack.c.b16 %v4987, %v4983
    %v5088 = vpack.c.b16 %v4988, %v4984
    %v5089 = vpack.c.b16 %v4989, %v4985
    %v5090 = vpack.c.b16 %v4990, %v4986
    %v5091 = vpack.c.b16 %v4995, %v4991
    %v5092 = vpack.c.b16 %v4996, %v4992
    %v5093 = vpack.c.b16 %v4997, %v4993
    %v5094 = vpack.c.b16 %v4998, %v4994
    %5191 = vmatprep.subr.bf16.mxu0 %v5000
    %5192 = vmatpush1.bf16.msra.mxu0 %v4999
    %5193 = vmatprep.subr.bf16.mxu0 %v5004
    %5194 = vmatpush1.bf16.msra.mxu0 %v5003
    %5195 = vmatprep.subr.bf16.mxu0 %v5008
    %5196 = vmatpush1.bf16.msra.mxu0 %v5007
    %5197 = vmatprep.subr.bf16.mxu0 %v5012
    %5198 = vmatpush1.bf16.msra.mxu0 %v5011
    %5199 = vmatprep.subr.bf16.mxu0 %v5016
    %5200 = vmatpush1.bf16.msra.mxu0 %v5015
    %5201 = vmatprep.subr.bf16.mxu0 %v5020
    %5202 = vmatpush1.bf16.msra.mxu0 %v5019
    %5203 = vmatprep.subr.bf16.mxu0 %v5024
    %5204 = vmatpush1.bf16.msra.mxu0 %v5023
    %5205 = vmatprep.subr.bf16.mxu0 %v5028
    %5206 = vmatpush1.bf16.msra.mxu0 %v5027
    %5207 = vmatprep.subr.bf16.mxu0 %v5032
    %5208 = vmatpush1.bf16.msra.mxu0 %v5031
    %5209 = vmatprep.subr.bf16.mxu0 %v5036
    %5210 = vmatpush1.bf16.msra.mxu0 %v5035
    %5211 = vmatprep.subr.bf16.mxu0 %v5040
    %5212 = vmatpush1.bf16.msra.mxu0 %v5039
    %5213 = vmatprep.subr.bf16.mxu0 %v5044
    %5214 = vmatpush1.bf16.msra.mxu0 %v5043
    %5215 = vmatprep.subr.bf16.mxu0 %v5048
    %5216 = vmatpush1.bf16.msra.mxu0 %v5047
    %5217 = vmatprep.subr.bf16.mxu0 %v5052
    %5218 = vmatpush1.bf16.msra.mxu0 %v5051
    %5219 = vmatprep.subr.bf16.mxu0 %v5056
    %5220 = vmatpush1.bf16.msra.mxu0 %v5055
    %5221 = vmatprep.subr.bf16.mxu0 %v5060
    %5222 = vmatpush1.bf16.msra.mxu0 %v5059
    %5223 = vmatprep.mubr.bf16.mxu0 %v4706
    %5224 = vmatmul.mubr.bf16.gmra.mrb[0].mxu0 %v4705
    %v5225 = vpop.f32.mrb[0].mxu0
    %v5226 = vadd.f32 0.0, %v5225
    %v5227 = vpop.f32.mrb[0].mxu0
    %v5228 = vadd.f32 0.0, %v5227
    %v5229 = vpop.f32.mrb[0].mxu0
    %v5230 = vpop.f32.mrb[0].mxu0
    %5231 = vdwg.mxu0
    %5232 = vmatprep.subr.bf16.mxu0 %v5064
    %5233 = vmatpush1.bf16.msra.mxu0 %v5063
    %5234 = vmatprep.subr.bf16.mxu0 %v5068
    %5235 = vmatpush1.bf16.msra.mxu0 %v5067
    %5236 = vmatprep.subr.bf16.mxu0 %v5072
    %5237 = vmatpush1.bf16.msra.mxu0 %v5071
    %5238 = vmatprep.subr.bf16.mxu0 %v5076
    %5239 = vmatpush1.bf16.msra.mxu0 %v5075
    %5240 = vmatprep.subr.bf16.mxu0 %v5080
    %5241 = vmatpush1.bf16.msra.mxu0 %v5079
    %5242 = vmatprep.subr.bf16.mxu0 %v5084
    %5243 = vmatpush1.bf16.msra.mxu0 %v5083
    %5244 = vmatprep.subr.bf16.mxu0 %v5088
    %5245 = vmatpush1.bf16.msra.mxu0 %v5087
    %5246 = vmatprep.subr.bf16.mxu0 %v5092
    %5247 = vmatpush1.bf16.msra.mxu0 %v5091
    %5248 = vmatprep.subr.bf16.mxu0 0
    %5249 = vmatpush1.bf16.msra.mxu0 0
    %5250 = vmatprep.subr.bf16.mxu0 0
    %5251 = vmatpush1.bf16.msra.mxu0 0
    %5252 = vmatprep.subr.bf16.mxu0 0
    %5253 = vmatpush1.bf16.msra.mxu0 0
    %5254 = vmatprep.subr.bf16.mxu0 0
    %5255 = vmatpush1.bf16.msra.mxu0 0
    %5256 = vmatprep.subr.bf16.mxu0 0
    %5257 = vmatpush1.bf16.msra.mxu0 0
    %5258 = vmatprep.subr.bf16.mxu0 0
    %5259 = vmatpush1.bf16.msra.mxu0 0
    %5260 = vmatprep.subr.bf16.mxu0 0
    %5261 = vmatpush1.bf16.msra.mxu0 0
    %5262 = vmatprep.subr.bf16.mxu0 0
    %5263 = vmatpush1.bf16.msra.mxu0 0
    %5264 = vmatprep.mubr.bf16.mxu0 0
    %5265 = vmatmul.mubr.bf16.gmra.mrb[0].mxu0 %v4707
    %v5266 = vpop.f32.mrb[0].mxu0
    %v5267 = vadd.f32 %v5226, %v5266
    %v5268 = vpop.f32.mrb[0].mxu0
    %v5269 = vadd.f32 %v5228, %v5268
    %v5270 = vpop.f32.mrb[0].mxu0
    %v5271 = vpop.f32.mrb[0].mxu0
    %5272 = vdwg.mxu0
    %5273 = vmatprep.subr.bf16.mxu0 %v5002
    %5274 = vmatpush1.bf16.msra.mxu0 %v5001
    %5275 = vmatprep.subr.bf16.mxu0 %v5006
    %5276 = vmatpush1.bf16.msra.mxu0 %v5005
    %5277 = vmatprep.subr.bf16.mxu0 %v5010
    %5278 = vmatpush1.bf16.msra.mxu0 %v5009
    %5279 = vmatprep.subr.bf16.mxu0 %v5014
    %5280 = vmatpush1.bf16.msra.mxu0 %v5013
    %5281 = vmatprep.subr.bf16.mxu0 %v5018
    %5282 = vmatpush1.bf16.msra.mxu0 %v5017
    %5283 = vmatprep.subr.bf16.mxu0 %v5022
    %5284 = vmatpush1.bf16.msra.mxu0 %v5021
    %5285 = vmatprep.subr.bf16.mxu0 %v5026
    %5286 = vmatpush1.bf16.msra.mxu0 %v5025
    %5287 = vmatprep.subr.bf16.mxu0 %v5030
    %5288 = vmatpush1.bf16.msra.mxu0 %v5029
    %5289 = vmatprep.subr.bf16.mxu0 %v5034
    %5290 = vmatpush1.bf16.msra.mxu0 %v5033
    %5291 = vmatprep.subr.bf16.mxu0 %v5038
    %5292 = vmatpush1.bf16.msra.mxu0 %v5037
    %5293 = vmatprep.subr.bf16.mxu0 %v5042
    %5294 = vmatpush1.bf16.msra.mxu0 %v5041
    %5295 = vmatprep.subr.bf16.mxu0 %v5046
    %5296 = vmatpush1.bf16.msra.mxu0 %v5045
    %5297 = vmatprep.subr.bf16.mxu0 %v5050
    %5298 = vmatpush1.bf16.msra.mxu0 %v5049
    %5299 = vmatprep.subr.bf16.mxu0 %v5054
    %5300 = vmatpush1.bf16.msra.mxu0 %v5053
    %5301 = vmatprep.subr.bf16.mxu0 %v5058
    %5302 = vmatpush1.bf16.msra.mxu0 %v5057
    %5303 = vmatprep.subr.bf16.mxu0 %v5062
    %5304 = vmatpush1.bf16.msra.mxu0 %v5061
    %5305 = vmatprep.mubr.bf16.mxu0 %v4706
    %5306 = vmatmul.mubr.bf16.gmra.mrb[0].mxu0 %v4705
    %v5307 = vpop.f32.mrb[0].mxu0
    %v5308 = vadd.f32 0.0, %v5307
    %v5309 = vpop.f32.mrb[0].mxu0
    %v5310 = vadd.f32 0.0, %v5309
    %v5311 = vpop.f32.mrb[0].mxu0
    %v5312 = vpop.f32.mrb[0].mxu0
    %5313 = vdwg.mxu0
    %5314 = vmatprep.subr.bf16.mxu0 %v5066
    %5315 = vmatpush1.bf16.msra.mxu0 %v5065
    %5316 = vmatprep.subr.bf16.mxu0 %v5070
    %5317 = vmatpush1.bf16.msra.mxu0 %v5069
    %5318 = vmatprep.subr.bf16.mxu0 %v5074
    %5319 = vmatpush1.bf16.msra.mxu0 %v5073
    %5320 = vmatprep.subr.bf16.mxu0 %v5078
    %5321 = vmatpush1.bf16.msra.mxu0 %v5077
    %5322 = vmatprep.subr.bf16.mxu0 %v5082
    %5323 = vmatpush1.bf16.msra.mxu0 %v5081
    %5324 = vmatprep.subr.bf16.mxu0 %v5086
    %5325 = vmatpush1.bf16.msra.mxu0 %v5085
    %5326 = vmatprep.subr.bf16.mxu0 %v5090
    %5327 = vmatpush1.bf16.msra.mxu0 %v5089
    %5328 = vmatprep.subr.bf16.mxu0 %v5094
    %5329 = vmatpush1.bf16.msra.mxu0 %v5093
    %5330 = vmatprep.subr.bf16.mxu0 0
    %5331 = vmatpush1.bf16.msra.mxu0 0
    %5332 = vmatprep.subr.bf16.mxu0 0
    %5333 = vmatpush1.bf16.msra.mxu0 0
    %5334 = vmatprep.subr.bf16.mxu0 0
    %5335 = vmatpush1.bf16.msra.mxu0 0
    %5336 = vmatprep.subr.bf16.mxu0 0
    %5337 = vmatpush1.bf16.msra.mxu0 0
    %5338 = vmatprep.subr.bf16.mxu0 0
    %5339 = vmatpush1.bf16.msra.mxu0 0
    %5340 = vmatprep.subr.bf16.mxu0 0
    %5341 = vmatpush1.bf16.msra.mxu0 0
    %5342 = vmatprep.subr.bf16.mxu0 0
    %5343 = vmatpush1.bf16.msra.mxu0 0
    %5344 = vmatprep.subr.bf16.mxu0 0
    %5345 = vmatpush1.bf16.msra.mxu0 0
    %5346 = vmatprep.mubr.bf16.mxu0 0
    %5347 = vmatmul.mubr.bf16.gmra.mrb[0].mxu0 %v4707
    %v5348 = vpop.f32.mrb[0].mxu0
    %v5349 = vadd.f32 %v5308, %v5348
    %v5350 = vpop.f32.mrb[0].mxu0
    %v5351 = vadd.f32 %v5310, %v5350
    %v5352 = vpop.f32.mrb[0].mxu0
    %v5353 = vpop.f32.mrb[0].mxu0
    %5354 = vdwg.mxu0
    %v5355 = vadd.f32 %v4605, %v5267
    %v5356 = vadd.f32 %v4606, %v5269
    %v5357 = vadd.f32 %v4607, %v5349
    %v5358 = vadd.f32 %v4608, %v5351
    %vm5359 = vcmask 1041408
    %v5360 = vsel %vm5359, %v5355, 0.0
    %v5361 = vrot.slane %v5360, 4
    %v5362 = vadd.f32 %v5360, %v5361
    %v5363 = vrot.slane %v5362, 2
    %v5364 = vadd.f32 %v5362, %v5363
    %v5365 = vrot.slane %v5364, 1
    %v5366 = vadd.f32 %v5364, %v5365
    %v5367 = vsel %vm5359, %v5356, 0.0
    %v5368 = vrot.slane %v5367, 4
    %v5369 = vadd.f32 %v5367, %v5368
    %v5370 = vrot.slane %v5369, 2
    %v5371 = vadd.f32 %v5369, %v5370
    %v5372 = vrot.slane %v5371, 1
    %v5373 = vadd.f32 %v5371, %v5372
    %v5374 = vsel %vm5359, %v5357, 0.0
    %v5375 = vrot.slane %v5374, 4
    %v5376 = vadd.f32 %v5374, %v5375
    %v5377 = vrot.slane %v5376, 2
    %v5378 = vadd.f32 %v5376, %v5377
    %v5379 = vrot.slane %v5378, 1
    %v5380 = vadd.f32 %v5378, %v5379
    %vm5381 = vcmask 123904
    %v5382 = vsel %vm5381, %v5358, 0.0
    %v5383 = vrot.slane %v5382, 4
    %v5384 = vadd.f32 %v5382, %v5383
    %v5385 = vrot.slane %v5384, 2
    %v5386 = vadd.f32 %v5384, %v5385
    %v5387 = vrot.slane %v5386, 1
    %v5388 = vadd.f32 %v5386, %v5387
    %v5389 = vrcp.pop 2.0
    %v5390 = vmul.f32 %v5366, %v5389
    %v5391 = vmul.f32 %v5373, %v5389
    %v5392 = vmul.f32 %v5380, %v5389
    %v5393 = vmul.f32 %v5388, %v5389
    %v5394 = vmul.f32 %v5355, %v5355
    %v5395 = vmul.f32 %v5356, %v5356
    %v5396 = vmul.f32 %v5357, %v5357
    %v5397 = vmul.f32 %v5358, %v5358
    %v5398 = vsel %vm5359, %v5394, 0.0
    %v5399 = vrot.slane %v5398, 4
    %v5400 = vadd.f32 %v5398, %v5399
    %v5401 = vrot.slane %v5400, 2
    %v5402 = vadd.f32 %v5400, %v5401
    %v5403 = vrot.slane %v5402, 1
    %v5404 = vadd.f32 %v5402, %v5403
    %v5405 = vsel %vm5359, %v5395, 0.0
    %v5406 = vrot.slane %v5405, 4
    %v5407 = vadd.f32 %v5405, %v5406
    %v5408 = vrot.slane %v5407, 2
    %v5409 = vadd.f32 %v5407, %v5408
    %v5410 = vrot.slane %v5409, 1
    %v5411 = vadd.f32 %v5409, %v5410
    %v5412 = vsel %vm5359, %v5396, 0.0
    %v5413 = vrot.slane %v5412, 4
    %v5414 = vadd.f32 %v5412, %v5413
    %v5415 = vrot.slane %v5414, 2
    %v5416 = vadd.f32 %v5414, %v5415
    %v5417 = vrot.slane %v5416, 1
    %v5418 = vadd.f32 %v5416, %v5417
    %v5419 = vsel %vm5381, %v5397, 0.0
    %v5420 = vrot.slane %v5419, 4
    %v5421 = vadd.f32 %v5419, %v5420
    %v5422 = vrot.slane %v5421, 2
    %v5423 = vadd.f32 %v5421, %v5422
    %v5424 = vrot.slane %v5423, 1
    %v5425 = vadd.f32 %v5423, %v5424
    %v5426 = vmul.f32 %v5404, %v5389
    %v5427 = vmul.f32 %v5411, %v5389
    %v5428 = vmul.f32 %v5418, %v5389
    %v5429 = vmul.f32 %v5425, %v5389
    %v5430 = vmul.f32 %v5390, %v5390
    %v5431 = vmul.f32 %v5391, %v5391
    %v5432 = vmul.f32 %v5392, %v5392
    %v5433 = vmul.f32 %v5393, %v5393
    %v5434 = vsub.f32 %v5426, %v5430
    %v5435 = vsub.f32 %v5427, %v5431
    %v5436 = vsub.f32 %v5428, %v5432
    %v5437 = vsub.f32 %v5429, %v5433
    %v5438 = vmax.f32 %v5434, 0.0
    %v5439 = vmax.f32 %v5435, 0.0
    %v5440 = vmax.f32 %v5436, 0.0
    %v5441 = vmax.f32 %v5437, 0.0
    %v5442 = vld [vmem:[%s8] sm:$0xf]
    %v5443 = vsub.f32 %v5355, %v5390
    %v5444 = vsub.f32 %v5356, %v5391
    %v5445 = vsub.f32 %v5357, %v5392
    %v5446 = vsub.f32 %v5358, %v5393
    %v5448 = vlaneseq
    %v5449 = vshrl.u32 %v5448, 7
    %v5450 = vsub.s32 0, %v5449
    %v5451 = vrot.slane %v5442, %v5450
    %v5452 = vlaneseq
    %v5453 = vshrl.u32 %v5452, 7
    %v5454 = vsub.s32 1, %v5453
    %v5455 = vrot.slane %v5442, %v5454
    %v5456 = vlaneseq
    %v5457 = vshrl.u32 %v5456, 7
    %v5458 = vsub.s32 2, %v5457
    %v5459 = vrot.slane %v5442, %v5458
    %v5460 = vlaneseq
    %v5461 = vshrl.u32 %v5460, 7
    %v5462 = vsub.s32 3, %v5461
    %v5463 = vrot.slane %v5442, %v5462
    %v5468 = vmul.f32 %v5451, %v5443
    %v5469 = vmul.f32 %v5455, %v5444
    %v5470 = vmul.f32 %v5459, %v5445
    %v5471 = vmul.f32 %v5463, %v5446
    %v5472 = vadd.f32 %v5438, 1e-05
    %v5473 = vadd.f32 %v5439, 1e-05
    %v5474 = vadd.f32 %v5440, 1e-05
    %v5475 = vadd.f32 %v5441, 1e-05
    %v5476 = vrsqrt.pop %v5472
    %v5477 = vrsqrt.pop %v5473
    %v5478 = vrsqrt.pop %v5474
    %v5479 = vrsqrt.pop %v5475
    %v5480 = vmul.f32 %v5468, %v5476
    %v5481 = vmul.f32 %v5469, %v5477
    %v5482 = vmul.f32 %v5470, %v5478
    %v5483 = vmul.f32 %v5471, %v5479
    %v5484 = vld [vmem:[%s9] sm:$0xf]
    %v5486 = vlaneseq
    %v5487 = vshrl.u32 %v5486, 7
    %v5488 = vsub.s32 0, %v5487
    %v5489 = vrot.slane %v5484, %v5488
    %v5490 = vlaneseq
    %v5491 = vshrl.u32 %v5490, 7
    %v5492 = vsub.s32 1, %v5491
    %v5493 = vrot.slane %v5484, %v5492
    %v5494 = vlaneseq
    %v5495 = vshrl.u32 %v5494, 7
    %v5496 = vsub.s32 2, %v5495
    %v5497 = vrot.slane %v5484, %v5496
    %v5498 = vlaneseq
    %v5499 = vshrl.u32 %v5498, 7
    %v5500 = vsub.s32 3, %v5499
    %v5501 = vrot.slane %v5484, %v5500
    %v5506 = vadd.f32 %v5480, %v5489
    %v5507 = vadd.f32 %v5481, %v5493
    %v5508 = vadd.f32 %v5482, %v5497
    %v5509 = vadd.f32 %v5483, %v5501
    %v5510 = vmax.f32 %v5506, 0.0
    %v5511 = vmax.f32 %v5507, 0.0
    %v5512 = vmax.f32 %v5508, 0.0
    %v5513 = vmax.f32 %v5509, 0.0
    %v5514 = vpack.c.bf16 %v5510, %v5510
    %v5515 = vpack.c.bf16 %v5511, %v5511
    %v5516 = vpack.c.bf16 %v5512, %v5512
    %v5517 = vpack.c.bf16 %v5513, %v5513
    %v5518 = vld [vmem:[%s10] sm:$0xf]
    %v5519 = vld [vmem:[%s10 + $0x4] sm:$0xf]
    %v5520 = vld [vmem:[%s10 + $0x8] sm:$0xf]
    %v5521 = vld [vmem:[%s10 + $0xc] sm:$0xf]
    %v5522 = vld [vmem:[%s10 + $0x10] sm:$0xf]
    %v5523 = vld [vmem:[%s10 + $0x14] sm:$0xf]
    %v5524 = vld [vmem:[%s10 + $0x18] sm:$0xf]
    %v5525 = vld [vmem:[%s10 + $0x1c] sm:$0xf]
    %v5526 = vld [vmem:[%s10 + $0x20] sm:$0xf]
    %v5527 = vld [vmem:[%s10 + $0x24] sm:$0xf]
    %v5528 = vld [vmem:[%s10 + $0x28] sm:$0xf]
    %v5529 = vld [vmem:[%s10 + $0x2c] sm:$0xf]
    %v5530 = vld [vmem:[%s10 + $0x30] sm:$0xf]
    %v5531 = vld [vmem:[%s10 + $0x34] sm:$0xf]
    %v5532 = vld [vmem:[%s10 + $0x38] sm:$0xf]
    %v5533 = vld [vmem:[%s10 + $0x3c] sm:$0xf]
    %v5534 = vld [vmem:[%s10 + $0x40] sm:$0xf]
    %v5535 = vld [vmem:[%s10 + $0x44] sm:$0xf]
    %v5536 = vld [vmem:[%s10 + $0x48] sm:$0xf]
    %v5537 = vld [vmem:[%s10 + $0x4c] sm:$0xf]
    %v5538 = vld [vmem:[%s10 + $0x50] sm:$0xf]
    %v5539 = vld [vmem:[%s10 + $0x54] sm:$0xf]
    %v5540 = vld [vmem:[%s10 + $0x58] sm:$0xf]
    %v5541 = vld [vmem:[%s10 + $0x5c] sm:$0xf]
    %v5542 = vld [vmem:[%s10 + $0x60] sm:$0xf]
    %v5543 = vld [vmem:[%s10 + $0x64] sm:$0xf]
    %v5544 = vld [vmem:[%s10 + $0x68] sm:$0xf]
    %v5545 = vld [vmem:[%s10 + $0x6c] sm:$0xf]
    %v5546 = vld [vmem:[%s10 + $0x70] sm:$0xf]
    %v5547 = vld [vmem:[%s10 + $0x74] sm:$0xf]
    %v5548 = vld [vmem:[%s10 + $0x78] sm:$0xf]
    %v5549 = vld [vmem:[%s10 + $0x7c] sm:$0xf]
    %v5550 = vld [vmem:[%s10 + $0x80] sm:$0xf]
    %v5551 = vld [vmem:[%s10 + $0x84] sm:$0xf]
    %v5552 = vld [vmem:[%s10 + $0x88] sm:$0xf]
    %v5553 = vld [vmem:[%s10 + $0x8c] sm:$0xf]
    %v5554 = vld [vmem:[%s10 + $0x90] sm:$0xf]
    %v5555 = vld [vmem:[%s10 + $0x94] sm:$0xf]
    %v5556 = vld [vmem:[%s10 + $0x98] sm:$0xf]
    %v5557 = vld [vmem:[%s10 + $0x9c] sm:$0xf]
    %v5558 = vld [vmem:[%s10 + $0xa0] sm:$0xf]
    %v5559 = vld [vmem:[%s10 + $0xa4] sm:$0xf]
    %v5560 = vld [vmem:[%s10 + $0xa8] sm:$0xf]
    %v5561 = vld [vmem:[%s10 + $0xac] sm:$0xf]
    %v5562 = vld [vmem:[%s10 + $0xb0] sm:$0xf]
    %v5563 = vld [vmem:[%s10 + $0xb4] sm:$0xf]
    %v5564 = vld [vmem:[%s10 + $0xb8] sm:$0xf]
    %v5565 = vld [vmem:[%s10 + $0xbc] sm:$0xf]
    %v5566 = vld [vmem:[%s10 + $0xc0] sm:$0xf]
    %v5567 = vld [vmem:[%s10 + $0xc4] sm:$0xf]
    %v5568 = vld [vmem:[%s11] sm:$0x1]
    %v5570 = vlaneseq
    %v5571 = vshrl.u32 %v5570, 7
    %v5572 = vsub.s32 0, %v5571
    %v5573 = vrot.slane %v5568, %v5572
    %v5625 = vunpack.c.l.b16 %v5518
    %v5626 = vunpack.c.l.b16 %v5519
    %v5627 = vunpack.c.l.b16 %v5520
    %v5628 = vunpack.c.l.b16 %v5521
    %v5629 = vunpack.c.l.b16 %v5522
    %v5630 = vunpack.c.l.b16 %v5523
    %v5631 = vunpack.c.l.b16 %v5524
    %v5632 = vunpack.c.l.b16 %v5525
    %v5633 = vunpack.c.l.b16 %v5526
    %v5634 = vunpack.c.l.b16 %v5527
    %v5635 = vunpack.c.l.b16 %v5528
    %v5636 = vunpack.c.l.b16 %v5529
    %v5637 = vunpack.c.l.b16 %v5530
    %v5638 = vunpack.c.l.b16 %v5531
    %v5639 = vunpack.c.l.b16 %v5532
    %v5640 = vunpack.c.l.b16 %v5533
    %v5641 = vunpack.c.l.b16 %v5534
    %v5642 = vunpack.c.l.b16 %v5535
    %v5643 = vunpack.c.l.b16 %v5536
    %v5644 = vunpack.c.l.b16 %v5537
    %v5645 = vunpack.c.l.b16 %v5538
    %v5646 = vunpack.c.l.b16 %v5539
    %v5647 = vunpack.c.l.b16 %v5540
    %v5648 = vunpack.c.l.b16 %v5541
    %v5649 = vunpack.c.l.b16 %v5542
    %v5650 = vunpack.c.l.b16 %v5543
    %v5651 = vunpack.c.l.b16 %v5544
    %v5652 = vunpack.c.l.b16 %v5545
    %v5653 = vunpack.c.l.b16 %v5546
    %v5654 = vunpack.c.l.b16 %v5547
    %v5655 = vunpack.c.l.b16 %v5548
    %v5656 = vunpack.c.l.b16 %v5549
    %v5657 = vunpack.c.l.b16 %v5550
    %v5658 = vunpack.c.l.b16 %v5551
    %v5659 = vunpack.c.l.b16 %v5552
    %v5660 = vunpack.c.l.b16 %v5553
    %v5661 = vunpack.c.l.b16 %v5554
    %v5662 = vunpack.c.l.b16 %v5555
    %v5663 = vunpack.c.l.b16 %v5556
    %v5664 = vunpack.c.l.b16 %v5557
    %v5665 = vunpack.c.l.b16 %v5558
    %v5666 = vunpack.c.l.b16 %v5559
    %v5667 = vunpack.c.l.b16 %v5560
    %v5668 = vunpack.c.l.b16 %v5561
    %v5669 = vunpack.c.l.b16 %v5562
    %v5670 = vunpack.c.l.b16 %v5563
    %v5671 = vunpack.c.l.b16 %v5564
    %v5672 = vunpack.c.l.b16 %v5565
    %v5673 = vunpack.c.l.b16 %v5566
    %v5674 = vunpack.c.l.b16 %v5567
    %v5675 = vpack.c.b16 %v5626, %v5625
    %v5676 = vpack.c.b16 %v5628, %v5627
    %v5677 = vpack.c.b16 %v5630, %v5629
    %v5678 = vpack.c.b16 %v5632, %v5631
    %v5679 = vpack.c.b16 %v5634, %v5633
    %v5680 = vpack.c.b16 %v5636, %v5635
    %v5681 = vpack.c.b16 %v5638, %v5637
    %v5682 = vpack.c.b16 %v5640, %v5639
    %v5683 = vpack.c.b16 %v5642, %v5641
    %v5684 = vpack.c.b16 %v5644, %v5643
    %v5685 = vpack.c.b16 %v5646, %v5645
    %v5686 = vpack.c.b16 %v5648, %v5647
    %v5687 = vpack.c.b16 %v5650, %v5649
    %v5688 = vpack.c.b16 %v5652, %v5651
    %v5689 = vpack.c.b16 %v5654, %v5653
    %v5690 = vpack.c.b16 %v5656, %v5655
    %v5691 = vpack.c.b16 %v5658, %v5657
    %v5692 = vpack.c.b16 %v5660, %v5659
    %v5693 = vpack.c.b16 %v5662, %v5661
    %v5694 = vpack.c.b16 %v5664, %v5663
    %v5695 = vpack.c.b16 %v5666, %v5665
    %v5696 = vpack.c.b16 %v5668, %v5667
    %v5697 = vpack.c.b16 %v5670, %v5669
    %v5698 = vpack.c.b16 %v5672, %v5671
    %v5699 = vpack.c.b16 %v5674, %v5673
    %vm5725 = vcmask 130048
    %v5727 = vsel %vm5725, %v5517, 0
    %5729 = vmatprep.subr.bf16.mxu0 0
    %5730 = vmatpush1.bf16.msra.mxu0 %v5675
    %5731 = vmatprep.subr.bf16.mxu0 0
    %5732 = vmatpush1.bf16.msra.mxu0 %v5676
    %5733 = vmatprep.subr.bf16.mxu0 0
    %5734 = vmatpush1.bf16.msra.mxu0 %v5677
    %5735 = vmatprep.subr.bf16.mxu0 0
    %5736 = vmatpush1.bf16.msra.mxu0 %v5678
    %5737 = vmatprep.subr.bf16.mxu0 0
    %5738 = vmatpush1.bf16.msra.mxu0 %v5679
    %5739 = vmatprep.subr.bf16.mxu0 0
    %5740 = vmatpush1.bf16.msra.mxu0 %v5680
    %5741 = vmatprep.subr.bf16.mxu0 0
    %5742 = vmatpush1.bf16.msra.mxu0 %v5681
    %5743 = vmatprep.subr.bf16.mxu0 0
    %5744 = vmatpush1.bf16.msra.mxu0 %v5682
    %5745 = vmatprep.subr.bf16.mxu0 0
    %5746 = vmatpush1.bf16.msra.mxu0 %v5683
    %5747 = vmatprep.subr.bf16.mxu0 0
    %5748 = vmatpush1.bf16.msra.mxu0 %v5684
    %5749 = vmatprep.subr.bf16.mxu0 0
    %5750 = vmatpush1.bf16.msra.mxu0 %v5685
    %5751 = vmatprep.subr.bf16.mxu0 0
    %5752 = vmatpush1.bf16.msra.mxu0 %v5686
    %5753 = vmatprep.subr.bf16.mxu0 0
    %5754 = vmatpush1.bf16.msra.mxu0 %v5687
    %5755 = vmatprep.subr.bf16.mxu0 0
    %5756 = vmatpush1.bf16.msra.mxu0 %v5688
    %5757 = vmatprep.subr.bf16.mxu0 0
    %5758 = vmatpush1.bf16.msra.mxu0 %v5689
    %5759 = vmatprep.subr.bf16.mxu0 0
    %5760 = vmatpush1.bf16.msra.mxu0 %v5690
    %5761 = vmatprep.mubr.bf16.mxu0 %v5515
    %5762 = vmatmul.mubr.bf16.gmra.mrb[0].mxu0 %v5514
    %v5763 = vpop.f32.mrb[0].mxu0
    %v5764 = vadd.f32 %v5573, %v5763
    %v5765 = vpop.f32.mrb[0].mxu0
    %v5766 = vpop.f32.mrb[0].mxu0
    %v5767 = vpop.f32.mrb[0].mxu0
    %5768 = vdwg.mxu0
    %5769 = vmatprep.subr.bf16.mxu0 0
    %5770 = vmatpush1.bf16.msra.mxu0 %v5691
    %5771 = vmatprep.subr.bf16.mxu0 0
    %5772 = vmatpush1.bf16.msra.mxu0 %v5692
    %5773 = vmatprep.subr.bf16.mxu0 0
    %5774 = vmatpush1.bf16.msra.mxu0 %v5693
    %5775 = vmatprep.subr.bf16.mxu0 0
    %5776 = vmatpush1.bf16.msra.mxu0 %v5694
    %5777 = vmatprep.subr.bf16.mxu0 0
    %5778 = vmatpush1.bf16.msra.mxu0 %v5695
    %5779 = vmatprep.subr.bf16.mxu0 0
    %5780 = vmatpush1.bf16.msra.mxu0 %v5696
    %5781 = vmatprep.subr.bf16.mxu0 0
    %5782 = vmatpush1.bf16.msra.mxu0 %v5697
    %5783 = vmatprep.subr.bf16.mxu0 0
    %5784 = vmatpush1.bf16.msra.mxu0 %v5698
    %5785 = vmatprep.subr.bf16.mxu0 0
    %5786 = vmatpush1.bf16.msra.mxu0 %v5699
    %5787 = vmatprep.subr.bf16.mxu0 0
    %5788 = vmatpush1.bf16.msra.mxu0 0
    %5789 = vmatprep.subr.bf16.mxu0 0
    %5790 = vmatpush1.bf16.msra.mxu0 0
    %5791 = vmatprep.subr.bf16.mxu0 0
    %5792 = vmatpush1.bf16.msra.mxu0 0
    %5793 = vmatprep.subr.bf16.mxu0 0
    %5794 = vmatpush1.bf16.msra.mxu0 0
    %5795 = vmatprep.subr.bf16.mxu0 0
    %5796 = vmatpush1.bf16.msra.mxu0 0
    %5797 = vmatprep.subr.bf16.mxu0 0
    %5798 = vmatpush1.bf16.msra.mxu0 0
    %5799 = vmatprep.subr.bf16.mxu0 0
    %5800 = vmatpush1.bf16.msra.mxu0 0
    %5801 = vmatprep.mubr.bf16.mxu0 %v5727
    %5802 = vmatmul.mubr.bf16.gmra.mrb[0].mxu0 %v5516
    %v5803 = vpop.f32.mrb[0].mxu0
    %v5804 = vadd.f32 %v5764, %v5803
    %v5805 = vpop.f32.mrb[0].mxu0
    %v5806 = vpop.f32.mrb[0].mxu0
    %v5807 = vpop.f32.mrb[0].mxu0
    %5808 = vdwg.mxu0
    %v5809 = vmax.f32 %v5804, 0.0
    %v5810 = vpack.c.bf16 %v5809, %v5809
    %v5811 = vld [vmem:[%s12] sm:$0xf]
    %v5812 = vld [vmem:[%s12 + $0x4] sm:$0xf]
    %v5813 = vld [vmem:[%s12 + $0x8] sm:$0xf]
    %v5814 = vld [vmem:[%s12 + $0xc] sm:$0xf]
    %v5815 = vld [vmem:[%s12 + $0x10] sm:$0xf]
    %v5816 = vld [vmem:[%s12 + $0x14] sm:$0xf]
    %v5817 = vld [vmem:[%s12 + $0x18] sm:$0xf]
    %v5818 = vld [vmem:[%s12 + $0x1c] sm:$0xf]
    %v5819 = vld [vmem:[%s12 + $0x20] sm:$0xf]
    %v5820 = vld [vmem:[%s12 + $0x24] sm:$0xf]
    %v5821 = vld [vmem:[%s12 + $0x28] sm:$0xf]
    %v5822 = vld [vmem:[%s12 + $0x2c] sm:$0xf]
    %v5823 = vld [vmem:[%s12 + $0x30] sm:$0xf]
    %v5824 = vld [vmem:[%s12 + $0x34] sm:$0xf]
    %v5825 = vld [vmem:[%s12 + $0x38] sm:$0xf]
    %v5826 = vld [vmem:[%s12 + $0x3c] sm:$0xf]
    %v5827 = vld [vmem:[%s13] sm:$0x1]
    %v5829 = vlaneseq
    %v5830 = vshrl.u32 %v5829, 7
    %v5831 = vsub.s32 0, %v5830
    %v5832 = vrot.slane %v5827, %v5831
    %v5850 = vunpack.c.l.b16 %v5811
    %v5851 = vunpack.c.l.b16 %v5812
    %v5852 = vunpack.c.l.b16 %v5813
    %v5853 = vunpack.c.l.b16 %v5814
    %v5854 = vunpack.c.l.b16 %v5815
    %v5855 = vunpack.c.l.b16 %v5816
    %v5856 = vunpack.c.l.b16 %v5817
    %v5857 = vunpack.c.l.b16 %v5818
    %v5858 = vunpack.c.l.b16 %v5819
    %v5859 = vunpack.c.l.b16 %v5820
    %v5860 = vunpack.c.l.b16 %v5821
    %v5861 = vunpack.c.l.b16 %v5822
    %v5862 = vunpack.c.l.b16 %v5823
    %v5863 = vunpack.c.l.b16 %v5824
    %v5864 = vunpack.c.l.b16 %v5825
    %v5865 = vunpack.c.l.b16 %v5826
    %v5866 = vpack.c.b16 %v5851, %v5850
    %v5867 = vpack.c.b16 %v5853, %v5852
    %v5868 = vpack.c.b16 %v5855, %v5854
    %v5869 = vpack.c.b16 %v5857, %v5856
    %v5870 = vpack.c.b16 %v5859, %v5858
    %v5871 = vpack.c.b16 %v5861, %v5860
    %v5872 = vpack.c.b16 %v5863, %v5862
    %v5873 = vpack.c.b16 %v5865, %v5864
    %5882 = vmatprep.subr.bf16.mxu0 0
    %5883 = vmatpush1.bf16.msra.mxu0 %v5866
    %5884 = vmatprep.subr.bf16.mxu0 0
    %5885 = vmatpush1.bf16.msra.mxu0 %v5867
    %5886 = vmatprep.subr.bf16.mxu0 0
    %5887 = vmatpush1.bf16.msra.mxu0 %v5868
    %5888 = vmatprep.subr.bf16.mxu0 0
    %5889 = vmatpush1.bf16.msra.mxu0 %v5869
    %5890 = vmatprep.subr.bf16.mxu0 0
    %5891 = vmatpush1.bf16.msra.mxu0 %v5870
    %5892 = vmatprep.subr.bf16.mxu0 0
    %5893 = vmatpush1.bf16.msra.mxu0 %v5871
    %5894 = vmatprep.subr.bf16.mxu0 0
    %5895 = vmatpush1.bf16.msra.mxu0 %v5872
    %5896 = vmatprep.subr.bf16.mxu0 0
    %5897 = vmatpush1.bf16.msra.mxu0 %v5873
    %5898 = vmatprep.subr.bf16.mxu0 0
    %5899 = vmatpush1.bf16.msra.mxu0 0
    %5900 = vmatprep.subr.bf16.mxu0 0
    %5901 = vmatpush1.bf16.msra.mxu0 0
    %5902 = vmatprep.subr.bf16.mxu0 0
    %5903 = vmatpush1.bf16.msra.mxu0 0
    %5904 = vmatprep.subr.bf16.mxu0 0
    %5905 = vmatpush1.bf16.msra.mxu0 0
    %5906 = vmatprep.subr.bf16.mxu0 0
    %5907 = vmatpush1.bf16.msra.mxu0 0
    %5908 = vmatprep.subr.bf16.mxu0 0
    %5909 = vmatpush1.bf16.msra.mxu0 0
    %5910 = vmatprep.subr.bf16.mxu0 0
    %5911 = vmatpush1.bf16.msra.mxu0 0
    %5912 = vmatprep.subr.bf16.mxu0 0
    %5913 = vmatpush1.bf16.msra.mxu0 0
    %5914 = vmatprep.mubr.bf16.mxu0 0
    %5915 = vmatmul.mubr.bf16.gmra.mrb[0].mxu0 %v5810
    %v5916 = vpop.f32.mrb[0].mxu0
    %v5917 = vadd.f32 %v5832, %v5916
    %v5918 = vpop.f32.mrb[0].mxu0
    %v5919 = vpop.f32.mrb[0].mxu0
    %v5920 = vpop.f32.mrb[0].mxu0
    %5921 = vdwg.mxu0
    %v5922 = vmax.f32 %v5917, 0.0
    %v5923 = vpack.c.bf16 %v5922, %v5922
    %v5924 = vld [vmem:[%s14] sm:$0xf]
    %v5925 = vld [vmem:[%s14 + $0x4] sm:$0xf]
    %v5926 = vld [vmem:[%s14 + $0x8] sm:$0xf]
    %v5927 = vld [vmem:[%s14 + $0xc] sm:$0xf]
    %v5928 = vld [vmem:[%s14 + $0x10] sm:$0xf]
    %v5929 = vld [vmem:[%s14 + $0x14] sm:$0xf]
    %v5930 = vld [vmem:[%s14 + $0x18] sm:$0xf]
    %v5931 = vld [vmem:[%s14 + $0x1c] sm:$0xf]
    %v5932 = vld [vmem:[%s14 + $0x20] sm:$0xf]
    %v5933 = vld [vmem:[%s14 + $0x24] sm:$0xf]
    %v5934 = vld [vmem:[%s14 + $0x28] sm:$0xf]
    %v5935 = vld [vmem:[%s14 + $0x2c] sm:$0xf]
    %v5936 = vld [vmem:[%s14 + $0x30] sm:$0xf]
    %v5937 = vld [vmem:[%s14 + $0x34] sm:$0xf]
    %v5938 = vld [vmem:[%s14 + $0x38] sm:$0xf]
    %v5939 = vld [vmem:[%s14 + $0x3c] sm:$0xf]
    %v5940 = vld [vmem:[%s15] sm:$0x1]
    %v5942 = vlaneseq
    %v5943 = vshrl.u32 %v5942, 7
    %v5944 = vsub.s32 0, %v5943
    %v5945 = vrot.slane %v5940, %v5944
    %v5963 = vunpack.c.l.b16 %v5924
    %v5964 = vunpack.c.l.b16 %v5925
    %v5965 = vunpack.c.l.b16 %v5926
    %v5966 = vunpack.c.l.b16 %v5927
    %v5967 = vunpack.c.l.b16 %v5928
    %v5968 = vunpack.c.l.b16 %v5929
    %v5969 = vunpack.c.l.b16 %v5930
    %v5970 = vunpack.c.l.b16 %v5931
    %v5971 = vunpack.c.l.b16 %v5932
    %v5972 = vunpack.c.l.b16 %v5933
    %v5973 = vunpack.c.l.b16 %v5934
    %v5974 = vunpack.c.l.b16 %v5935
    %v5975 = vunpack.c.l.b16 %v5936
    %v5976 = vunpack.c.l.b16 %v5937
    %v5977 = vunpack.c.l.b16 %v5938
    %v5978 = vunpack.c.l.b16 %v5939
    %v5979 = vpack.c.b16 %v5964, %v5963
    %v5980 = vpack.c.b16 %v5966, %v5965
    %v5981 = vpack.c.b16 %v5968, %v5967
    %v5982 = vpack.c.b16 %v5970, %v5969
    %v5983 = vpack.c.b16 %v5972, %v5971
    %v5984 = vpack.c.b16 %v5974, %v5973
    %v5985 = vpack.c.b16 %v5976, %v5975
    %v5986 = vpack.c.b16 %v5978, %v5977
    %5995 = vmatprep.subr.bf16.mxu0 0
    %5996 = vmatpush1.bf16.msra.mxu0 %v5979
    %5997 = vmatprep.subr.bf16.mxu0 0
    %5998 = vmatpush1.bf16.msra.mxu0 %v5980
    %5999 = vmatprep.subr.bf16.mxu0 0
    %6000 = vmatpush1.bf16.msra.mxu0 %v5981
    %6001 = vmatprep.subr.bf16.mxu0 0
    %6002 = vmatpush1.bf16.msra.mxu0 %v5982
    %6003 = vmatprep.subr.bf16.mxu0 0
    %6004 = vmatpush1.bf16.msra.mxu0 %v5983
    %6005 = vmatprep.subr.bf16.mxu0 0
    %6006 = vmatpush1.bf16.msra.mxu0 %v5984
    %6007 = vmatprep.subr.bf16.mxu0 0
    %6008 = vmatpush1.bf16.msra.mxu0 %v5985
    %6009 = vmatprep.subr.bf16.mxu0 0
    %6010 = vmatpush1.bf16.msra.mxu0 %v5986
    %6011 = vmatprep.subr.bf16.mxu0 0
    %6012 = vmatpush1.bf16.msra.mxu0 0
    %6013 = vmatprep.subr.bf16.mxu0 0
    %6014 = vmatpush1.bf16.msra.mxu0 0
    %6015 = vmatprep.subr.bf16.mxu0 0
    %6016 = vmatpush1.bf16.msra.mxu0 0
    %6017 = vmatprep.subr.bf16.mxu0 0
    %6018 = vmatpush1.bf16.msra.mxu0 0
    %6019 = vmatprep.subr.bf16.mxu0 0
    %6020 = vmatpush1.bf16.msra.mxu0 0
    %6021 = vmatprep.subr.bf16.mxu0 0
    %6022 = vmatpush1.bf16.msra.mxu0 0
    %6023 = vmatprep.subr.bf16.mxu0 0
    %6024 = vmatpush1.bf16.msra.mxu0 0
    %6025 = vmatprep.subr.bf16.mxu0 0
    %6026 = vmatpush1.bf16.msra.mxu0 0
    %6027 = vmatprep.mubr.bf16.mxu0 0
    %6028 = vmatmul.mubr.bf16.gmra.mrb[0].mxu0 %v5923
    %v6029 = vpop.f32.mrb[0].mxu0
    %v6030 = vadd.f32 %v5945, %v6029
    %v6031 = vpop.f32.mrb[0].mxu0
    %v6032 = vpop.f32.mrb[0].mxu0
    %v6033 = vpop.f32.mrb[0].mxu0
    %6034 = vdwg.mxu0
    %6035 = vst [vmem:[#allocation2] sm:$0x3] %v6030
    // Predicated region
    $region66: #{forward.5} parent=1 // pred_check
      _
    $region67: #{forward.5} parent=1 // pred_check_branch
      %6037 = sbr.rel (0) target = $region69
    $region68: #{forward.5} parent=1 // pred_region
      %s6039 = ssub.s32 32, 32
      %6040 = vsyncadd [#allocation3], %s6039
      %s6042 = sshll.u32 [#allocation2], 4
      %s6043 = int_to_ptr.vmem [resolvable:$true] %s6042
      %6045 = dma.vmem_to_hbm [thread:$0]  %s6043, 32, %s16, [#allocation3]
    $region69: #{forward.5} parent=1 // pred_fallthru
      _
    // Predicated region
    $region70: #{forward.5} parent=1 // pred_check
      _
    $region71: #{forward.5} parent=1 // pred_check_branch
      %6047 = sbr.rel (0) target = $region73
    $region72: #{forward.5} parent=1 // pred_region
      %6048 = dma.done [#allocation3], 32
    $region73: #{forward.5} parent=1 // pred_fallthru
      _
    %6049 = vsyncpa [#allocation3], 1

</llo_original>
